<compile_context>
chip_gen: v7x
topology: tpu7x:2x2x1
jax: 0.10.0
libtpu: 0.0.40
codegen_flags: <defaults>
</compile_context>

<pallas_src>
import functools

import jax
import jax.numpy as jnp
import numpy as np
from jax.experimental import pallas as pl
from jax.experimental.pallas import tpu as pltpu

LANE = 128   # lane width: channel dims padded to this
_WPAD = 16   # sublane-aligned (for bf16 packing) left halo offset in scratch


def _rup(n, m):
    return ((n + m - 1) // m) * m


@functools.lru_cache(maxsize=None)
def _vmem_limit_bytes():
    """Generation-aware scoped-VMEM limit: ~3/4 of physical VMEM, capped at
    96 MiB (v5e/v6e have 128 MiB per core, v7x has 64 MiB)."""
    cap = None
    try:
        info = pltpu.get_tpu_info()
        for name in ("vmem_capacity_bytes", "vmem_size_bytes", "vmem_bytes"):
            v = getattr(info, name, None)
            if v:
                cap = int(v)
                break
    except Exception:
        cap = None
    if cap is None:
        return 48 * 1024 * 1024        # safe on every generation
    return min((cap * 3) // 4, 96 * 1024 * 1024)


def _choose_tm(m, target=1024):
    """Pick an M-tile that divides m when possible (no HBM pad/slice round
    trip between stages) and gives >= 2 grid steps (both TCs get work)."""
    best = 0
    t = 8
    limit = min(m // 2, target)
    while t <= limit:
        if m % t == 0:
            best = t
        t += 8
    if best >= 64:
        return best
    # awkward m: pad rows to a multiple of 8 and use up to `target` per tile
    return min(_rup(m, 8), target)


def _mish(x):
    # mish(x) = x * tanh(softplus(x)) = x * ((1+e^x)^2 - 1) / ((1+e^x)^2 + 1)
    # One EUP exp + one EUP approx reciprocal instead of exp + log1p + tanh
    # + exact divide.  Clamping the exp argument keeps it finite; for x >= 20
    # the ratio is 1.0 at f32 precision so the clamp is exact.
    e = jnp.exp(jnp.minimum(x, 20.0))
    n = (1.0 + e) * (1.0 + e)
    return x * (n - 1.0) * pl.reciprocal(n + 1.0, approx=True)


# --------------------------------------------------------------------------
# Kernel A: M-tiled 1x1 conv (channel matmul, bf16 operands) + folded BN + Mish
# --------------------------------------------------------------------------
def _conv1x1_kernel(x_ref, w_ref, s_ref, b_ref, o_ref):
    y = jnp.dot(x_ref[...].astype(jnp.bfloat16), w_ref[...],
                preferred_element_type=jnp.float32)
    o_ref[...] = _mish(y * s_ref[...] + b_ref[...]).astype(o_ref.dtype)


def conv1x1_bn_mish(x2d, w, scale, bias, tm):
    m, ci = x2d.shape
    co = w.shape[1]
    return pl.pallas_call(
        _conv1x1_kernel,
        grid=(m // tm,),
        out_shape=jax.ShapeDtypeStruct((m, co), jnp.float32),
        in_specs=[
            pl.BlockSpec((tm, ci), lambda i: (i, 0)),
            pl.BlockSpec((ci, co), lambda i: (0, 0)),
            pl.BlockSpec((1, co), lambda i: (0, 0)),
            pl.BlockSpec((1, co), lambda i: (0, 0)),
        ],
        out_specs=pl.BlockSpec((tm, co), lambda i: (i, 0)),
        compiler_params=pltpu.CompilerParams(
            dimension_semantics=("parallel",),
            vmem_limit_bytes=_vmem_limit_bytes()),
    )(x2d, w, scale.reshape(1, co), bias.reshape(1, co))


# --------------------------------------------------------------------------
# Kernel B: fused ResBlock (one pallas_call per batch plane)
#   t = mish(bn(h @ wa))           (1x1 ConvModule, never leaves VMEM)
#   y = mish(bn(conv3x3(t))) + h   (3x3 ConvModule + shortcut)
# 3x3 conv: bf16 zero-halo built in a VMEM scratch (only the halo ring is
# zeroed), contraction = 9 accumulated (H*W,C)@(C,C) bf16 matmuls.
# --------------------------------------------------------------------------
def _resblock_kernel(h_ref, wa_ref, sa_ref, ba_ref, wb_ref, sb_ref, bb_ref,
                     o_ref, xp_ref, *, H, W):
    C = h_ref.shape[-1]
    h = h_ref[...].reshape(H * W, C)

    # 1x1 ConvModule (conv + folded BN + Mish) -- stays in VMEM.
    t = _mish(jnp.dot(h.astype(jnp.bfloat16), wa_ref[...],
                      preferred_element_type=jnp.float32)
              * sa_ref[...] + ba_ref[...])

    # Zero ONLY the halo ring that the shifted reads below actually touch
    # (the interior is fully overwritten every grid step, so no full-scratch
    # zero-fill -- that store pass competed with the scarce vst slot).
    zrow = jnp.zeros((1, W + 2, C), xp_ref.dtype)
    zcol = jnp.zeros((H, 1, C), xp_ref.dtype)
    xp_ref[0:1, _WPAD - 1:_WPAD + W + 1, :] = zrow
    xp_ref[H + 1:H + 2, _WPAD - 1:_WPAD + W + 1, :] = zrow
    xp_ref[1:H + 1, _WPAD - 1:_WPAD, :] = zcol
    xp_ref[1:H + 1, _WPAD + W:_WPAD + W + 1, :] = zcol
    # Interior at a sublane-aligned offset (aligned store, bf16 operand).
    xp_ref[1:H + 1, _WPAD:_WPAD + W, :] = \
        t.astype(xp_ref.dtype).reshape(H, W, C)

    # 3x3 conv = 9 accumulated (H*W,C)@(C,C) matmuls on shifted views; no
    # lane-axis concatenate / fresh H*W x 3C buffer is materialized.
    acc = jnp.zeros((H * W, C), jnp.float32)
    for dy in range(3):
        for dx in range(3):
            win = xp_ref[dy:dy + H,
                         _WPAD - 1 + dx:_WPAD - 1 + dx + W, :]
            acc = acc + jnp.dot(win.reshape(H * W, C), wb_ref[dy, dx],
                                preferred_element_type=jnp.float32)

    # folded BN + Mish + residual shortcut (all f32)
    y = _mish(acc * sb_ref[...] + bb_ref[...]) + h
    o_ref[...] = y.reshape(H, W, C).astype(o_ref.dtype)


def resblock_fused(h, wa, sa, ba, wb, sb, bb):
    # h: (N, H, W, C) NHWC, C lane-padded; wb: (3, 3, C, C) bf16
    N, H, W, C = h.shape
    return pl.pallas_call(
        functools.partial(_resblock_kernel, H=H, W=W),
        grid=(N,),
        out_shape=jax.ShapeDtypeStruct((N, H, W, C), jnp.float32),
        in_specs=[
            pl.BlockSpec((pl.Squeezed(), H, W, C), lambda n: (n, 0, 0, 0)),
            pl.BlockSpec((C, C), lambda n: (0, 0)),
            pl.BlockSpec((1, C), lambda n: (0, 0)),
            pl.BlockSpec((1, C), lambda n: (0, 0)),
            pl.BlockSpec((3, 3, C, C), lambda n: (0, 0, 0, 0)),
            pl.BlockSpec((1, C), lambda n: (0, 0)),
            pl.BlockSpec((1, C), lambda n: (0, 0)),
        ],
        out_specs=pl.BlockSpec((pl.Squeezed(), H, W, C),
                               lambda n: (n, 0, 0, 0)),
        scratch_shapes=[pltpu.VMEM((H + 2, W + _WPAD + 1, C), jnp.bfloat16)],
        compiler_params=pltpu.CompilerParams(
            dimension_semantics=("parallel",),
            vmem_limit_bytes=_vmem_limit_bytes()),
    )(h, wa, sa.reshape(1, C), ba.reshape(1, C), wb,
      sb.reshape(1, C), bb.reshape(1, C))


# --------------------------------------------------------------------------
# Kernel C: fused tail
#   out = mish(bn4( [mish(bn_a(h @ w3)) || mish(bn_b(x @ w2))] @ w4 ))
# which equals conv4(mish(bn(cat(conv3(h), conv2(x))))) without ever writing
# y1, y2 or the concat to HBM.  The final dot has K = 2*Hp (one full MXU pass
# on the 256-deep v6e/v7x MXU).
# --------------------------------------------------------------------------
def _tail_kernel(h_ref, x_ref, w3_ref, w2_ref, sa_ref, ba_ref, sb_ref, bb_ref,
                 w4_ref, s4_ref, b4_ref, o_ref):
    z1 = _mish(jnp.dot(h_ref[...].astype(jnp.bfloat16), w3_ref[...],
                       preferred_element_type=jnp.float32)
               * sa_ref[...] + ba_ref[...])
    z2 = _mish(jnp.dot(x_ref[...].astype(jnp.bfloat16), w2_ref[...],
                       preferred_element_type=jnp.float32)
               * sb_ref[...] + bb_ref[...])
    z = jnp.concatenate([z1, z2], axis=-1).astype(jnp.bfloat16)
    y = jnp.dot(z, w4_ref[...], preferred_element_type=jnp.float32)
    o_ref[...] = _mish(y * s4_ref[...] + b4_ref[...]).astype(o_ref.dtype)


def tail_fused(h2d, x2d, w3, w2, sbn_a, bbn_a, sbn_b, bbn_b, w4, s4, b4, tm):
    m, hc = h2d.shape
    ci = x2d.shape[1]
    co = w4.shape[1]
    const = lambda i: (0, 0)
    return pl.pallas_call(
        _tail_kernel,
        grid=(m // tm,),
        out_shape=jax.ShapeDtypeStruct((m, co), jnp.float32),
        in_specs=[
            pl.BlockSpec((tm, hc), lambda i: (i, 0)),
            pl.BlockSpec((tm, ci), lambda i: (i, 0)),
            pl.BlockSpec((hc, hc), const),
            pl.BlockSpec((ci, hc), const),
            pl.BlockSpec((1, hc), const),
            pl.BlockSpec((1, hc), const),
            pl.BlockSpec((1, hc), const),
            pl.BlockSpec((1, hc), const),
            pl.BlockSpec((2 * hc, co), const),
            pl.BlockSpec((1, co), const),
            pl.BlockSpec((1, co), const),
        ],
        out_specs=pl.BlockSpec((tm, co), lambda i: (i, 0)),
        compiler_params=pltpu.CompilerParams(
            dimension_semantics=("parallel",),
            vmem_limit_bytes=_vmem_limit_bytes()),
    )(h2d, x2d, w3, w2, sbn_a.reshape(1, hc), bbn_a.reshape(1, hc),
      sbn_b.reshape(1, hc), bbn_b.reshape(1, hc), w4,
      s4.reshape(1, co), b4.reshape(1, co))


# --------------------------------------------------------------------------
# Parameter padding to the lane-dense internal layout (weights -> bf16)
# --------------------------------------------------------------------------
def pad_params_for_pallas(params, cin, cout):
    hidden = params["w1"].shape[1]
    Cp, Hp, Op = _rup(cin, LANE), _rup(hidden, LANE), _rup(cout, LANE)

    def pw(w, r, c):   # pad 2-D weight, cast once to bf16 (MXU operand)
        return jnp.pad(
            w, ((0, r - w.shape[0]), (0, c - w.shape[1]))).astype(jnp.bfloat16)

    def pv(v, c):      # per-channel scale/bias stay f32 (epilogue precision)
        return jnp.pad(v, (0, c - v.shape[0]))

    pp = {"Cp": Cp, "Hp": Hp, "Op": Op}
    pp["w1"] = pw(params["w1"], Cp, Hp)
    pp["s1"] = pv(params["s1"], Hp)
    pp["b1"] = pv(params["b1"], Hp)
    res = []
    for p in params["res"]:
        wb = jnp.pad(p["wb"], ((0, 0), (0, 0),
                               (0, Hp - hidden), (0, Hp - hidden)))
        res.append({
            "wa": pw(p["wa"], Hp, Hp),
            "sa": pv(p["sa"], Hp),
            "ba": pv(p["ba"], Hp),
            "wb": wb.astype(jnp.bfloat16),            # (3, 3, Hp, Hp)
            "sb": pv(p["sb"], Hp),
            "bb": pv(p["bb"], Hp),
        })
    pp["res"] = res
    pp["w3"] = pw(params["w3"], Hp, Hp)
    pp["w2"] = pw(params["w2"], Cp, Hp)
    # bn over the concat, split per channel segment (y1 first, y2 second)
    pp["sbn_a"] = pv(params["sbn"][:hidden], Hp)
    pp["bbn_a"] = pv(params["bbn"][:hidden], Hp)
    pp["sbn_b"] = pv(params["sbn"][hidden:], Hp)
    pp["bbn_b"] = pv(params["bbn"][hidden:], Hp)
    # conv4 fused over the concat: rows [0:Hp] act on y1 lanes, [Hp:2Hp] on y2
    pp["w4"] = jnp.concatenate([pw(params["w4"][:hidden], Hp, Op),
                                pw(params["w4"][hidden:], Hp, Op)], axis=0)
    pp["s4"] = pv(params["s4"], Op)
    pp["b4"] = pv(params["b4"], Op)
    return pp


# --------------------------------------------------------------------------
# CSPBlock1 forward (Pallas)
# --------------------------------------------------------------------------
def cspblock1_pallas(x, params, num_resblocks):
    # x: (N, H, W, Cin) NHWC
    N, H, W, Cin = x.shape
    cout = params["w4"].shape[1]
    pp = pad_params_for_pallas(params, Cin, cout)
    Cp, Hp = pp["Cp"], pp["Hp"]

    M = N * H * W
    tm = _choose_tm(M)
    Mp = _rup(M, tm)          # == M when tm divides M (the common case)

    # layout plumbing only: lane (and, if needed, row) zero-padding of x
    x2p = jnp.pad(x.reshape(M, Cin), ((0, Mp - M), (0, Cp - Cin)))

    # conv1 = ConvModule(1x1, BN, Mish)
    h2 = conv1x1_bn_mish(x2p, pp["w1"], pp["s1"], pp["b1"], tm)
    if Mp != M:
        h2 = h2[:M]
    h = h2.reshape(N, H, W, Hp)

    # ResBlocks, each fully fused into one pallas_call
    for q in pp["res"]:
        h = resblock_fused(h, q["wa"], q["sa"], q["ba"], q["wb"],
                           q["sb"], q["bb"])

    # fused tail: conv3/conv2 -> concat -> BN -> Mish -> conv4 -> BN -> Mish
    h2p = h.reshape(M, Hp)
    if Mp != M:
        h2p = jnp.pad(h2p, ((0, Mp - M), (0, 0)))
    out2 = tail_fused(h2p, x2p, pp["w3"], pp["w2"],
                      pp["sbn_a"], pp["bbn_a"], pp["sbn_b"], pp["bbn_b"],
                      pp["w4"], pp["s4"], pp["b4"], tm)
    return out2[:M, :cout].reshape(N, H, W, cout)


# --------------------------------------------------------------------------
# Pure-JAX reference (same math, f32 end-to-end, no Pallas) for verification
# --------------------------------------------------------------------------
def cspblock1_reference(x, params, num_resblocks):
    def c1x1(x, w):
        return jnp.einsum("nhwc,co->nhwo", x, w)

    def bn_mish(x, s, b):
        y = x * s + b
        return y * jnp.tanh(jax.nn.softplus(y))

    h = bn_mish(c1x1(x, params["w1"]), params["s1"], params["b1"])
    for i in range(num_resblocks):
        p = params["res"][i]
        t = bn_mish(c1x1(h, p["wa"]), p["sa"], p["ba"])
        c = jax.lax.conv_general_dilated(
            t, p["wb"], (1, 1), "SAME",
            dimension_numbers=("NHWC", "HWIO", "NHWC"))
        h = h + bn_mish(c, p["sb"], p["bb"])
    y1 = c1x1(h, params["w3"])
    y2 = c1x1(x, params["w2"])
    cat = jnp.concatenate([y1, y2], axis=-1)
    z = bn_mish(cat, params["sbn"], params["bbn"])
    return bn_mish(c1x1(z, params["w4"]), params["s4"], params["b4"])


# --------------------------------------------------------------------------
# Deterministic parameter initialization (folded BN, eval-mode semantics)
# --------------------------------------------------------------------------
def make_params(key, cin, cout, num_resblocks, eps=1e-5):
    hidden = cout // 2
    nkeys = 7 + 4 * num_resblocks
    it = iter(list(jax.random.split(key, nkeys)))

    def conv_w_1x1(ci, co):
        w = 0.1 * jax.random.normal(next(it), (co, ci, 1, 1), jnp.float32)
        return jnp.transpose(w[:, :, 0, 0], (1, 0))            # (ci, co)

    def conv_w_3x3(ci, co):
        w = 0.1 * jax.random.normal(next(it), (co, ci, 3, 3), jnp.float32)
        return jnp.transpose(w, (2, 3, 1, 0))                   # (3,3,ci,co)

    def bn_fold(c):
        k1, k2, k3, k4 = jax.random.split(next(it), 4)
        gamma = 1.0 + 0.1 * jax.random.normal(k1, (c,), jnp.float32)
        beta = 0.1 * jax.random.normal(k2, (c,), jnp.float32)
        mean = 0.1 * jax.random.normal(k3, (c,), jnp.float32)
        var = 0.5 + 0.5 * jax.random.uniform(k4, (c,), jnp.float32)
        scale = gamma / jnp.sqrt(var + eps)
        bias = beta - mean * scale
        return scale, bias

    params = {}
    params["w1"] = conv_w_1x1(cin, hidden)
    params["s1"], params["b1"] = bn_fold(hidden)
    res = []
    for _ in range(num_resblocks):
        p = {}
        p["wa"] = conv_w_1x1(hidden, hidden)
        p["sa"], p["ba"] = bn_fold(hidden)
        p["wb"] = conv_w_3x3(hidden, hidden)
        p["sb"], p["bb"] = bn_fold(hidden)
        res.append(p)
    params["res"] = res
    params["w3"] = conv_w_1x1(hidden, hidden)
    params["w2"] = conv_w_1x1(cin, hidden)
    params["sbn"], params["bbn"] = bn_fold(2 * hidden)
    params["w4"] = conv_w_1x1(2 * hidden, cout)
    params["s4"], params["b4"] = bn_fold(cout)
    return params


if __name__ == "__main__":
    N, Cin, H, W = 2, 4, 16, 16
    Cout = 8
    num_resblocks = 1

    root = jax.random.PRNGKey(0)
    kx, kp = jax.random.split(root)
    x_nchw = jax.random.normal(kx, (N, Cin, H, W), jnp.float32)
    x_nhwc = jnp.transpose(x_nchw, (0, 2, 3, 1))   # NCHW -> NHWC for kernels

    params = make_params(kp, Cin, Cout, num_resblocks)

    fwd = jax.jit(functools.partial(cspblock1_pallas,
                                    num_resblocks=num_resblocks))
    out = jax.block_until_ready(fwd(x_nhwc, params))

    ref = jax.block_until_ready(
        cspblock1_reference(x_nhwc, params, num_resblocks))

    assert out.shape == (N, H, W, Cout)
    # Tolerance sized for bf16 MXU operands (f32 accumulation & f32 BN/Mish
    # epilogue) vs. the f32 end-to-end reference.
    np.testing.assert_allclose(np.asarray(out), np.asarray(ref),
                               rtol=2e-2, atol=5e-3)
    print("KERNEL_OK")
</pallas_src>

<mosaic_0001>
module attributes {stable_mosaic.version = 11 : i64} {
  func.func @_conv1x1_kernel(%arg0: i32, %arg1: memref<256x128xf32, #tpu.memory_space<vmem>>, %arg2: memref<128x128xbf16, #tpu.memory_space<vmem>>, %arg3: memref<1x128xf32, #tpu.memory_space<vmem>>, %arg4: memref<1x128xf32, #tpu.memory_space<vmem>>, %arg5: memref<256x128xf32, #tpu.memory_space<vmem>>) attributes {dimension_semantics = [#tpu.dimension_semantics<parallel>], iteration_bounds = array<i64: 2>, scalar_prefetch = 0 : i64, scratch_operands = 0 : i64, tpu.core_type = #tpu.core_type<tc>, window_params = [{transform_indices = @transform_0, window_bounds = array<i64: 256, 128>}, {pipeline_mode = #tpu.pipeline_mode<synchronous>, transform_indices = @transform_1, window_bounds = array<i64: 128, 128>}, {pipeline_mode = #tpu.pipeline_mode<synchronous>, transform_indices = @transform_2, window_bounds = array<i64: 1, 128>}, {pipeline_mode = #tpu.pipeline_mode<synchronous>, transform_indices = @transform_3, window_bounds = array<i64: 1, 128>}, {transform_indices = @transform_4, window_bounds = array<i64: 256, 128>}]} {
    %c0 = arith.constant 0 : index
    %c0_0 = arith.constant 0 : index
    %0 = vector.load %arg1[%c0, %c0_0] : memref<256x128xf32, #tpu.memory_space<vmem>>, vector<256x128xf32>
    %1 = arith.truncf %0 : vector<256x128xf32> to vector<256x128xbf16>
    %c0_1 = arith.constant 0 : index
    %c0_2 = arith.constant 0 : index
    %2 = vector.load %arg2[%c0_1, %c0_2] : memref<128x128xbf16, #tpu.memory_space<vmem>>, vector<128x128xbf16>
    %cst = arith.constant dense<0.000000e+00> : vector<256x128xf32>
    %3 = tpu.matmul %1, %2, %cst {dimension_numbers = #tpu.dot_dimension_numbers<[1], [0], [0], [1], [0, 0, 1, 1], [], []>} : vector<256x128xbf16>, vector<128x128xbf16>, vector<256x128xf32> -> vector<256x128xf32>
    %c0_3 = arith.constant 0 : index
    %c0_4 = arith.constant 0 : index
    %4 = vector.load %arg3[%c0_3, %c0_4] : memref<1x128xf32, #tpu.memory_space<vmem>>, vector<1x128xf32>
    %5 = vector.broadcast %4 : vector<1x128xf32> to vector<256x128xf32>
    %6 = arith.mulf %3, %5 : vector<256x128xf32>
    %c0_5 = arith.constant 0 : index
    %c0_6 = arith.constant 0 : index
    %7 = vector.load %arg4[%c0_5, %c0_6] : memref<1x128xf32, #tpu.memory_space<vmem>>, vector<1x128xf32>
    %8 = vector.broadcast %7 : vector<1x128xf32> to vector<256x128xf32>
    %9 = arith.addf %6, %8 : vector<256x128xf32>
    %cst_7 = arith.constant 2.000000e+01 : f32
    %10 = vector.broadcast %cst_7 : f32 to vector<256x128xf32>
    %11 = arith.minimumf %9, %10 : vector<256x128xf32>
    %12 = math.exp %11 : vector<256x128xf32>
    %cst_8 = arith.constant 1.000000e+00 : f32
    %13 = vector.broadcast %cst_8 : f32 to vector<256x128xf32>
    %14 = arith.addf %13, %12 : vector<256x128xf32>
    %cst_9 = arith.constant 1.000000e+00 : f32
    %15 = vector.broadcast %cst_9 : f32 to vector<256x128xf32>
    %16 = arith.addf %15, %12 : vector<256x128xf32>
    %17 = arith.mulf %14, %16 : vector<256x128xf32>
    %cst_10 = arith.constant 1.000000e+00 : f32
    %18 = vector.broadcast %cst_10 : f32 to vector<256x128xf32>
    %19 = arith.subf %17, %18 : vector<256x128xf32>
    %20 = arith.mulf %9, %19 : vector<256x128xf32>
    %cst_11 = arith.constant 1.000000e+00 : f32
    %21 = vector.broadcast %cst_11 : f32 to vector<256x128xf32>
    %22 = arith.addf %17, %21 : vector<256x128xf32>
    %23 = tpu.reciprocal %22 {approx = true} : vector<256x128xf32> -> vector<256x128xf32>
    %24 = arith.mulf %20, %23 : vector<256x128xf32>
    %c0_12 = arith.constant 0 : index
    %c0_13 = arith.constant 0 : index
    %25 = vector.load %arg5[%c0_12, %c0_13] : memref<256x128xf32, #tpu.memory_space<vmem>>, vector<256x128xf32>
    tpu.vector_store %arg5[%c0_12, %c0_13], %24 {strides = array<i32>} : memref<256x128xf32, #tpu.memory_space<vmem>>, vector<256x128xf32>,
    return
  }
  func.func @transform_0(%arg0: i32) -> (i32, i32) {
    %c0_i32 = arith.constant 0 : i32
    %c0_i32_0 = arith.constant 0 : i32
    return %arg0, %c0_i32 : i32, i32
  }
  func.func @transform_1(%arg0: i32) -> (i32, i32) {
    %c0_i32 = arith.constant 0 : i32
    %c0_i32_0 = arith.constant 0 : i32
    %c0_i32_1 = arith.constant 0 : i32
    return %c0_i32, %c0_i32_0 : i32, i32
  }
  func.func @transform_2(%arg0: i32) -> (i32, i32) {
    %c0_i32 = arith.constant 0 : i32
    %c0_i32_0 = arith.constant 0 : i32
    %c0_i32_1 = arith.constant 0 : i32
    return %c0_i32, %c0_i32_0 : i32, i32
  }
  func.func @transform_3(%arg0: i32) -> (i32, i32) {
    %c0_i32 = arith.constant 0 : i32
    %c0_i32_0 = arith.constant 0 : i32
    %c0_i32_1 = arith.constant 0 : i32
    return %c0_i32, %c0_i32_0 : i32, i32
  }
  func.func @transform_4(%arg0: i32) -> (i32, i32) {
    %c0_i32 = arith.constant 0 : i32
    %c0_i32_0 = arith.constant 0 : i32
    return %arg0, %c0_i32 : i32, i32
  }
}

module attributes {stable_mosaic.version = 11 : i64} {
  func.func @_resblock_kernel(%arg0: i32, %arg1: memref<1x16x16x128xf32, #tpu.memory_space<vmem>>, %arg2: memref<128x128xbf16, #tpu.memory_space<vmem>>, %arg3: memref<1x128xf32, #tpu.memory_space<vmem>>, %arg4: memref<1x128xf32, #tpu.memory_space<vmem>>, %arg5: memref<3x3x128x128xbf16, #tpu.memory_space<vmem>>, %arg6: memref<1x128xf32, #tpu.memory_space<vmem>>, %arg7: memref<1x128xf32, #tpu.memory_space<vmem>>, %arg8: memref<1x16x16x128xf32, #tpu.memory_space<vmem>>, %arg9: memref<18x33x128xbf16, #tpu.memory_space<vmem>>) attributes {dimension_semantics = [#tpu.dimension_semantics<parallel>], iteration_bounds = array<i64: 2>, scalar_prefetch = 0 : i64, scratch_operands = 1 : i64, tpu.core_type = #tpu.core_type<tc>, window_params = [{transform_indices = @transform_0, window_bounds = array<i64: 1, 16, 16, 128>}, {pipeline_mode = #tpu.pipeline_mode<synchronous>, transform_indices = @transform_1, window_bounds = array<i64: 128, 128>}, {pipeline_mode = #tpu.pipeline_mode<synchronous>, transform_indices = @transform_2, window_bounds = array<i64: 1, 128>}, {pipeline_mode = #tpu.pipeline_mode<synchronous>, transform_indices = @transform_3, window_bounds = array<i64: 1, 128>}, {pipeline_mode = #tpu.pipeline_mode<synchronous>, transform_indices = @transform_4, window_bounds = array<i64: 3, 3, 128, 128>}, {pipeline_mode = #tpu.pipeline_mode<synchronous>, transform_indices = @transform_5, window_bounds = array<i64: 1, 128>}, {pipeline_mode = #tpu.pipeline_mode<synchronous>, transform_indices = @transform_6, window_bounds = array<i64: 1, 128>}, {transform_indices = @transform_7, window_bounds = array<i64: 1, 16, 16, 128>}]} {
    %c0 = arith.constant 0 : index
    %c0_0 = arith.constant 0 : index
    %c0_1 = arith.constant 0 : index
    %c0_2 = arith.constant 0 : index
    %0 = vector.load %arg1[%c0, %c0_0, %c0_1, %c0_2] : memref<1x16x16x128xf32, #tpu.memory_space<vmem>>, vector<1x16x16x128xf32>
    %1 = vector.shape_cast %0 : vector<1x16x16x128xf32> to vector<16x16x128xf32>
    %2 = vector.shape_cast %1 : vector<16x16x128xf32> to vector<256x128xf32>
    %3 = arith.truncf %2 : vector<256x128xf32> to vector<256x128xbf16>
    %c0_3 = arith.constant 0 : index
    %c0_4 = arith.constant 0 : index
    %4 = vector.load %arg2[%c0_3, %c0_4] : memref<128x128xbf16, #tpu.memory_space<vmem>>, vector<128x128xbf16>
    %cst = arith.constant dense<0.000000e+00> : vector<256x128xf32>
    %5 = tpu.matmul %3, %4, %cst {dimension_numbers = #tpu.dot_dimension_numbers<[1], [0], [0], [1], [0, 0, 1, 1], [], []>} : vector<256x128xbf16>, vector<128x128xbf16>, vector<256x128xf32> -> vector<256x128xf32>
    %c0_5 = arith.constant 0 : index
    %c0_6 = arith.constant 0 : index
    %6 = vector.load %arg3[%c0_5, %c0_6] : memref<1x128xf32, #tpu.memory_space<vmem>>, vector<1x128xf32>
    %7 = vector.broadcast %6 : vector<1x128xf32> to vector<256x128xf32>
    %8 = arith.mulf %5, %7 : vector<256x128xf32>
    %c0_7 = arith.constant 0 : index
    %c0_8 = arith.constant 0 : index
    %9 = vector.load %arg4[%c0_7, %c0_8] : memref<1x128xf32, #tpu.memory_space<vmem>>, vector<1x128xf32>
    %10 = vector.broadcast %9 : vector<1x128xf32> to vector<256x128xf32>
    %11 = arith.addf %8, %10 : vector<256x128xf32>
    %cst_9 = arith.constant 2.000000e+01 : f32
    %12 = vector.broadcast %cst_9 : f32 to vector<256x128xf32>
    %13 = arith.minimumf %11, %12 : vector<256x128xf32>
    %14 = math.exp %13 : vector<256x128xf32>
    %cst_10 = arith.constant 1.000000e+00 : f32
    %15 = vector.broadcast %cst_10 : f32 to vector<256x128xf32>
    %16 = arith.addf %15, %14 : vector<256x128xf32>
    %cst_11 = arith.constant 1.000000e+00 : f32
    %17 = vector.broadcast %cst_11 : f32 to vector<256x128xf32>
    %18 = arith.addf %17, %14 : vector<256x128xf32>
    %19 = arith.mulf %16, %18 : vector<256x128xf32>
    %cst_12 = arith.constant 1.000000e+00 : f32
    %20 = vector.broadcast %cst_12 : f32 to vector<256x128xf32>
    %21 = arith.subf %19, %20 : vector<256x128xf32>
    %22 = arith.mulf %11, %21 : vector<256x128xf32>
    %cst_13 = arith.constant 1.000000e+00 : f32
    %23 = vector.broadcast %cst_13 : f32 to vector<256x128xf32>
    %24 = arith.addf %19, %23 : vector<256x128xf32>
    %25 = tpu.reciprocal %24 {approx = true} : vector<256x128xf32> -> vector<256x128xf32>
    %26 = arith.mulf %22, %25 : vector<256x128xf32>
    %cst_14 = arith.constant 0.000000e+00 : bf16
    %27 = vector.broadcast %cst_14 : bf16 to vector<1x18x128xbf16>
    %cst_15 = arith.constant 0.000000e+00 : bf16
    %28 = vector.broadcast %cst_15 : bf16 to vector<16x1x128xbf16>
    %c0_16 = arith.constant 0 : index
    %c15 = arith.constant 15 : index
    %c0_17 = arith.constant 0 : index
    %29 = vector.load %arg9[%c0_16, %c15, %c0_17] : memref<18x33x128xbf16, #tpu.memory_space<vmem>>, vector<1x18x128xbf16>
    tpu.vector_store %arg9[%c0_16, %c15, %c0_17], %27 {strides = array<i32>} : memref<18x33x128xbf16, #tpu.memory_space<vmem>>, vector<1x18x128xbf16>,
    %c17 = arith.constant 17 : index
    %c15_18 = arith.constant 15 : index
    %c0_19 = arith.constant 0 : index
    %30 = vector.load %arg9[%c17, %c15_18, %c0_19] : memref<18x33x128xbf16, #tpu.memory_space<vmem>>, vector<1x18x128xbf16>
    tpu.vector_store %arg9[%c17, %c15_18, %c0_19], %27 {strides = array<i32>} : memref<18x33x128xbf16, #tpu.memory_space<vmem>>, vector<1x18x128xbf16>,
    %c1 = arith.constant 1 : index
    %c15_20 = arith.constant 15 : index
    %c0_21 = arith.constant 0 : index
    %31 = vector.load %arg9[%c1, %c15_20, %c0_21] : memref<18x33x128xbf16, #tpu.memory_space<vmem>>, vector<16x1x128xbf16>
    tpu.vector_store %arg9[%c1, %c15_20, %c0_21], %28 {strides = array<i32>} : memref<18x33x128xbf16, #tpu.memory_space<vmem>>, vector<16x1x128xbf16>,
    %c1_22 = arith.constant 1 : index
    %c32 = arith.constant 32 : index
    %c0_23 = arith.constant 0 : index
    %32 = vector.load %arg9[%c1_22, %c32, %c0_23] : memref<18x33x128xbf16, #tpu.memory_space<vmem>>, vector<16x1x128xbf16>
    tpu.vector_store %arg9[%c1_22, %c32, %c0_23], %28 {strides = array<i32>} : memref<18x33x128xbf16, #tpu.memory_space<vmem>>, vector<16x1x128xbf16>,
    %33 = arith.truncf %26 : vector<256x128xf32> to vector<256x128xbf16>
    %34 = vector.shape_cast %33 : vector<256x128xbf16> to vector<16x16x128xbf16>
    %c1_24 = arith.constant 1 : index
    %c16 = arith.constant 16 : index
    %c0_25 = arith.constant 0 : index
    %35 = vector.load %arg9[%c1_24, %c16, %c0_25] : memref<18x33x128xbf16, #tpu.memory_space<vmem>>, vector<16x16x128xbf16>
    tpu.vector_store %arg9[%c1_24, %c16, %c0_25], %34 {strides = array<i32>} : memref<18x33x128xbf16, #tpu.memory_space<vmem>>, vector<16x16x128xbf16>,
    %cst_26 = arith.constant 0.000000e+00 : f32
    %36 = vector.broadcast %cst_26 : f32 to vector<256x128xf32>
    %c0_27 = arith.constant 0 : index
    %c15_28 = arith.constant 15 : index
    %c0_29 = arith.constant 0 : index
    %37 = vector.load %arg9[%c0_27, %c15_28, %c0_29] : memref<18x33x128xbf16, #tpu.memory_space<vmem>>, vector<16x16x128xbf16>
    %38 = vector.shape_cast %37 : vector<16x16x128xbf16> to vector<256x128xbf16>
    %c0_30 = arith.constant 0 : index
    %c0_31 = arith.constant 0 : index
    %c0_32 = arith.constant 0 : index
    %c0_33 = arith.constant 0 : index
    %39 = vector.load %arg5[%c0_30, %c0_31, %c0_32, %c0_33] : memref<3x3x128x128xbf16, #tpu.memory_space<vmem>>, vector<1x1x128x128xbf16>
    %40 = vector.shape_cast %39 : vector<1x1x128x128xbf16> to vector<128x128xbf16>
    %cst_34 = arith.constant dense<0.000000e+00> : vector<256x128xf32>
    %41 = tpu.matmul %38, %40, %cst_34 {dimension_numbers = #tpu.dot_dimension_numbers<[1], [0], [0], [1], [0, 0, 1, 1], [], []>} : vector<256x128xbf16>, vector<128x128xbf16>, vector<256x128xf32> -> vector<256x128xf32>
    %42 = arith.addf %36, %41 : vector<256x128xf32>
    %c0_35 = arith.constant 0 : index
    %c16_36 = arith.constant 16 : index
    %c0_37 = arith.constant 0 : index
    %43 = vector.load %arg9[%c0_35, %c16_36, %c0_37] : memref<18x33x128xbf16, #tpu.memory_space<vmem>>, vector<16x16x128xbf16>
    %44 = vector.shape_cast %43 : vector<16x16x128xbf16> to vector<256x128xbf16>
    %c0_38 = arith.constant 0 : index
    %c1_39 = arith.constant 1 : index
    %c0_40 = arith.constant 0 : index
    %c0_41 = arith.constant 0 : index
    %45 = vector.load %arg5[%c0_38, %c1_39, %c0_40, %c0_41] : memref<3x3x128x128xbf16, #tpu.memory_space<vmem>>, vector<1x1x128x128xbf16>
    %46 = vector.shape_cast %45 : vector<1x1x128x128xbf16> to vector<128x128xbf16>
    %cst_42 = arith.constant dense<0.000000e+00> : vector<256x128xf32>
    %47 = tpu.matmul %44, %46, %cst_42 {dimension_numbers = #tpu.dot_dimension_numbers<[1], [0], [0], [1], [0, 0, 1, 1], [], []>} : vector<256x128xbf16>, vector<128x128xbf16>, vector<256x128xf32> -> vector<256x128xf32>
    %48 = arith.addf %42, %47 : vector<256x128xf32>
    %c0_43 = arith.constant 0 : index
    %c17_44 = arith.constant 17 : index
    %c0_45 = arith.constant 0 : index
    %49 = vector.load %arg9[%c0_43, %c17_44, %c0_45] : memref<18x33x128xbf16, #tpu.memory_space<vmem>>, vector<16x16x128xbf16>
    %50 = vector.shape_cast %49 : vector<16x16x128xbf16> to vector<256x128xbf16>
    %c0_46 = arith.constant 0 : index
    %c2 = arith.constant 2 : index
    %c0_47 = arith.constant 0 : index
    %c0_48 = arith.constant 0 : index
    %51 = vector.load %arg5[%c0_46, %c2, %c0_47, %c0_48] : memref<3x3x128x128xbf16, #tpu.memory_space<vmem>>, vector<1x1x128x128xbf16>
    %52 = vector.shape_cast %51 : vector<1x1x128x128xbf16> to vector<128x128xbf16>
    %cst_49 = arith.constant dense<0.000000e+00> : vector<256x128xf32>
    %53 = tpu.matmul %50, %52, %cst_49 {dimension_numbers = #tpu.dot_dimension_numbers<[1], [0], [0], [1], [0, 0, 1, 1], [], []>} : vector<256x128xbf16>, vector<128x128xbf16>, vector<256x128xf32> -> vector<256x128xf32>
    %54 = arith.addf %48, %53 : vector<256x128xf32>
    %c1_50 = arith.constant 1 : index
    %c15_51 = arith.constant 15 : index
    %c0_52 = arith.constant 0 : index
    %55 = vector.load %arg9[%c1_50, %c15_51, %c0_52] : memref<18x33x128xbf16, #tpu.memory_space<vmem>>, vector<16x16x128xbf16>
    %56 = vector.shape_cast %55 : vector<16x16x128xbf16> to vector<256x128xbf16>
    %c1_53 = arith.constant 1 : index
    %c0_54 = arith.constant 0 : index
    %c0_55 = arith.constant 0 : index
    %c0_56 = arith.constant 0 : index
    %57 = vector.load %arg5[%c1_53, %c0_54, %c0_55, %c0_56] : memref<3x3x128x128xbf16, #tpu.memory_space<vmem>>, vector<1x1x128x128xbf16>
    %58 = vector.shape_cast %57 : vector<1x1x128x128xbf16> to vector<128x128xbf16>
    %cst_57 = arith.constant dense<0.000000e+00> : vector<256x128xf32>
    %59 = tpu.matmul %56, %58, %cst_57 {dimension_numbers = #tpu.dot_dimension_numbers<[1], [0], [0], [1], [0, 0, 1, 1], [], []>} : vector<256x128xbf16>, vector<128x128xbf16>, vector<256x128xf32> -> vector<256x128xf32>
    %60 = arith.addf %54, %59 : vector<256x128xf32>
    %c1_58 = arith.constant 1 : index
    %c16_59 = arith.constant 16 : index
    %c0_60 = arith.constant 0 : index
    %61 = vector.load %arg9[%c1_58, %c16_59, %c0_60] : memref<18x33x128xbf16, #tpu.memory_space<vmem>>, vector<16x16x128xbf16>
    %62 = vector.shape_cast %61 : vector<16x16x128xbf16> to vector<256x128xbf16>
    %c1_61 = arith.constant 1 : index
    %c1_62 = arith.constant 1 : index
    %c0_63 = arith.constant 0 : index
    %c0_64 = arith.constant 0 : index
    %63 = vector.load %arg5[%c1_61, %c1_62, %c0_63, %c0_64] : memref<3x3x128x128xbf16, #tpu.memory_space<vmem>>, vector<1x1x128x128xbf16>
    %64 = vector.shape_cast %63 : vector<1x1x128x128xbf16> to vector<128x128xbf16>
    %cst_65 = arith.constant dense<0.000000e+00> : vector<256x128xf32>
    %65 = tpu.matmul %62, %64, %cst_65 {dimension_numbers = #tpu.dot_dimension_numbers<[1], [0], [0], [1], [0, 0, 1, 1], [], []>} : vector<256x128xbf16>, vector<128x128xbf16>, vector<256x128xf32> -> vector<256x128xf32>
    %66 = arith.addf %60, %65 : vector<256x128xf32>
    %c1_66 = arith.constant 1 : index
    %c17_67 = arith.constant 17 : index
    %c0_68 = arith.constant 0 : index
    %67 = vector.load %arg9[%c1_66, %c17_67, %c0_68] : memref<18x33x128xbf16, #tpu.memory_space<vmem>>, vector<16x16x128xbf16>
    %68 = vector.shape_cast %67 : vector<16x16x128xbf16> to vector<256x128xbf16>
    %c1_69 = arith.constant 1 : index
    %c2_70 = arith.constant 2 : index
    %c0_71 = arith.constant 0 : index
    %c0_72 = arith.constant 0 : index
    %69 = vector.load %arg5[%c1_69, %c2_70, %c0_71, %c0_72] : memref<3x3x128x128xbf16, #tpu.memory_space<vmem>>, vector<1x1x128x128xbf16>
    %70 = vector.shape_cast %69 : vector<1x1x128x128xbf16> to vector<128x128xbf16>
    %cst_73 = arith.constant dense<0.000000e+00> : vector<256x128xf32>
    %71 = tpu.matmul %68, %70, %cst_73 {dimension_numbers = #tpu.dot_dimension_numbers<[1], [0], [0], [1], [0, 0, 1, 1], [], []>} : vector<256x128xbf16>, vector<128x128xbf16>, vector<256x128xf32> -> vector<256x128xf32>
    %72 = arith.addf %66, %71 : vector<256x128xf32>
    %c2_74 = arith.constant 2 : index
    %c15_75 = arith.constant 15 : index
    %c0_76 = arith.constant 0 : index
    %73 = vector.load %arg9[%c2_74, %c15_75, %c0_76] : memref<18x33x128xbf16, #tpu.memory_space<vmem>>, vector<16x16x128xbf16>
    %74 = vector.shape_cast %73 : vector<16x16x128xbf16> to vector<256x128xbf16>
    %c2_77 = arith.constant 2 : index
    %c0_78 = arith.constant 0 : index
    %c0_79 = arith.constant 0 : index
    %c0_80 = arith.constant 0 : index
    %75 = vector.load %arg5[%c2_77, %c0_78, %c0_79, %c0_80] : memref<3x3x128x128xbf16, #tpu.memory_space<vmem>>, vector<1x1x128x128xbf16>
    %76 = vector.shape_cast %75 : vector<1x1x128x128xbf16> to vector<128x128xbf16>
    %cst_81 = arith.constant dense<0.000000e+00> : vector<256x128xf32>
    %77 = tpu.matmul %74, %76, %cst_81 {dimension_numbers = #tpu.dot_dimension_numbers<[1], [0], [0], [1], [0, 0, 1, 1], [], []>} : vector<256x128xbf16>, vector<128x128xbf16>, vector<256x128xf32> -> vector<256x128xf32>
    %78 = arith.addf %72, %77 : vector<256x128xf32>
    %c2_82 = arith.constant 2 : index
    %c16_83 = arith.constant 16 : index
    %c0_84 = arith.constant 0 : index
    %79 = vector.load %arg9[%c2_82, %c16_83, %c0_84] : memref<18x33x128xbf16, #tpu.memory_space<vmem>>, vector<16x16x128xbf16>
    %80 = vector.shape_cast %79 : vector<16x16x128xbf16> to vector<256x128xbf16>
    %c2_85 = arith.constant 2 : index
    %c1_86 = arith.constant 1 : index
    %c0_87 = arith.constant 0 : index
    %c0_88 = arith.constant 0 : index
    %81 = vector.load %arg5[%c2_85, %c1_86, %c0_87, %c0_88] : memref<3x3x128x128xbf16, #tpu.memory_space<vmem>>, vector<1x1x128x128xbf16>
    %82 = vector.shape_cast %81 : vector<1x1x128x128xbf16> to vector<128x128xbf16>
    %cst_89 = arith.constant dense<0.000000e+00> : vector<256x128xf32>
    %83 = tpu.matmul %80, %82, %cst_89 {dimension_numbers = #tpu.dot_dimension_numbers<[1], [0], [0], [1], [0, 0, 1, 1], [], []>} : vector<256x128xbf16>, vector<128x128xbf16>, vector<256x128xf32> -> vector<256x128xf32>
    %84 = arith.addf %78, %83 : vector<256x128xf32>
    %c2_90 = arith.constant 2 : index
    %c17_91 = arith.constant 17 : index
    %c0_92 = arith.constant 0 : index
    %85 = vector.load %arg9[%c2_90, %c17_91, %c0_92] : memref<18x33x128xbf16, #tpu.memory_space<vmem>>, vector<16x16x128xbf16>
    %86 = vector.shape_cast %85 : vector<16x16x128xbf16> to vector<256x128xbf16>
    %c2_93 = arith.constant 2 : index
    %c2_94 = arith.constant 2 : index
    %c0_95 = arith.constant 0 : index
    %c0_96 = arith.constant 0 : index
    %87 = vector.load %arg5[%c2_93, %c2_94, %c0_95, %c0_96] : memref<3x3x128x128xbf16, #tpu.memory_space<vmem>>, vector<1x1x128x128xbf16>
    %88 = vector.shape_cast %87 : vector<1x1x128x128xbf16> to vector<128x128xbf16>
    %cst_97 = arith.constant dense<0.000000e+00> : vector<256x128xf32>
    %89 = tpu.matmul %86, %88, %cst_97 {dimension_numbers = #tpu.dot_dimension_numbers<[1], [0], [0], [1], [0, 0, 1, 1], [], []>} : vector<256x128xbf16>, vector<128x128xbf16>, vector<256x128xf32> -> vector<256x128xf32>
    %90 = arith.addf %84, %89 : vector<256x128xf32>
    %c0_98 = arith.constant 0 : index
    %c0_99 = arith.constant 0 : index
    %91 = vector.load %arg6[%c0_98, %c0_99] : memref<1x128xf32, #tpu.memory_space<vmem>>, vector<1x128xf32>
    %92 = vector.broadcast %91 : vector<1x128xf32> to vector<256x128xf32>
    %93 = arith.mulf %90, %92 : vector<256x128xf32>
    %c0_100 = arith.constant 0 : index
    %c0_101 = arith.constant 0 : index
    %94 = vector.load %arg7[%c0_100, %c0_101] : memref<1x128xf32, #tpu.memory_space<vmem>>, vector<1x128xf32>
    %95 = vector.broadcast %94 : vector<1x128xf32> to vector<256x128xf32>
    %96 = arith.addf %93, %95 : vector<256x128xf32>
    %cst_102 = arith.constant 2.000000e+01 : f32
    %97 = vector.broadcast %cst_102 : f32 to vector<256x128xf32>
    %98 = arith.minimumf %96, %97 : vector<256x128xf32>
    %99 = math.exp %98 : vector<256x128xf32>
    %cst_103 = arith.constant 1.000000e+00 : f32
    %100 = vector.broadcast %cst_103 : f32 to vector<256x128xf32>
    %101 = arith.addf %100, %99 : vector<256x128xf32>
    %cst_104 = arith.constant 1.000000e+00 : f32
    %102 = vector.broadcast %cst_104 : f32 to vector<256x128xf32>
    %103 = arith.addf %102, %99 : vector<256x128xf32>
    %104 = arith.mulf %101, %103 : vector<256x128xf32>
    %cst_105 = arith.constant 1.000000e+00 : f32
    %105 = vector.broadcast %cst_105 : f32 to vector<256x128xf32>
    %106 = arith.subf %104, %105 : vector<256x128xf32>
    %107 = arith.mulf %96, %106 : vector<256x128xf32>
    %cst_106 = arith.constant 1.000000e+00 : f32
    %108 = vector.broadcast %cst_106 : f32 to vector<256x128xf32>
    %109 = arith.addf %104, %108 : vector<256x128xf32>
    %110 = tpu.reciprocal %109 {approx = true} : vector<256x128xf32> -> vector<256x128xf32>
    %111 = arith.mulf %107, %110 : vector<256x128xf32>
    %112 = arith.addf %111, %2 : vector<256x128xf32>
    %113 = vector.shape_cast %112 : vector<256x128xf32> to vector<16x16x128xf32>
    %c0_107 = arith.constant 0 : index
    %c0_108 = arith.constant 0 : index
    %c0_109 = arith.constant 0 : index
    %c0_110 = arith.constant 0 : index
    %114 = vector.load %arg8[%c0_107, %c0_108, %c0_109, %c0_110] : memref<1x16x16x128xf32, #tpu.memory_space<vmem>>, vector<1x16x16x128xf32>
    %115 = vector.shape_cast %114 : vector<1x16x16x128xf32> to vector<16x16x128xf32>
    %116 = vector.shape_cast %113 : vector<16x16x128xf32> to vector<1x16x16x128xf32>
    tpu.vector_store %arg8[%c0_107, %c0_108, %c0_109, %c0_110], %116 {strides = array<i32>} : memref<1x16x16x128xf32, #tpu.memory_space<vmem>>, vector<1x16x16x128xf32>,
    return
  }
  func.func @transform_0(%arg0: i32) -> (i32, i32, i32, i32) {
    %c0_i32 = arith.constant 0 : i32
    %c0_i32_0 = arith.constant 0 : i32
    %c0_i32_1 = arith.constant 0 : i32
    %c0_i32_2 = arith.constant 0 : i32
    return %arg0, %c0_i32, %c0_i32_0, %c0_i32_1 : i32, i32, i32, i32
  }
  func.func @transform_1(%arg0: i32) -> (i32, i32) {
    %c0_i32 = arith.constant 0 : i32
    %c0_i32_0 = arith.constant 0 : i32
    %c0_i32_1 = arith.constant 0 : i32
    return %c0_i32, %c0_i32_0 : i32, i32
  }
  func.func @transform_2(%arg0: i32) -> (i32, i32) {
    %c0_i32 = arith.constant 0 : i32
    %c0_i32_0 = arith.constant 0 : i32
    %c0_i32_1 = arith.constant 0 : i32
    return %c0_i32, %c0_i32_0 : i32, i32
  }
  func.func @transform_3(%arg0: i32) -> (i32, i32) {
    %c0_i32 = arith.constant 0 : i32
    %c0_i32_0 = arith.constant 0 : i32
    %c0_i32_1 = arith.constant 0 : i32
    return %c0_i32, %c0_i32_0 : i32, i32
  }
  func.func @transform_4(%arg0: i32) -> (i32, i32, i32, i32) {
    %c0_i32 = arith.constant 0 : i32
    %c0_i32_0 = arith.constant 0 : i32
    %c0_i32_1 = arith.constant 0 : i32
    %c0_i32_2 = arith.constant 0 : i32
    %c0_i32_3 = arith.constant 0 : i32
    return %c0_i32, %c0_i32_0, %c0_i32_1, %c0_i32_2 : i32, i32, i32, i32
  }
  func.func @transform_5(%arg0: i32) -> (i32, i32) {
    %c0_i32 = arith.constant 0 : i32
    %c0_i32_0 = arith.constant 0 : i32
    %c0_i32_1 = arith.constant 0 : i32
    return %c0_i32, %c0_i32_0 : i32, i32
  }
  func.func @transform_6(%arg0: i32) -> (i32, i32) {
    %c0_i32 = arith.constant 0 : i32
    %c0_i32_0 = arith.constant 0 : i32
    %c0_i32_1 = arith.constant 0 : i32
    return %c0_i32, %c0_i32_0 : i32, i32
  }
  func.func @transform_7(%arg0: i32) -> (i32, i32, i32, i32) {
    %c0_i32 = arith.constant 0 : i32
    %c0_i32_0 = arith.constant 0 : i32
    %c0_i32_1 = arith.constant 0 : i32
    %c0_i32_2 = arith.constant 0 : i32
    return %arg0, %c0_i32, %c0_i32_0, %c0_i32_1 : i32, i32, i32, i32
  }
}

module attributes {stable_mosaic.version = 11 : i64} {
  func.func @_tail_kernel(%arg0: i32, %arg1: memref<256x128xf32, #tpu.memory_space<vmem>>, %arg2: memref<256x128xf32, #tpu.memory_space<vmem>>, %arg3: memref<128x128xbf16, #tpu.memory_space<vmem>>, %arg4: memref<128x128xbf16, #tpu.memory_space<vmem>>, %arg5: memref<1x128xf32, #tpu.memory_space<vmem>>, %arg6: memref<1x128xf32, #tpu.memory_space<vmem>>, %arg7: memref<1x128xf32, #tpu.memory_space<vmem>>, %arg8: memref<1x128xf32, #tpu.memory_space<vmem>>, %arg9: memref<256x128xbf16, #tpu.memory_space<vmem>>, %arg10: memref<1x128xf32, #tpu.memory_space<vmem>>, %arg11: memref<1x128xf32, #tpu.memory_space<vmem>>, %arg12: memref<256x128xf32, #tpu.memory_space<vmem>>) attributes {dimension_semantics = [#tpu.dimension_semantics<parallel>], iteration_bounds = array<i64: 2>, scalar_prefetch = 0 : i64, scratch_operands = 0 : i64, tpu.core_type = #tpu.core_type<tc>, window_params = [{transform_indices = @transform_0, window_bounds = array<i64: 256, 128>}, {transform_indices = @transform_1, window_bounds = array<i64: 256, 128>}, {pipeline_mode = #tpu.pipeline_mode<synchronous>, transform_indices = @transform_2, window_bounds = array<i64: 128, 128>}, {pipeline_mode = #tpu.pipeline_mode<synchronous>, transform_indices = @transform_3, window_bounds = array<i64: 128, 128>}, {pipeline_mode = #tpu.pipeline_mode<synchronous>, transform_indices = @transform_4, window_bounds = array<i64: 1, 128>}, {pipeline_mode = #tpu.pipeline_mode<synchronous>, transform_indices = @transform_5, window_bounds = array<i64: 1, 128>}, {pipeline_mode = #tpu.pipeline_mode<synchronous>, transform_indices = @transform_6, window_bounds = array<i64: 1, 128>}, {pipeline_mode = #tpu.pipeline_mode<synchronous>, transform_indices = @transform_7, window_bounds = array<i64: 1, 128>}, {pipeline_mode = #tpu.pipeline_mode<synchronous>, transform_indices = @transform_8, window_bounds = array<i64: 256, 128>}, {pipeline_mode = #tpu.pipeline_mode<synchronous>, transform_indices = @transform_9, window_bounds = array<i64: 1, 128>}, {pipeline_mode = #tpu.pipeline_mode<synchronous>, transform_indices = @transform_10, window_bounds = array<i64: 1, 128>}, {transform_indices = @transform_11, window_bounds = array<i64: 256, 128>}]} {
    %c0 = arith.constant 0 : index
    %c0_0 = arith.constant 0 : index
    %0 = vector.load %arg1[%c0, %c0_0] : memref<256x128xf32, #tpu.memory_space<vmem>>, vector<256x128xf32>
    %1 = arith.truncf %0 : vector<256x128xf32> to vector<256x128xbf16>
    %c0_1 = arith.constant 0 : index
    %c0_2 = arith.constant 0 : index
    %2 = vector.load %arg3[%c0_1, %c0_2] : memref<128x128xbf16, #tpu.memory_space<vmem>>, vector<128x128xbf16>
    %cst = arith.constant dense<0.000000e+00> : vector<256x128xf32>
    %3 = tpu.matmul %1, %2, %cst {dimension_numbers = #tpu.dot_dimension_numbers<[1], [0], [0], [1], [0, 0, 1, 1], [], []>} : vector<256x128xbf16>, vector<128x128xbf16>, vector<256x128xf32> -> vector<256x128xf32>
    %c0_3 = arith.constant 0 : index
    %c0_4 = arith.constant 0 : index
    %4 = vector.load %arg5[%c0_3, %c0_4] : memref<1x128xf32, #tpu.memory_space<vmem>>, vector<1x128xf32>
    %5 = vector.broadcast %4 : vector<1x128xf32> to vector<256x128xf32>
    %6 = arith.mulf %3, %5 : vector<256x128xf32>
    %c0_5 = arith.constant 0 : index
    %c0_6 = arith.constant 0 : index
    %7 = vector.load %arg6[%c0_5, %c0_6] : memref<1x128xf32, #tpu.memory_space<vmem>>, vector<1x128xf32>
    %8 = vector.broadcast %7 : vector<1x128xf32> to vector<256x128xf32>
    %9 = arith.addf %6, %8 : vector<256x128xf32>
    %cst_7 = arith.constant 2.000000e+01 : f32
    %10 = vector.broadcast %cst_7 : f32 to vector<256x128xf32>
    %11 = arith.minimumf %9, %10 : vector<256x128xf32>
    %12 = math.exp %11 : vector<256x128xf32>
    %cst_8 = arith.constant 1.000000e+00 : f32
    %13 = vector.broadcast %cst_8 : f32 to vector<256x128xf32>
    %14 = arith.addf %13, %12 : vector<256x128xf32>
    %cst_9 = arith.constant 1.000000e+00 : f32
    %15 = vector.broadcast %cst_9 : f32 to vector<256x128xf32>
    %16 = arith.addf %15, %12 : vector<256x128xf32>
    %17 = arith.mulf %14, %16 : vector<256x128xf32>
    %cst_10 = arith.constant 1.000000e+00 : f32
    %18 = vector.broadcast %cst_10 : f32 to vector<256x128xf32>
    %19 = arith.subf %17, %18 : vector<256x128xf32>
    %20 = arith.mulf %9, %19 : vector<256x128xf32>
    %cst_11 = arith.constant 1.000000e+00 : f32
    %21 = vector.broadcast %cst_11 : f32 to vector<256x128xf32>
    %22 = arith.addf %17, %21 : vector<256x128xf32>
    %23 = tpu.reciprocal %22 {approx = true} : vector<256x128xf32> -> vector<256x128xf32>
    %24 = arith.mulf %20, %23 : vector<256x128xf32>
    %c0_12 = arith.constant 0 : index
    %c0_13 = arith.constant 0 : index
    %25 = vector.load %arg2[%c0_12, %c0_13] : memref<256x128xf32, #tpu.memory_space<vmem>>, vector<256x128xf32>
    %26 = arith.truncf %25 : vector<256x128xf32> to vector<256x128xbf16>
    %c0_14 = arith.constant 0 : index
    %c0_15 = arith.constant 0 : index
    %27 = vector.load %arg4[%c0_14, %c0_15] : memref<128x128xbf16, #tpu.memory_space<vmem>>, vector<128x128xbf16>
    %cst_16 = arith.constant dense<0.000000e+00> : vector<256x128xf32>
    %28 = tpu.matmul %26, %27, %cst_16 {dimension_numbers = #tpu.dot_dimension_numbers<[1], [0], [0], [1], [0, 0, 1, 1], [], []>} : vector<256x128xbf16>, vector<128x128xbf16>, vector<256x128xf32> -> vector<256x128xf32>
    %c0_17 = arith.constant 0 : index
    %c0_18 = arith.constant 0 : index
    %29 = vector.load %arg7[%c0_17, %c0_18] : memref<1x128xf32, #tpu.memory_space<vmem>>, vector<1x128xf32>
    %30 = vector.broadcast %29 : vector<1x128xf32> to vector<256x128xf32>
    %31 = arith.mulf %28, %30 : vector<256x128xf32>
    %c0_19 = arith.constant 0 : index
    %c0_20 = arith.constant 0 : index
    %32 = vector.load %arg8[%c0_19, %c0_20] : memref<1x128xf32, #tpu.memory_space<vmem>>, vector<1x128xf32>
    %33 = vector.broadcast %32 : vector<1x128xf32> to vector<256x128xf32>
    %34 = arith.addf %31, %33 : vector<256x128xf32>
    %cst_21 = arith.constant 2.000000e+01 : f32
    %35 = vector.broadcast %cst_21 : f32 to vector<256x128xf32>
    %36 = arith.minimumf %34, %35 : vector<256x128xf32>
    %37 = math.exp %36 : vector<256x128xf32>
    %cst_22 = arith.constant 1.000000e+00 : f32
    %38 = vector.broadcast %cst_22 : f32 to vector<256x128xf32>
    %39 = arith.addf %38, %37 : vector<256x128xf32>
    %cst_23 = arith.constant 1.000000e+00 : f32
    %40 = vector.broadcast %cst_23 : f32 to vector<256x128xf32>
    %41 = arith.addf %40, %37 : vector<256x128xf32>
    %42 = arith.mulf %39, %41 : vector<256x128xf32>
    %cst_24 = arith.constant 1.000000e+00 : f32
    %43 = vector.broadcast %cst_24 : f32 to vector<256x128xf32>
    %44 = arith.subf %42, %43 : vector<256x128xf32>
    %45 = arith.mulf %34, %44 : vector<256x128xf32>
    %cst_25 = arith.constant 1.000000e+00 : f32
    %46 = vector.broadcast %cst_25 : f32 to vector<256x128xf32>
    %47 = arith.addf %42, %46 : vector<256x128xf32>
    %48 = tpu.reciprocal %47 {approx = true} : vector<256x128xf32> -> vector<256x128xf32>
    %49 = arith.mulf %45, %48 : vector<256x128xf32>
    %50 = tpu.concatenate %24, %49 in 1 : vector<256x128xf32>, vector<256x128xf32> -> vector<256x256xf32>
    %51 = arith.truncf %50 : vector<256x256xf32> to vector<256x256xbf16>
    %c0_26 = arith.constant 0 : index
    %c0_27 = arith.constant 0 : index
    %52 = vector.load %arg9[%c0_26, %c0_27] : memref<256x128xbf16, #tpu.memory_space<vmem>>, vector<256x128xbf16>
    %cst_28 = arith.constant dense<0.000000e+00> : vector<256x128xf32>
    %53 = tpu.matmul %51, %52, %cst_28 {dimension_numbers = #tpu.dot_dimension_numbers<[1], [0], [0], [1], [0, 0, 1, 1], [], []>} : vector<256x256xbf16>, vector<256x128xbf16>, vector<256x128xf32> -> vector<256x128xf32>
    %c0_29 = arith.constant 0 : index
    %c0_30 = arith.constant 0 : index
    %54 = vector.load %arg10[%c0_29, %c0_30] : memref<1x128xf32, #tpu.memory_space<vmem>>, vector<1x128xf32>
    %55 = vector.broadcast %54 : vector<1x128xf32> to vector<256x128xf32>
    %56 = arith.mulf %53, %55 : vector<256x128xf32>
    %c0_31 = arith.constant 0 : index
    %c0_32 = arith.constant 0 : index
    %57 = vector.load %arg11[%c0_31, %c0_32] : memref<1x128xf32, #tpu.memory_space<vmem>>, vector<1x128xf32>
    %58 = vector.broadcast %57 : vector<1x128xf32> to vector<256x128xf32>
    %59 = arith.addf %56, %58 : vector<256x128xf32>
    %cst_33 = arith.constant 2.000000e+01 : f32
    %60 = vector.broadcast %cst_33 : f32 to vector<256x128xf32>
    %61 = arith.minimumf %59, %60 : vector<256x128xf32>
    %62 = math.exp %61 : vector<256x128xf32>
    %cst_34 = arith.constant 1.000000e+00 : f32
    %63 = vector.broadcast %cst_34 : f32 to vector<256x128xf32>
    %64 = arith.addf %63, %62 : vector<256x128xf32>
    %cst_35 = arith.constant 1.000000e+00 : f32
    %65 = vector.broadcast %cst_35 : f32 to vector<256x128xf32>
    %66 = arith.addf %65, %62 : vector<256x128xf32>
    %67 = arith.mulf %64, %66 : vector<256x128xf32>
    %cst_36 = arith.constant 1.000000e+00 : f32
    %68 = vector.broadcast %cst_36 : f32 to vector<256x128xf32>
    %69 = arith.subf %67, %68 : vector<256x128xf32>
    %70 = arith.mulf %59, %69 : vector<256x128xf32>
    %cst_37 = arith.constant 1.000000e+00 : f32
    %71 = vector.broadcast %cst_37 : f32 to vector<256x128xf32>
    %72 = arith.addf %67, %71 : vector<256x128xf32>
    %73 = tpu.reciprocal %72 {approx = true} : vector<256x128xf32> -> vector<256x128xf32>
    %74 = arith.mulf %70, %73 : vector<256x128xf32>
    %c0_38 = arith.constant 0 : index
    %c0_39 = arith.constant 0 : index
    %75 = vector.load %arg12[%c0_38, %c0_39] : memref<256x128xf32, #tpu.memory_space<vmem>>, vector<256x128xf32>
    tpu.vector_store %arg12[%c0_38, %c0_39], %74 {strides = array<i32>} : memref<256x128xf32, #tpu.memory_space<vmem>>, vector<256x128xf32>,
    return
  }
  func.func @transform_0(%arg0: i32) -> (i32, i32) {
    %c0_i32 = arith.constant 0 : i32
    %c0_i32_0 = arith.constant 0 : i32
    return %arg0, %c0_i32 : i32, i32
  }
  func.func @transform_1(%arg0: i32) -> (i32, i32) {
    %c0_i32 = arith.constant 0 : i32
    %c0_i32_0 = arith.constant 0 : i32
    return %arg0, %c0_i32 : i32, i32
  }
  func.func @transform_2(%arg0: i32) -> (i32, i32) {
    %c0_i32 = arith.constant 0 : i32
    %c0_i32_0 = arith.constant 0 : i32
    %c0_i32_1 = arith.constant 0 : i32
    return %c0_i32, %c0_i32_0 : i32, i32
  }
  func.func @transform_3(%arg0: i32) -> (i32, i32) {
    %c0_i32 = arith.constant 0 : i32
    %c0_i32_0 = arith.constant 0 : i32
    %c0_i32_1 = arith.constant 0 : i32
    return %c0_i32, %c0_i32_0 : i32, i32
  }
  func.func @transform_4(%arg0: i32) -> (i32, i32) {
    %c0_i32 = arith.constant 0 : i32
    %c0_i32_0 = arith.constant 0 : i32
    %c0_i32_1 = arith.constant 0 : i32
    return %c0_i32, %c0_i32_0 : i32, i32
  }
  func.func @transform_5(%arg0: i32) -> (i32, i32) {
    %c0_i32 = arith.constant 0 : i32
    %c0_i32_0 = arith.constant 0 : i32
    %c0_i32_1 = arith.constant 0 : i32
    return %c0_i32, %c0_i32_0 : i32, i32
  }
  func.func @transform_6(%arg0: i32) -> (i32, i32) {
    %c0_i32 = arith.constant 0 : i32
    %c0_i32_0 = arith.constant 0 : i32
    %c0_i32_1 = arith.constant 0 : i32
    return %c0_i32, %c0_i32_0 : i32, i32
  }
  func.func @transform_7(%arg0: i32) -> (i32, i32) {
    %c0_i32 = arith.constant 0 : i32
    %c0_i32_0 = arith.constant 0 : i32
    %c0_i32_1 = arith.constant 0 : i32
    return %c0_i32, %c0_i32_0 : i32, i32
  }
  func.func @transform_8(%arg0: i32) -> (i32, i32) {
    %c0_i32 = arith.constant 0 : i32
    %c0_i32_0 = arith.constant 0 : i32
    %c0_i32_1 = arith.constant 0 : i32
    return %c0_i32, %c0_i32_0 : i32, i32
  }
  func.func @transform_9(%arg0: i32) -> (i32, i32) {
    %c0_i32 = arith.constant 0 : i32
    %c0_i32_0 = arith.constant 0 : i32
    %c0_i32_1 = arith.constant 0 : i32
    return %c0_i32, %c0_i32_0 : i32, i32
  }
  func.func @transform_10(%arg0: i32) -> (i32, i32) {
    %c0_i32 = arith.constant 0 : i32
    %c0_i32_0 = arith.constant 0 : i32
    %c0_i32_1 = arith.constant 0 : i32
    return %c0_i32, %c0_i32_0 : i32, i32
  }
  func.func @transform_11(%arg0: i32) -> (i32, i32) {
    %c0_i32 = arith.constant 0 : i32
    %c0_i32_0 = arith.constant 0 : i32
    return %arg0, %c0_i32 : i32, i32
  }
}

</mosaic_0001>

<llo_original>
// kernel: cspblock1_pallas.3
$region0: #{cspblock1_pallas.3}
  #allocation0 [shape = 'u32[]', space=smem, size = 0x4, offset = 0x4, fixed_abs, tag = 'smem constant byte address 0x4 - core index']
  #allocation1 [shape = 'u32[144,128]{1,0:T(1,128)}', space=vmem, size = 0x12000, scoped, tag = 'internal scratch']
  %s0 = inlined_call_operand.vmem [shape: f32[512,128], index: 0, kind: input, shape index: {}]
  %s1 = inlined_call_operand.vmem [shape: bf16[128,128], index: 1, kind: input, shape index: {}]
  %s2 = inlined_call_operand.vmem [shape: f32[1,128], index: 2, kind: input, shape index: {}]
  %s3 = inlined_call_operand.vmem [shape: f32[1,128], index: 3, kind: input, shape index: {}]
  %s4 = inlined_call_operand.vmem [shape: f32[512,128], index: 4, kind: output, shape index: {}]
  %s5 = sld [smem:[#allocation0]]
  $region49: #{cspblock1_pallas.3} parent=0
    _
  %s7 = ssub.s32 1, %s5
  %s8 = scalar_select 0, %s7, %s5
  loop: start=0, step=1, limit=4
  $region2: #{cspblock1_pallas.3} parent=0 // loop_pre_header
    _
  $region3: #{cspblock1_pallas.3} parent=0 // loop_header
    %s10 = sphi 0, %s14
    %p11 = scmp.ge.s32.totalorder %s10, 4
    %s20 = sphi 0, %s22
    %s23 = sphi 0, %s20
    %s24 = sphi 0, %s23
    %s40 = sphi 0, %s24
    %s44 = sphi 0, %s44
    %s46 = sphi 0, %s44
    %s47 = sphi 0, %s46
    %s61 = sphi 0, %s47
    %s65 = sphi 0, %s65
    %s67 = sphi 0, %s65
    %s68 = sphi 0, %s67
    %s82 = sphi 0, %s68
    %s86 = sphi 0, %s86
    %s88 = sphi 0, %s86
    %s89 = sphi 0, %s88
    %s103 = sphi 0, %s89
    %s109 = sphi 0, %s111
    %s112 = sphi 0, %s109
    %s113 = sphi 0, %s112
    %s129 = sphi 0, %s113
  $region4: #{cspblock1_pallas.3} parent=0 // loop_header_branch
    %13 = sbr.rel (%p11) target = $region8
  $region5: #{cspblock1_pallas.3} parent=0 // loop_body
    %s15 = ssub.s32 %s10, 1
    %s16 = ssub.s32 %s10, 2
    %s17 = sadd.s32 %s10, 1
    %s18 = ssub.s32 %s10, %s17
    %p19 = scmp.eq.s32.totalorder %s18, 0
    %s21 = sadd.s32 %s20, 1
    %s22 = scalar_select %p19, %s20, %s21
    %p25 = pneg %p19
    %p26 = scmp.eq.s32.totalorder %s10, 1
    %p27 = por %p25, %p26
    %p28 = scmp.ne.s32.totalorder %s20, %s23
    %p29 = scmp.eq.s32.totalorder %s10, 0
    %p30 = por %p28, %p29
    %p31 = scmp.ne.s32.totalorder %s20, %s23
    %p32 = scmp.eq.s32.totalorder %s15, 1
    %p33 = por %p31, %p32
    %p34 = scmp.ne.s32.totalorder %s23, %s24
    %p35 = scmp.eq.s32.totalorder %s15, 0
    %p36 = por %p34, %p35
    %p37 = scmp.ne.s32.totalorder %s23, %s24
    %p38 = scmp.eq.s32.totalorder %s16, 1
    %p39 = por %p37, %p38
    %p41 = scmp.ne.s32.totalorder %s24, %s40
    %p42 = scmp.eq.s32.totalorder %s16, 0
    %p43 = por %p41, %p42
    %s45 = sadd.s32 %s44, 1
    %p48 = scmp.eq.s32.totalorder %s10, 1
    %p49 = scmp.ne.s32.totalorder %s44, %s46
    %p50 = scmp.eq.s32.totalorder %s10, 0
    %p51 = por %p49, %p50
    %p52 = scmp.ne.s32.totalorder %s44, %s46
    %p53 = scmp.eq.s32.totalorder %s15, 1
    %p54 = por %p52, %p53
    %p55 = scmp.ne.s32.totalorder %s46, %s47
    %p56 = scmp.eq.s32.totalorder %s15, 0
    %p57 = por %p55, %p56
    %p58 = scmp.ne.s32.totalorder %s46, %s47
    %p59 = scmp.eq.s32.totalorder %s16, 1
    %p60 = por %p58, %p59
    %p62 = scmp.ne.s32.totalorder %s47, %s61
    %p63 = scmp.eq.s32.totalorder %s16, 0
    %p64 = por %p62, %p63
    %s66 = sadd.s32 %s65, 1
    %p69 = scmp.eq.s32.totalorder %s10, 1
    %p70 = scmp.ne.s32.totalorder %s65, %s67
    %p71 = scmp.eq.s32.totalorder %s10, 0
    %p72 = por %p70, %p71
    %p73 = scmp.ne.s32.totalorder %s65, %s67
    %p74 = scmp.eq.s32.totalorder %s15, 1
    %p75 = por %p73, %p74
    %p76 = scmp.ne.s32.totalorder %s67, %s68
    %p77 = scmp.eq.s32.totalorder %s15, 0
    %p78 = por %p76, %p77
    %p79 = scmp.ne.s32.totalorder %s67, %s68
    %p80 = scmp.eq.s32.totalorder %s16, 1
    %p81 = por %p79, %p80
    %p83 = scmp.ne.s32.totalorder %s68, %s82
    %p84 = scmp.eq.s32.totalorder %s16, 0
    %p85 = por %p83, %p84
    %s87 = sadd.s32 %s86, 1
    %p90 = scmp.eq.s32.totalorder %s10, 1
    %p91 = scmp.ne.s32.totalorder %s86, %s88
    %p92 = scmp.eq.s32.totalorder %s10, 0
    %p93 = por %p91, %p92
    %p94 = scmp.ne.s32.totalorder %s86, %s88
    %p95 = scmp.eq.s32.totalorder %s15, 1
    %p96 = por %p94, %p95
    %p97 = scmp.ne.s32.totalorder %s88, %s89
    %p98 = scmp.eq.s32.totalorder %s15, 0
    %p99 = por %p97, %p98
    %p100 = scmp.ne.s32.totalorder %s88, %s89
    %p101 = scmp.eq.s32.totalorder %s16, 1
    %p102 = por %p100, %p101
    %p104 = scmp.ne.s32.totalorder %s89, %s103
    %p105 = scmp.eq.s32.totalorder %s16, 0
    %p106 = por %p104, %p105
    %s107 = ssub.s32 %s10, %s17
    %p108 = scmp.eq.s32.totalorder %s107, 0
    %s110 = sadd.s32 %s109, 1
    %s111 = scalar_select %p108, %s109, %s110
    %p114 = pneg %p108
    %p115 = scmp.eq.s32.totalorder %s10, 1
    %p116 = por %p114, %p115
    %p117 = scmp.ne.s32.totalorder %s109, %s112
    %p118 = scmp.eq.s32.totalorder %s10, 0
    %p119 = por %p117, %p118
    %p120 = scmp.ne.s32.totalorder %s109, %s112
    %p121 = scmp.eq.s32.totalorder %s15, 1
    %p122 = por %p120, %p121
    %p123 = scmp.ne.s32.totalorder %s112, %s113
    %p124 = scmp.eq.s32.totalorder %s15, 0
    %p125 = por %p123, %p124
    %p126 = scmp.ne.s32.totalorder %s112, %s113
    %p127 = scmp.eq.s32.totalorder %s16, 1
    %p128 = por %p126, %p127
    %p130 = scmp.ne.s32.totalorder %s113, %s129
    %p131 = scmp.eq.s32.totalorder %s16, 0
    %p132 = por %p130, %p131
    %p133 = scmp.le.s32.totalorder 1, %s10
    %p134 = scmp.lt.s32.totalorder %s10, 3
    %p135 = pnand %p133, %p134
    %p136 = pneg %p135
    // Predicated region
    $region9: #{cspblock1_pallas.3} parent=5 // pred_check
      _
    $region10: #{cspblock1_pallas.3} parent=5 // pred_check_branch
      %138 = sbr.rel (%p135) target = $region12
    $region11: #{cspblock1_pallas.3} parent=5 // pred_region
      %s139 = ssub.s32 %s10, 1
      // Predicated region
      $region13: #{cspblock1_pallas.3} parent=11 // pred_check
        %p140 = pneg %p57
      $region14: #{cspblock1_pallas.3} parent=11 // pred_check_branch
        %142 = sbr.rel (%p140) target = $region16
      $region15: #{cspblock1_pallas.3} parent=11 // pred_region
        _
      $region16: #{cspblock1_pallas.3} parent=11 // pred_fallthru
        _
      // Predicated region
      $region17: #{cspblock1_pallas.3} parent=11 // pred_check
        %p143 = pneg %p78
      $region18: #{cspblock1_pallas.3} parent=11 // pred_check_branch
        %145 = sbr.rel (%p143) target = $region20
      $region19: #{cspblock1_pallas.3} parent=11 // pred_region
        _
      $region20: #{cspblock1_pallas.3} parent=11 // pred_fallthru
        _
      // Predicated region
      $region21: #{cspblock1_pallas.3} parent=11 // pred_check
        %p146 = pneg %p99
      $region22: #{cspblock1_pallas.3} parent=11 // pred_check_branch
        %148 = sbr.rel (%p146) target = $region24
      $region23: #{cspblock1_pallas.3} parent=11 // pred_region
        _
      $region24: #{cspblock1_pallas.3} parent=11 // pred_fallthru
        _
    $region12: #{cspblock1_pallas.3} parent=5 // pred_fallthru
      _
    %p149 = scmp.lt.s32.totalorder %s10, 2
    // Predicated region
    $region25: #{cspblock1_pallas.3} parent=5 // pred_check
      %p150 = pneg %p149
    $region26: #{cspblock1_pallas.3} parent=5 // pred_check_branch
      %152 = sbr.rel (%p150) target = $region28
    $region27: #{cspblock1_pallas.3} parent=5 // pred_region
      // Predicated region
      $region29: #{cspblock1_pallas.3} parent=27 // pred_check
        %p153 = pneg %p30
      $region30: #{cspblock1_pallas.3} parent=27 // pred_check_branch
        %155 = sbr.rel (%p153) target = $region32
      $region31: #{cspblock1_pallas.3} parent=27 // pred_region
        %s156 = smul.u32 32, %s10
        %p157 = scmp.lt.s32.totalorder %s156, 63
        %s158 = scalar_select %p157, %s156, 63
        %s159 = smul.addr %s158, 8
        %s160 = scalar_lea.vmem %s0, %s159
        %s161 = smul.u32 32, %s10
      $region32: #{cspblock1_pallas.3} parent=27 // pred_fallthru
        _
    $region28: #{cspblock1_pallas.3} parent=5 // pred_fallthru
      _
    %p162 = scmp.le.s32.totalorder 1, %s10
    %p163 = scmp.lt.s32.totalorder %s10, 3
    %p164 = pnand %p162, %p163
    %p165 = pneg %p164
    // Predicated region
    $region33: #{cspblock1_pallas.3} parent=5 // pred_check
      _
    $region34: #{cspblock1_pallas.3} parent=5 // pred_check_branch
      %167 = sbr.rel (%p164) target = $region36
    $region35: #{cspblock1_pallas.3} parent=5 // pred_region
      %s168 = ssub.s32 %s10, 1
      %s169 = smul.u32 32, %s15
      %p170 = scmp.lt.s32.totalorder %s169, 63
      %s171 = scalar_select %p170, %s169, 63
      %s172 = smul.addr %s171, 8
      %s173 = scalar_lea.vmem %s0, %s172
      %p174 = pneg %p36
      %p175 = pneg %p33
      %p176 = pneg %p57
      %p177 = pneg %p54
      %p178 = pneg %p78
      %p179 = pneg %p75
      %p180 = pneg %p99
      %p181 = pneg %p96
      %p182 = pneg %p125
      %p183 = pneg %p122
      %s184 = smul.u32 32, %s15
      %p185 = scmp.lt.s32.totalorder %s184, 63
      %s186 = scalar_select %p185, %s184, 63
      %s187 = smul.addr %s186, 8
      %s188 = scalar_lea.vmem %s4, %s187
      %s189 = smul.u32 32, %s15
      %p190 = scmp.lt.s32.totalorder %s189, 63
      %s191 = scalar_select %p190, %s189, 63
      %s192 = smul.addr %s191, 8
      %s193 = scalar_lea.vmem %s0, %s192
      %s194 = smul.u32 32, %s15
      %s195 = smul.u32 32, %s15
      %p196 = scmp.lt.s32.totalorder %s195, 63
      %s197 = scalar_select %p196, %s195, 63
      %s198 = smul.addr %s197, 8
      %s199 = scalar_lea.vmem %s4, %s198
      %s200 = smul.u32 32, %s15
      %v202 = vld [vmem:[%s193] sm:$0xff]
      %v203 = vld [vmem:[%s193 + $0x8] sm:$0xff]
      %v204 = vld [vmem:[%s193 + $0x10] sm:$0xff]
      %v205 = vld [vmem:[%s193 + $0x18] sm:$0xff]
      %v206 = vld [vmem:[%s193 + $0x20] sm:$0xff]
      %v207 = vld [vmem:[%s193 + $0x28] sm:$0xff]
      %v208 = vld [vmem:[%s193 + $0x30] sm:$0xff]
      %v209 = vld [vmem:[%s193 + $0x38] sm:$0xff]
      %v210 = vld [vmem:[%s193 + $0x40] sm:$0xff]
      %v211 = vld [vmem:[%s193 + $0x48] sm:$0xff]
      %v212 = vld [vmem:[%s193 + $0x50] sm:$0xff]
      %v213 = vld [vmem:[%s193 + $0x58] sm:$0xff]
      %v214 = vld [vmem:[%s193 + $0x60] sm:$0xff]
      %v215 = vld [vmem:[%s193 + $0x68] sm:$0xff]
      %v216 = vld [vmem:[%s193 + $0x70] sm:$0xff]
      %v217 = vld [vmem:[%s193 + $0x78] sm:$0xff]
      %v218 = vld [vmem:[%s193 + $0x80] sm:$0xff]
      %v219 = vld [vmem:[%s193 + $0x88] sm:$0xff]
      %v220 = vld [vmem:[%s193 + $0x90] sm:$0xff]
      %v221 = vld [vmem:[%s193 + $0x98] sm:$0xff]
      %v222 = vld [vmem:[%s193 + $0xa0] sm:$0xff]
      %v223 = vld [vmem:[%s193 + $0xa8] sm:$0xff]
      %v224 = vld [vmem:[%s193 + $0xb0] sm:$0xff]
      %v225 = vld [vmem:[%s193 + $0xb8] sm:$0xff]
      %v226 = vld [vmem:[%s193 + $0xc0] sm:$0xff]
      %v227 = vld [vmem:[%s193 + $0xc8] sm:$0xff]
      %v228 = vld [vmem:[%s193 + $0xd0] sm:$0xff]
      %v229 = vld [vmem:[%s193 + $0xd8] sm:$0xff]
      %v230 = vld [vmem:[%s193 + $0xe0] sm:$0xff]
      %v231 = vld [vmem:[%s193 + $0xe8] sm:$0xff]
      %v232 = vld [vmem:[%s193 + $0xf0] sm:$0xff]
      %v233 = vld [vmem:[%s193 + $0xf8] sm:$0xff]
      %v234 = vpack.c.bf16 %v203, %v202
      %v235 = vpack.c.bf16 %v205, %v204
      %v236 = vpack.c.bf16 %v207, %v206
      %v237 = vpack.c.bf16 %v209, %v208
      %v238 = vpack.c.bf16 %v211, %v210
      %v239 = vpack.c.bf16 %v213, %v212
      %v240 = vpack.c.bf16 %v215, %v214
      %v241 = vpack.c.bf16 %v217, %v216
      %v242 = vpack.c.bf16 %v219, %v218
      %v243 = vpack.c.bf16 %v221, %v220
      %v244 = vpack.c.bf16 %v223, %v222
      %v245 = vpack.c.bf16 %v225, %v224
      %v246 = vpack.c.bf16 %v227, %v226
      %v247 = vpack.c.bf16 %v229, %v228
      %v248 = vpack.c.bf16 %v231, %v230
      %v249 = vpack.c.bf16 %v233, %v232
      %v250 = vld [vmem:[%s1] sm:$0xf]
      %v251 = vld [vmem:[%s1 + $0x4] sm:$0xf]
      %v252 = vld [vmem:[%s1 + $0x8] sm:$0xf]
      %v253 = vld [vmem:[%s1 + $0xc] sm:$0xf]
      %v254 = vld [vmem:[%s1 + $0x10] sm:$0xf]
      %v255 = vld [vmem:[%s1 + $0x14] sm:$0xf]
      %v256 = vld [vmem:[%s1 + $0x18] sm:$0xf]
      %v257 = vld [vmem:[%s1 + $0x1c] sm:$0xf]
      %v258 = vld [vmem:[%s1 + $0x20] sm:$0xf]
      %v259 = vld [vmem:[%s1 + $0x24] sm:$0xf]
      %v260 = vld [vmem:[%s1 + $0x28] sm:$0xf]
      %v261 = vld [vmem:[%s1 + $0x2c] sm:$0xf]
      %v262 = vld [vmem:[%s1 + $0x30] sm:$0xf]
      %v263 = vld [vmem:[%s1 + $0x34] sm:$0xf]
      %v264 = vld [vmem:[%s1 + $0x38] sm:$0xf]
      %v265 = vld [vmem:[%s1 + $0x3c] sm:$0xf]
      %v282 = vunpack.c.l.b16 %v250
      %v283 = vunpack.c.l.b16 %v251
      %v284 = vunpack.c.l.b16 %v252
      %v285 = vunpack.c.l.b16 %v253
      %v286 = vunpack.c.l.b16 %v254
      %v287 = vunpack.c.l.b16 %v255
      %v288 = vunpack.c.l.b16 %v256
      %v289 = vunpack.c.l.b16 %v257
      %v290 = vunpack.c.l.b16 %v258
      %v291 = vunpack.c.l.b16 %v259
      %v292 = vunpack.c.l.b16 %v260
      %v293 = vunpack.c.l.b16 %v261
      %v294 = vunpack.c.l.b16 %v262
      %v295 = vunpack.c.l.b16 %v263
      %v296 = vunpack.c.l.b16 %v264
      %v297 = vunpack.c.l.b16 %v265
      %v298 = vpack.c.b16 %v283, %v282
      %v299 = vpack.c.b16 %v285, %v284
      %v300 = vpack.c.b16 %v287, %v286
      %v301 = vpack.c.b16 %v289, %v288
      %v302 = vpack.c.b16 %v291, %v290
      %v303 = vpack.c.b16 %v293, %v292
      %v304 = vpack.c.b16 %v295, %v294
      %v305 = vpack.c.b16 %v297, %v296
      %314 = vmatprep.subr.bf16.mxu0 0
      %315 = vmatpush1.bf16.msra.mxu0 %v298
      %316 = vmatprep.subr.bf16.mxu0 0
      %317 = vmatpush1.bf16.msra.mxu0 %v299
      %318 = vmatprep.subr.bf16.mxu0 0
      %319 = vmatpush1.bf16.msra.mxu0 %v300
      %320 = vmatprep.subr.bf16.mxu0 0
      %321 = vmatpush1.bf16.msra.mxu0 %v301
      %322 = vmatprep.subr.bf16.mxu0 0
      %323 = vmatpush1.bf16.msra.mxu0 %v302
      %324 = vmatprep.subr.bf16.mxu0 0
      %325 = vmatpush1.bf16.msra.mxu0 %v303
      %326 = vmatprep.subr.bf16.mxu0 0
      %327 = vmatpush1.bf16.msra.mxu0 %v304
      %328 = vmatprep.subr.bf16.mxu0 0
      %329 = vmatpush1.bf16.msra.mxu0 %v305
      %330 = vmatprep.subr.bf16.mxu0 0
      %331 = vmatpush1.bf16.msra.mxu0 0
      %332 = vmatprep.subr.bf16.mxu0 0
      %333 = vmatpush1.bf16.msra.mxu0 0
      %334 = vmatprep.subr.bf16.mxu0 0
      %335 = vmatpush1.bf16.msra.mxu0 0
      %336 = vmatprep.subr.bf16.mxu0 0
      %337 = vmatpush1.bf16.msra.mxu0 0
      %338 = vmatprep.subr.bf16.mxu0 0
      %339 = vmatpush1.bf16.msra.mxu0 0
      %340 = vmatprep.subr.bf16.mxu0 0
      %341 = vmatpush1.bf16.msra.mxu0 0
      %342 = vmatprep.subr.bf16.mxu0 0
      %343 = vmatpush1.bf16.msra.mxu0 0
      %344 = vmatprep.subr.bf16.mxu0 0
      %345 = vmatpush1.bf16.msra.mxu0 0
      %346 = vmatprep.mubr.bf16.mxu0 0
      %347 = vmatmul.mubr.bf16.gmra.mrb[0].mxu0 %v234
      %v348 = vpop.f32.mrb[0].mxu0
      %v349 = vadd.f32 0.0, %v348
      %v350 = vpop.f32.mrb[0].mxu0
      %v351 = vpop.f32.mrb[0].mxu0
      %v352 = vadd.f32 0.0, %v351
      %v353 = vpop.f32.mrb[0].mxu0
      %354 = vmatprep.mubr.bf16.mxu0 0
      %355 = vmatmul.mubr.bf16.gmra.mrb[0].mxu0 %v235
      %v356 = vpop.f32.mrb[0].mxu0
      %v357 = vadd.f32 0.0, %v356
      %v358 = vpop.f32.mrb[0].mxu0
      %v359 = vpop.f32.mrb[0].mxu0
      %v360 = vadd.f32 0.0, %v359
      %v361 = vpop.f32.mrb[0].mxu0
      %362 = vmatprep.mubr.bf16.mxu0 0
      %363 = vmatmul.mubr.bf16.gmra.mrb[0].mxu0 %v236
      %v364 = vpop.f32.mrb[0].mxu0
      %v365 = vadd.f32 0.0, %v364
      %v366 = vpop.f32.mrb[0].mxu0
      %v367 = vpop.f32.mrb[0].mxu0
      %v368 = vadd.f32 0.0, %v367
      %v369 = vpop.f32.mrb[0].mxu0
      %370 = vmatprep.mubr.bf16.mxu0 0
      %371 = vmatmul.mubr.bf16.gmra.mrb[0].mxu0 %v237
      %v372 = vpop.f32.mrb[0].mxu0
      %v373 = vadd.f32 0.0, %v372
      %v374 = vpop.f32.mrb[0].mxu0
      %v375 = vpop.f32.mrb[0].mxu0
      %v376 = vadd.f32 0.0, %v375
      %v377 = vpop.f32.mrb[0].mxu0
      %378 = vmatprep.mubr.bf16.mxu0 0
      %379 = vmatmul.mubr.bf16.gmra.mrb[0].mxu0 %v238
      %v380 = vpop.f32.mrb[0].mxu0
      %v381 = vadd.f32 0.0, %v380
      %v382 = vpop.f32.mrb[0].mxu0
      %v383 = vpop.f32.mrb[0].mxu0
      %v384 = vadd.f32 0.0, %v383
      %v385 = vpop.f32.mrb[0].mxu0
      %386 = vmatprep.mubr.bf16.mxu0 0
      %387 = vmatmul.mubr.bf16.gmra.mrb[0].mxu0 %v239
      %v388 = vpop.f32.mrb[0].mxu0
      %v389 = vadd.f32 0.0, %v388
      %v390 = vpop.f32.mrb[0].mxu0
      %v391 = vpop.f32.mrb[0].mxu0
      %v392 = vadd.f32 0.0, %v391
      %v393 = vpop.f32.mrb[0].mxu0
      %394 = vmatprep.mubr.bf16.mxu0 0
      %395 = vmatmul.mubr.bf16.gmra.mrb[0].mxu0 %v240
      %v396 = vpop.f32.mrb[0].mxu0
      %v397 = vadd.f32 0.0, %v396
      %v398 = vpop.f32.mrb[0].mxu0
      %v399 = vpop.f32.mrb[0].mxu0
      %v400 = vadd.f32 0.0, %v399
      %v401 = vpop.f32.mrb[0].mxu0
      %402 = vmatprep.mubr.bf16.mxu0 0
      %403 = vmatmul.mubr.bf16.gmra.mrb[0].mxu0 %v241
      %v404 = vpop.f32.mrb[0].mxu0
      %v405 = vadd.f32 0.0, %v404
      %v406 = vpop.f32.mrb[0].mxu0
      %v407 = vpop.f32.mrb[0].mxu0
      %v408 = vadd.f32 0.0, %v407
      %v409 = vpop.f32.mrb[0].mxu0
      %410 = vmatprep.mubr.bf16.mxu0 0
      %411 = vmatmul.mubr.bf16.gmra.mrb[0].mxu0 %v242
      %v412 = vpop.f32.mrb[0].mxu0
      %v413 = vadd.f32 0.0, %v412
      %v414 = vpop.f32.mrb[0].mxu0
      %v415 = vpop.f32.mrb[0].mxu0
      %v416 = vadd.f32 0.0, %v415
      %v417 = vpop.f32.mrb[0].mxu0
      %418 = vmatprep.mubr.bf16.mxu0 0
      %419 = vmatmul.mubr.bf16.gmra.mrb[0].mxu0 %v243
      %v420 = vpop.f32.mrb[0].mxu0
      %v421 = vadd.f32 0.0, %v420
      %v422 = vpop.f32.mrb[0].mxu0
      %v423 = vpop.f32.mrb[0].mxu0
      %v424 = vadd.f32 0.0, %v423
      %v425 = vpop.f32.mrb[0].mxu0
      %426 = vmatprep.mubr.bf16.mxu0 0
      %427 = vmatmul.mubr.bf16.gmra.mrb[0].mxu0 %v244
      %v428 = vpop.f32.mrb[0].mxu0
      %v429 = vadd.f32 0.0, %v428
      %v430 = vpop.f32.mrb[0].mxu0
      %v431 = vpop.f32.mrb[0].mxu0
      %v432 = vadd.f32 0.0, %v431
      %v433 = vpop.f32.mrb[0].mxu0
      %434 = vmatprep.mubr.bf16.mxu0 0
      %435 = vmatmul.mubr.bf16.gmra.mrb[0].mxu0 %v245
      %v436 = vpop.f32.mrb[0].mxu0
      %v437 = vadd.f32 0.0, %v436
      %v438 = vpop.f32.mrb[0].mxu0
      %v439 = vpop.f32.mrb[0].mxu0
      %v440 = vadd.f32 0.0, %v439
      %v441 = vpop.f32.mrb[0].mxu0
      %442 = vmatprep.mubr.bf16.mxu0 0
      %443 = vmatmul.mubr.bf16.gmra.mrb[0].mxu0 %v246
      %v444 = vpop.f32.mrb[0].mxu0
      %v445 = vadd.f32 0.0, %v444
      %v446 = vpop.f32.mrb[0].mxu0
      %v447 = vpop.f32.mrb[0].mxu0
      %v448 = vadd.f32 0.0, %v447
      %v449 = vpop.f32.mrb[0].mxu0
      %450 = vmatprep.mubr.bf16.mxu0 0
      %451 = vmatmul.mubr.bf16.gmra.mrb[0].mxu0 %v247
      %v452 = vpop.f32.mrb[0].mxu0
      %v453 = vadd.f32 0.0, %v452
      %v454 = vpop.f32.mrb[0].mxu0
      %v455 = vpop.f32.mrb[0].mxu0
      %v456 = vadd.f32 0.0, %v455
      %v457 = vpop.f32.mrb[0].mxu0
      %458 = vmatprep.mubr.bf16.mxu0 0
      %459 = vmatmul.mubr.bf16.gmra.mrb[0].mxu0 %v248
      %v460 = vpop.f32.mrb[0].mxu0
      %v461 = vadd.f32 0.0, %v460
      %v462 = vpop.f32.mrb[0].mxu0
      %v463 = vpop.f32.mrb[0].mxu0
      %v464 = vadd.f32 0.0, %v463
      %v465 = vpop.f32.mrb[0].mxu0
      %466 = vmatprep.mubr.bf16.mxu0 0
      %467 = vmatmul.mubr.bf16.gmra.mrb[0].mxu0 %v249
      %v468 = vpop.f32.mrb[0].mxu0
      %v469 = vadd.f32 0.0, %v468
      %v470 = vpop.f32.mrb[0].mxu0
      %v471 = vpop.f32.mrb[0].mxu0
      %v472 = vadd.f32 0.0, %v471
      %v473 = vpop.f32.mrb[0].mxu0
      %474 = vdwg.mxu0
      %v475 = vld [vmem:[%s2] sm:$0x1]
      %v477 = vlaneseq
      %v478 = vshrl.u32 %v477, 7
      %v479 = vsub.s32 0, %v478
      %v480 = vrot.slane %v475, %v479
      %v482 = vmul.f32 %v349, %v480
      %v483 = vmul.f32 %v352, %v480
      %v484 = vmul.f32 %v357, %v480
      %v485 = vmul.f32 %v360, %v480
      %v486 = vmul.f32 %v365, %v480
      %v487 = vmul.f32 %v368, %v480
      %v488 = vmul.f32 %v373, %v480
      %v489 = vmul.f32 %v376, %v480
      %v490 = vmul.f32 %v381, %v480
      %v491 = vmul.f32 %v384, %v480
      %v492 = vmul.f32 %v389, %v480
      %v493 = vmul.f32 %v392, %v480
      %v494 = vmul.f32 %v397, %v480
      %v495 = vmul.f32 %v400, %v480
      %v496 = vmul.f32 %v405, %v480
      %v497 = vmul.f32 %v408, %v480
      %v498 = vmul.f32 %v413, %v480
      %v499 = vmul.f32 %v416, %v480
      %v500 = vmul.f32 %v421, %v480
      %v501 = vmul.f32 %v424, %v480
      %v502 = vmul.f32 %v429, %v480
      %v503 = vmul.f32 %v432, %v480
      %v504 = vmul.f32 %v437, %v480
      %v505 = vmul.f32 %v440, %v480
      %v506 = vmul.f32 %v445, %v480
      %v507 = vmul.f32 %v448, %v480
      %v508 = vmul.f32 %v453, %v480
      %v509 = vmul.f32 %v456, %v480
      %v510 = vmul.f32 %v461, %v480
      %v511 = vmul.f32 %v464, %v480
      %v512 = vmul.f32 %v469, %v480
      %v513 = vmul.f32 %v472, %v480
      %v514 = vld [vmem:[%s3] sm:$0x1]
      %v516 = vlaneseq
      %v517 = vshrl.u32 %v516, 7
      %v518 = vsub.s32 0, %v517
      %v519 = vrot.slane %v514, %v518
      %v521 = vadd.f32 %v482, %v519
      %v522 = vadd.f32 %v483, %v519
      %v523 = vadd.f32 %v484, %v519
      %v524 = vadd.f32 %v485, %v519
      %v525 = vadd.f32 %v486, %v519
      %v526 = vadd.f32 %v487, %v519
      %v527 = vadd.f32 %v488, %v519
      %v528 = vadd.f32 %v489, %v519
      %v529 = vadd.f32 %v490, %v519
      %v530 = vadd.f32 %v491, %v519
      %v531 = vadd.f32 %v492, %v519
      %v532 = vadd.f32 %v493, %v519
      %v533 = vadd.f32 %v494, %v519
      %v534 = vadd.f32 %v495, %v519
      %v535 = vadd.f32 %v496, %v519
      %v536 = vadd.f32 %v497, %v519
      %v537 = vadd.f32 %v498, %v519
      %v538 = vadd.f32 %v499, %v519
      %v539 = vadd.f32 %v500, %v519
      %v540 = vadd.f32 %v501, %v519
      %v541 = vadd.f32 %v502, %v519
      %v542 = vadd.f32 %v503, %v519
      %v543 = vadd.f32 %v504, %v519
      %v544 = vadd.f32 %v505, %v519
      %v545 = vadd.f32 %v506, %v519
      %v546 = vadd.f32 %v507, %v519
      %v547 = vadd.f32 %v508, %v519
      %v548 = vadd.f32 %v509, %v519
      %v549 = vadd.f32 %v510, %v519
      %v550 = vadd.f32 %v511, %v519
      %v551 = vadd.f32 %v512, %v519
      %v552 = vadd.f32 %v513, %v519
      %v553 = vmin.f32 %v521, 20.0
      %v554 = vmin.f32 %v522, 20.0
      %v555 = vmin.f32 %v523, 20.0
      %v556 = vmin.f32 %v524, 20.0
      %v557 = vmin.f32 %v525, 20.0
      %v558 = vmin.f32 %v526, 20.0
      %v559 = vmin.f32 %v527, 20.0
      %v560 = vmin.f32 %v528, 20.0
      %v561 = vmin.f32 %v529, 20.0
      %v562 = vmin.f32 %v530, 20.0
      %v563 = vmin.f32 %v531, 20.0
      %v564 = vmin.f32 %v532, 20.0
      %v565 = vmin.f32 %v533, 20.0
      %v566 = vmin.f32 %v534, 20.0
      %v567 = vmin.f32 %v535, 20.0
      %v568 = vmin.f32 %v536, 20.0
      %v569 = vmin.f32 %v537, 20.0
      %v570 = vmin.f32 %v538, 20.0
      %v571 = vmin.f32 %v539, 20.0
      %v572 = vmin.f32 %v540, 20.0
      %v573 = vmin.f32 %v541, 20.0
      %v574 = vmin.f32 %v542, 20.0
      %v575 = vmin.f32 %v543, 20.0
      %v576 = vmin.f32 %v544, 20.0
      %v577 = vmin.f32 %v545, 20.0
      %v578 = vmin.f32 %v546, 20.0
      %v579 = vmin.f32 %v547, 20.0
      %v580 = vmin.f32 %v548, 20.0
      %v581 = vmin.f32 %v549, 20.0
      %v582 = vmin.f32 %v550, 20.0
      %v583 = vmin.f32 %v551, 20.0
      %v584 = vmin.f32 %v552, 20.0
      %v585 = vmul.f32 %v553, 1.442695
      %v586 = vpow.pop %v585
      %v587 = vmul.f32 %v554, 1.442695
      %v588 = vpow.pop %v587
      %v589 = vmul.f32 %v555, 1.442695
      %v590 = vpow.pop %v589
      %v591 = vmul.f32 %v556, 1.442695
      %v592 = vpow.pop %v591
      %v593 = vmul.f32 %v557, 1.442695
      %v594 = vpow.pop %v593
      %v595 = vmul.f32 %v558, 1.442695
      %v596 = vpow.pop %v595
      %v597 = vmul.f32 %v559, 1.442695
      %v598 = vpow.pop %v597
      %v599 = vmul.f32 %v560, 1.442695
      %v600 = vpow.pop %v599
      %v601 = vmul.f32 %v561, 1.442695
      %v602 = vpow.pop %v601
      %v603 = vmul.f32 %v562, 1.442695
      %v604 = vpow.pop %v603
      %v605 = vmul.f32 %v563, 1.442695
      %v606 = vpow.pop %v605
      %v607 = vmul.f32 %v564, 1.442695
      %v608 = vpow.pop %v607
      %v609 = vmul.f32 %v565, 1.442695
      %v610 = vpow.pop %v609
      %v611 = vmul.f32 %v566, 1.442695
      %v612 = vpow.pop %v611
      %v613 = vmul.f32 %v567, 1.442695
      %v614 = vpow.pop %v613
      %v615 = vmul.f32 %v568, 1.442695
      %v616 = vpow.pop %v615
      %v617 = vmul.f32 %v569, 1.442695
      %v618 = vpow.pop %v617
      %v619 = vmul.f32 %v570, 1.442695
      %v620 = vpow.pop %v619
      %v621 = vmul.f32 %v571, 1.442695
      %v622 = vpow.pop %v621
      %v623 = vmul.f32 %v572, 1.442695
      %v624 = vpow.pop %v623
      %v625 = vmul.f32 %v573, 1.442695
      %v626 = vpow.pop %v625
      %v627 = vmul.f32 %v574, 1.442695
      %v628 = vpow.pop %v627
      %v629 = vmul.f32 %v575, 1.442695
      %v630 = vpow.pop %v629
      %v631 = vmul.f32 %v576, 1.442695
      %v632 = vpow.pop %v631
      %v633 = vmul.f32 %v577, 1.442695
      %v634 = vpow.pop %v633
      %v635 = vmul.f32 %v578, 1.442695
      %v636 = vpow.pop %v635
      %v637 = vmul.f32 %v579, 1.442695
      %v638 = vpow.pop %v637
      %v639 = vmul.f32 %v580, 1.442695
      %v640 = vpow.pop %v639
      %v641 = vmul.f32 %v581, 1.442695
      %v642 = vpow.pop %v641
      %v643 = vmul.f32 %v582, 1.442695
      %v644 = vpow.pop %v643
      %v645 = vmul.f32 %v583, 1.442695
      %v646 = vpow.pop %v645
      %v647 = vmul.f32 %v584, 1.442695
      %v648 = vpow.pop %v647
      %v649 = vadd.f32 %v586, 1.0
      %v650 = vadd.f32 %v588, 1.0
      %v651 = vadd.f32 %v590, 1.0
      %v652 = vadd.f32 %v592, 1.0
      %v653 = vadd.f32 %v594, 1.0
      %v654 = vadd.f32 %v596, 1.0
      %v655 = vadd.f32 %v598, 1.0
      %v656 = vadd.f32 %v600, 1.0
      %v657 = vadd.f32 %v602, 1.0
      %v658 = vadd.f32 %v604, 1.0
      %v659 = vadd.f32 %v606, 1.0
      %v660 = vadd.f32 %v608, 1.0
      %v661 = vadd.f32 %v610, 1.0
      %v662 = vadd.f32 %v612, 1.0
      %v663 = vadd.f32 %v614, 1.0
      %v664 = vadd.f32 %v616, 1.0
      %v665 = vadd.f32 %v618, 1.0
      %v666 = vadd.f32 %v620, 1.0
      %v667 = vadd.f32 %v622, 1.0
      %v668 = vadd.f32 %v624, 1.0
      %v669 = vadd.f32 %v626, 1.0
      %v670 = vadd.f32 %v628, 1.0
      %v671 = vadd.f32 %v630, 1.0
      %v672 = vadd.f32 %v632, 1.0
      %v673 = vadd.f32 %v634, 1.0
      %v674 = vadd.f32 %v636, 1.0
      %v675 = vadd.f32 %v638, 1.0
      %v676 = vadd.f32 %v640, 1.0
      %v677 = vadd.f32 %v642, 1.0
      %v678 = vadd.f32 %v644, 1.0
      %v679 = vadd.f32 %v646, 1.0
      %v680 = vadd.f32 %v648, 1.0
      %v681 = vmul.f32 %v649, %v649
      %v682 = vmul.f32 %v650, %v650
      %v683 = vmul.f32 %v651, %v651
      %v684 = vmul.f32 %v652, %v652
      %v685 = vmul.f32 %v653, %v653
      %v686 = vmul.f32 %v654, %v654
      %v687 = vmul.f32 %v655, %v655
      %v688 = vmul.f32 %v656, %v656
      %v689 = vmul.f32 %v657, %v657
      %v690 = vmul.f32 %v658, %v658
      %v691 = vmul.f32 %v659, %v659
      %v692 = vmul.f32 %v660, %v660
      %v693 = vmul.f32 %v661, %v661
      %v694 = vmul.f32 %v662, %v662
      %v695 = vmul.f32 %v663, %v663
      %v696 = vmul.f32 %v664, %v664
      %v697 = vmul.f32 %v665, %v665
      %v698 = vmul.f32 %v666, %v666
      %v699 = vmul.f32 %v667, %v667
      %v700 = vmul.f32 %v668, %v668
      %v701 = vmul.f32 %v669, %v669
      %v702 = vmul.f32 %v670, %v670
      %v703 = vmul.f32 %v671, %v671
      %v704 = vmul.f32 %v672, %v672
      %v705 = vmul.f32 %v673, %v673
      %v706 = vmul.f32 %v674, %v674
      %v707 = vmul.f32 %v675, %v675
      %v708 = vmul.f32 %v676, %v676
      %v709 = vmul.f32 %v677, %v677
      %v710 = vmul.f32 %v678, %v678
      %v711 = vmul.f32 %v679, %v679
      %v712 = vmul.f32 %v680, %v680
      %v713 = vsub.f32 %v681, 1.0
      %v714 = vsub.f32 %v682, 1.0
      %v715 = vsub.f32 %v683, 1.0
      %v716 = vsub.f32 %v684, 1.0
      %v717 = vsub.f32 %v685, 1.0
      %v718 = vsub.f32 %v686, 1.0
      %v719 = vsub.f32 %v687, 1.0
      %v720 = vsub.f32 %v688, 1.0
      %v721 = vsub.f32 %v689, 1.0
      %v722 = vsub.f32 %v690, 1.0
      %v723 = vsub.f32 %v691, 1.0
      %v724 = vsub.f32 %v692, 1.0
      %v725 = vsub.f32 %v693, 1.0
      %v726 = vsub.f32 %v694, 1.0
      %v727 = vsub.f32 %v695, 1.0
      %v728 = vsub.f32 %v696, 1.0
      %v729 = vsub.f32 %v697, 1.0
      %v730 = vsub.f32 %v698, 1.0
      %v731 = vsub.f32 %v699, 1.0
      %v732 = vsub.f32 %v700, 1.0
      %v733 = vsub.f32 %v701, 1.0
      %v734 = vsub.f32 %v702, 1.0
      %v735 = vsub.f32 %v703, 1.0
      %v736 = vsub.f32 %v704, 1.0
      %v737 = vsub.f32 %v705, 1.0
      %v738 = vsub.f32 %v706, 1.0
      %v739 = vsub.f32 %v707, 1.0
      %v740 = vsub.f32 %v708, 1.0
      %v741 = vsub.f32 %v709, 1.0
      %v742 = vsub.f32 %v710, 1.0
      %v743 = vsub.f32 %v711, 1.0
      %v744 = vsub.f32 %v712, 1.0
      %v745 = vmul.f32 %v521, %v713
      %v746 = vmul.f32 %v522, %v714
      %v747 = vmul.f32 %v523, %v715
      %v748 = vmul.f32 %v524, %v716
      %v749 = vmul.f32 %v525, %v717
      %v750 = vmul.f32 %v526, %v718
      %v751 = vmul.f32 %v527, %v719
      %v752 = vmul.f32 %v528, %v720
      %v753 = vmul.f32 %v529, %v721
      %v754 = vmul.f32 %v530, %v722
      %v755 = vmul.f32 %v531, %v723
      %v756 = vmul.f32 %v532, %v724
      %v757 = vmul.f32 %v533, %v725
      %v758 = vmul.f32 %v534, %v726
      %v759 = vmul.f32 %v535, %v727
      %v760 = vmul.f32 %v536, %v728
      %v761 = vmul.f32 %v537, %v729
      %v762 = vmul.f32 %v538, %v730
      %v763 = vmul.f32 %v539, %v731
      %v764 = vmul.f32 %v540, %v732
      %v765 = vmul.f32 %v541, %v733
      %v766 = vmul.f32 %v542, %v734
      %v767 = vmul.f32 %v543, %v735
      %v768 = vmul.f32 %v544, %v736
      %v769 = vmul.f32 %v545, %v737
      %v770 = vmul.f32 %v546, %v738
      %v771 = vmul.f32 %v547, %v739
      %v772 = vmul.f32 %v548, %v740
      %v773 = vmul.f32 %v549, %v741
      %v774 = vmul.f32 %v550, %v742
      %v775 = vmul.f32 %v551, %v743
      %v776 = vmul.f32 %v552, %v744
      %v777 = vadd.f32 %v681, 1.0
      %v778 = vadd.f32 %v682, 1.0
      %v779 = vadd.f32 %v683, 1.0
      %v780 = vadd.f32 %v684, 1.0
      %v781 = vadd.f32 %v685, 1.0
      %v782 = vadd.f32 %v686, 1.0
      %v783 = vadd.f32 %v687, 1.0
      %v784 = vadd.f32 %v688, 1.0
      %v785 = vadd.f32 %v689, 1.0
      %v786 = vadd.f32 %v690, 1.0
      %v787 = vadd.f32 %v691, 1.0
      %v788 = vadd.f32 %v692, 1.0
      %v789 = vadd.f32 %v693, 1.0
      %v790 = vadd.f32 %v694, 1.0
      %v791 = vadd.f32 %v695, 1.0
      %v792 = vadd.f32 %v696, 1.0
      %v793 = vadd.f32 %v697, 1.0
      %v794 = vadd.f32 %v698, 1.0
      %v795 = vadd.f32 %v699, 1.0
      %v796 = vadd.f32 %v700, 1.0
      %v797 = vadd.f32 %v701, 1.0
      %v798 = vadd.f32 %v702, 1.0
      %v799 = vadd.f32 %v703, 1.0
      %v800 = vadd.f32 %v704, 1.0
      %v801 = vadd.f32 %v705, 1.0
      %v802 = vadd.f32 %v706, 1.0
      %v803 = vadd.f32 %v707, 1.0
      %v804 = vadd.f32 %v708, 1.0
      %v805 = vadd.f32 %v709, 1.0
      %v806 = vadd.f32 %v710, 1.0
      %v807 = vadd.f32 %v711, 1.0
      %v808 = vadd.f32 %v712, 1.0
      %v809 = vrcp.pop %v777
      %v810 = vrcp.pop %v778
      %v811 = vrcp.pop %v779
      %v812 = vrcp.pop %v780
      %v813 = vrcp.pop %v781
      %v814 = vrcp.pop %v782
      %v815 = vrcp.pop %v783
      %v816 = vrcp.pop %v784
      %v817 = vrcp.pop %v785
      %v818 = vrcp.pop %v786
      %v819 = vrcp.pop %v787
      %v820 = vrcp.pop %v788
      %v821 = vrcp.pop %v789
      %v822 = vrcp.pop %v790
      %v823 = vrcp.pop %v791
      %v824 = vrcp.pop %v792
      %v825 = vrcp.pop %v793
      %v826 = vrcp.pop %v794
      %v827 = vrcp.pop %v795
      %v828 = vrcp.pop %v796
      %v829 = vrcp.pop %v797
      %v830 = vrcp.pop %v798
      %v831 = vrcp.pop %v799
      %v832 = vrcp.pop %v800
      %v833 = vrcp.pop %v801
      %v834 = vrcp.pop %v802
      %v835 = vrcp.pop %v803
      %v836 = vrcp.pop %v804
      %v837 = vrcp.pop %v805
      %v838 = vrcp.pop %v806
      %v839 = vrcp.pop %v807
      %v840 = vrcp.pop %v808
      %v841 = vmul.f32 %v745, %v809
      %v842 = vmul.f32 %v746, %v810
      %v843 = vmul.f32 %v747, %v811
      %v844 = vmul.f32 %v748, %v812
      %v845 = vmul.f32 %v749, %v813
      %v846 = vmul.f32 %v750, %v814
      %v847 = vmul.f32 %v751, %v815
      %v848 = vmul.f32 %v752, %v816
      %v849 = vmul.f32 %v753, %v817
      %v850 = vmul.f32 %v754, %v818
      %v851 = vmul.f32 %v755, %v819
      %v852 = vmul.f32 %v756, %v820
      %v853 = vmul.f32 %v757, %v821
      %v854 = vmul.f32 %v758, %v822
      %v855 = vmul.f32 %v759, %v823
      %v856 = vmul.f32 %v760, %v824
      %v857 = vmul.f32 %v761, %v825
      %v858 = vmul.f32 %v762, %v826
      %v859 = vmul.f32 %v763, %v827
      %v860 = vmul.f32 %v764, %v828
      %v861 = vmul.f32 %v765, %v829
      %v862 = vmul.f32 %v766, %v830
      %v863 = vmul.f32 %v767, %v831
      %v864 = vmul.f32 %v768, %v832
      %v865 = vmul.f32 %v769, %v833
      %v866 = vmul.f32 %v770, %v834
      %v867 = vmul.f32 %v771, %v835
      %v868 = vmul.f32 %v772, %v836
      %v869 = vmul.f32 %v773, %v837
      %v870 = vmul.f32 %v774, %v838
      %v871 = vmul.f32 %v775, %v839
      %v872 = vmul.f32 %v776, %v840
      %873 = vst [vmem:[%s199] sm:$0xff] %v841
      %874 = vst [vmem:[%s199 + $0x8] sm:$0xff] %v842
      %875 = vst [vmem:[%s199 + $0x10] sm:$0xff] %v843
      %876 = vst [vmem:[%s199 + $0x18] sm:$0xff] %v844
      %877 = vst [vmem:[%s199 + $0x20] sm:$0xff] %v845
      %878 = vst [vmem:[%s199 + $0x28] sm:$0xff] %v846
      %879 = vst [vmem:[%s199 + $0x30] sm:$0xff] %v847
      %880 = vst [vmem:[%s199 + $0x38] sm:$0xff] %v848
      %881 = vst [vmem:[%s199 + $0x40] sm:$0xff] %v849
      %882 = vst [vmem:[%s199 + $0x48] sm:$0xff] %v850
      %883 = vst [vmem:[%s199 + $0x50] sm:$0xff] %v851
      %884 = vst [vmem:[%s199 + $0x58] sm:$0xff] %v852
      %885 = vst [vmem:[%s199 + $0x60] sm:$0xff] %v853
      %886 = vst [vmem:[%s199 + $0x68] sm:$0xff] %v854
      %887 = vst [vmem:[%s199 + $0x70] sm:$0xff] %v855
      %888 = vst [vmem:[%s199 + $0x78] sm:$0xff] %v856
      %889 = vst [vmem:[%s199 + $0x80] sm:$0xff] %v857
      %890 = vst [vmem:[%s199 + $0x88] sm:$0xff] %v858
      %891 = vst [vmem:[%s199 + $0x90] sm:$0xff] %v859
      %892 = vst [vmem:[%s199 + $0x98] sm:$0xff] %v860
      %893 = vst [vmem:[%s199 + $0xa0] sm:$0xff] %v861
      %894 = vst [vmem:[%s199 + $0xa8] sm:$0xff] %v862
      %895 = vst [vmem:[%s199 + $0xb0] sm:$0xff] %v863
      %896 = vst [vmem:[%s199 + $0xb8] sm:$0xff] %v864
      %897 = vst [vmem:[%s199 + $0xc0] sm:$0xff] %v865
      %898 = vst [vmem:[%s199 + $0xc8] sm:$0xff] %v866
      %899 = vst [vmem:[%s199 + $0xd0] sm:$0xff] %v867
      %900 = vst [vmem:[%s199 + $0xd8] sm:$0xff] %v868
      %901 = vst [vmem:[%s199 + $0xe0] sm:$0xff] %v869
      %902 = vst [vmem:[%s199 + $0xe8] sm:$0xff] %v870
      %903 = vst [vmem:[%s199 + $0xf0] sm:$0xff] %v871
      %904 = vst [vmem:[%s199 + $0xf8] sm:$0xff] %v872
      %s905 = smul.u32 32, %s15
      %p906 = scmp.lt.s32.totalorder %s905, 63
      %s907 = scalar_select %p906, %s905, 63
      %s908 = smul.addr %s907, 8
      %s909 = scalar_lea.vmem %s4, %s908
      // Predicated region
      $region37: #{cspblock1_pallas.3} parent=35 // pred_check
        %p910 = pneg %p122
      $region38: #{cspblock1_pallas.3} parent=35 // pred_check_branch
        %912 = sbr.rel (%p910) target = $region40
      $region39: #{cspblock1_pallas.3} parent=35 // pred_region
        %s913 = smul.u32 32, %s15
      $region40: #{cspblock1_pallas.3} parent=35 // pred_fallthru
        _
    $region36: #{cspblock1_pallas.3} parent=5 // pred_fallthru
      _
    %p914 = scmp.le.s32.totalorder 2, %s10
    // Predicated region
    $region41: #{cspblock1_pallas.3} parent=5 // pred_check
      %p915 = pneg %p914
    $region42: #{cspblock1_pallas.3} parent=5 // pred_check_branch
      %917 = sbr.rel (%p915) target = $region44
    $region43: #{cspblock1_pallas.3} parent=5 // pred_region
      %s918 = ssub.s32 %s10, 2
      // Predicated region
      $region45: #{cspblock1_pallas.3} parent=43 // pred_check
        %p919 = pneg %p128
      $region46: #{cspblock1_pallas.3} parent=43 // pred_check_branch
        %921 = sbr.rel (%p919) target = $region48
      $region47: #{cspblock1_pallas.3} parent=43 // pred_region
        %s922 = smul.u32 32, %s16
        %p923 = scmp.lt.s32.totalorder %s922, 63
        %s924 = scalar_select %p923, %s922, 63
        %s925 = smul.addr %s924, 8
        %s926 = scalar_lea.vmem %s4, %s925
      $region48: #{cspblock1_pallas.3} parent=43 // pred_fallthru
        _
    $region44: #{cspblock1_pallas.3} parent=5 // pred_fallthru
      _
  $region6: #{cspblock1_pallas.3} parent=0 // loop_footer
    %s14 = sadd.s32 1, %s10
  $region7: #{cspblock1_pallas.3} parent=0 // loop_footer_branch
    %9 = sbr.rel target = $region3
  $region8: #{cspblock1_pallas.3} parent=0 // loop_exit
    _

// kernel: cspblock1_pallas.5
$region0: #{cspblock1_pallas.5}
  #allocation0 [shape = 'u32[]', space=smem, size = 0x4, offset = 0x4, fixed_abs, tag = 'smem constant byte address 0x4 - core index']
  #allocation1 [shape = 'u32[144,128]{1,0:T(1,128)}', space=vmem, size = 0x12000, scoped, tag = 'internal scratch']
  %s0 = inlined_call_operand.vmem [shape: f32[512,128], index: 0, kind: input, shape index: {}]
  %s1 = inlined_call_operand.vmem [shape: f32[512,128], index: 1, kind: input, shape index: {}]
  %s2 = inlined_call_operand.vmem [shape: bf16[128,128], index: 2, kind: input, shape index: {}]
  %s3 = inlined_call_operand.vmem [shape: bf16[128,128], index: 3, kind: input, shape index: {}]
  %s4 = inlined_call_operand.vmem [shape: f32[1,128], index: 4, kind: input, shape index: {}]
  %s5 = inlined_call_operand.vmem [shape: f32[1,128], index: 5, kind: input, shape index: {}]
  %s6 = inlined_call_operand.vmem [shape: f32[1,128], index: 6, kind: input, shape index: {}]
  %s7 = inlined_call_operand.vmem [shape: f32[1,128], index: 7, kind: input, shape index: {}]
  %s8 = inlined_call_operand.vmem [shape: bf16[256,128], index: 8, kind: input, shape index: {}]
  %s9 = inlined_call_operand.vmem [shape: f32[1,128], index: 9, kind: input, shape index: {}]
  %s10 = inlined_call_operand.vmem [shape: f32[1,128], index: 10, kind: input, shape index: {}]
  %s11 = inlined_call_operand.vmem [shape: f32[512,128], index: 11, kind: output, shape index: {}]
  %s12 = sld [smem:[#allocation0]]
  $region77: #{cspblock1_pallas.5} parent=0
    _
  %s14 = ssub.s32 1, %s12
  %s15 = scalar_select 0, %s14, %s12
  loop: start=0, step=1, limit=4
  $region2: #{cspblock1_pallas.5} parent=0 // loop_pre_header
    _
  $region3: #{cspblock1_pallas.5} parent=0 // loop_header
    %s17 = sphi 0, %s21
    %p18 = scmp.ge.s32.totalorder %s17, 4
    %s27 = sphi 0, %s29
    %s30 = sphi 0, %s27
    %s31 = sphi 0, %s30
    %s47 = sphi 0, %s31
    %s53 = sphi 0, %s55
    %s56 = sphi 0, %s53
    %s57 = sphi 0, %s56
    %s73 = sphi 0, %s57
    %s77 = sphi 0, %s77
    %s79 = sphi 0, %s77
    %s80 = sphi 0, %s79
    %s94 = sphi 0, %s80
    %s98 = sphi 0, %s98
    %s100 = sphi 0, %s98
    %s101 = sphi 0, %s100
    %s115 = sphi 0, %s101
    %s119 = sphi 0, %s119
    %s121 = sphi 0, %s119
    %s122 = sphi 0, %s121
    %s136 = sphi 0, %s122
    %s140 = sphi 0, %s140
    %s142 = sphi 0, %s140
    %s143 = sphi 0, %s142
    %s157 = sphi 0, %s143
    %s161 = sphi 0, %s161
    %s163 = sphi 0, %s161
    %s164 = sphi 0, %s163
    %s178 = sphi 0, %s164
    %s182 = sphi 0, %s182
    %s184 = sphi 0, %s182
    %s185 = sphi 0, %s184
    %s199 = sphi 0, %s185
    %s203 = sphi 0, %s203
    %s205 = sphi 0, %s203
    %s206 = sphi 0, %s205
    %s220 = sphi 0, %s206
    %s224 = sphi 0, %s224
    %s226 = sphi 0, %s224
    %s227 = sphi 0, %s226
    %s241 = sphi 0, %s227
    %s245 = sphi 0, %s245
    %s247 = sphi 0, %s245
    %s248 = sphi 0, %s247
    %s262 = sphi 0, %s248
    %s268 = sphi 0, %s270
    %s271 = sphi 0, %s268
    %s272 = sphi 0, %s271
    %s288 = sphi 0, %s272
  $region4: #{cspblock1_pallas.5} parent=0 // loop_header_branch
    %20 = sbr.rel (%p18) target = $region8
  $region5: #{cspblock1_pallas.5} parent=0 // loop_body
    %s22 = ssub.s32 %s17, 1
    %s23 = ssub.s32 %s17, 2
    %s24 = sadd.s32 %s17, 1
    %s25 = ssub.s32 %s17, %s24
    %p26 = scmp.eq.s32.totalorder %s25, 0
    %s28 = sadd.s32 %s27, 1
    %s29 = scalar_select %p26, %s27, %s28
    %p32 = pneg %p26
    %p33 = scmp.eq.s32.totalorder %s17, 1
    %p34 = por %p32, %p33
    %p35 = scmp.ne.s32.totalorder %s27, %s30
    %p36 = scmp.eq.s32.totalorder %s17, 0
    %p37 = por %p35, %p36
    %p38 = scmp.ne.s32.totalorder %s27, %s30
    %p39 = scmp.eq.s32.totalorder %s22, 1
    %p40 = por %p38, %p39
    %p41 = scmp.ne.s32.totalorder %s30, %s31
    %p42 = scmp.eq.s32.totalorder %s22, 0
    %p43 = por %p41, %p42
    %p44 = scmp.ne.s32.totalorder %s30, %s31
    %p45 = scmp.eq.s32.totalorder %s23, 1
    %p46 = por %p44, %p45
    %p48 = scmp.ne.s32.totalorder %s31, %s47
    %p49 = scmp.eq.s32.totalorder %s23, 0
    %p50 = por %p48, %p49
    %s51 = ssub.s32 %s17, %s24
    %p52 = scmp.eq.s32.totalorder %s51, 0
    %s54 = sadd.s32 %s53, 1
    %s55 = scalar_select %p52, %s53, %s54
    %p58 = pneg %p52
    %p59 = scmp.eq.s32.totalorder %s17, 1
    %p60 = por %p58, %p59
    %p61 = scmp.ne.s32.totalorder %s53, %s56
    %p62 = scmp.eq.s32.totalorder %s17, 0
    %p63 = por %p61, %p62
    %p64 = scmp.ne.s32.totalorder %s53, %s56
    %p65 = scmp.eq.s32.totalorder %s22, 1
    %p66 = por %p64, %p65
    %p67 = scmp.ne.s32.totalorder %s56, %s57
    %p68 = scmp.eq.s32.totalorder %s22, 0
    %p69 = por %p67, %p68
    %p70 = scmp.ne.s32.totalorder %s56, %s57
    %p71 = scmp.eq.s32.totalorder %s23, 1
    %p72 = por %p70, %p71
    %p74 = scmp.ne.s32.totalorder %s57, %s73
    %p75 = scmp.eq.s32.totalorder %s23, 0
    %p76 = por %p74, %p75
    %s78 = sadd.s32 %s77, 1
    %p81 = scmp.eq.s32.totalorder %s17, 1
    %p82 = scmp.ne.s32.totalorder %s77, %s79
    %p83 = scmp.eq.s32.totalorder %s17, 0
    %p84 = por %p82, %p83
    %p85 = scmp.ne.s32.totalorder %s77, %s79
    %p86 = scmp.eq.s32.totalorder %s22, 1
    %p87 = por %p85, %p86
    %p88 = scmp.ne.s32.totalorder %s79, %s80
    %p89 = scmp.eq.s32.totalorder %s22, 0
    %p90 = por %p88, %p89
    %p91 = scmp.ne.s32.totalorder %s79, %s80
    %p92 = scmp.eq.s32.totalorder %s23, 1
    %p93 = por %p91, %p92
    %p95 = scmp.ne.s32.totalorder %s80, %s94
    %p96 = scmp.eq.s32.totalorder %s23, 0
    %p97 = por %p95, %p96
    %s99 = sadd.s32 %s98, 1
    %p102 = scmp.eq.s32.totalorder %s17, 1
    %p103 = scmp.ne.s32.totalorder %s98, %s100
    %p104 = scmp.eq.s32.totalorder %s17, 0
    %p105 = por %p103, %p104
    %p106 = scmp.ne.s32.totalorder %s98, %s100
    %p107 = scmp.eq.s32.totalorder %s22, 1
    %p108 = por %p106, %p107
    %p109 = scmp.ne.s32.totalorder %s100, %s101
    %p110 = scmp.eq.s32.totalorder %s22, 0
    %p111 = por %p109, %p110
    %p112 = scmp.ne.s32.totalorder %s100, %s101
    %p113 = scmp.eq.s32.totalorder %s23, 1
    %p114 = por %p112, %p113
    %p116 = scmp.ne.s32.totalorder %s101, %s115
    %p117 = scmp.eq.s32.totalorder %s23, 0
    %p118 = por %p116, %p117
    %s120 = sadd.s32 %s119, 1
    %p123 = scmp.eq.s32.totalorder %s17, 1
    %p124 = scmp.ne.s32.totalorder %s119, %s121
    %p125 = scmp.eq.s32.totalorder %s17, 0
    %p126 = por %p124, %p125
    %p127 = scmp.ne.s32.totalorder %s119, %s121
    %p128 = scmp.eq.s32.totalorder %s22, 1
    %p129 = por %p127, %p128
    %p130 = scmp.ne.s32.totalorder %s121, %s122
    %p131 = scmp.eq.s32.totalorder %s22, 0
    %p132 = por %p130, %p131
    %p133 = scmp.ne.s32.totalorder %s121, %s122
    %p134 = scmp.eq.s32.totalorder %s23, 1
    %p135 = por %p133, %p134
    %p137 = scmp.ne.s32.totalorder %s122, %s136
    %p138 = scmp.eq.s32.totalorder %s23, 0
    %p139 = por %p137, %p138
    %s141 = sadd.s32 %s140, 1
    %p144 = scmp.eq.s32.totalorder %s17, 1
    %p145 = scmp.ne.s32.totalorder %s140, %s142
    %p146 = scmp.eq.s32.totalorder %s17, 0
    %p147 = por %p145, %p146
    %p148 = scmp.ne.s32.totalorder %s140, %s142
    %p149 = scmp.eq.s32.totalorder %s22, 1
    %p150 = por %p148, %p149
    %p151 = scmp.ne.s32.totalorder %s142, %s143
    %p152 = scmp.eq.s32.totalorder %s22, 0
    %p153 = por %p151, %p152
    %p154 = scmp.ne.s32.totalorder %s142, %s143
    %p155 = scmp.eq.s32.totalorder %s23, 1
    %p156 = por %p154, %p155
    %p158 = scmp.ne.s32.totalorder %s143, %s157
    %p159 = scmp.eq.s32.totalorder %s23, 0
    %p160 = por %p158, %p159
    %s162 = sadd.s32 %s161, 1
    %p165 = scmp.eq.s32.totalorder %s17, 1
    %p166 = scmp.ne.s32.totalorder %s161, %s163
    %p167 = scmp.eq.s32.totalorder %s17, 0
    %p168 = por %p166, %p167
    %p169 = scmp.ne.s32.totalorder %s161, %s163
    %p170 = scmp.eq.s32.totalorder %s22, 1
    %p171 = por %p169, %p170
    %p172 = scmp.ne.s32.totalorder %s163, %s164
    %p173 = scmp.eq.s32.totalorder %s22, 0
    %p174 = por %p172, %p173
    %p175 = scmp.ne.s32.totalorder %s163, %s164
    %p176 = scmp.eq.s32.totalorder %s23, 1
    %p177 = por %p175, %p176
    %p179 = scmp.ne.s32.totalorder %s164, %s178
    %p180 = scmp.eq.s32.totalorder %s23, 0
    %p181 = por %p179, %p180
    %s183 = sadd.s32 %s182, 1
    %p186 = scmp.eq.s32.totalorder %s17, 1
    %p187 = scmp.ne.s32.totalorder %s182, %s184
    %p188 = scmp.eq.s32.totalorder %s17, 0
    %p189 = por %p187, %p188
    %p190 = scmp.ne.s32.totalorder %s182, %s184
    %p191 = scmp.eq.s32.totalorder %s22, 1
    %p192 = por %p190, %p191
    %p193 = scmp.ne.s32.totalorder %s184, %s185
    %p194 = scmp.eq.s32.totalorder %s22, 0
    %p195 = por %p193, %p194
    %p196 = scmp.ne.s32.totalorder %s184, %s185
    %p197 = scmp.eq.s32.totalorder %s23, 1
    %p198 = por %p196, %p197
    %p200 = scmp.ne.s32.totalorder %s185, %s199
    %p201 = scmp.eq.s32.totalorder %s23, 0
    %p202 = por %p200, %p201
    %s204 = sadd.s32 %s203, 1
    %p207 = scmp.eq.s32.totalorder %s17, 1
    %p208 = scmp.ne.s32.totalorder %s203, %s205
    %p209 = scmp.eq.s32.totalorder %s17, 0
    %p210 = por %p208, %p209
    %p211 = scmp.ne.s32.totalorder %s203, %s205
    %p212 = scmp.eq.s32.totalorder %s22, 1
    %p213 = por %p211, %p212
    %p214 = scmp.ne.s32.totalorder %s205, %s206
    %p215 = scmp.eq.s32.totalorder %s22, 0
    %p216 = por %p214, %p215
    %p217 = scmp.ne.s32.totalorder %s205, %s206
    %p218 = scmp.eq.s32.totalorder %s23, 1
    %p219 = por %p217, %p218
    %p221 = scmp.ne.s32.totalorder %s206, %s220
    %p222 = scmp.eq.s32.totalorder %s23, 0
    %p223 = por %p221, %p222
    %s225 = sadd.s32 %s224, 1
    %p228 = scmp.eq.s32.totalorder %s17, 1
    %p229 = scmp.ne.s32.totalorder %s224, %s226
    %p230 = scmp.eq.s32.totalorder %s17, 0
    %p231 = por %p229, %p230
    %p232 = scmp.ne.s32.totalorder %s224, %s226
    %p233 = scmp.eq.s32.totalorder %s22, 1
    %p234 = por %p232, %p233
    %p235 = scmp.ne.s32.totalorder %s226, %s227
    %p236 = scmp.eq.s32.totalorder %s22, 0
    %p237 = por %p235, %p236
    %p238 = scmp.ne.s32.totalorder %s226, %s227
    %p239 = scmp.eq.s32.totalorder %s23, 1
    %p240 = por %p238, %p239
    %p242 = scmp.ne.s32.totalorder %s227, %s241
    %p243 = scmp.eq.s32.totalorder %s23, 0
    %p244 = por %p242, %p243
    %s246 = sadd.s32 %s245, 1
    %p249 = scmp.eq.s32.totalorder %s17, 1
    %p250 = scmp.ne.s32.totalorder %s245, %s247
    %p251 = scmp.eq.s32.totalorder %s17, 0
    %p252 = por %p250, %p251
    %p253 = scmp.ne.s32.totalorder %s245, %s247
    %p254 = scmp.eq.s32.totalorder %s22, 1
    %p255 = por %p253, %p254
    %p256 = scmp.ne.s32.totalorder %s247, %s248
    %p257 = scmp.eq.s32.totalorder %s22, 0
    %p258 = por %p256, %p257
    %p259 = scmp.ne.s32.totalorder %s247, %s248
    %p260 = scmp.eq.s32.totalorder %s23, 1
    %p261 = por %p259, %p260
    %p263 = scmp.ne.s32.totalorder %s248, %s262
    %p264 = scmp.eq.s32.totalorder %s23, 0
    %p265 = por %p263, %p264
    %s266 = ssub.s32 %s17, %s24
    %p267 = scmp.eq.s32.totalorder %s266, 0
    %s269 = sadd.s32 %s268, 1
    %s270 = scalar_select %p267, %s268, %s269
    %p273 = pneg %p267
    %p274 = scmp.eq.s32.totalorder %s17, 1
    %p275 = por %p273, %p274
    %p276 = scmp.ne.s32.totalorder %s268, %s271
    %p277 = scmp.eq.s32.totalorder %s17, 0
    %p278 = por %p276, %p277
    %p279 = scmp.ne.s32.totalorder %s268, %s271
    %p280 = scmp.eq.s32.totalorder %s22, 1
    %p281 = por %p279, %p280
    %p282 = scmp.ne.s32.totalorder %s271, %s272
    %p283 = scmp.eq.s32.totalorder %s22, 0
    %p284 = por %p282, %p283
    %p285 = scmp.ne.s32.totalorder %s271, %s272
    %p286 = scmp.eq.s32.totalorder %s23, 1
    %p287 = por %p285, %p286
    %p289 = scmp.ne.s32.totalorder %s272, %s288
    %p290 = scmp.eq.s32.totalorder %s23, 0
    %p291 = por %p289, %p290
    %p292 = scmp.le.s32.totalorder 1, %s17
    %p293 = scmp.lt.s32.totalorder %s17, 3
    %p294 = pnand %p292, %p293
    %p295 = pneg %p294
    // Predicated region
    $region9: #{cspblock1_pallas.5} parent=5 // pred_check
      _
    $region10: #{cspblock1_pallas.5} parent=5 // pred_check_branch
      %297 = sbr.rel (%p294) target = $region12
    $region11: #{cspblock1_pallas.5} parent=5 // pred_region
      %s298 = ssub.s32 %s17, 1
      // Predicated region
      $region13: #{cspblock1_pallas.5} parent=11 // pred_check
        %p299 = pneg %p90
      $region14: #{cspblock1_pallas.5} parent=11 // pred_check_branch
        %301 = sbr.rel (%p299) target = $region16
      $region15: #{cspblock1_pallas.5} parent=11 // pred_region
        _
      $region16: #{cspblock1_pallas.5} parent=11 // pred_fallthru
        _
      // Predicated region
      $region17: #{cspblock1_pallas.5} parent=11 // pred_check
        %p302 = pneg %p111
      $region18: #{cspblock1_pallas.5} parent=11 // pred_check_branch
        %304 = sbr.rel (%p302) target = $region20
      $region19: #{cspblock1_pallas.5} parent=11 // pred_region
        _
      $region20: #{cspblock1_pallas.5} parent=11 // pred_fallthru
        _
      // Predicated region
      $region21: #{cspblock1_pallas.5} parent=11 // pred_check
        %p305 = pneg %p132
      $region22: #{cspblock1_pallas.5} parent=11 // pred_check_branch
        %307 = sbr.rel (%p305) target = $region24
      $region23: #{cspblock1_pallas.5} parent=11 // pred_region
        _
      $region24: #{cspblock1_pallas.5} parent=11 // pred_fallthru
        _
      // Predicated region
      $region25: #{cspblock1_pallas.5} parent=11 // pred_check
        %p308 = pneg %p153
      $region26: #{cspblock1_pallas.5} parent=11 // pred_check_branch
        %310 = sbr.rel (%p308) target = $region28
      $region27: #{cspblock1_pallas.5} parent=11 // pred_region
        _
      $region28: #{cspblock1_pallas.5} parent=11 // pred_fallthru
        _
      // Predicated region
      $region29: #{cspblock1_pallas.5} parent=11 // pred_check
        %p311 = pneg %p174
      $region30: #{cspblock1_pallas.5} parent=11 // pred_check_branch
        %313 = sbr.rel (%p311) target = $region32
      $region31: #{cspblock1_pallas.5} parent=11 // pred_region
        _
      $region32: #{cspblock1_pallas.5} parent=11 // pred_fallthru
        _
      // Predicated region
      $region33: #{cspblock1_pallas.5} parent=11 // pred_check
        %p314 = pneg %p195
      $region34: #{cspblock1_pallas.5} parent=11 // pred_check_branch
        %316 = sbr.rel (%p314) target = $region36
      $region35: #{cspblock1_pallas.5} parent=11 // pred_region
        _
      $region36: #{cspblock1_pallas.5} parent=11 // pred_fallthru
        _
      // Predicated region
      $region37: #{cspblock1_pallas.5} parent=11 // pred_check
        %p317 = pneg %p216
      $region38: #{cspblock1_pallas.5} parent=11 // pred_check_branch
        %319 = sbr.rel (%p317) target = $region40
      $region39: #{cspblock1_pallas.5} parent=11 // pred_region
        _
      $region40: #{cspblock1_pallas.5} parent=11 // pred_fallthru
        _
      // Predicated region
      $region41: #{cspblock1_pallas.5} parent=11 // pred_check
        %p320 = pneg %p237
      $region42: #{cspblock1_pallas.5} parent=11 // pred_check_branch
        %322 = sbr.rel (%p320) target = $region44
      $region43: #{cspblock1_pallas.5} parent=11 // pred_region
        _
      $region44: #{cspblock1_pallas.5} parent=11 // pred_fallthru
        _
      // Predicated region
      $region45: #{cspblock1_pallas.5} parent=11 // pred_check
        %p323 = pneg %p258
      $region46: #{cspblock1_pallas.5} parent=11 // pred_check_branch
        %325 = sbr.rel (%p323) target = $region48
      $region47: #{cspblock1_pallas.5} parent=11 // pred_region
        _
      $region48: #{cspblock1_pallas.5} parent=11 // pred_fallthru
        _
    $region12: #{cspblock1_pallas.5} parent=5 // pred_fallthru
      _
    %p326 = scmp.lt.s32.totalorder %s17, 2
    // Predicated region
    $region49: #{cspblock1_pallas.5} parent=5 // pred_check
      %p327 = pneg %p326
    $region50: #{cspblock1_pallas.5} parent=5 // pred_check_branch
      %329 = sbr.rel (%p327) target = $region52
    $region51: #{cspblock1_pallas.5} parent=5 // pred_region
      // Predicated region
      $region53: #{cspblock1_pallas.5} parent=51 // pred_check
        %p330 = pneg %p37
      $region54: #{cspblock1_pallas.5} parent=51 // pred_check_branch
        %332 = sbr.rel (%p330) target = $region56
      $region55: #{cspblock1_pallas.5} parent=51 // pred_region
        %s333 = smul.u32 32, %s17
        %p334 = scmp.lt.s32.totalorder %s333, 63
        %s335 = scalar_select %p334, %s333, 63
        %s336 = smul.addr %s335, 8
        %s337 = scalar_lea.vmem %s0, %s336
        %s338 = smul.u32 32, %s17
      $region56: #{cspblock1_pallas.5} parent=51 // pred_fallthru
        _
      // Predicated region
      $region57: #{cspblock1_pallas.5} parent=51 // pred_check
        %p339 = pneg %p63
      $region58: #{cspblock1_pallas.5} parent=51 // pred_check_branch
        %341 = sbr.rel (%p339) target = $region60
      $region59: #{cspblock1_pallas.5} parent=51 // pred_region
        %s342 = smul.u32 32, %s17
        %p343 = scmp.lt.s32.totalorder %s342, 63
        %s344 = scalar_select %p343, %s342, 63
        %s345 = smul.addr %s344, 8
        %s346 = scalar_lea.vmem %s1, %s345
        %s347 = smul.u32 32, %s17
      $region60: #{cspblock1_pallas.5} parent=51 // pred_fallthru
        _
    $region52: #{cspblock1_pallas.5} parent=5 // pred_fallthru
      _
    %p348 = scmp.le.s32.totalorder 1, %s17
    %p349 = scmp.lt.s32.totalorder %s17, 3
    %p350 = pnand %p348, %p349
    %p351 = pneg %p350
    // Predicated region
    $region61: #{cspblock1_pallas.5} parent=5 // pred_check
      _
    $region62: #{cspblock1_pallas.5} parent=5 // pred_check_branch
      %353 = sbr.rel (%p350) target = $region64
    $region63: #{cspblock1_pallas.5} parent=5 // pred_region
      %s354 = ssub.s32 %s17, 1
      %s355 = smul.u32 32, %s22
      %p356 = scmp.lt.s32.totalorder %s355, 63
      %s357 = scalar_select %p356, %s355, 63
      %s358 = smul.addr %s357, 8
      %s359 = scalar_lea.vmem %s0, %s358
      %p360 = pneg %p43
      %p361 = pneg %p40
      %s362 = smul.u32 32, %s22
      %p363 = scmp.lt.s32.totalorder %s362, 63
      %s364 = scalar_select %p363, %s362, 63
      %s365 = smul.addr %s364, 8
      %s366 = scalar_lea.vmem %s1, %s365
      %p367 = pneg %p69
      %p368 = pneg %p66
      %p369 = pneg %p90
      %p370 = pneg %p87
      %p371 = pneg %p111
      %p372 = pneg %p108
      %p373 = pneg %p132
      %p374 = pneg %p129
      %p375 = pneg %p153
      %p376 = pneg %p150
      %p377 = pneg %p174
      %p378 = pneg %p171
      %p379 = pneg %p195
      %p380 = pneg %p192
      %p381 = pneg %p216
      %p382 = pneg %p213
      %p383 = pneg %p237
      %p384 = pneg %p234
      %p385 = pneg %p258
      %p386 = pneg %p255
      %p387 = pneg %p284
      %p388 = pneg %p281
      %s389 = smul.u32 32, %s22
      %p390 = scmp.lt.s32.totalorder %s389, 63
      %s391 = scalar_select %p390, %s389, 63
      %s392 = smul.addr %s391, 8
      %s393 = scalar_lea.vmem %s11, %s392
      %s394 = smul.u32 32, %s22
      %p395 = scmp.lt.s32.totalorder %s394, 63
      %s396 = scalar_select %p395, %s394, 63
      %s397 = smul.addr %s396, 8
      %s398 = scalar_lea.vmem %s0, %s397
      %s399 = smul.u32 32, %s22
      %s400 = smul.u32 32, %s22
      %p401 = scmp.lt.s32.totalorder %s400, 63
      %s402 = scalar_select %p401, %s400, 63
      %s403 = smul.addr %s402, 8
      %s404 = scalar_lea.vmem %s1, %s403
      %s405 = smul.u32 32, %s22
      %s406 = smul.u32 32, %s22
      %p407 = scmp.lt.s32.totalorder %s406, 63
      %s408 = scalar_select %p407, %s406, 63
      %s409 = smul.addr %s408, 8
      %s410 = scalar_lea.vmem %s11, %s409
      %s411 = smul.u32 32, %s22
      %v413 = vld [vmem:[%s398] sm:$0xff]
      %v414 = vld [vmem:[%s398 + $0x8] sm:$0xff]
      %v415 = vld [vmem:[%s398 + $0x10] sm:$0xff]
      %v416 = vld [vmem:[%s398 + $0x18] sm:$0xff]
      %v417 = vld [vmem:[%s398 + $0x20] sm:$0xff]
      %v418 = vld [vmem:[%s398 + $0x28] sm:$0xff]
      %v419 = vld [vmem:[%s398 + $0x30] sm:$0xff]
      %v420 = vld [vmem:[%s398 + $0x38] sm:$0xff]
      %v421 = vld [vmem:[%s398 + $0x40] sm:$0xff]
      %v422 = vld [vmem:[%s398 + $0x48] sm:$0xff]
      %v423 = vld [vmem:[%s398 + $0x50] sm:$0xff]
      %v424 = vld [vmem:[%s398 + $0x58] sm:$0xff]
      %v425 = vld [vmem:[%s398 + $0x60] sm:$0xff]
      %v426 = vld [vmem:[%s398 + $0x68] sm:$0xff]
      %v427 = vld [vmem:[%s398 + $0x70] sm:$0xff]
      %v428 = vld [vmem:[%s398 + $0x78] sm:$0xff]
      %v429 = vld [vmem:[%s398 + $0x80] sm:$0xff]
      %v430 = vld [vmem:[%s398 + $0x88] sm:$0xff]
      %v431 = vld [vmem:[%s398 + $0x90] sm:$0xff]
      %v432 = vld [vmem:[%s398 + $0x98] sm:$0xff]
      %v433 = vld [vmem:[%s398 + $0xa0] sm:$0xff]
      %v434 = vld [vmem:[%s398 + $0xa8] sm:$0xff]
      %v435 = vld [vmem:[%s398 + $0xb0] sm:$0xff]
      %v436 = vld [vmem:[%s398 + $0xb8] sm:$0xff]
      %v437 = vld [vmem:[%s398 + $0xc0] sm:$0xff]
      %v438 = vld [vmem:[%s398 + $0xc8] sm:$0xff]
      %v439 = vld [vmem:[%s398 + $0xd0] sm:$0xff]
      %v440 = vld [vmem:[%s398 + $0xd8] sm:$0xff]
      %v441 = vld [vmem:[%s398 + $0xe0] sm:$0xff]
      %v442 = vld [vmem:[%s398 + $0xe8] sm:$0xff]
      %v443 = vld [vmem:[%s398 + $0xf0] sm:$0xff]
      %v444 = vld [vmem:[%s398 + $0xf8] sm:$0xff]
      %v445 = vpack.c.bf16 %v414, %v413
      %v446 = vpack.c.bf16 %v416, %v415
      %v447 = vpack.c.bf16 %v418, %v417
      %v448 = vpack.c.bf16 %v420, %v419
      %v449 = vpack.c.bf16 %v422, %v421
      %v450 = vpack.c.bf16 %v424, %v423
      %v451 = vpack.c.bf16 %v426, %v425
      %v452 = vpack.c.bf16 %v428, %v427
      %v453 = vpack.c.bf16 %v430, %v429
      %v454 = vpack.c.bf16 %v432, %v431
      %v455 = vpack.c.bf16 %v434, %v433
      %v456 = vpack.c.bf16 %v436, %v435
      %v457 = vpack.c.bf16 %v438, %v437
      %v458 = vpack.c.bf16 %v440, %v439
      %v459 = vpack.c.bf16 %v442, %v441
      %v460 = vpack.c.bf16 %v444, %v443
      %v461 = vld [vmem:[%s2] sm:$0xf]
      %v462 = vld [vmem:[%s2 + $0x4] sm:$0xf]
      %v463 = vld [vmem:[%s2 + $0x8] sm:$0xf]
      %v464 = vld [vmem:[%s2 + $0xc] sm:$0xf]
      %v465 = vld [vmem:[%s2 + $0x10] sm:$0xf]
      %v466 = vld [vmem:[%s2 + $0x14] sm:$0xf]
      %v467 = vld [vmem:[%s2 + $0x18] sm:$0xf]
      %v468 = vld [vmem:[%s2 + $0x1c] sm:$0xf]
      %v469 = vld [vmem:[%s2 + $0x20] sm:$0xf]
      %v470 = vld [vmem:[%s2 + $0x24] sm:$0xf]
      %v471 = vld [vmem:[%s2 + $0x28] sm:$0xf]
      %v472 = vld [vmem:[%s2 + $0x2c] sm:$0xf]
      %v473 = vld [vmem:[%s2 + $0x30] sm:$0xf]
      %v474 = vld [vmem:[%s2 + $0x34] sm:$0xf]
      %v475 = vld [vmem:[%s2 + $0x38] sm:$0xf]
      %v476 = vld [vmem:[%s2 + $0x3c] sm:$0xf]
      %v493 = vunpack.c.l.b16 %v461
      %v494 = vunpack.c.l.b16 %v462
      %v495 = vunpack.c.l.b16 %v463
      %v496 = vunpack.c.l.b16 %v464
      %v497 = vunpack.c.l.b16 %v465
      %v498 = vunpack.c.l.b16 %v466
      %v499 = vunpack.c.l.b16 %v467
      %v500 = vunpack.c.l.b16 %v468
      %v501 = vunpack.c.l.b16 %v469
      %v502 = vunpack.c.l.b16 %v470
      %v503 = vunpack.c.l.b16 %v471
      %v504 = vunpack.c.l.b16 %v472
      %v505 = vunpack.c.l.b16 %v473
      %v506 = vunpack.c.l.b16 %v474
      %v507 = vunpack.c.l.b16 %v475
      %v508 = vunpack.c.l.b16 %v476
      %v509 = vpack.c.b16 %v494, %v493
      %v510 = vpack.c.b16 %v496, %v495
      %v511 = vpack.c.b16 %v498, %v497
      %v512 = vpack.c.b16 %v500, %v499
      %v513 = vpack.c.b16 %v502, %v501
      %v514 = vpack.c.b16 %v504, %v503
      %v515 = vpack.c.b16 %v506, %v505
      %v516 = vpack.c.b16 %v508, %v507
      %525 = vmatprep.subr.bf16.mxu0 0
      %526 = vmatpush1.bf16.msra.mxu0 %v509
      %527 = vmatprep.subr.bf16.mxu0 0
      %528 = vmatpush1.bf16.msra.mxu0 %v510
      %529 = vmatprep.subr.bf16.mxu0 0
      %530 = vmatpush1.bf16.msra.mxu0 %v511
      %531 = vmatprep.subr.bf16.mxu0 0
      %532 = vmatpush1.bf16.msra.mxu0 %v512
      %533 = vmatprep.subr.bf16.mxu0 0
      %534 = vmatpush1.bf16.msra.mxu0 %v513
      %535 = vmatprep.subr.bf16.mxu0 0
      %536 = vmatpush1.bf16.msra.mxu0 %v514
      %537 = vmatprep.subr.bf16.mxu0 0
      %538 = vmatpush1.bf16.msra.mxu0 %v515
      %539 = vmatprep.subr.bf16.mxu0 0
      %540 = vmatpush1.bf16.msra.mxu0 %v516
      %541 = vmatprep.subr.bf16.mxu0 0
      %542 = vmatpush1.bf16.msra.mxu0 0
      %543 = vmatprep.subr.bf16.mxu0 0
      %544 = vmatpush1.bf16.msra.mxu0 0
      %545 = vmatprep.subr.bf16.mxu0 0
      %546 = vmatpush1.bf16.msra.mxu0 0
      %547 = vmatprep.subr.bf16.mxu0 0
      %548 = vmatpush1.bf16.msra.mxu0 0
      %549 = vmatprep.subr.bf16.mxu0 0
      %550 = vmatpush1.bf16.msra.mxu0 0
      %551 = vmatprep.subr.bf16.mxu0 0
      %552 = vmatpush1.bf16.msra.mxu0 0
      %553 = vmatprep.subr.bf16.mxu0 0
      %554 = vmatpush1.bf16.msra.mxu0 0
      %555 = vmatprep.subr.bf16.mxu0 0
      %556 = vmatpush1.bf16.msra.mxu0 0
      %557 = vmatprep.mubr.bf16.mxu0 0
      %558 = vmatmul.mubr.bf16.gmra.mrb[0].mxu0 %v445
      %v559 = vpop.f32.mrb[0].mxu0
      %v560 = vadd.f32 0.0, %v559
      %v561 = vpop.f32.mrb[0].mxu0
      %v562 = vpop.f32.mrb[0].mxu0
      %v563 = vadd.f32 0.0, %v562
      %v564 = vpop.f32.mrb[0].mxu0
      %565 = vmatprep.mubr.bf16.mxu0 0
      %566 = vmatmul.mubr.bf16.gmra.mrb[0].mxu0 %v446
      %v567 = vpop.f32.mrb[0].mxu0
      %v568 = vadd.f32 0.0, %v567
      %v569 = vpop.f32.mrb[0].mxu0
      %v570 = vpop.f32.mrb[0].mxu0
      %v571 = vadd.f32 0.0, %v570
      %v572 = vpop.f32.mrb[0].mxu0
      %573 = vmatprep.mubr.bf16.mxu0 0
      %574 = vmatmul.mubr.bf16.gmra.mrb[0].mxu0 %v447
      %v575 = vpop.f32.mrb[0].mxu0
      %v576 = vadd.f32 0.0, %v575
      %v577 = vpop.f32.mrb[0].mxu0
      %v578 = vpop.f32.mrb[0].mxu0
      %v579 = vadd.f32 0.0, %v578
      %v580 = vpop.f32.mrb[0].mxu0
      %581 = vmatprep.mubr.bf16.mxu0 0
      %582 = vmatmul.mubr.bf16.gmra.mrb[0].mxu0 %v448
      %v583 = vpop.f32.mrb[0].mxu0
      %v584 = vadd.f32 0.0, %v583
      %v585 = vpop.f32.mrb[0].mxu0
      %v586 = vpop.f32.mrb[0].mxu0
      %v587 = vadd.f32 0.0, %v586
      %v588 = vpop.f32.mrb[0].mxu0
      %589 = vmatprep.mubr.bf16.mxu0 0
      %590 = vmatmul.mubr.bf16.gmra.mrb[0].mxu0 %v449
      %v591 = vpop.f32.mrb[0].mxu0
      %v592 = vadd.f32 0.0, %v591
      %v593 = vpop.f32.mrb[0].mxu0
      %v594 = vpop.f32.mrb[0].mxu0
      %v595 = vadd.f32 0.0, %v594
      %v596 = vpop.f32.mrb[0].mxu0
      %597 = vmatprep.mubr.bf16.mxu0 0
      %598 = vmatmul.mubr.bf16.gmra.mrb[0].mxu0 %v450
      %v599 = vpop.f32.mrb[0].mxu0
      %v600 = vadd.f32 0.0, %v599
      %v601 = vpop.f32.mrb[0].mxu0
      %v602 = vpop.f32.mrb[0].mxu0
      %v603 = vadd.f32 0.0, %v602
      %v604 = vpop.f32.mrb[0].mxu0
      %605 = vmatprep.mubr.bf16.mxu0 0
      %606 = vmatmul.mubr.bf16.gmra.mrb[0].mxu0 %v451
      %v607 = vpop.f32.mrb[0].mxu0
      %v608 = vadd.f32 0.0, %v607
      %v609 = vpop.f32.mrb[0].mxu0
      %v610 = vpop.f32.mrb[0].mxu0
      %v611 = vadd.f32 0.0, %v610
      %v612 = vpop.f32.mrb[0].mxu0
      %613 = vmatprep.mubr.bf16.mxu0 0
      %614 = vmatmul.mubr.bf16.gmra.mrb[0].mxu0 %v452
      %v615 = vpop.f32.mrb[0].mxu0
      %v616 = vadd.f32 0.0, %v615
      %v617 = vpop.f32.mrb[0].mxu0
      %v618 = vpop.f32.mrb[0].mxu0
      %v619 = vadd.f32 0.0, %v618
      %v620 = vpop.f32.mrb[0].mxu0
      %621 = vmatprep.mubr.bf16.mxu0 0
      %622 = vmatmul.mubr.bf16.gmra.mrb[0].mxu0 %v453
      %v623 = vpop.f32.mrb[0].mxu0
      %v624 = vadd.f32 0.0, %v623
      %v625 = vpop.f32.mrb[0].mxu0
      %v626 = vpop.f32.mrb[0].mxu0
      %v627 = vadd.f32 0.0, %v626
      %v628 = vpop.f32.mrb[0].mxu0
      %629 = vmatprep.mubr.bf16.mxu0 0
      %630 = vmatmul.mubr.bf16.gmra.mrb[0].mxu0 %v454
      %v631 = vpop.f32.mrb[0].mxu0
      %v632 = vadd.f32 0.0, %v631
      %v633 = vpop.f32.mrb[0].mxu0
      %v634 = vpop.f32.mrb[0].mxu0
      %v635 = vadd.f32 0.0, %v634
      %v636 = vpop.f32.mrb[0].mxu0
      %637 = vmatprep.mubr.bf16.mxu0 0
      %638 = vmatmul.mubr.bf16.gmra.mrb[0].mxu0 %v455
      %v639 = vpop.f32.mrb[0].mxu0
      %v640 = vadd.f32 0.0, %v639
      %v641 = vpop.f32.mrb[0].mxu0
      %v642 = vpop.f32.mrb[0].mxu0
      %v643 = vadd.f32 0.0, %v642
      %v644 = vpop.f32.mrb[0].mxu0
      %645 = vmatprep.mubr.bf16.mxu0 0
      %646 = vmatmul.mubr.bf16.gmra.mrb[0].mxu0 %v456
      %v647 = vpop.f32.mrb[0].mxu0
      %v648 = vadd.f32 0.0, %v647
      %v649 = vpop.f32.mrb[0].mxu0
      %v650 = vpop.f32.mrb[0].mxu0
      %v651 = vadd.f32 0.0, %v650
      %v652 = vpop.f32.mrb[0].mxu0
      %653 = vmatprep.mubr.bf16.mxu0 0
      %654 = vmatmul.mubr.bf16.gmra.mrb[0].mxu0 %v457
      %v655 = vpop.f32.mrb[0].mxu0
      %v656 = vadd.f32 0.0, %v655
      %v657 = vpop.f32.mrb[0].mxu0
      %v658 = vpop.f32.mrb[0].mxu0
      %v659 = vadd.f32 0.0, %v658
      %v660 = vpop.f32.mrb[0].mxu0
      %661 = vmatprep.mubr.bf16.mxu0 0
      %662 = vmatmul.mubr.bf16.gmra.mrb[0].mxu0 %v458
      %v663 = vpop.f32.mrb[0].mxu0
      %v664 = vadd.f32 0.0, %v663
      %v665 = vpop.f32.mrb[0].mxu0
      %v666 = vpop.f32.mrb[0].mxu0
      %v667 = vadd.f32 0.0, %v666
      %v668 = vpop.f32.mrb[0].mxu0
      %669 = vmatprep.mubr.bf16.mxu0 0
      %670 = vmatmul.mubr.bf16.gmra.mrb[0].mxu0 %v459
      %v671 = vpop.f32.mrb[0].mxu0
      %v672 = vadd.f32 0.0, %v671
      %v673 = vpop.f32.mrb[0].mxu0
      %v674 = vpop.f32.mrb[0].mxu0
      %v675 = vadd.f32 0.0, %v674
      %v676 = vpop.f32.mrb[0].mxu0
      %677 = vmatprep.mubr.bf16.mxu0 0
      %678 = vmatmul.mubr.bf16.gmra.mrb[0].mxu0 %v460
      %v679 = vpop.f32.mrb[0].mxu0
      %v680 = vadd.f32 0.0, %v679
      %v681 = vpop.f32.mrb[0].mxu0
      %v682 = vpop.f32.mrb[0].mxu0
      %v683 = vadd.f32 0.0, %v682
      %v684 = vpop.f32.mrb[0].mxu0
      %685 = vdwg.mxu0
      %v686 = vld [vmem:[%s4] sm:$0x1]
      %v688 = vlaneseq
      %v689 = vshrl.u32 %v688, 7
      %v690 = vsub.s32 0, %v689
      %v691 = vrot.slane %v686, %v690
      %v693 = vmul.f32 %v560, %v691
      %v694 = vmul.f32 %v563, %v691
      %v695 = vmul.f32 %v568, %v691
      %v696 = vmul.f32 %v571, %v691
      %v697 = vmul.f32 %v576, %v691
      %v698 = vmul.f32 %v579, %v691
      %v699 = vmul.f32 %v584, %v691
      %v700 = vmul.f32 %v587, %v691
      %v701 = vmul.f32 %v592, %v691
      %v702 = vmul.f32 %v595, %v691
      %v703 = vmul.f32 %v600, %v691
      %v704 = vmul.f32 %v603, %v691
      %v705 = vmul.f32 %v608, %v691
      %v706 = vmul.f32 %v611, %v691
      %v707 = vmul.f32 %v616, %v691
      %v708 = vmul.f32 %v619, %v691
      %v709 = vmul.f32 %v624, %v691
      %v710 = vmul.f32 %v627, %v691
      %v711 = vmul.f32 %v632, %v691
      %v712 = vmul.f32 %v635, %v691
      %v713 = vmul.f32 %v640, %v691
      %v714 = vmul.f32 %v643, %v691
      %v715 = vmul.f32 %v648, %v691
      %v716 = vmul.f32 %v651, %v691
      %v717 = vmul.f32 %v656, %v691
      %v718 = vmul.f32 %v659, %v691
      %v719 = vmul.f32 %v664, %v691
      %v720 = vmul.f32 %v667, %v691
      %v721 = vmul.f32 %v672, %v691
      %v722 = vmul.f32 %v675, %v691
      %v723 = vmul.f32 %v680, %v691
      %v724 = vmul.f32 %v683, %v691
      %v725 = vld [vmem:[%s5] sm:$0x1]
      %v727 = vlaneseq
      %v728 = vshrl.u32 %v727, 7
      %v729 = vsub.s32 0, %v728
      %v730 = vrot.slane %v725, %v729
      %v732 = vadd.f32 %v693, %v730
      %v733 = vadd.f32 %v694, %v730
      %v734 = vadd.f32 %v695, %v730
      %v735 = vadd.f32 %v696, %v730
      %v736 = vadd.f32 %v697, %v730
      %v737 = vadd.f32 %v698, %v730
      %v738 = vadd.f32 %v699, %v730
      %v739 = vadd.f32 %v700, %v730
      %v740 = vadd.f32 %v701, %v730
      %v741 = vadd.f32 %v702, %v730
      %v742 = vadd.f32 %v703, %v730
      %v743 = vadd.f32 %v704, %v730
      %v744 = vadd.f32 %v705, %v730
      %v745 = vadd.f32 %v706, %v730
      %v746 = vadd.f32 %v707, %v730
      %v747 = vadd.f32 %v708, %v730
      %v748 = vadd.f32 %v709, %v730
      %v749 = vadd.f32 %v710, %v730
      %v750 = vadd.f32 %v711, %v730
      %v751 = vadd.f32 %v712, %v730
      %v752 = vadd.f32 %v713, %v730
      %v753 = vadd.f32 %v714, %v730
      %v754 = vadd.f32 %v715, %v730
      %v755 = vadd.f32 %v716, %v730
      %v756 = vadd.f32 %v717, %v730
      %v757 = vadd.f32 %v718, %v730
      %v758 = vadd.f32 %v719, %v730
      %v759 = vadd.f32 %v720, %v730
      %v760 = vadd.f32 %v721, %v730
      %v761 = vadd.f32 %v722, %v730
      %v762 = vadd.f32 %v723, %v730
      %v763 = vadd.f32 %v724, %v730
      %v764 = vmin.f32 %v732, 20.0
      %v765 = vmin.f32 %v733, 20.0
      %v766 = vmin.f32 %v734, 20.0
      %v767 = vmin.f32 %v735, 20.0
      %v768 = vmin.f32 %v736, 20.0
      %v769 = vmin.f32 %v737, 20.0
      %v770 = vmin.f32 %v738, 20.0
      %v771 = vmin.f32 %v739, 20.0
      %v772 = vmin.f32 %v740, 20.0
      %v773 = vmin.f32 %v741, 20.0
      %v774 = vmin.f32 %v742, 20.0
      %v775 = vmin.f32 %v743, 20.0
      %v776 = vmin.f32 %v744, 20.0
      %v777 = vmin.f32 %v745, 20.0
      %v778 = vmin.f32 %v746, 20.0
      %v779 = vmin.f32 %v747, 20.0
      %v780 = vmin.f32 %v748, 20.0
      %v781 = vmin.f32 %v749, 20.0
      %v782 = vmin.f32 %v750, 20.0
      %v783 = vmin.f32 %v751, 20.0
      %v784 = vmin.f32 %v752, 20.0
      %v785 = vmin.f32 %v753, 20.0
      %v786 = vmin.f32 %v754, 20.0
      %v787 = vmin.f32 %v755, 20.0
      %v788 = vmin.f32 %v756, 20.0
      %v789 = vmin.f32 %v757, 20.0
      %v790 = vmin.f32 %v758, 20.0
      %v791 = vmin.f32 %v759, 20.0
      %v792 = vmin.f32 %v760, 20.0
      %v793 = vmin.f32 %v761, 20.0
      %v794 = vmin.f32 %v762, 20.0
      %v795 = vmin.f32 %v763, 20.0
      %v796 = vmul.f32 %v764, 1.442695
      %v797 = vpow.pop %v796
      %v798 = vmul.f32 %v765, 1.442695
      %v799 = vpow.pop %v798
      %v800 = vmul.f32 %v766, 1.442695
      %v801 = vpow.pop %v800
      %v802 = vmul.f32 %v767, 1.442695
      %v803 = vpow.pop %v802
      %v804 = vmul.f32 %v768, 1.442695
      %v805 = vpow.pop %v804
      %v806 = vmul.f32 %v769, 1.442695
      %v807 = vpow.pop %v806
      %v808 = vmul.f32 %v770, 1.442695
      %v809 = vpow.pop %v808
      %v810 = vmul.f32 %v771, 1.442695
      %v811 = vpow.pop %v810
      %v812 = vmul.f32 %v772, 1.442695
      %v813 = vpow.pop %v812
      %v814 = vmul.f32 %v773, 1.442695
      %v815 = vpow.pop %v814
      %v816 = vmul.f32 %v774, 1.442695
      %v817 = vpow.pop %v816
      %v818 = vmul.f32 %v775, 1.442695
      %v819 = vpow.pop %v818
      %v820 = vmul.f32 %v776, 1.442695
      %v821 = vpow.pop %v820
      %v822 = vmul.f32 %v777, 1.442695
      %v823 = vpow.pop %v822
      %v824 = vmul.f32 %v778, 1.442695
      %v825 = vpow.pop %v824
      %v826 = vmul.f32 %v779, 1.442695
      %v827 = vpow.pop %v826
      %v828 = vmul.f32 %v780, 1.442695
      %v829 = vpow.pop %v828
      %v830 = vmul.f32 %v781, 1.442695
      %v831 = vpow.pop %v830
      %v832 = vmul.f32 %v782, 1.442695
      %v833 = vpow.pop %v832
      %v834 = vmul.f32 %v783, 1.442695
      %v835 = vpow.pop %v834
      %v836 = vmul.f32 %v784, 1.442695
      %v837 = vpow.pop %v836
      %v838 = vmul.f32 %v785, 1.442695
      %v839 = vpow.pop %v838
      %v840 = vmul.f32 %v786, 1.442695
      %v841 = vpow.pop %v840
      %v842 = vmul.f32 %v787, 1.442695
      %v843 = vpow.pop %v842
      %v844 = vmul.f32 %v788, 1.442695
      %v845 = vpow.pop %v844
      %v846 = vmul.f32 %v789, 1.442695
      %v847 = vpow.pop %v846
      %v848 = vmul.f32 %v790, 1.442695
      %v849 = vpow.pop %v848
      %v850 = vmul.f32 %v791, 1.442695
      %v851 = vpow.pop %v850
      %v852 = vmul.f32 %v792, 1.442695
      %v853 = vpow.pop %v852
      %v854 = vmul.f32 %v793, 1.442695
      %v855 = vpow.pop %v854
      %v856 = vmul.f32 %v794, 1.442695
      %v857 = vpow.pop %v856
      %v858 = vmul.f32 %v795, 1.442695
      %v859 = vpow.pop %v858
      %v860 = vadd.f32 %v797, 1.0
      %v861 = vadd.f32 %v799, 1.0
      %v862 = vadd.f32 %v801, 1.0
      %v863 = vadd.f32 %v803, 1.0
      %v864 = vadd.f32 %v805, 1.0
      %v865 = vadd.f32 %v807, 1.0
      %v866 = vadd.f32 %v809, 1.0
      %v867 = vadd.f32 %v811, 1.0
      %v868 = vadd.f32 %v813, 1.0
      %v869 = vadd.f32 %v815, 1.0
      %v870 = vadd.f32 %v817, 1.0
      %v871 = vadd.f32 %v819, 1.0
      %v872 = vadd.f32 %v821, 1.0
      %v873 = vadd.f32 %v823, 1.0
      %v874 = vadd.f32 %v825, 1.0
      %v875 = vadd.f32 %v827, 1.0
      %v876 = vadd.f32 %v829, 1.0
      %v877 = vadd.f32 %v831, 1.0
      %v878 = vadd.f32 %v833, 1.0
      %v879 = vadd.f32 %v835, 1.0
      %v880 = vadd.f32 %v837, 1.0
      %v881 = vadd.f32 %v839, 1.0
      %v882 = vadd.f32 %v841, 1.0
      %v883 = vadd.f32 %v843, 1.0
      %v884 = vadd.f32 %v845, 1.0
      %v885 = vadd.f32 %v847, 1.0
      %v886 = vadd.f32 %v849, 1.0
      %v887 = vadd.f32 %v851, 1.0
      %v888 = vadd.f32 %v853, 1.0
      %v889 = vadd.f32 %v855, 1.0
      %v890 = vadd.f32 %v857, 1.0
      %v891 = vadd.f32 %v859, 1.0
      %v892 = vmul.f32 %v860, %v860
      %v893 = vmul.f32 %v861, %v861
      %v894 = vmul.f32 %v862, %v862
      %v895 = vmul.f32 %v863, %v863
      %v896 = vmul.f32 %v864, %v864
      %v897 = vmul.f32 %v865, %v865
      %v898 = vmul.f32 %v866, %v866
      %v899 = vmul.f32 %v867, %v867
      %v900 = vmul.f32 %v868, %v868
      %v901 = vmul.f32 %v869, %v869
      %v902 = vmul.f32 %v870, %v870
      %v903 = vmul.f32 %v871, %v871
      %v904 = vmul.f32 %v872, %v872
      %v905 = vmul.f32 %v873, %v873
      %v906 = vmul.f32 %v874, %v874
      %v907 = vmul.f32 %v875, %v875
      %v908 = vmul.f32 %v876, %v876
      %v909 = vmul.f32 %v877, %v877
      %v910 = vmul.f32 %v878, %v878
      %v911 = vmul.f32 %v879, %v879
      %v912 = vmul.f32 %v880, %v880
      %v913 = vmul.f32 %v881, %v881
      %v914 = vmul.f32 %v882, %v882
      %v915 = vmul.f32 %v883, %v883
      %v916 = vmul.f32 %v884, %v884
      %v917 = vmul.f32 %v885, %v885
      %v918 = vmul.f32 %v886, %v886
      %v919 = vmul.f32 %v887, %v887
      %v920 = vmul.f32 %v888, %v888
      %v921 = vmul.f32 %v889, %v889
      %v922 = vmul.f32 %v890, %v890
      %v923 = vmul.f32 %v891, %v891
      %v924 = vsub.f32 %v892, 1.0
      %v925 = vsub.f32 %v893, 1.0
      %v926 = vsub.f32 %v894, 1.0
      %v927 = vsub.f32 %v895, 1.0
      %v928 = vsub.f32 %v896, 1.0
      %v929 = vsub.f32 %v897, 1.0
      %v930 = vsub.f32 %v898, 1.0
      %v931 = vsub.f32 %v899, 1.0
      %v932 = vsub.f32 %v900, 1.0
      %v933 = vsub.f32 %v901, 1.0
      %v934 = vsub.f32 %v902, 1.0
      %v935 = vsub.f32 %v903, 1.0
      %v936 = vsub.f32 %v904, 1.0
      %v937 = vsub.f32 %v905, 1.0
      %v938 = vsub.f32 %v906, 1.0
      %v939 = vsub.f32 %v907, 1.0
      %v940 = vsub.f32 %v908, 1.0
      %v941 = vsub.f32 %v909, 1.0
      %v942 = vsub.f32 %v910, 1.0
      %v943 = vsub.f32 %v911, 1.0
      %v944 = vsub.f32 %v912, 1.0
      %v945 = vsub.f32 %v913, 1.0
      %v946 = vsub.f32 %v914, 1.0
      %v947 = vsub.f32 %v915, 1.0
      %v948 = vsub.f32 %v916, 1.0
      %v949 = vsub.f32 %v917, 1.0
      %v950 = vsub.f32 %v918, 1.0
      %v951 = vsub.f32 %v919, 1.0
      %v952 = vsub.f32 %v920, 1.0
      %v953 = vsub.f32 %v921, 1.0
      %v954 = vsub.f32 %v922, 1.0
      %v955 = vsub.f32 %v923, 1.0
      %v956 = vmul.f32 %v732, %v924
      %v957 = vmul.f32 %v733, %v925
      %v958 = vmul.f32 %v734, %v926
      %v959 = vmul.f32 %v735, %v927
      %v960 = vmul.f32 %v736, %v928
      %v961 = vmul.f32 %v737, %v929
      %v962 = vmul.f32 %v738, %v930
      %v963 = vmul.f32 %v739, %v931
      %v964 = vmul.f32 %v740, %v932
      %v965 = vmul.f32 %v741, %v933
      %v966 = vmul.f32 %v742, %v934
      %v967 = vmul.f32 %v743, %v935
      %v968 = vmul.f32 %v744, %v936
      %v969 = vmul.f32 %v745, %v937
      %v970 = vmul.f32 %v746, %v938
      %v971 = vmul.f32 %v747, %v939
      %v972 = vmul.f32 %v748, %v940
      %v973 = vmul.f32 %v749, %v941
      %v974 = vmul.f32 %v750, %v942
      %v975 = vmul.f32 %v751, %v943
      %v976 = vmul.f32 %v752, %v944
      %v977 = vmul.f32 %v753, %v945
      %v978 = vmul.f32 %v754, %v946
      %v979 = vmul.f32 %v755, %v947
      %v980 = vmul.f32 %v756, %v948
      %v981 = vmul.f32 %v757, %v949
      %v982 = vmul.f32 %v758, %v950
      %v983 = vmul.f32 %v759, %v951
      %v984 = vmul.f32 %v760, %v952
      %v985 = vmul.f32 %v761, %v953
      %v986 = vmul.f32 %v762, %v954
      %v987 = vmul.f32 %v763, %v955
      %v988 = vadd.f32 %v892, 1.0
      %v989 = vadd.f32 %v893, 1.0
      %v990 = vadd.f32 %v894, 1.0
      %v991 = vadd.f32 %v895, 1.0
      %v992 = vadd.f32 %v896, 1.0
      %v993 = vadd.f32 %v897, 1.0
      %v994 = vadd.f32 %v898, 1.0
      %v995 = vadd.f32 %v899, 1.0
      %v996 = vadd.f32 %v900, 1.0
      %v997 = vadd.f32 %v901, 1.0
      %v998 = vadd.f32 %v902, 1.0
      %v999 = vadd.f32 %v903, 1.0
      %v1000 = vadd.f32 %v904, 1.0
      %v1001 = vadd.f32 %v905, 1.0
      %v1002 = vadd.f32 %v906, 1.0
      %v1003 = vadd.f32 %v907, 1.0
      %v1004 = vadd.f32 %v908, 1.0
      %v1005 = vadd.f32 %v909, 1.0
      %v1006 = vadd.f32 %v910, 1.0
      %v1007 = vadd.f32 %v911, 1.0
      %v1008 = vadd.f32 %v912, 1.0
      %v1009 = vadd.f32 %v913, 1.0
      %v1010 = vadd.f32 %v914, 1.0
      %v1011 = vadd.f32 %v915, 1.0
      %v1012 = vadd.f32 %v916, 1.0
      %v1013 = vadd.f32 %v917, 1.0
      %v1014 = vadd.f32 %v918, 1.0
      %v1015 = vadd.f32 %v919, 1.0
      %v1016 = vadd.f32 %v920, 1.0
      %v1017 = vadd.f32 %v921, 1.0
      %v1018 = vadd.f32 %v922, 1.0
      %v1019 = vadd.f32 %v923, 1.0
      %v1020 = vrcp.pop %v988
      %v1021 = vrcp.pop %v989
      %v1022 = vrcp.pop %v990
      %v1023 = vrcp.pop %v991
      %v1024 = vrcp.pop %v992
      %v1025 = vrcp.pop %v993
      %v1026 = vrcp.pop %v994
      %v1027 = vrcp.pop %v995
      %v1028 = vrcp.pop %v996
      %v1029 = vrcp.pop %v997
      %v1030 = vrcp.pop %v998
      %v1031 = vrcp.pop %v999
      %v1032 = vrcp.pop %v1000
      %v1033 = vrcp.pop %v1001
      %v1034 = vrcp.pop %v1002
      %v1035 = vrcp.pop %v1003
      %v1036 = vrcp.pop %v1004
      %v1037 = vrcp.pop %v1005
      %v1038 = vrcp.pop %v1006
      %v1039 = vrcp.pop %v1007
      %v1040 = vrcp.pop %v1008
      %v1041 = vrcp.pop %v1009
      %v1042 = vrcp.pop %v1010
      %v1043 = vrcp.pop %v1011
      %v1044 = vrcp.pop %v1012
      %v1045 = vrcp.pop %v1013
      %v1046 = vrcp.pop %v1014
      %v1047 = vrcp.pop %v1015
      %v1048 = vrcp.pop %v1016
      %v1049 = vrcp.pop %v1017
      %v1050 = vrcp.pop %v1018
      %v1051 = vrcp.pop %v1019
      %v1052 = vmul.f32 %v956, %v1020
      %v1053 = vmul.f32 %v957, %v1021
      %v1054 = vmul.f32 %v958, %v1022
      %v1055 = vmul.f32 %v959, %v1023
      %v1056 = vmul.f32 %v960, %v1024
      %v1057 = vmul.f32 %v961, %v1025
      %v1058 = vmul.f32 %v962, %v1026
      %v1059 = vmul.f32 %v963, %v1027
      %v1060 = vmul.f32 %v964, %v1028
      %v1061 = vmul.f32 %v965, %v1029
      %v1062 = vmul.f32 %v966, %v1030
      %v1063 = vmul.f32 %v967, %v1031
      %v1064 = vmul.f32 %v968, %v1032
      %v1065 = vmul.f32 %v969, %v1033
      %v1066 = vmul.f32 %v970, %v1034
      %v1067 = vmul.f32 %v971, %v1035
      %v1068 = vmul.f32 %v972, %v1036
      %v1069 = vmul.f32 %v973, %v1037
      %v1070 = vmul.f32 %v974, %v1038
      %v1071 = vmul.f32 %v975, %v1039
      %v1072 = vmul.f32 %v976, %v1040
      %v1073 = vmul.f32 %v977, %v1041
      %v1074 = vmul.f32 %v978, %v1042
      %v1075 = vmul.f32 %v979, %v1043
      %v1076 = vmul.f32 %v980, %v1044
      %v1077 = vmul.f32 %v981, %v1045
      %v1078 = vmul.f32 %v982, %v1046
      %v1079 = vmul.f32 %v983, %v1047
      %v1080 = vmul.f32 %v984, %v1048
      %v1081 = vmul.f32 %v985, %v1049
      %v1082 = vmul.f32 %v986, %v1050
      %v1083 = vmul.f32 %v987, %v1051
      %v1084 = vld [vmem:[%s404] sm:$0xff]
      %v1085 = vld [vmem:[%s404 + $0x8] sm:$0xff]
      %v1086 = vld [vmem:[%s404 + $0x10] sm:$0xff]
      %v1087 = vld [vmem:[%s404 + $0x18] sm:$0xff]
      %v1088 = vld [vmem:[%s404 + $0x20] sm:$0xff]
      %v1089 = vld [vmem:[%s404 + $0x28] sm:$0xff]
      %v1090 = vld [vmem:[%s404 + $0x30] sm:$0xff]
      %v1091 = vld [vmem:[%s404 + $0x38] sm:$0xff]
      %v1092 = vld [vmem:[%s404 + $0x40] sm:$0xff]
      %v1093 = vld [vmem:[%s404 + $0x48] sm:$0xff]
      %v1094 = vld [vmem:[%s404 + $0x50] sm:$0xff]
      %v1095 = vld [vmem:[%s404 + $0x58] sm:$0xff]
      %v1096 = vld [vmem:[%s404 + $0x60] sm:$0xff]
      %v1097 = vld [vmem:[%s404 + $0x68] sm:$0xff]
      %v1098 = vld [vmem:[%s404 + $0x70] sm:$0xff]
      %v1099 = vld [vmem:[%s404 + $0x78] sm:$0xff]
      %v1100 = vld [vmem:[%s404 + $0x80] sm:$0xff]
      %v1101 = vld [vmem:[%s404 + $0x88] sm:$0xff]
      %v1102 = vld [vmem:[%s404 + $0x90] sm:$0xff]
      %v1103 = vld [vmem:[%s404 + $0x98] sm:$0xff]
      %v1104 = vld [vmem:[%s404 + $0xa0] sm:$0xff]
      %v1105 = vld [vmem:[%s404 + $0xa8] sm:$0xff]
      %v1106 = vld [vmem:[%s404 + $0xb0] sm:$0xff]
      %v1107 = vld [vmem:[%s404 + $0xb8] sm:$0xff]
      %v1108 = vld [vmem:[%s404 + $0xc0] sm:$0xff]
      %v1109 = vld [vmem:[%s404 + $0xc8] sm:$0xff]
      %v1110 = vld [vmem:[%s404 + $0xd0] sm:$0xff]
      %v1111 = vld [vmem:[%s404 + $0xd8] sm:$0xff]
      %v1112 = vld [vmem:[%s404 + $0xe0] sm:$0xff]
      %v1113 = vld [vmem:[%s404 + $0xe8] sm:$0xff]
      %v1114 = vld [vmem:[%s404 + $0xf0] sm:$0xff]
      %v1115 = vld [vmem:[%s404 + $0xf8] sm:$0xff]
      %v1116 = vpack.c.bf16 %v1085, %v1084
      %v1117 = vpack.c.bf16 %v1087, %v1086
      %v1118 = vpack.c.bf16 %v1089, %v1088
      %v1119 = vpack.c.bf16 %v1091, %v1090
      %v1120 = vpack.c.bf16 %v1093, %v1092
      %v1121 = vpack.c.bf16 %v1095, %v1094
      %v1122 = vpack.c.bf16 %v1097, %v1096
      %v1123 = vpack.c.bf16 %v1099, %v1098
      %v1124 = vpack.c.bf16 %v1101, %v1100
      %v1125 = vpack.c.bf16 %v1103, %v1102
      %v1126 = vpack.c.bf16 %v1105, %v1104
      %v1127 = vpack.c.bf16 %v1107, %v1106
      %v1128 = vpack.c.bf16 %v1109, %v1108
      %v1129 = vpack.c.bf16 %v1111, %v1110
      %v1130 = vpack.c.bf16 %v1113, %v1112
      %v1131 = vpack.c.bf16 %v1115, %v1114
      %v1132 = vld [vmem:[%s3] sm:$0xf]
      %v1133 = vld [vmem:[%s3 + $0x4] sm:$0xf]
      %v1134 = vld [vmem:[%s3 + $0x8] sm:$0xf]
      %v1135 = vld [vmem:[%s3 + $0xc] sm:$0xf]
      %v1136 = vld [vmem:[%s3 + $0x10] sm:$0xf]
      %v1137 = vld [vmem:[%s3 + $0x14] sm:$0xf]
      %v1138 = vld [vmem:[%s3 + $0x18] sm:$0xf]
      %v1139 = vld [vmem:[%s3 + $0x1c] sm:$0xf]
      %v1140 = vld [vmem:[%s3 + $0x20] sm:$0xf]
      %v1141 = vld [vmem:[%s3 + $0x24] sm:$0xf]
      %v1142 = vld [vmem:[%s3 + $0x28] sm:$0xf]
      %v1143 = vld [vmem:[%s3 + $0x2c] sm:$0xf]
      %v1144 = vld [vmem:[%s3 + $0x30] sm:$0xf]
      %v1145 = vld [vmem:[%s3 + $0x34] sm:$0xf]
      %v1146 = vld [vmem:[%s3 + $0x38] sm:$0xf]
      %v1147 = vld [vmem:[%s3 + $0x3c] sm:$0xf]
      %v1164 = vunpack.c.l.b16 %v1132
      %v1165 = vunpack.c.l.b16 %v1133
      %v1166 = vunpack.c.l.b16 %v1134
      %v1167 = vunpack.c.l.b16 %v1135
      %v1168 = vunpack.c.l.b16 %v1136
      %v1169 = vunpack.c.l.b16 %v1137
      %v1170 = vunpack.c.l.b16 %v1138
      %v1171 = vunpack.c.l.b16 %v1139
      %v1172 = vunpack.c.l.b16 %v1140
      %v1173 = vunpack.c.l.b16 %v1141
      %v1174 = vunpack.c.l.b16 %v1142
      %v1175 = vunpack.c.l.b16 %v1143
      %v1176 = vunpack.c.l.b16 %v1144
      %v1177 = vunpack.c.l.b16 %v1145
      %v1178 = vunpack.c.l.b16 %v1146
      %v1179 = vunpack.c.l.b16 %v1147
      %v1180 = vpack.c.b16 %v1165, %v1164
      %v1181 = vpack.c.b16 %v1167, %v1166
      %v1182 = vpack.c.b16 %v1169, %v1168
      %v1183 = vpack.c.b16 %v1171, %v1170
      %v1184 = vpack.c.b16 %v1173, %v1172
      %v1185 = vpack.c.b16 %v1175, %v1174
      %v1186 = vpack.c.b16 %v1177, %v1176
      %v1187 = vpack.c.b16 %v1179, %v1178
      %1196 = vmatprep.subr.bf16.mxu0 0
      %1197 = vmatpush1.bf16.msra.mxu0 %v1180
      %1198 = vmatprep.subr.bf16.mxu0 0
      %1199 = vmatpush1.bf16.msra.mxu0 %v1181
      %1200 = vmatprep.subr.bf16.mxu0 0
      %1201 = vmatpush1.bf16.msra.mxu0 %v1182
      %1202 = vmatprep.subr.bf16.mxu0 0
      %1203 = vmatpush1.bf16.msra.mxu0 %v1183
      %1204 = vmatprep.subr.bf16.mxu0 0
      %1205 = vmatpush1.bf16.msra.mxu0 %v1184
      %1206 = vmatprep.subr.bf16.mxu0 0
      %1207 = vmatpush1.bf16.msra.mxu0 %v1185
      %1208 = vmatprep.subr.bf16.mxu0 0
      %1209 = vmatpush1.bf16.msra.mxu0 %v1186
      %1210 = vmatprep.subr.bf16.mxu0 0
      %1211 = vmatpush1.bf16.msra.mxu0 %v1187
      %1212 = vmatprep.subr.bf16.mxu0 0
      %1213 = vmatpush1.bf16.msra.mxu0 0
      %1214 = vmatprep.subr.bf16.mxu0 0
      %1215 = vmatpush1.bf16.msra.mxu0 0
      %1216 = vmatprep.subr.bf16.mxu0 0
      %1217 = vmatpush1.bf16.msra.mxu0 0
      %1218 = vmatprep.subr.bf16.mxu0 0
      %1219 = vmatpush1.bf16.msra.mxu0 0
      %1220 = vmatprep.subr.bf16.mxu0 0
      %1221 = vmatpush1.bf16.msra.mxu0 0
      %1222 = vmatprep.subr.bf16.mxu0 0
      %1223 = vmatpush1.bf16.msra.mxu0 0
      %1224 = vmatprep.subr.bf16.mxu0 0
      %1225 = vmatpush1.bf16.msra.mxu0 0
      %1226 = vmatprep.subr.bf16.mxu0 0
      %1227 = vmatpush1.bf16.msra.mxu0 0
      %1228 = vmatprep.mubr.bf16.mxu0 0
      %1229 = vmatmul.mubr.bf16.gmra.mrb[0].mxu0 %v1116
      %v1230 = vpop.f32.mrb[0].mxu0
      %v1231 = vadd.f32 0.0, %v1230
      %v1232 = vpop.f32.mrb[0].mxu0
      %v1233 = vpop.f32.mrb[0].mxu0
      %v1234 = vadd.f32 0.0, %v1233
      %v1235 = vpop.f32.mrb[0].mxu0
      %1236 = vmatprep.mubr.bf16.mxu0 0
      %1237 = vmatmul.mubr.bf16.gmra.mrb[0].mxu0 %v1117
      %v1238 = vpop.f32.mrb[0].mxu0
      %v1239 = vadd.f32 0.0, %v1238
      %v1240 = vpop.f32.mrb[0].mxu0
      %v1241 = vpop.f32.mrb[0].mxu0
      %v1242 = vadd.f32 0.0, %v1241
      %v1243 = vpop.f32.mrb[0].mxu0
      %1244 = vmatprep.mubr.bf16.mxu0 0
      %1245 = vmatmul.mubr.bf16.gmra.mrb[0].mxu0 %v1118
      %v1246 = vpop.f32.mrb[0].mxu0
      %v1247 = vadd.f32 0.0, %v1246
      %v1248 = vpop.f32.mrb[0].mxu0
      %v1249 = vpop.f32.mrb[0].mxu0
      %v1250 = vadd.f32 0.0, %v1249
      %v1251 = vpop.f32.mrb[0].mxu0
      %1252 = vmatprep.mubr.bf16.mxu0 0
      %1253 = vmatmul.mubr.bf16.gmra.mrb[0].mxu0 %v1119
      %v1254 = vpop.f32.mrb[0].mxu0
      %v1255 = vadd.f32 0.0, %v1254
      %v1256 = vpop.f32.mrb[0].mxu0
      %v1257 = vpop.f32.mrb[0].mxu0
      %v1258 = vadd.f32 0.0, %v1257
      %v1259 = vpop.f32.mrb[0].mxu0
      %1260 = vmatprep.mubr.bf16.mxu0 0
      %1261 = vmatmul.mubr.bf16.gmra.mrb[0].mxu0 %v1120
      %v1262 = vpop.f32.mrb[0].mxu0
      %v1263 = vadd.f32 0.0, %v1262
      %v1264 = vpop.f32.mrb[0].mxu0
      %v1265 = vpop.f32.mrb[0].mxu0
      %v1266 = vadd.f32 0.0, %v1265
      %v1267 = vpop.f32.mrb[0].mxu0
      %1268 = vmatprep.mubr.bf16.mxu0 0
      %1269 = vmatmul.mubr.bf16.gmra.mrb[0].mxu0 %v1121
      %v1270 = vpop.f32.mrb[0].mxu0
      %v1271 = vadd.f32 0.0, %v1270
      %v1272 = vpop.f32.mrb[0].mxu0
      %v1273 = vpop.f32.mrb[0].mxu0
      %v1274 = vadd.f32 0.0, %v1273
      %v1275 = vpop.f32.mrb[0].mxu0
      %1276 = vmatprep.mubr.bf16.mxu0 0
      %1277 = vmatmul.mubr.bf16.gmra.mrb[0].mxu0 %v1122
      %v1278 = vpop.f32.mrb[0].mxu0
      %v1279 = vadd.f32 0.0, %v1278
      %v1280 = vpop.f32.mrb[0].mxu0
      %v1281 = vpop.f32.mrb[0].mxu0
      %v1282 = vadd.f32 0.0, %v1281
      %v1283 = vpop.f32.mrb[0].mxu0
      %1284 = vmatprep.mubr.bf16.mxu0 0
      %1285 = vmatmul.mubr.bf16.gmra.mrb[0].mxu0 %v1123
      %v1286 = vpop.f32.mrb[0].mxu0
      %v1287 = vadd.f32 0.0, %v1286
      %v1288 = vpop.f32.mrb[0].mxu0
      %v1289 = vpop.f32.mrb[0].mxu0
      %v1290 = vadd.f32 0.0, %v1289
      %v1291 = vpop.f32.mrb[0].mxu0
      %1292 = vmatprep.mubr.bf16.mxu0 0
      %1293 = vmatmul.mubr.bf16.gmra.mrb[0].mxu0 %v1124
      %v1294 = vpop.f32.mrb[0].mxu0
      %v1295 = vadd.f32 0.0, %v1294
      %v1296 = vpop.f32.mrb[0].mxu0
      %v1297 = vpop.f32.mrb[0].mxu0
      %v1298 = vadd.f32 0.0, %v1297
      %v1299 = vpop.f32.mrb[0].mxu0
      %1300 = vmatprep.mubr.bf16.mxu0 0
      %1301 = vmatmul.mubr.bf16.gmra.mrb[0].mxu0 %v1125
      %v1302 = vpop.f32.mrb[0].mxu0
      %v1303 = vadd.f32 0.0, %v1302
      %v1304 = vpop.f32.mrb[0].mxu0
      %v1305 = vpop.f32.mrb[0].mxu0
      %v1306 = vadd.f32 0.0, %v1305
      %v1307 = vpop.f32.mrb[0].mxu0
      %1308 = vmatprep.mubr.bf16.mxu0 0
      %1309 = vmatmul.mubr.bf16.gmra.mrb[0].mxu0 %v1126
      %v1310 = vpop.f32.mrb[0].mxu0
      %v1311 = vadd.f32 0.0, %v1310
      %v1312 = vpop.f32.mrb[0].mxu0
      %v1313 = vpop.f32.mrb[0].mxu0
      %v1314 = vadd.f32 0.0, %v1313
      %v1315 = vpop.f32.mrb[0].mxu0
      %1316 = vmatprep.mubr.bf16.mxu0 0
      %1317 = vmatmul.mubr.bf16.gmra.mrb[0].mxu0 %v1127
      %v1318 = vpop.f32.mrb[0].mxu0
      %v1319 = vadd.f32 0.0, %v1318
      %v1320 = vpop.f32.mrb[0].mxu0
      %v1321 = vpop.f32.mrb[0].mxu0
      %v1322 = vadd.f32 0.0, %v1321
      %v1323 = vpop.f32.mrb[0].mxu0
      %1324 = vmatprep.mubr.bf16.mxu0 0
      %1325 = vmatmul.mubr.bf16.gmra.mrb[0].mxu0 %v1128
      %v1326 = vpop.f32.mrb[0].mxu0
      %v1327 = vadd.f32 0.0, %v1326
      %v1328 = vpop.f32.mrb[0].mxu0
      %v1329 = vpop.f32.mrb[0].mxu0
      %v1330 = vadd.f32 0.0, %v1329
      %v1331 = vpop.f32.mrb[0].mxu0
      %1332 = vmatprep.mubr.bf16.mxu0 0
      %1333 = vmatmul.mubr.bf16.gmra.mrb[0].mxu0 %v1129
      %v1334 = vpop.f32.mrb[0].mxu0
      %v1335 = vadd.f32 0.0, %v1334
      %v1336 = vpop.f32.mrb[0].mxu0
      %v1337 = vpop.f32.mrb[0].mxu0
      %v1338 = vadd.f32 0.0, %v1337
      %v1339 = vpop.f32.mrb[0].mxu0
      %1340 = vmatprep.mubr.bf16.mxu0 0
      %1341 = vmatmul.mubr.bf16.gmra.mrb[0].mxu0 %v1130
      %v1342 = vpop.f32.mrb[0].mxu0
      %v1343 = vadd.f32 0.0, %v1342
      %v1344 = vpop.f32.mrb[0].mxu0
      %v1345 = vpop.f32.mrb[0].mxu0
      %v1346 = vadd.f32 0.0, %v1345
      %v1347 = vpop.f32.mrb[0].mxu0
      %1348 = vmatprep.mubr.bf16.mxu0 0
      %1349 = vmatmul.mubr.bf16.gmra.mrb[0].mxu0 %v1131
      %v1350 = vpop.f32.mrb[0].mxu0
      %v1351 = vadd.f32 0.0, %v1350
      %v1352 = vpop.f32.mrb[0].mxu0
      %v1353 = vpop.f32.mrb[0].mxu0
      %v1354 = vadd.f32 0.0, %v1353
      %v1355 = vpop.f32.mrb[0].mxu0
      %1356 = vdwg.mxu0
      %v1357 = vld [vmem:[%s6] sm:$0x1]
      %v1359 = vlaneseq
      %v1360 = vshrl.u32 %v1359, 7
      %v1361 = vsub.s32 0, %v1360
      %v1362 = vrot.slane %v1357, %v1361
      %v1364 = vmul.f32 %v1231, %v1362
      %v1365 = vmul.f32 %v1234, %v1362
      %v1366 = vmul.f32 %v1239, %v1362
      %v1367 = vmul.f32 %v1242, %v1362
      %v1368 = vmul.f32 %v1247, %v1362
      %v1369 = vmul.f32 %v1250, %v1362
      %v1370 = vmul.f32 %v1255, %v1362
      %v1371 = vmul.f32 %v1258, %v1362
      %v1372 = vmul.f32 %v1263, %v1362
      %v1373 = vmul.f32 %v1266, %v1362
      %v1374 = vmul.f32 %v1271, %v1362
      %v1375 = vmul.f32 %v1274, %v1362
      %v1376 = vmul.f32 %v1279, %v1362
      %v1377 = vmul.f32 %v1282, %v1362
      %v1378 = vmul.f32 %v1287, %v1362
      %v1379 = vmul.f32 %v1290, %v1362
      %v1380 = vmul.f32 %v1295, %v1362
      %v1381 = vmul.f32 %v1298, %v1362
      %v1382 = vmul.f32 %v1303, %v1362
      %v1383 = vmul.f32 %v1306, %v1362
      %v1384 = vmul.f32 %v1311, %v1362
      %v1385 = vmul.f32 %v1314, %v1362
      %v1386 = vmul.f32 %v1319, %v1362
      %v1387 = vmul.f32 %v1322, %v1362
      %v1388 = vmul.f32 %v1327, %v1362
      %v1389 = vmul.f32 %v1330, %v1362
      %v1390 = vmul.f32 %v1335, %v1362
      %v1391 = vmul.f32 %v1338, %v1362
      %v1392 = vmul.f32 %v1343, %v1362
      %v1393 = vmul.f32 %v1346, %v1362
      %v1394 = vmul.f32 %v1351, %v1362
      %v1395 = vmul.f32 %v1354, %v1362
      %v1396 = vld [vmem:[%s7] sm:$0x1]
      %v1398 = vlaneseq
      %v1399 = vshrl.u32 %v1398, 7
      %v1400 = vsub.s32 0, %v1399
      %v1401 = vrot.slane %v1396, %v1400
      %v1403 = vadd.f32 %v1364, %v1401
      %v1404 = vadd.f32 %v1365, %v1401
      %v1405 = vadd.f32 %v1366, %v1401
      %v1406 = vadd.f32 %v1367, %v1401
      %v1407 = vadd.f32 %v1368, %v1401
      %v1408 = vadd.f32 %v1369, %v1401
      %v1409 = vadd.f32 %v1370, %v1401
      %v1410 = vadd.f32 %v1371, %v1401
      %v1411 = vadd.f32 %v1372, %v1401
      %v1412 = vadd.f32 %v1373, %v1401
      %v1413 = vadd.f32 %v1374, %v1401
      %v1414 = vadd.f32 %v1375, %v1401
      %v1415 = vadd.f32 %v1376, %v1401
      %v1416 = vadd.f32 %v1377, %v1401
      %v1417 = vadd.f32 %v1378, %v1401
      %v1418 = vadd.f32 %v1379, %v1401
      %v1419 = vadd.f32 %v1380, %v1401
      %v1420 = vadd.f32 %v1381, %v1401
      %v1421 = vadd.f32 %v1382, %v1401
      %v1422 = vadd.f32 %v1383, %v1401
      %v1423 = vadd.f32 %v1384, %v1401
      %v1424 = vadd.f32 %v1385, %v1401
      %v1425 = vadd.f32 %v1386, %v1401
      %v1426 = vadd.f32 %v1387, %v1401
      %v1427 = vadd.f32 %v1388, %v1401
      %v1428 = vadd.f32 %v1389, %v1401
      %v1429 = vadd.f32 %v1390, %v1401
      %v1430 = vadd.f32 %v1391, %v1401
      %v1431 = vadd.f32 %v1392, %v1401
      %v1432 = vadd.f32 %v1393, %v1401
      %v1433 = vadd.f32 %v1394, %v1401
      %v1434 = vadd.f32 %v1395, %v1401
      %v1435 = vmin.f32 %v1403, 20.0
      %v1436 = vmin.f32 %v1404, 20.0
      %v1437 = vmin.f32 %v1405, 20.0
      %v1438 = vmin.f32 %v1406, 20.0
      %v1439 = vmin.f32 %v1407, 20.0
      %v1440 = vmin.f32 %v1408, 20.0
      %v1441 = vmin.f32 %v1409, 20.0
      %v1442 = vmin.f32 %v1410, 20.0
      %v1443 = vmin.f32 %v1411, 20.0
      %v1444 = vmin.f32 %v1412, 20.0
      %v1445 = vmin.f32 %v1413, 20.0
      %v1446 = vmin.f32 %v1414, 20.0
      %v1447 = vmin.f32 %v1415, 20.0
      %v1448 = vmin.f32 %v1416, 20.0
      %v1449 = vmin.f32 %v1417, 20.0
      %v1450 = vmin.f32 %v1418, 20.0
      %v1451 = vmin.f32 %v1419, 20.0
      %v1452 = vmin.f32 %v1420, 20.0
      %v1453 = vmin.f32 %v1421, 20.0
      %v1454 = vmin.f32 %v1422, 20.0
      %v1455 = vmin.f32 %v1423, 20.0
      %v1456 = vmin.f32 %v1424, 20.0
      %v1457 = vmin.f32 %v1425, 20.0
      %v1458 = vmin.f32 %v1426, 20.0
      %v1459 = vmin.f32 %v1427, 20.0
      %v1460 = vmin.f32 %v1428, 20.0
      %v1461 = vmin.f32 %v1429, 20.0
      %v1462 = vmin.f32 %v1430, 20.0
      %v1463 = vmin.f32 %v1431, 20.0
      %v1464 = vmin.f32 %v1432, 20.0
      %v1465 = vmin.f32 %v1433, 20.0
      %v1466 = vmin.f32 %v1434, 20.0
      %v1467 = vmul.f32 %v1435, 1.442695
      %v1468 = vpow.pop %v1467
      %v1469 = vmul.f32 %v1436, 1.442695
      %v1470 = vpow.pop %v1469
      %v1471 = vmul.f32 %v1437, 1.442695
      %v1472 = vpow.pop %v1471
      %v1473 = vmul.f32 %v1438, 1.442695
      %v1474 = vpow.pop %v1473
      %v1475 = vmul.f32 %v1439, 1.442695
      %v1476 = vpow.pop %v1475
      %v1477 = vmul.f32 %v1440, 1.442695
      %v1478 = vpow.pop %v1477
      %v1479 = vmul.f32 %v1441, 1.442695
      %v1480 = vpow.pop %v1479
      %v1481 = vmul.f32 %v1442, 1.442695
      %v1482 = vpow.pop %v1481
      %v1483 = vmul.f32 %v1443, 1.442695
      %v1484 = vpow.pop %v1483
      %v1485 = vmul.f32 %v1444, 1.442695
      %v1486 = vpow.pop %v1485
      %v1487 = vmul.f32 %v1445, 1.442695
      %v1488 = vpow.pop %v1487
      %v1489 = vmul.f32 %v1446, 1.442695
      %v1490 = vpow.pop %v1489
      %v1491 = vmul.f32 %v1447, 1.442695
      %v1492 = vpow.pop %v1491
      %v1493 = vmul.f32 %v1448, 1.442695
      %v1494 = vpow.pop %v1493
      %v1495 = vmul.f32 %v1449, 1.442695
      %v1496 = vpow.pop %v1495
      %v1497 = vmul.f32 %v1450, 1.442695
      %v1498 = vpow.pop %v1497
      %v1499 = vmul.f32 %v1451, 1.442695
      %v1500 = vpow.pop %v1499
      %v1501 = vmul.f32 %v1452, 1.442695
      %v1502 = vpow.pop %v1501
      %v1503 = vmul.f32 %v1453, 1.442695
      %v1504 = vpow.pop %v1503
      %v1505 = vmul.f32 %v1454, 1.442695
      %v1506 = vpow.pop %v1505
      %v1507 = vmul.f32 %v1455, 1.442695
      %v1508 = vpow.pop %v1507
      %v1509 = vmul.f32 %v1456, 1.442695
      %v1510 = vpow.pop %v1509
      %v1511 = vmul.f32 %v1457, 1.442695
      %v1512 = vpow.pop %v1511
      %v1513 = vmul.f32 %v1458, 1.442695
      %v1514 = vpow.pop %v1513
      %v1515 = vmul.f32 %v1459, 1.442695
      %v1516 = vpow.pop %v1515
      %v1517 = vmul.f32 %v1460, 1.442695
      %v1518 = vpow.pop %v1517
      %v1519 = vmul.f32 %v1461, 1.442695
      %v1520 = vpow.pop %v1519
      %v1521 = vmul.f32 %v1462, 1.442695
      %v1522 = vpow.pop %v1521
      %v1523 = vmul.f32 %v1463, 1.442695
      %v1524 = vpow.pop %v1523
      %v1525 = vmul.f32 %v1464, 1.442695
      %v1526 = vpow.pop %v1525
      %v1527 = vmul.f32 %v1465, 1.442695
      %v1528 = vpow.pop %v1527
      %v1529 = vmul.f32 %v1466, 1.442695
      %v1530 = vpow.pop %v1529
      %v1531 = vadd.f32 %v1468, 1.0
      %v1532 = vadd.f32 %v1470, 1.0
      %v1533 = vadd.f32 %v1472, 1.0
      %v1534 = vadd.f32 %v1474, 1.0
      %v1535 = vadd.f32 %v1476, 1.0
      %v1536 = vadd.f32 %v1478, 1.0
      %v1537 = vadd.f32 %v1480, 1.0
      %v1538 = vadd.f32 %v1482, 1.0
      %v1539 = vadd.f32 %v1484, 1.0
      %v1540 = vadd.f32 %v1486, 1.0
      %v1541 = vadd.f32 %v1488, 1.0
      %v1542 = vadd.f32 %v1490, 1.0
      %v1543 = vadd.f32 %v1492, 1.0
      %v1544 = vadd.f32 %v1494, 1.0
      %v1545 = vadd.f32 %v1496, 1.0
      %v1546 = vadd.f32 %v1498, 1.0
      %v1547 = vadd.f32 %v1500, 1.0
      %v1548 = vadd.f32 %v1502, 1.0
      %v1549 = vadd.f32 %v1504, 1.0
      %v1550 = vadd.f32 %v1506, 1.0
      %v1551 = vadd.f32 %v1508, 1.0
      %v1552 = vadd.f32 %v1510, 1.0
      %v1553 = vadd.f32 %v1512, 1.0
      %v1554 = vadd.f32 %v1514, 1.0
      %v1555 = vadd.f32 %v1516, 1.0
      %v1556 = vadd.f32 %v1518, 1.0
      %v1557 = vadd.f32 %v1520, 1.0
      %v1558 = vadd.f32 %v1522, 1.0
      %v1559 = vadd.f32 %v1524, 1.0
      %v1560 = vadd.f32 %v1526, 1.0
      %v1561 = vadd.f32 %v1528, 1.0
      %v1562 = vadd.f32 %v1530, 1.0
      %v1563 = vmul.f32 %v1531, %v1531
      %v1564 = vmul.f32 %v1532, %v1532
      %v1565 = vmul.f32 %v1533, %v1533
      %v1566 = vmul.f32 %v1534, %v1534
      %v1567 = vmul.f32 %v1535, %v1535
      %v1568 = vmul.f32 %v1536, %v1536
      %v1569 = vmul.f32 %v1537, %v1537
      %v1570 = vmul.f32 %v1538, %v1538
      %v1571 = vmul.f32 %v1539, %v1539
      %v1572 = vmul.f32 %v1540, %v1540
      %v1573 = vmul.f32 %v1541, %v1541
      %v1574 = vmul.f32 %v1542, %v1542
      %v1575 = vmul.f32 %v1543, %v1543
      %v1576 = vmul.f32 %v1544, %v1544
      %v1577 = vmul.f32 %v1545, %v1545
      %v1578 = vmul.f32 %v1546, %v1546
      %v1579 = vmul.f32 %v1547, %v1547
      %v1580 = vmul.f32 %v1548, %v1548
      %v1581 = vmul.f32 %v1549, %v1549
      %v1582 = vmul.f32 %v1550, %v1550
      %v1583 = vmul.f32 %v1551, %v1551
      %v1584 = vmul.f32 %v1552, %v1552
      %v1585 = vmul.f32 %v1553, %v1553
      %v1586 = vmul.f32 %v1554, %v1554
      %v1587 = vmul.f32 %v1555, %v1555
      %v1588 = vmul.f32 %v1556, %v1556
      %v1589 = vmul.f32 %v1557, %v1557
      %v1590 = vmul.f32 %v1558, %v1558
      %v1591 = vmul.f32 %v1559, %v1559
      %v1592 = vmul.f32 %v1560, %v1560
      %v1593 = vmul.f32 %v1561, %v1561
      %v1594 = vmul.f32 %v1562, %v1562
      %v1595 = vsub.f32 %v1563, 1.0
      %v1596 = vsub.f32 %v1564, 1.0
      %v1597 = vsub.f32 %v1565, 1.0
      %v1598 = vsub.f32 %v1566, 1.0
      %v1599 = vsub.f32 %v1567, 1.0
      %v1600 = vsub.f32 %v1568, 1.0
      %v1601 = vsub.f32 %v1569, 1.0
      %v1602 = vsub.f32 %v1570, 1.0
      %v1603 = vsub.f32 %v1571, 1.0
      %v1604 = vsub.f32 %v1572, 1.0
      %v1605 = vsub.f32 %v1573, 1.0
      %v1606 = vsub.f32 %v1574, 1.0
      %v1607 = vsub.f32 %v1575, 1.0
      %v1608 = vsub.f32 %v1576, 1.0
      %v1609 = vsub.f32 %v1577, 1.0
      %v1610 = vsub.f32 %v1578, 1.0
      %v1611 = vsub.f32 %v1579, 1.0
      %v1612 = vsub.f32 %v1580, 1.0
      %v1613 = vsub.f32 %v1581, 1.0
      %v1614 = vsub.f32 %v1582, 1.0
      %v1615 = vsub.f32 %v1583, 1.0
      %v1616 = vsub.f32 %v1584, 1.0
      %v1617 = vsub.f32 %v1585, 1.0
      %v1618 = vsub.f32 %v1586, 1.0
      %v1619 = vsub.f32 %v1587, 1.0
      %v1620 = vsub.f32 %v1588, 1.0
      %v1621 = vsub.f32 %v1589, 1.0
      %v1622 = vsub.f32 %v1590, 1.0
      %v1623 = vsub.f32 %v1591, 1.0
      %v1624 = vsub.f32 %v1592, 1.0
      %v1625 = vsub.f32 %v1593, 1.0
      %v1626 = vsub.f32 %v1594, 1.0
      %v1627 = vmul.f32 %v1403, %v1595
      %v1628 = vmul.f32 %v1404, %v1596
      %v1629 = vmul.f32 %v1405, %v1597
      %v1630 = vmul.f32 %v1406, %v1598
      %v1631 = vmul.f32 %v1407, %v1599
      %v1632 = vmul.f32 %v1408, %v1600
      %v1633 = vmul.f32 %v1409, %v1601
      %v1634 = vmul.f32 %v1410, %v1602
      %v1635 = vmul.f32 %v1411, %v1603
      %v1636 = vmul.f32 %v1412, %v1604
      %v1637 = vmul.f32 %v1413, %v1605
      %v1638 = vmul.f32 %v1414, %v1606
      %v1639 = vmul.f32 %v1415, %v1607
      %v1640 = vmul.f32 %v1416, %v1608
      %v1641 = vmul.f32 %v1417, %v1609
      %v1642 = vmul.f32 %v1418, %v1610
      %v1643 = vmul.f32 %v1419, %v1611
      %v1644 = vmul.f32 %v1420, %v1612
      %v1645 = vmul.f32 %v1421, %v1613
      %v1646 = vmul.f32 %v1422, %v1614
      %v1647 = vmul.f32 %v1423, %v1615
      %v1648 = vmul.f32 %v1424, %v1616
      %v1649 = vmul.f32 %v1425, %v1617
      %v1650 = vmul.f32 %v1426, %v1618
      %v1651 = vmul.f32 %v1427, %v1619
      %v1652 = vmul.f32 %v1428, %v1620
      %v1653 = vmul.f32 %v1429, %v1621
      %v1654 = vmul.f32 %v1430, %v1622
      %v1655 = vmul.f32 %v1431, %v1623
      %v1656 = vmul.f32 %v1432, %v1624
      %v1657 = vmul.f32 %v1433, %v1625
      %v1658 = vmul.f32 %v1434, %v1626
      %v1659 = vadd.f32 %v1563, 1.0
      %v1660 = vadd.f32 %v1564, 1.0
      %v1661 = vadd.f32 %v1565, 1.0
      %v1662 = vadd.f32 %v1566, 1.0
      %v1663 = vadd.f32 %v1567, 1.0
      %v1664 = vadd.f32 %v1568, 1.0
      %v1665 = vadd.f32 %v1569, 1.0
      %v1666 = vadd.f32 %v1570, 1.0
      %v1667 = vadd.f32 %v1571, 1.0
      %v1668 = vadd.f32 %v1572, 1.0
      %v1669 = vadd.f32 %v1573, 1.0
      %v1670 = vadd.f32 %v1574, 1.0
      %v1671 = vadd.f32 %v1575, 1.0
      %v1672 = vadd.f32 %v1576, 1.0
      %v1673 = vadd.f32 %v1577, 1.0
      %v1674 = vadd.f32 %v1578, 1.0
      %v1675 = vadd.f32 %v1579, 1.0
      %v1676 = vadd.f32 %v1580, 1.0
      %v1677 = vadd.f32 %v1581, 1.0
      %v1678 = vadd.f32 %v1582, 1.0
      %v1679 = vadd.f32 %v1583, 1.0
      %v1680 = vadd.f32 %v1584, 1.0
      %v1681 = vadd.f32 %v1585, 1.0
      %v1682 = vadd.f32 %v1586, 1.0
      %v1683 = vadd.f32 %v1587, 1.0
      %v1684 = vadd.f32 %v1588, 1.0
      %v1685 = vadd.f32 %v1589, 1.0
      %v1686 = vadd.f32 %v1590, 1.0
      %v1687 = vadd.f32 %v1591, 1.0
      %v1688 = vadd.f32 %v1592, 1.0
      %v1689 = vadd.f32 %v1593, 1.0
      %v1690 = vadd.f32 %v1594, 1.0
      %v1691 = vrcp.pop %v1659
      %v1692 = vrcp.pop %v1660
      %v1693 = vrcp.pop %v1661
      %v1694 = vrcp.pop %v1662
      %v1695 = vrcp.pop %v1663
      %v1696 = vrcp.pop %v1664
      %v1697 = vrcp.pop %v1665
      %v1698 = vrcp.pop %v1666
      %v1699 = vrcp.pop %v1667
      %v1700 = vrcp.pop %v1668
      %v1701 = vrcp.pop %v1669
      %v1702 = vrcp.pop %v1670
      %v1703 = vrcp.pop %v1671
      %v1704 = vrcp.pop %v1672
      %v1705 = vrcp.pop %v1673
      %v1706 = vrcp.pop %v1674
      %v1707 = vrcp.pop %v1675
      %v1708 = vrcp.pop %v1676
      %v1709 = vrcp.pop %v1677
      %v1710 = vrcp.pop %v1678
      %v1711 = vrcp.pop %v1679
      %v1712 = vrcp.pop %v1680
      %v1713 = vrcp.pop %v1681
      %v1714 = vrcp.pop %v1682
      %v1715 = vrcp.pop %v1683
      %v1716 = vrcp.pop %v1684
      %v1717 = vrcp.pop %v1685
      %v1718 = vrcp.pop %v1686
      %v1719 = vrcp.pop %v1687
      %v1720 = vrcp.pop %v1688
      %v1721 = vrcp.pop %v1689
      %v1722 = vrcp.pop %v1690
      %v1723 = vmul.f32 %v1627, %v1691
      %v1724 = vmul.f32 %v1628, %v1692
      %v1725 = vmul.f32 %v1629, %v1693
      %v1726 = vmul.f32 %v1630, %v1694
      %v1727 = vmul.f32 %v1631, %v1695
      %v1728 = vmul.f32 %v1632, %v1696
      %v1729 = vmul.f32 %v1633, %v1697
      %v1730 = vmul.f32 %v1634, %v1698
      %v1731 = vmul.f32 %v1635, %v1699
      %v1732 = vmul.f32 %v1636, %v1700
      %v1733 = vmul.f32 %v1637, %v1701
      %v1734 = vmul.f32 %v1638, %v1702
      %v1735 = vmul.f32 %v1639, %v1703
      %v1736 = vmul.f32 %v1640, %v1704
      %v1737 = vmul.f32 %v1641, %v1705
      %v1738 = vmul.f32 %v1642, %v1706
      %v1739 = vmul.f32 %v1643, %v1707
      %v1740 = vmul.f32 %v1644, %v1708
      %v1741 = vmul.f32 %v1645, %v1709
      %v1742 = vmul.f32 %v1646, %v1710
      %v1743 = vmul.f32 %v1647, %v1711
      %v1744 = vmul.f32 %v1648, %v1712
      %v1745 = vmul.f32 %v1649, %v1713
      %v1746 = vmul.f32 %v1650, %v1714
      %v1747 = vmul.f32 %v1651, %v1715
      %v1748 = vmul.f32 %v1652, %v1716
      %v1749 = vmul.f32 %v1653, %v1717
      %v1750 = vmul.f32 %v1654, %v1718
      %v1751 = vmul.f32 %v1655, %v1719
      %v1752 = vmul.f32 %v1656, %v1720
      %v1753 = vmul.f32 %v1657, %v1721
      %v1754 = vmul.f32 %v1658, %v1722
      %v1755 = vpack.c.bf16 %v1053, %v1052
      %v1756 = vpack.c.bf16 %v1724, %v1723
      %v1757 = vpack.c.bf16 %v1055, %v1054
      %v1758 = vpack.c.bf16 %v1726, %v1725
      %v1759 = vpack.c.bf16 %v1057, %v1056
      %v1760 = vpack.c.bf16 %v1728, %v1727
      %v1761 = vpack.c.bf16 %v1059, %v1058
      %v1762 = vpack.c.bf16 %v1730, %v1729
      %v1763 = vpack.c.bf16 %v1061, %v1060
      %v1764 = vpack.c.bf16 %v1732, %v1731
      %v1765 = vpack.c.bf16 %v1063, %v1062
      %v1766 = vpack.c.bf16 %v1734, %v1733
      %v1767 = vpack.c.bf16 %v1065, %v1064
      %v1768 = vpack.c.bf16 %v1736, %v1735
      %v1769 = vpack.c.bf16 %v1067, %v1066
      %v1770 = vpack.c.bf16 %v1738, %v1737
      %v1771 = vpack.c.bf16 %v1069, %v1068
      %v1772 = vpack.c.bf16 %v1740, %v1739
      %v1773 = vpack.c.bf16 %v1071, %v1070
      %v1774 = vpack.c.bf16 %v1742, %v1741
      %v1775 = vpack.c.bf16 %v1073, %v1072
      %v1776 = vpack.c.bf16 %v1744, %v1743
      %v1777 = vpack.c.bf16 %v1075, %v1074
      %v1778 = vpack.c.bf16 %v1746, %v1745
      %v1779 = vpack.c.bf16 %v1077, %v1076
      %v1780 = vpack.c.bf16 %v1748, %v1747
      %v1781 = vpack.c.bf16 %v1079, %v1078
      %v1782 = vpack.c.bf16 %v1750, %v1749
      %v1783 = vpack.c.bf16 %v1081, %v1080
      %v1784 = vpack.c.bf16 %v1752, %v1751
      %v1785 = vpack.c.bf16 %v1083, %v1082
      %v1786 = vpack.c.bf16 %v1754, %v1753
      %v1787 = vld [vmem:[%s8] sm:$0xf]
      %v1788 = vld [vmem:[%s8 + $0x4] sm:$0xf]
      %v1789 = vld [vmem:[%s8 + $0x8] sm:$0xf]
      %v1790 = vld [vmem:[%s8 + $0xc] sm:$0xf]
      %v1791 = vld [vmem:[%s8 + $0x10] sm:$0xf]
      %v1792 = vld [vmem:[%s8 + $0x14] sm:$0xf]
      %v1793 = vld [vmem:[%s8 + $0x18] sm:$0xf]
      %v1794 = vld [vmem:[%s8 + $0x1c] sm:$0xf]
      %v1795 = vld [vmem:[%s8 + $0x20] sm:$0xf]
      %v1796 = vld [vmem:[%s8 + $0x24] sm:$0xf]
      %v1797 = vld [vmem:[%s8 + $0x28] sm:$0xf]
      %v1798 = vld [vmem:[%s8 + $0x2c] sm:$0xf]
      %v1799 = vld [vmem:[%s8 + $0x30] sm:$0xf]
      %v1800 = vld [vmem:[%s8 + $0x34] sm:$0xf]
      %v1801 = vld [vmem:[%s8 + $0x38] sm:$0xf]
      %v1802 = vld [vmem:[%s8 + $0x3c] sm:$0xf]
      %v1803 = vld [vmem:[%s8 + $0x40] sm:$0xf]
      %v1804 = vld [vmem:[%s8 + $0x44] sm:$0xf]
      %v1805 = vld [vmem:[%s8 + $0x48] sm:$0xf]
      %v1806 = vld [vmem:[%s8 + $0x4c] sm:$0xf]
      %v1807 = vld [vmem:[%s8 + $0x50] sm:$0xf]
      %v1808 = vld [vmem:[%s8 + $0x54] sm:$0xf]
      %v1809 = vld [vmem:[%s8 + $0x58] sm:$0xf]
      %v1810 = vld [vmem:[%s8 + $0x5c] sm:$0xf]
      %v1811 = vld [vmem:[%s8 + $0x60] sm:$0xf]
      %v1812 = vld [vmem:[%s8 + $0x64] sm:$0xf]
      %v1813 = vld [vmem:[%s8 + $0x68] sm:$0xf]
      %v1814 = vld [vmem:[%s8 + $0x6c] sm:$0xf]
      %v1815 = vld [vmem:[%s8 + $0x70] sm:$0xf]
      %v1816 = vld [vmem:[%s8 + $0x74] sm:$0xf]
      %v1817 = vld [vmem:[%s8 + $0x78] sm:$0xf]
      %v1818 = vld [vmem:[%s8 + $0x7c] sm:$0xf]
      %v1851 = vunpack.c.l.b16 %v1787
      %v1852 = vunpack.c.l.b16 %v1788
      %v1853 = vunpack.c.l.b16 %v1789
      %v1854 = vunpack.c.l.b16 %v1790
      %v1855 = vunpack.c.l.b16 %v1791
      %v1856 = vunpack.c.l.b16 %v1792
      %v1857 = vunpack.c.l.b16 %v1793
      %v1858 = vunpack.c.l.b16 %v1794
      %v1859 = vunpack.c.l.b16 %v1795
      %v1860 = vunpack.c.l.b16 %v1796
      %v1861 = vunpack.c.l.b16 %v1797
      %v1862 = vunpack.c.l.b16 %v1798
      %v1863 = vunpack.c.l.b16 %v1799
      %v1864 = vunpack.c.l.b16 %v1800
      %v1865 = vunpack.c.l.b16 %v1801
      %v1866 = vunpack.c.l.b16 %v1802
      %v1867 = vunpack.c.l.b16 %v1803
      %v1868 = vunpack.c.l.b16 %v1804
      %v1869 = vunpack.c.l.b16 %v1805
      %v1870 = vunpack.c.l.b16 %v1806
      %v1871 = vunpack.c.l.b16 %v1807
      %v1872 = vunpack.c.l.b16 %v1808
      %v1873 = vunpack.c.l.b16 %v1809
      %v1874 = vunpack.c.l.b16 %v1810
      %v1875 = vunpack.c.l.b16 %v1811
      %v1876 = vunpack.c.l.b16 %v1812
      %v1877 = vunpack.c.l.b16 %v1813
      %v1878 = vunpack.c.l.b16 %v1814
      %v1879 = vunpack.c.l.b16 %v1815
      %v1880 = vunpack.c.l.b16 %v1816
      %v1881 = vunpack.c.l.b16 %v1817
      %v1882 = vunpack.c.l.b16 %v1818
      %v1883 = vpack.c.b16 %v1852, %v1851
      %v1884 = vpack.c.b16 %v1854, %v1853
      %v1885 = vpack.c.b16 %v1856, %v1855
      %v1886 = vpack.c.b16 %v1858, %v1857
      %v1887 = vpack.c.b16 %v1860, %v1859
      %v1888 = vpack.c.b16 %v1862, %v1861
      %v1889 = vpack.c.b16 %v1864, %v1863
      %v1890 = vpack.c.b16 %v1866, %v1865
      %v1891 = vpack.c.b16 %v1868, %v1867
      %v1892 = vpack.c.b16 %v1870, %v1869
      %v1893 = vpack.c.b16 %v1872, %v1871
      %v1894 = vpack.c.b16 %v1874, %v1873
      %v1895 = vpack.c.b16 %v1876, %v1875
      %v1896 = vpack.c.b16 %v1878, %v1877
      %v1897 = vpack.c.b16 %v1880, %v1879
      %v1898 = vpack.c.b16 %v1882, %v1881
      %1915 = vmatprep.subr.bf16.mxu0 0
      %1916 = vmatpush1.bf16.msra.mxu0 %v1883
      %1917 = vmatprep.subr.bf16.mxu0 0
      %1918 = vmatpush1.bf16.msra.mxu0 %v1884
      %1919 = vmatprep.subr.bf16.mxu0 0
      %1920 = vmatpush1.bf16.msra.mxu0 %v1885
      %1921 = vmatprep.subr.bf16.mxu0 0
      %1922 = vmatpush1.bf16.msra.mxu0 %v1886
      %1923 = vmatprep.subr.bf16.mxu0 0
      %1924 = vmatpush1.bf16.msra.mxu0 %v1887
      %1925 = vmatprep.subr.bf16.mxu0 0
      %1926 = vmatpush1.bf16.msra.mxu0 %v1888
      %1927 = vmatprep.subr.bf16.mxu0 0
      %1928 = vmatpush1.bf16.msra.mxu0 %v1889
      %1929 = vmatprep.subr.bf16.mxu0 0
      %1930 = vmatpush1.bf16.msra.mxu0 %v1890
      %1931 = vmatprep.subr.bf16.mxu0 0
      %1932 = vmatpush1.bf16.msra.mxu0 %v1891
      %1933 = vmatprep.subr.bf16.mxu0 0
      %1934 = vmatpush1.bf16.msra.mxu0 %v1892
      %1935 = vmatprep.subr.bf16.mxu0 0
      %1936 = vmatpush1.bf16.msra.mxu0 %v1893
      %1937 = vmatprep.subr.bf16.mxu0 0
      %1938 = vmatpush1.bf16.msra.mxu0 %v1894
      %1939 = vmatprep.subr.bf16.mxu0 0
      %1940 = vmatpush1.bf16.msra.mxu0 %v1895
      %1941 = vmatprep.subr.bf16.mxu0 0
      %1942 = vmatpush1.bf16.msra.mxu0 %v1896
      %1943 = vmatprep.subr.bf16.mxu0 0
      %1944 = vmatpush1.bf16.msra.mxu0 %v1897
      %1945 = vmatprep.subr.bf16.mxu0 0
      %1946 = vmatpush1.bf16.msra.mxu0 %v1898
      %1947 = vmatprep.mubr.bf16.mxu0 %v1756
      %1948 = vmatmul.mubr.bf16.gmra.mrb[0].mxu0 %v1755
      %v1949 = vpop.f32.mrb[0].mxu0
      %v1950 = vadd.f32 0.0, %v1949
      %v1951 = vpop.f32.mrb[0].mxu0
      %v1952 = vpop.f32.mrb[0].mxu0
      %v1953 = vadd.f32 0.0, %v1952
      %v1954 = vpop.f32.mrb[0].mxu0
      %1955 = vmatprep.mubr.bf16.mxu0 %v1758
      %1956 = vmatmul.mubr.bf16.gmra.mrb[0].mxu0 %v1757
      %v1957 = vpop.f32.mrb[0].mxu0
      %v1958 = vadd.f32 0.0, %v1957
      %v1959 = vpop.f32.mrb[0].mxu0
      %v1960 = vpop.f32.mrb[0].mxu0
      %v1961 = vadd.f32 0.0, %v1960
      %v1962 = vpop.f32.mrb[0].mxu0
      %1963 = vmatprep.mubr.bf16.mxu0 %v1760
      %1964 = vmatmul.mubr.bf16.gmra.mrb[0].mxu0 %v1759
      %v1965 = vpop.f32.mrb[0].mxu0
      %v1966 = vadd.f32 0.0, %v1965
      %v1967 = vpop.f32.mrb[0].mxu0
      %v1968 = vpop.f32.mrb[0].mxu0
      %v1969 = vadd.f32 0.0, %v1968
      %v1970 = vpop.f32.mrb[0].mxu0
      %1971 = vmatprep.mubr.bf16.mxu0 %v1762
      %1972 = vmatmul.mubr.bf16.gmra.mrb[0].mxu0 %v1761
      %v1973 = vpop.f32.mrb[0].mxu0
      %v1974 = vadd.f32 0.0, %v1973
      %v1975 = vpop.f32.mrb[0].mxu0
      %v1976 = vpop.f32.mrb[0].mxu0
      %v1977 = vadd.f32 0.0, %v1976
      %v1978 = vpop.f32.mrb[0].mxu0
      %1979 = vmatprep.mubr.bf16.mxu0 %v1764
      %1980 = vmatmul.mubr.bf16.gmra.mrb[0].mxu0 %v1763
      %v1981 = vpop.f32.mrb[0].mxu0
      %v1982 = vadd.f32 0.0, %v1981
      %v1983 = vpop.f32.mrb[0].mxu0
      %v1984 = vpop.f32.mrb[0].mxu0
      %v1985 = vadd.f32 0.0, %v1984
      %v1986 = vpop.f32.mrb[0].mxu0
      %1987 = vmatprep.mubr.bf16.mxu0 %v1766
      %1988 = vmatmul.mubr.bf16.gmra.mrb[0].mxu0 %v1765
      %v1989 = vpop.f32.mrb[0].mxu0
      %v1990 = vadd.f32 0.0, %v1989
      %v1991 = vpop.f32.mrb[0].mxu0
      %v1992 = vpop.f32.mrb[0].mxu0
      %v1993 = vadd.f32 0.0, %v1992
      %v1994 = vpop.f32.mrb[0].mxu0
      %1995 = vmatprep.mubr.bf16.mxu0 %v1768
      %1996 = vmatmul.mubr.bf16.gmra.mrb[0].mxu0 %v1767
      %v1997 = vpop.f32.mrb[0].mxu0
      %v1998 = vadd.f32 0.0, %v1997
      %v1999 = vpop.f32.mrb[0].mxu0
      %v2000 = vpop.f32.mrb[0].mxu0
      %v2001 = vadd.f32 0.0, %v2000
      %v2002 = vpop.f32.mrb[0].mxu0
      %2003 = vmatprep.mubr.bf16.mxu0 %v1770
      %2004 = vmatmul.mubr.bf16.gmra.mrb[0].mxu0 %v1769
      %v2005 = vpop.f32.mrb[0].mxu0
      %v2006 = vadd.f32 0.0, %v2005
      %v2007 = vpop.f32.mrb[0].mxu0
      %v2008 = vpop.f32.mrb[0].mxu0
      %v2009 = vadd.f32 0.0, %v2008
      %v2010 = vpop.f32.mrb[0].mxu0
      %2011 = vmatprep.mubr.bf16.mxu0 %v1772
      %2012 = vmatmul.mubr.bf16.gmra.mrb[0].mxu0 %v1771
      %v2013 = vpop.f32.mrb[0].mxu0
      %v2014 = vadd.f32 0.0, %v2013
      %v2015 = vpop.f32.mrb[0].mxu0
      %v2016 = vpop.f32.mrb[0].mxu0
      %v2017 = vadd.f32 0.0, %v2016
      %v2018 = vpop.f32.mrb[0].mxu0
      %2019 = vmatprep.mubr.bf16.mxu0 %v1774
      %2020 = vmatmul.mubr.bf16.gmra.mrb[0].mxu0 %v1773
      %v2021 = vpop.f32.mrb[0].mxu0
      %v2022 = vadd.f32 0.0, %v2021
      %v2023 = vpop.f32.mrb[0].mxu0
      %v2024 = vpop.f32.mrb[0].mxu0
      %v2025 = vadd.f32 0.0, %v2024
      %v2026 = vpop.f32.mrb[0].mxu0
      %2027 = vmatprep.mubr.bf16.mxu0 %v1776
      %2028 = vmatmul.mubr.bf16.gmra.mrb[0].mxu0 %v1775
      %v2029 = vpop.f32.mrb[0].mxu0
      %v2030 = vadd.f32 0.0, %v2029
      %v2031 = vpop.f32.mrb[0].mxu0
      %v2032 = vpop.f32.mrb[0].mxu0
      %v2033 = vadd.f32 0.0, %v2032
      %v2034 = vpop.f32.mrb[0].mxu0
      %2035 = vmatprep.mubr.bf16.mxu0 %v1778
      %2036 = vmatmul.mubr.bf16.gmra.mrb[0].mxu0 %v1777
      %v2037 = vpop.f32.mrb[0].mxu0
      %v2038 = vadd.f32 0.0, %v2037
      %v2039 = vpop.f32.mrb[0].mxu0
      %v2040 = vpop.f32.mrb[0].mxu0
      %v2041 = vadd.f32 0.0, %v2040
      %v2042 = vpop.f32.mrb[0].mxu0
      %2043 = vmatprep.mubr.bf16.mxu0 %v1780
      %2044 = vmatmul.mubr.bf16.gmra.mrb[0].mxu0 %v1779
      %v2045 = vpop.f32.mrb[0].mxu0
      %v2046 = vadd.f32 0.0, %v2045
      %v2047 = vpop.f32.mrb[0].mxu0
      %v2048 = vpop.f32.mrb[0].mxu0
      %v2049 = vadd.f32 0.0, %v2048
      %v2050 = vpop.f32.mrb[0].mxu0
      %2051 = vmatprep.mubr.bf16.mxu0 %v1782
      %2052 = vmatmul.mubr.bf16.gmra.mrb[0].mxu0 %v1781
      %v2053 = vpop.f32.mrb[0].mxu0
      %v2054 = vadd.f32 0.0, %v2053
      %v2055 = vpop.f32.mrb[0].mxu0
      %v2056 = vpop.f32.mrb[0].mxu0
      %v2057 = vadd.f32 0.0, %v2056
      %v2058 = vpop.f32.mrb[0].mxu0
      %2059 = vmatprep.mubr.bf16.mxu0 %v1784
      %2060 = vmatmul.mubr.bf16.gmra.mrb[0].mxu0 %v1783
      %v2061 = vpop.f32.mrb[0].mxu0
      %v2062 = vadd.f32 0.0, %v2061
      %v2063 = vpop.f32.mrb[0].mxu0
      %v2064 = vpop.f32.mrb[0].mxu0
      %v2065 = vadd.f32 0.0, %v2064
      %v2066 = vpop.f32.mrb[0].mxu0
      %2067 = vmatprep.mubr.bf16.mxu0 %v1786
      %2068 = vmatmul.mubr.bf16.gmra.mrb[0].mxu0 %v1785
      %v2069 = vpop.f32.mrb[0].mxu0
      %v2070 = vadd.f32 0.0, %v2069
      %v2071 = vpop.f32.mrb[0].mxu0
      %v2072 = vpop.f32.mrb[0].mxu0
      %v2073 = vadd.f32 0.0, %v2072
      %v2074 = vpop.f32.mrb[0].mxu0
      %2075 = vdwg.mxu0
      %v2076 = vld [vmem:[%s9] sm:$0x1]
      %v2078 = vlaneseq
      %v2079 = vshrl.u32 %v2078, 7
      %v2080 = vsub.s32 0, %v2079
      %v2081 = vrot.slane %v2076, %v2080
      %v2083 = vmul.f32 %v1950, %v2081
      %v2084 = vmul.f32 %v1953, %v2081
      %v2085 = vmul.f32 %v1958, %v2081
      %v2086 = vmul.f32 %v1961, %v2081
      %v2087 = vmul.f32 %v1966, %v2081
      %v2088 = vmul.f32 %v1969, %v2081
      %v2089 = vmul.f32 %v1974, %v2081
      %v2090 = vmul.f32 %v1977, %v2081
      %v2091 = vmul.f32 %v1982, %v2081
      %v2092 = vmul.f32 %v1985, %v2081
      %v2093 = vmul.f32 %v1990, %v2081
      %v2094 = vmul.f32 %v1993, %v2081
      %v2095 = vmul.f32 %v1998, %v2081
      %v2096 = vmul.f32 %v2001, %v2081
      %v2097 = vmul.f32 %v2006, %v2081
      %v2098 = vmul.f32 %v2009, %v2081
      %v2099 = vmul.f32 %v2014, %v2081
      %v2100 = vmul.f32 %v2017, %v2081
      %v2101 = vmul.f32 %v2022, %v2081
      %v2102 = vmul.f32 %v2025, %v2081
      %v2103 = vmul.f32 %v2030, %v2081
      %v2104 = vmul.f32 %v2033, %v2081
      %v2105 = vmul.f32 %v2038, %v2081
      %v2106 = vmul.f32 %v2041, %v2081
      %v2107 = vmul.f32 %v2046, %v2081
      %v2108 = vmul.f32 %v2049, %v2081
      %v2109 = vmul.f32 %v2054, %v2081
      %v2110 = vmul.f32 %v2057, %v2081
      %v2111 = vmul.f32 %v2062, %v2081
      %v2112 = vmul.f32 %v2065, %v2081
      %v2113 = vmul.f32 %v2070, %v2081
      %v2114 = vmul.f32 %v2073, %v2081
      %v2115 = vld [vmem:[%s10] sm:$0x1]
      %v2117 = vlaneseq
      %v2118 = vshrl.u32 %v2117, 7
      %v2119 = vsub.s32 0, %v2118
      %v2120 = vrot.slane %v2115, %v2119
      %v2122 = vadd.f32 %v2083, %v2120
      %v2123 = vadd.f32 %v2084, %v2120
      %v2124 = vadd.f32 %v2085, %v2120
      %v2125 = vadd.f32 %v2086, %v2120
      %v2126 = vadd.f32 %v2087, %v2120
      %v2127 = vadd.f32 %v2088, %v2120
      %v2128 = vadd.f32 %v2089, %v2120
      %v2129 = vadd.f32 %v2090, %v2120
      %v2130 = vadd.f32 %v2091, %v2120
      %v2131 = vadd.f32 %v2092, %v2120
      %v2132 = vadd.f32 %v2093, %v2120
      %v2133 = vadd.f32 %v2094, %v2120
      %v2134 = vadd.f32 %v2095, %v2120
      %v2135 = vadd.f32 %v2096, %v2120
      %v2136 = vadd.f32 %v2097, %v2120
      %v2137 = vadd.f32 %v2098, %v2120
      %v2138 = vadd.f32 %v2099, %v2120
      %v2139 = vadd.f32 %v2100, %v2120
      %v2140 = vadd.f32 %v2101, %v2120
      %v2141 = vadd.f32 %v2102, %v2120
      %v2142 = vadd.f32 %v2103, %v2120
      %v2143 = vadd.f32 %v2104, %v2120
      %v2144 = vadd.f32 %v2105, %v2120
      %v2145 = vadd.f32 %v2106, %v2120
      %v2146 = vadd.f32 %v2107, %v2120
      %v2147 = vadd.f32 %v2108, %v2120
      %v2148 = vadd.f32 %v2109, %v2120
      %v2149 = vadd.f32 %v2110, %v2120
      %v2150 = vadd.f32 %v2111, %v2120
      %v2151 = vadd.f32 %v2112, %v2120
      %v2152 = vadd.f32 %v2113, %v2120
      %v2153 = vadd.f32 %v2114, %v2120
      %v2154 = vmin.f32 %v2122, 20.0
      %v2155 = vmin.f32 %v2123, 20.0
      %v2156 = vmin.f32 %v2124, 20.0
      %v2157 = vmin.f32 %v2125, 20.0
      %v2158 = vmin.f32 %v2126, 20.0
      %v2159 = vmin.f32 %v2127, 20.0
      %v2160 = vmin.f32 %v2128, 20.0
      %v2161 = vmin.f32 %v2129, 20.0
      %v2162 = vmin.f32 %v2130, 20.0
      %v2163 = vmin.f32 %v2131, 20.0
      %v2164 = vmin.f32 %v2132, 20.0
      %v2165 = vmin.f32 %v2133, 20.0
      %v2166 = vmin.f32 %v2134, 20.0
      %v2167 = vmin.f32 %v2135, 20.0
      %v2168 = vmin.f32 %v2136, 20.0
      %v2169 = vmin.f32 %v2137, 20.0
      %v2170 = vmin.f32 %v2138, 20.0
      %v2171 = vmin.f32 %v2139, 20.0
      %v2172 = vmin.f32 %v2140, 20.0
      %v2173 = vmin.f32 %v2141, 20.0
      %v2174 = vmin.f32 %v2142, 20.0
      %v2175 = vmin.f32 %v2143, 20.0
      %v2176 = vmin.f32 %v2144, 20.0
      %v2177 = vmin.f32 %v2145, 20.0
      %v2178 = vmin.f32 %v2146, 20.0
      %v2179 = vmin.f32 %v2147, 20.0
      %v2180 = vmin.f32 %v2148, 20.0
      %v2181 = vmin.f32 %v2149, 20.0
      %v2182 = vmin.f32 %v2150, 20.0
      %v2183 = vmin.f32 %v2151, 20.0
      %v2184 = vmin.f32 %v2152, 20.0
      %v2185 = vmin.f32 %v2153, 20.0
      %v2186 = vmul.f32 %v2154, 1.442695
      %v2187 = vpow.pop %v2186
      %v2188 = vmul.f32 %v2155, 1.442695
      %v2189 = vpow.pop %v2188
      %v2190 = vmul.f32 %v2156, 1.442695
      %v2191 = vpow.pop %v2190
      %v2192 = vmul.f32 %v2157, 1.442695
      %v2193 = vpow.pop %v2192
      %v2194 = vmul.f32 %v2158, 1.442695
      %v2195 = vpow.pop %v2194
      %v2196 = vmul.f32 %v2159, 1.442695
      %v2197 = vpow.pop %v2196
      %v2198 = vmul.f32 %v2160, 1.442695
      %v2199 = vpow.pop %v2198
      %v2200 = vmul.f32 %v2161, 1.442695
      %v2201 = vpow.pop %v2200
      %v2202 = vmul.f32 %v2162, 1.442695
      %v2203 = vpow.pop %v2202
      %v2204 = vmul.f32 %v2163, 1.442695
      %v2205 = vpow.pop %v2204
      %v2206 = vmul.f32 %v2164, 1.442695
      %v2207 = vpow.pop %v2206
      %v2208 = vmul.f32 %v2165, 1.442695
      %v2209 = vpow.pop %v2208
      %v2210 = vmul.f32 %v2166, 1.442695
      %v2211 = vpow.pop %v2210
      %v2212 = vmul.f32 %v2167, 1.442695
      %v2213 = vpow.pop %v2212
      %v2214 = vmul.f32 %v2168, 1.442695
      %v2215 = vpow.pop %v2214
      %v2216 = vmul.f32 %v2169, 1.442695
      %v2217 = vpow.pop %v2216
      %v2218 = vmul.f32 %v2170, 1.442695
      %v2219 = vpow.pop %v2218
      %v2220 = vmul.f32 %v2171, 1.442695
      %v2221 = vpow.pop %v2220
      %v2222 = vmul.f32 %v2172, 1.442695
      %v2223 = vpow.pop %v2222
      %v2224 = vmul.f32 %v2173, 1.442695
      %v2225 = vpow.pop %v2224
      %v2226 = vmul.f32 %v2174, 1.442695
      %v2227 = vpow.pop %v2226
      %v2228 = vmul.f32 %v2175, 1.442695
      %v2229 = vpow.pop %v2228
      %v2230 = vmul.f32 %v2176, 1.442695
      %v2231 = vpow.pop %v2230
      %v2232 = vmul.f32 %v2177, 1.442695
      %v2233 = vpow.pop %v2232
      %v2234 = vmul.f32 %v2178, 1.442695
      %v2235 = vpow.pop %v2234
      %v2236 = vmul.f32 %v2179, 1.442695
      %v2237 = vpow.pop %v2236
      %v2238 = vmul.f32 %v2180, 1.442695
      %v2239 = vpow.pop %v2238
      %v2240 = vmul.f32 %v2181, 1.442695
      %v2241 = vpow.pop %v2240
      %v2242 = vmul.f32 %v2182, 1.442695
      %v2243 = vpow.pop %v2242
      %v2244 = vmul.f32 %v2183, 1.442695
      %v2245 = vpow.pop %v2244
      %v2246 = vmul.f32 %v2184, 1.442695
      %v2247 = vpow.pop %v2246
      %v2248 = vmul.f32 %v2185, 1.442695
      %v2249 = vpow.pop %v2248
      %v2250 = vadd.f32 %v2187, 1.0
      %v2251 = vadd.f32 %v2189, 1.0
      %v2252 = vadd.f32 %v2191, 1.0
      %v2253 = vadd.f32 %v2193, 1.0
      %v2254 = vadd.f32 %v2195, 1.0
      %v2255 = vadd.f32 %v2197, 1.0
      %v2256 = vadd.f32 %v2199, 1.0
      %v2257 = vadd.f32 %v2201, 1.0
      %v2258 = vadd.f32 %v2203, 1.0
      %v2259 = vadd.f32 %v2205, 1.0
      %v2260 = vadd.f32 %v2207, 1.0
      %v2261 = vadd.f32 %v2209, 1.0
      %v2262 = vadd.f32 %v2211, 1.0
      %v2263 = vadd.f32 %v2213, 1.0
      %v2264 = vadd.f32 %v2215, 1.0
      %v2265 = vadd.f32 %v2217, 1.0
      %v2266 = vadd.f32 %v2219, 1.0
      %v2267 = vadd.f32 %v2221, 1.0
      %v2268 = vadd.f32 %v2223, 1.0
      %v2269 = vadd.f32 %v2225, 1.0
      %v2270 = vadd.f32 %v2227, 1.0
      %v2271 = vadd.f32 %v2229, 1.0
      %v2272 = vadd.f32 %v2231, 1.0
      %v2273 = vadd.f32 %v2233, 1.0
      %v2274 = vadd.f32 %v2235, 1.0
      %v2275 = vadd.f32 %v2237, 1.0
      %v2276 = vadd.f32 %v2239, 1.0
      %v2277 = vadd.f32 %v2241, 1.0
      %v2278 = vadd.f32 %v2243, 1.0
      %v2279 = vadd.f32 %v2245, 1.0
      %v2280 = vadd.f32 %v2247, 1.0
      %v2281 = vadd.f32 %v2249, 1.0
      %v2282 = vmul.f32 %v2250, %v2250
      %v2283 = vmul.f32 %v2251, %v2251
      %v2284 = vmul.f32 %v2252, %v2252
      %v2285 = vmul.f32 %v2253, %v2253
      %v2286 = vmul.f32 %v2254, %v2254
      %v2287 = vmul.f32 %v2255, %v2255
      %v2288 = vmul.f32 %v2256, %v2256
      %v2289 = vmul.f32 %v2257, %v2257
      %v2290 = vmul.f32 %v2258, %v2258
      %v2291 = vmul.f32 %v2259, %v2259
      %v2292 = vmul.f32 %v2260, %v2260
      %v2293 = vmul.f32 %v2261, %v2261
      %v2294 = vmul.f32 %v2262, %v2262
      %v2295 = vmul.f32 %v2263, %v2263
      %v2296 = vmul.f32 %v2264, %v2264
      %v2297 = vmul.f32 %v2265, %v2265
      %v2298 = vmul.f32 %v2266, %v2266
      %v2299 = vmul.f32 %v2267, %v2267
      %v2300 = vmul.f32 %v2268, %v2268
      %v2301 = vmul.f32 %v2269, %v2269
      %v2302 = vmul.f32 %v2270, %v2270
      %v2303 = vmul.f32 %v2271, %v2271
      %v2304 = vmul.f32 %v2272, %v2272
      %v2305 = vmul.f32 %v2273, %v2273
      %v2306 = vmul.f32 %v2274, %v2274
      %v2307 = vmul.f32 %v2275, %v2275
      %v2308 = vmul.f32 %v2276, %v2276
      %v2309 = vmul.f32 %v2277, %v2277
      %v2310 = vmul.f32 %v2278, %v2278
      %v2311 = vmul.f32 %v2279, %v2279
      %v2312 = vmul.f32 %v2280, %v2280
      %v2313 = vmul.f32 %v2281, %v2281
      %v2314 = vsub.f32 %v2282, 1.0
      %v2315 = vsub.f32 %v2283, 1.0
      %v2316 = vsub.f32 %v2284, 1.0
      %v2317 = vsub.f32 %v2285, 1.0
      %v2318 = vsub.f32 %v2286, 1.0
      %v2319 = vsub.f32 %v2287, 1.0
      %v2320 = vsub.f32 %v2288, 1.0
      %v2321 = vsub.f32 %v2289, 1.0
      %v2322 = vsub.f32 %v2290, 1.0
      %v2323 = vsub.f32 %v2291, 1.0
      %v2324 = vsub.f32 %v2292, 1.0
      %v2325 = vsub.f32 %v2293, 1.0
      %v2326 = vsub.f32 %v2294, 1.0
      %v2327 = vsub.f32 %v2295, 1.0
      %v2328 = vsub.f32 %v2296, 1.0
      %v2329 = vsub.f32 %v2297, 1.0
      %v2330 = vsub.f32 %v2298, 1.0
      %v2331 = vsub.f32 %v2299, 1.0
      %v2332 = vsub.f32 %v2300, 1.0
      %v2333 = vsub.f32 %v2301, 1.0
      %v2334 = vsub.f32 %v2302, 1.0
      %v2335 = vsub.f32 %v2303, 1.0
      %v2336 = vsub.f32 %v2304, 1.0
      %v2337 = vsub.f32 %v2305, 1.0
      %v2338 = vsub.f32 %v2306, 1.0
      %v2339 = vsub.f32 %v2307, 1.0
      %v2340 = vsub.f32 %v2308, 1.0
      %v2341 = vsub.f32 %v2309, 1.0
      %v2342 = vsub.f32 %v2310, 1.0
      %v2343 = vsub.f32 %v2311, 1.0
      %v2344 = vsub.f32 %v2312, 1.0
      %v2345 = vsub.f32 %v2313, 1.0
      %v2346 = vmul.f32 %v2122, %v2314
      %v2347 = vmul.f32 %v2123, %v2315
      %v2348 = vmul.f32 %v2124, %v2316
      %v2349 = vmul.f32 %v2125, %v2317
      %v2350 = vmul.f32 %v2126, %v2318
      %v2351 = vmul.f32 %v2127, %v2319
      %v2352 = vmul.f32 %v2128, %v2320
      %v2353 = vmul.f32 %v2129, %v2321
      %v2354 = vmul.f32 %v2130, %v2322
      %v2355 = vmul.f32 %v2131, %v2323
      %v2356 = vmul.f32 %v2132, %v2324
      %v2357 = vmul.f32 %v2133, %v2325
      %v2358 = vmul.f32 %v2134, %v2326
      %v2359 = vmul.f32 %v2135, %v2327
      %v2360 = vmul.f32 %v2136, %v2328
      %v2361 = vmul.f32 %v2137, %v2329
      %v2362 = vmul.f32 %v2138, %v2330
      %v2363 = vmul.f32 %v2139, %v2331
      %v2364 = vmul.f32 %v2140, %v2332
      %v2365 = vmul.f32 %v2141, %v2333
      %v2366 = vmul.f32 %v2142, %v2334
      %v2367 = vmul.f32 %v2143, %v2335
      %v2368 = vmul.f32 %v2144, %v2336
      %v2369 = vmul.f32 %v2145, %v2337
      %v2370 = vmul.f32 %v2146, %v2338
      %v2371 = vmul.f32 %v2147, %v2339
      %v2372 = vmul.f32 %v2148, %v2340
      %v2373 = vmul.f32 %v2149, %v2341
      %v2374 = vmul.f32 %v2150, %v2342
      %v2375 = vmul.f32 %v2151, %v2343
      %v2376 = vmul.f32 %v2152, %v2344
      %v2377 = vmul.f32 %v2153, %v2345
      %v2378 = vadd.f32 %v2282, 1.0
      %v2379 = vadd.f32 %v2283, 1.0
      %v2380 = vadd.f32 %v2284, 1.0
      %v2381 = vadd.f32 %v2285, 1.0
      %v2382 = vadd.f32 %v2286, 1.0
      %v2383 = vadd.f32 %v2287, 1.0
      %v2384 = vadd.f32 %v2288, 1.0
      %v2385 = vadd.f32 %v2289, 1.0
      %v2386 = vadd.f32 %v2290, 1.0
      %v2387 = vadd.f32 %v2291, 1.0
      %v2388 = vadd.f32 %v2292, 1.0
      %v2389 = vadd.f32 %v2293, 1.0
      %v2390 = vadd.f32 %v2294, 1.0
      %v2391 = vadd.f32 %v2295, 1.0
      %v2392 = vadd.f32 %v2296, 1.0
      %v2393 = vadd.f32 %v2297, 1.0
      %v2394 = vadd.f32 %v2298, 1.0
      %v2395 = vadd.f32 %v2299, 1.0
      %v2396 = vadd.f32 %v2300, 1.0
      %v2397 = vadd.f32 %v2301, 1.0
      %v2398 = vadd.f32 %v2302, 1.0
      %v2399 = vadd.f32 %v2303, 1.0
      %v2400 = vadd.f32 %v2304, 1.0
      %v2401 = vadd.f32 %v2305, 1.0
      %v2402 = vadd.f32 %v2306, 1.0
      %v2403 = vadd.f32 %v2307, 1.0
      %v2404 = vadd.f32 %v2308, 1.0
      %v2405 = vadd.f32 %v2309, 1.0
      %v2406 = vadd.f32 %v2310, 1.0
      %v2407 = vadd.f32 %v2311, 1.0
      %v2408 = vadd.f32 %v2312, 1.0
      %v2409 = vadd.f32 %v2313, 1.0
      %v2410 = vrcp.pop %v2378
      %v2411 = vrcp.pop %v2379
      %v2412 = vrcp.pop %v2380
      %v2413 = vrcp.pop %v2381
      %v2414 = vrcp.pop %v2382
      %v2415 = vrcp.pop %v2383
      %v2416 = vrcp.pop %v2384
      %v2417 = vrcp.pop %v2385
      %v2418 = vrcp.pop %v2386
      %v2419 = vrcp.pop %v2387
      %v2420 = vrcp.pop %v2388
      %v2421 = vrcp.pop %v2389
      %v2422 = vrcp.pop %v2390
      %v2423 = vrcp.pop %v2391
      %v2424 = vrcp.pop %v2392
      %v2425 = vrcp.pop %v2393
      %v2426 = vrcp.pop %v2394
      %v2427 = vrcp.pop %v2395
      %v2428 = vrcp.pop %v2396
      %v2429 = vrcp.pop %v2397
      %v2430 = vrcp.pop %v2398
      %v2431 = vrcp.pop %v2399
      %v2432 = vrcp.pop %v2400
      %v2433 = vrcp.pop %v2401
      %v2434 = vrcp.pop %v2402
      %v2435 = vrcp.pop %v2403
      %v2436 = vrcp.pop %v2404
      %v2437 = vrcp.pop %v2405
      %v2438 = vrcp.pop %v2406
      %v2439 = vrcp.pop %v2407
      %v2440 = vrcp.pop %v2408
      %v2441 = vrcp.pop %v2409
      %v2442 = vmul.f32 %v2346, %v2410
      %v2443 = vmul.f32 %v2347, %v2411
      %v2444 = vmul.f32 %v2348, %v2412
      %v2445 = vmul.f32 %v2349, %v2413
      %v2446 = vmul.f32 %v2350, %v2414
      %v2447 = vmul.f32 %v2351, %v2415
      %v2448 = vmul.f32 %v2352, %v2416
      %v2449 = vmul.f32 %v2353, %v2417
      %v2450 = vmul.f32 %v2354, %v2418
      %v2451 = vmul.f32 %v2355, %v2419
      %v2452 = vmul.f32 %v2356, %v2420
      %v2453 = vmul.f32 %v2357, %v2421
      %v2454 = vmul.f32 %v2358, %v2422
      %v2455 = vmul.f32 %v2359, %v2423
      %v2456 = vmul.f32 %v2360, %v2424
      %v2457 = vmul.f32 %v2361, %v2425
      %v2458 = vmul.f32 %v2362, %v2426
      %v2459 = vmul.f32 %v2363, %v2427
      %v2460 = vmul.f32 %v2364, %v2428
      %v2461 = vmul.f32 %v2365, %v2429
      %v2462 = vmul.f32 %v2366, %v2430
      %v2463 = vmul.f32 %v2367, %v2431
      %v2464 = vmul.f32 %v2368, %v2432
      %v2465 = vmul.f32 %v2369, %v2433
      %v2466 = vmul.f32 %v2370, %v2434
      %v2467 = vmul.f32 %v2371, %v2435
      %v2468 = vmul.f32 %v2372, %v2436
      %v2469 = vmul.f32 %v2373, %v2437
      %v2470 = vmul.f32 %v2374, %v2438
      %v2471 = vmul.f32 %v2375, %v2439
      %v2472 = vmul.f32 %v2376, %v2440
      %v2473 = vmul.f32 %v2377, %v2441
      %2474 = vst [vmem:[%s410] sm:$0xff] %v2442
      %2475 = vst [vmem:[%s410 + $0x8] sm:$0xff] %v2443
      %2476 = vst [vmem:[%s410 + $0x10] sm:$0xff] %v2444
      %2477 = vst [vmem:[%s410 + $0x18] sm:$0xff] %v2445
      %2478 = vst [vmem:[%s410 + $0x20] sm:$0xff] %v2446
      %2479 = vst [vmem:[%s410 + $0x28] sm:$0xff] %v2447
      %2480 = vst [vmem:[%s410 + $0x30] sm:$0xff] %v2448
      %2481 = vst [vmem:[%s410 + $0x38] sm:$0xff] %v2449
      %2482 = vst [vmem:[%s410 + $0x40] sm:$0xff] %v2450
      %2483 = vst [vmem:[%s410 + $0x48] sm:$0xff] %v2451
      %2484 = vst [vmem:[%s410 + $0x50] sm:$0xff] %v2452
      %2485 = vst [vmem:[%s410 + $0x58] sm:$0xff] %v2453
      %2486 = vst [vmem:[%s410 + $0x60] sm:$0xff] %v2454
      %2487 = vst [vmem:[%s410 + $0x68] sm:$0xff] %v2455
      %2488 = vst [vmem:[%s410 + $0x70] sm:$0xff] %v2456
      %2489 = vst [vmem:[%s410 + $0x78] sm:$0xff] %v2457
      %2490 = vst [vmem:[%s410 + $0x80] sm:$0xff] %v2458
      %2491 = vst [vmem:[%s410 + $0x88] sm:$0xff] %v2459
      %2492 = vst [vmem:[%s410 + $0x90] sm:$0xff] %v2460
      %2493 = vst [vmem:[%s410 + $0x98] sm:$0xff] %v2461
      %2494 = vst [vmem:[%s410 + $0xa0] sm:$0xff] %v2462
      %2495 = vst [vmem:[%s410 + $0xa8] sm:$0xff] %v2463
      %2496 = vst [vmem:[%s410 + $0xb0] sm:$0xff] %v2464
      %2497 = vst [vmem:[%s410 + $0xb8] sm:$0xff] %v2465
      %2498 = vst [vmem:[%s410 + $0xc0] sm:$0xff] %v2466
      %2499 = vst [vmem:[%s410 + $0xc8] sm:$0xff] %v2467
      %2500 = vst [vmem:[%s410 + $0xd0] sm:$0xff] %v2468
      %2501 = vst [vmem:[%s410 + $0xd8] sm:$0xff] %v2469
      %2502 = vst [vmem:[%s410 + $0xe0] sm:$0xff] %v2470
      %2503 = vst [vmem:[%s410 + $0xe8] sm:$0xff] %v2471
      %2504 = vst [vmem:[%s410 + $0xf0] sm:$0xff] %v2472
      %2505 = vst [vmem:[%s410 + $0xf8] sm:$0xff] %v2473
      %s2506 = smul.u32 32, %s22
      %p2507 = scmp.lt.s32.totalorder %s2506, 63
      %s2508 = scalar_select %p2507, %s2506, 63
      %s2509 = smul.addr %s2508, 8
      %s2510 = scalar_lea.vmem %s11, %s2509
      // Predicated region
      $region65: #{cspblock1_pallas.5} parent=63 // pred_check
        %p2511 = pneg %p281
      $region66: #{cspblock1_pallas.5} parent=63 // pred_check_branch
        %2513 = sbr.rel (%p2511) target = $region68
      $region67: #{cspblock1_pallas.5} parent=63 // pred_region
        %s2514 = smul.u32 32, %s22
      $region68: #{cspblock1_pallas.5} parent=63 // pred_fallthru
        _
    $region64: #{cspblock1_pallas.5} parent=5 // pred_fallthru
      _
    %p2515 = scmp.le.s32.totalorder 2, %s17
    // Predicated region
    $region69: #{cspblock1_pallas.5} parent=5 // pred_check
      %p2516 = pneg %p2515
    $region70: #{cspblock1_pallas.5} parent=5 // pred_check_branch
      %2518 = sbr.rel (%p2516) target = $region72
    $region71: #{cspblock1_pallas.5} parent=5 // pred_region
      %s2519 = ssub.s32 %s17, 2
      // Predicated region
      $region73: #{cspblock1_pallas.5} parent=71 // pred_check
        %p2520 = pneg %p287
      $region74: #{cspblock1_pallas.5} parent=71 // pred_check_branch
        %2522 = sbr.rel (%p2520) target = $region76
      $region75: #{cspblock1_pallas.5} parent=71 // pred_region
        %s2523 = smul.u32 32, %s23
        %p2524 = scmp.lt.s32.totalorder %s2523, 63
        %s2525 = scalar_select %p2524, %s2523, 63
        %s2526 = smul.addr %s2525, 8
        %s2527 = scalar_lea.vmem %s11, %s2526
      $region76: #{cspblock1_pallas.5} parent=71 // pred_fallthru
        _
    $region72: #{cspblock1_pallas.5} parent=5 // pred_fallthru
      _
  $region6: #{cspblock1_pallas.5} parent=0 // loop_footer
    %s21 = sadd.s32 1, %s17
  $region7: #{cspblock1_pallas.5} parent=0 // loop_footer_branch
    %16 = sbr.rel target = $region3
  $region8: #{cspblock1_pallas.5} parent=0 // loop_exit
    _

// kernel: cspblock1_pallas.4
$region0: #{cspblock1_pallas.4}
  #allocation0 [shape = 'u32[]', space=smem, size = 0x4, offset = 0x4, fixed_abs, tag = 'smem constant byte address 0x4 - core index']
  #allocation1 [shape = 'u32[144,128]{1,0:T(1,128)}', space=vmem, size = 0x12000, scoped, tag = 'internal scratch']
  #allocation2 [shape = 'bf16[18,33,128]{2,1,0:T(8,128)(2,1)}', space=vmem, size = 0x2d000, scoped, tag = 'scratch operand']
  %s0 = inlined_call_operand.vmem [shape: f32[2,16,16,128], index: 0, kind: input, shape index: {}]
  %s1 = inlined_call_operand.vmem [shape: bf16[128,128], index: 1, kind: input, shape index: {}]
  %s2 = inlined_call_operand.vmem [shape: f32[1,128], index: 2, kind: input, shape index: {}]
  %s3 = inlined_call_operand.vmem [shape: f32[1,128], index: 3, kind: input, shape index: {}]
  %s4 = inlined_call_operand.vmem [shape: bf16[3,3,128,128], index: 4, kind: input, shape index: {}]
  %s5 = inlined_call_operand.vmem [shape: f32[1,128], index: 5, kind: input, shape index: {}]
  %s6 = inlined_call_operand.vmem [shape: f32[1,128], index: 6, kind: input, shape index: {}]
  %s7 = inlined_call_operand.vmem [shape: f32[2,16,16,128], index: 7, kind: output, shape index: {}]
  %s8 = sld [smem:[#allocation0]]
  $region61: #{cspblock1_pallas.4} parent=0
    _
  %s10 = ssub.s32 1, %s8
  %s11 = scalar_select 0, %s10, %s8
  loop: start=0, step=1, limit=4
  $region2: #{cspblock1_pallas.4} parent=0 // loop_pre_header
    _
  $region3: #{cspblock1_pallas.4} parent=0 // loop_header
    %s13 = sphi 0, %s17
    %p14 = scmp.ge.s32.totalorder %s13, 4
    %s23 = sphi 0, %s25
    %s26 = sphi 0, %s23
    %s27 = sphi 0, %s26
    %s43 = sphi 0, %s27
    %s47 = sphi 0, %s47
    %s49 = sphi 0, %s47
    %s50 = sphi 0, %s49
    %s64 = sphi 0, %s50
    %s68 = sphi 0, %s68
    %s70 = sphi 0, %s68
    %s71 = sphi 0, %s70
    %s85 = sphi 0, %s71
    %s89 = sphi 0, %s89
    %s91 = sphi 0, %s89
    %s92 = sphi 0, %s91
    %s106 = sphi 0, %s92
    %s110 = sphi 0, %s110
    %s112 = sphi 0, %s110
    %s113 = sphi 0, %s112
    %s127 = sphi 0, %s113
    %s131 = sphi 0, %s131
    %s133 = sphi 0, %s131
    %s134 = sphi 0, %s133
    %s148 = sphi 0, %s134
    %s152 = sphi 0, %s152
    %s154 = sphi 0, %s152
    %s155 = sphi 0, %s154
    %s169 = sphi 0, %s155
    %s175 = sphi 0, %s177
    %s178 = sphi 0, %s175
    %s179 = sphi 0, %s178
    %s195 = sphi 0, %s179
  $region4: #{cspblock1_pallas.4} parent=0 // loop_header_branch
    %16 = sbr.rel (%p14) target = $region8
  $region5: #{cspblock1_pallas.4} parent=0 // loop_body
    %s18 = ssub.s32 %s13, 1
    %s19 = ssub.s32 %s13, 2
    %s20 = sadd.s32 %s13, 1
    %s21 = ssub.s32 %s13, %s20
    %p22 = scmp.eq.s32.totalorder %s21, 0
    %s24 = sadd.s32 %s23, 1
    %s25 = scalar_select %p22, %s23, %s24
    %p28 = pneg %p22
    %p29 = scmp.eq.s32.totalorder %s13, 1
    %p30 = por %p28, %p29
    %p31 = scmp.ne.s32.totalorder %s23, %s26
    %p32 = scmp.eq.s32.totalorder %s13, 0
    %p33 = por %p31, %p32
    %p34 = scmp.ne.s32.totalorder %s23, %s26
    %p35 = scmp.eq.s32.totalorder %s18, 1
    %p36 = por %p34, %p35
    %p37 = scmp.ne.s32.totalorder %s26, %s27
    %p38 = scmp.eq.s32.totalorder %s18, 0
    %p39 = por %p37, %p38
    %p40 = scmp.ne.s32.totalorder %s26, %s27
    %p41 = scmp.eq.s32.totalorder %s19, 1
    %p42 = por %p40, %p41
    %p44 = scmp.ne.s32.totalorder %s27, %s43
    %p45 = scmp.eq.s32.totalorder %s19, 0
    %p46 = por %p44, %p45
    %s48 = sadd.s32 %s47, 1
    %p51 = scmp.eq.s32.totalorder %s13, 1
    %p52 = scmp.ne.s32.totalorder %s47, %s49
    %p53 = scmp.eq.s32.totalorder %s13, 0
    %p54 = por %p52, %p53
    %p55 = scmp.ne.s32.totalorder %s47, %s49
    %p56 = scmp.eq.s32.totalorder %s18, 1
    %p57 = por %p55, %p56
    %p58 = scmp.ne.s32.totalorder %s49, %s50
    %p59 = scmp.eq.s32.totalorder %s18, 0
    %p60 = por %p58, %p59
    %p61 = scmp.ne.s32.totalorder %s49, %s50
    %p62 = scmp.eq.s32.totalorder %s19, 1
    %p63 = por %p61, %p62
    %p65 = scmp.ne.s32.totalorder %s50, %s64
    %p66 = scmp.eq.s32.totalorder %s19, 0
    %p67 = por %p65, %p66
    %s69 = sadd.s32 %s68, 1
    %p72 = scmp.eq.s32.totalorder %s13, 1
    %p73 = scmp.ne.s32.totalorder %s68, %s70
    %p74 = scmp.eq.s32.totalorder %s13, 0
    %p75 = por %p73, %p74
    %p76 = scmp.ne.s32.totalorder %s68, %s70
    %p77 = scmp.eq.s32.totalorder %s18, 1
    %p78 = por %p76, %p77
    %p79 = scmp.ne.s32.totalorder %s70, %s71
    %p80 = scmp.eq.s32.totalorder %s18, 0
    %p81 = por %p79, %p80
    %p82 = scmp.ne.s32.totalorder %s70, %s71
    %p83 = scmp.eq.s32.totalorder %s19, 1
    %p84 = por %p82, %p83
    %p86 = scmp.ne.s32.totalorder %s71, %s85
    %p87 = scmp.eq.s32.totalorder %s19, 0
    %p88 = por %p86, %p87
    %s90 = sadd.s32 %s89, 1
    %p93 = scmp.eq.s32.totalorder %s13, 1
    %p94 = scmp.ne.s32.totalorder %s89, %s91
    %p95 = scmp.eq.s32.totalorder %s13, 0
    %p96 = por %p94, %p95
    %p97 = scmp.ne.s32.totalorder %s89, %s91
    %p98 = scmp.eq.s32.totalorder %s18, 1
    %p99 = por %p97, %p98
    %p100 = scmp.ne.s32.totalorder %s91, %s92
    %p101 = scmp.eq.s32.totalorder %s18, 0
    %p102 = por %p100, %p101
    %p103 = scmp.ne.s32.totalorder %s91, %s92
    %p104 = scmp.eq.s32.totalorder %s19, 1
    %p105 = por %p103, %p104
    %p107 = scmp.ne.s32.totalorder %s92, %s106
    %p108 = scmp.eq.s32.totalorder %s19, 0
    %p109 = por %p107, %p108
    %s111 = sadd.s32 %s110, 1
    %p114 = scmp.eq.s32.totalorder %s13, 1
    %p115 = scmp.ne.s32.totalorder %s110, %s112
    %p116 = scmp.eq.s32.totalorder %s13, 0
    %p117 = por %p115, %p116
    %p118 = scmp.ne.s32.totalorder %s110, %s112
    %p119 = scmp.eq.s32.totalorder %s18, 1
    %p120 = por %p118, %p119
    %p121 = scmp.ne.s32.totalorder %s112, %s113
    %p122 = scmp.eq.s32.totalorder %s18, 0
    %p123 = por %p121, %p122
    %p124 = scmp.ne.s32.totalorder %s112, %s113
    %p125 = scmp.eq.s32.totalorder %s19, 1
    %p126 = por %p124, %p125
    %p128 = scmp.ne.s32.totalorder %s113, %s127
    %p129 = scmp.eq.s32.totalorder %s19, 0
    %p130 = por %p128, %p129
    %s132 = sadd.s32 %s131, 1
    %p135 = scmp.eq.s32.totalorder %s13, 1
    %p136 = scmp.ne.s32.totalorder %s131, %s133
    %p137 = scmp.eq.s32.totalorder %s13, 0
    %p138 = por %p136, %p137
    %p139 = scmp.ne.s32.totalorder %s131, %s133
    %p140 = scmp.eq.s32.totalorder %s18, 1
    %p141 = por %p139, %p140
    %p142 = scmp.ne.s32.totalorder %s133, %s134
    %p143 = scmp.eq.s32.totalorder %s18, 0
    %p144 = por %p142, %p143
    %p145 = scmp.ne.s32.totalorder %s133, %s134
    %p146 = scmp.eq.s32.totalorder %s19, 1
    %p147 = por %p145, %p146
    %p149 = scmp.ne.s32.totalorder %s134, %s148
    %p150 = scmp.eq.s32.totalorder %s19, 0
    %p151 = por %p149, %p150
    %s153 = sadd.s32 %s152, 1
    %p156 = scmp.eq.s32.totalorder %s13, 1
    %p157 = scmp.ne.s32.totalorder %s152, %s154
    %p158 = scmp.eq.s32.totalorder %s13, 0
    %p159 = por %p157, %p158
    %p160 = scmp.ne.s32.totalorder %s152, %s154
    %p161 = scmp.eq.s32.totalorder %s18, 1
    %p162 = por %p160, %p161
    %p163 = scmp.ne.s32.totalorder %s154, %s155
    %p164 = scmp.eq.s32.totalorder %s18, 0
    %p165 = por %p163, %p164
    %p166 = scmp.ne.s32.totalorder %s154, %s155
    %p167 = scmp.eq.s32.totalorder %s19, 1
    %p168 = por %p166, %p167
    %p170 = scmp.ne.s32.totalorder %s155, %s169
    %p171 = scmp.eq.s32.totalorder %s19, 0
    %p172 = por %p170, %p171
    %s173 = ssub.s32 %s13, %s20
    %p174 = scmp.eq.s32.totalorder %s173, 0
    %s176 = sadd.s32 %s175, 1
    %s177 = scalar_select %p174, %s175, %s176
    %p180 = pneg %p174
    %p181 = scmp.eq.s32.totalorder %s13, 1
    %p182 = por %p180, %p181
    %p183 = scmp.ne.s32.totalorder %s175, %s178
    %p184 = scmp.eq.s32.totalorder %s13, 0
    %p185 = por %p183, %p184
    %p186 = scmp.ne.s32.totalorder %s175, %s178
    %p187 = scmp.eq.s32.totalorder %s18, 1
    %p188 = por %p186, %p187
    %p189 = scmp.ne.s32.totalorder %s178, %s179
    %p190 = scmp.eq.s32.totalorder %s18, 0
    %p191 = por %p189, %p190
    %p192 = scmp.ne.s32.totalorder %s178, %s179
    %p193 = scmp.eq.s32.totalorder %s19, 1
    %p194 = por %p192, %p193
    %p196 = scmp.ne.s32.totalorder %s179, %s195
    %p197 = scmp.eq.s32.totalorder %s19, 0
    %p198 = por %p196, %p197
    %p199 = scmp.le.s32.totalorder 1, %s13
    %p200 = scmp.lt.s32.totalorder %s13, 3
    %p201 = pnand %p199, %p200
    %p202 = pneg %p201
    // Predicated region
    $region9: #{cspblock1_pallas.4} parent=5 // pred_check
      _
    $region10: #{cspblock1_pallas.4} parent=5 // pred_check_branch
      %204 = sbr.rel (%p201) target = $region12
    $region11: #{cspblock1_pallas.4} parent=5 // pred_region
      %s205 = ssub.s32 %s13, 1
      // Predicated region
      $region13: #{cspblock1_pallas.4} parent=11 // pred_check
        %p206 = pneg %p60
      $region14: #{cspblock1_pallas.4} parent=11 // pred_check_branch
        %208 = sbr.rel (%p206) target = $region16
      $region15: #{cspblock1_pallas.4} parent=11 // pred_region
        _
      $region16: #{cspblock1_pallas.4} parent=11 // pred_fallthru
        _
      // Predicated region
      $region17: #{cspblock1_pallas.4} parent=11 // pred_check
        %p209 = pneg %p81
      $region18: #{cspblock1_pallas.4} parent=11 // pred_check_branch
        %211 = sbr.rel (%p209) target = $region20
      $region19: #{cspblock1_pallas.4} parent=11 // pred_region
        _
      $region20: #{cspblock1_pallas.4} parent=11 // pred_fallthru
        _
      // Predicated region
      $region21: #{cspblock1_pallas.4} parent=11 // pred_check
        %p212 = pneg %p102
      $region22: #{cspblock1_pallas.4} parent=11 // pred_check_branch
        %214 = sbr.rel (%p212) target = $region24
      $region23: #{cspblock1_pallas.4} parent=11 // pred_region
        _
      $region24: #{cspblock1_pallas.4} parent=11 // pred_fallthru
        _
      // Predicated region
      $region25: #{cspblock1_pallas.4} parent=11 // pred_check
        %p215 = pneg %p123
      $region26: #{cspblock1_pallas.4} parent=11 // pred_check_branch
        %217 = sbr.rel (%p215) target = $region28
      $region27: #{cspblock1_pallas.4} parent=11 // pred_region
        _
      $region28: #{cspblock1_pallas.4} parent=11 // pred_fallthru
        _
      // Predicated region
      $region29: #{cspblock1_pallas.4} parent=11 // pred_check
        %p218 = pneg %p144
      $region30: #{cspblock1_pallas.4} parent=11 // pred_check_branch
        %220 = sbr.rel (%p218) target = $region32
      $region31: #{cspblock1_pallas.4} parent=11 // pred_region
        _
      $region32: #{cspblock1_pallas.4} parent=11 // pred_fallthru
        _
      // Predicated region
      $region33: #{cspblock1_pallas.4} parent=11 // pred_check
        %p221 = pneg %p165
      $region34: #{cspblock1_pallas.4} parent=11 // pred_check_branch
        %223 = sbr.rel (%p221) target = $region36
      $region35: #{cspblock1_pallas.4} parent=11 // pred_region
        _
      $region36: #{cspblock1_pallas.4} parent=11 // pred_fallthru
        _
    $region12: #{cspblock1_pallas.4} parent=5 // pred_fallthru
      _
    %p224 = scmp.lt.s32.totalorder %s13, 2
    // Predicated region
    $region37: #{cspblock1_pallas.4} parent=5 // pred_check
      %p225 = pneg %p224
    $region38: #{cspblock1_pallas.4} parent=5 // pred_check_branch
      %227 = sbr.rel (%p225) target = $region40
    $region39: #{cspblock1_pallas.4} parent=5 // pred_region
      // Predicated region
      $region41: #{cspblock1_pallas.4} parent=39 // pred_check
        %p228 = pneg %p33
      $region42: #{cspblock1_pallas.4} parent=39 // pred_check_branch
        %230 = sbr.rel (%p228) target = $region44
      $region43: #{cspblock1_pallas.4} parent=39 // pred_region
        %p231 = scmp.lt.s32.totalorder %s13, 1
        %s232 = scalar_select %p231, %s13, 1
        %s233 = smul.addr %s232, 32
        %s234 = smul.addr %s233, 8
        %s235 = scalar_lea.vmem %s0, %s234
      $region44: #{cspblock1_pallas.4} parent=39 // pred_fallthru
        _
    $region40: #{cspblock1_pallas.4} parent=5 // pred_fallthru
      _
    %p236 = scmp.le.s32.totalorder 1, %s13
    %p237 = scmp.lt.s32.totalorder %s13, 3
    %p238 = pnand %p236, %p237
    %p239 = pneg %p238
    // Predicated region
    $region45: #{cspblock1_pallas.4} parent=5 // pred_check
      _
    $region46: #{cspblock1_pallas.4} parent=5 // pred_check_branch
      %241 = sbr.rel (%p238) target = $region48
    $region47: #{cspblock1_pallas.4} parent=5 // pred_region
      %s242 = ssub.s32 %s13, 1
      %p243 = scmp.lt.s32.totalorder %s18, 1
      %s244 = scalar_select %p243, %s18, 1
      %s245 = smul.addr %s244, 32
      %s246 = smul.addr %s245, 8
      %s247 = scalar_lea.vmem %s0, %s246
      %p248 = pneg %p39
      %p249 = pneg %p36
      %p250 = pneg %p60
      %p251 = pneg %p57
      %p252 = pneg %p81
      %p253 = pneg %p78
      %p254 = pneg %p102
      %p255 = pneg %p99
      %p256 = pneg %p123
      %p257 = pneg %p120
      %p258 = pneg %p144
      %p259 = pneg %p141
      %p260 = pneg %p165
      %p261 = pneg %p162
      %p262 = pneg %p191
      %p263 = pneg %p188
      %p264 = scmp.lt.s32.totalorder %s18, 1
      %s265 = scalar_select %p264, %s18, 1
      %s266 = smul.addr %s265, 32
      %s267 = smul.addr %s266, 8
      %s268 = scalar_lea.vmem %s7, %s267
      %p269 = scmp.lt.s32.totalorder %s18, 1
      %s270 = scalar_select %p269, %s18, 1
      %s271 = smul.addr %s270, 32
      %s272 = smul.addr %s271, 8
      %s273 = scalar_lea.vmem %s0, %s272
      %p274 = scmp.lt.s32.totalorder %s18, 1
      %s275 = scalar_select %p274, %s18, 1
      %s276 = smul.addr %s275, 32
      %s277 = smul.addr %s276, 8
      %s278 = scalar_lea.vmem %s7, %s277
      %v280 = vld [vmem:[%s273] sm:$0xff]
      %v281 = vld [vmem:[%s273 + $0x8] sm:$0xff]
      %v282 = vld [vmem:[%s273 + $0x10] sm:$0xff]
      %v283 = vld [vmem:[%s273 + $0x18] sm:$0xff]
      %v284 = vld [vmem:[%s273 + $0x20] sm:$0xff]
      %v285 = vld [vmem:[%s273 + $0x28] sm:$0xff]
      %v286 = vld [vmem:[%s273 + $0x30] sm:$0xff]
      %v287 = vld [vmem:[%s273 + $0x38] sm:$0xff]
      %v288 = vld [vmem:[%s273 + $0x40] sm:$0xff]
      %v289 = vld [vmem:[%s273 + $0x48] sm:$0xff]
      %v290 = vld [vmem:[%s273 + $0x50] sm:$0xff]
      %v291 = vld [vmem:[%s273 + $0x58] sm:$0xff]
      %v292 = vld [vmem:[%s273 + $0x60] sm:$0xff]
      %v293 = vld [vmem:[%s273 + $0x68] sm:$0xff]
      %v294 = vld [vmem:[%s273 + $0x70] sm:$0xff]
      %v295 = vld [vmem:[%s273 + $0x78] sm:$0xff]
      %v296 = vld [vmem:[%s273 + $0x80] sm:$0xff]
      %v297 = vld [vmem:[%s273 + $0x88] sm:$0xff]
      %v298 = vld [vmem:[%s273 + $0x90] sm:$0xff]
      %v299 = vld [vmem:[%s273 + $0x98] sm:$0xff]
      %v300 = vld [vmem:[%s273 + $0xa0] sm:$0xff]
      %v301 = vld [vmem:[%s273 + $0xa8] sm:$0xff]
      %v302 = vld [vmem:[%s273 + $0xb0] sm:$0xff]
      %v303 = vld [vmem:[%s273 + $0xb8] sm:$0xff]
      %v304 = vld [vmem:[%s273 + $0xc0] sm:$0xff]
      %v305 = vld [vmem:[%s273 + $0xc8] sm:$0xff]
      %v306 = vld [vmem:[%s273 + $0xd0] sm:$0xff]
      %v307 = vld [vmem:[%s273 + $0xd8] sm:$0xff]
      %v308 = vld [vmem:[%s273 + $0xe0] sm:$0xff]
      %v309 = vld [vmem:[%s273 + $0xe8] sm:$0xff]
      %v310 = vld [vmem:[%s273 + $0xf0] sm:$0xff]
      %v311 = vld [vmem:[%s273 + $0xf8] sm:$0xff]
      %v312 = vpack.c.bf16 %v281, %v280
      %v313 = vpack.c.bf16 %v283, %v282
      %v314 = vpack.c.bf16 %v285, %v284
      %v315 = vpack.c.bf16 %v287, %v286
      %v316 = vpack.c.bf16 %v289, %v288
      %v317 = vpack.c.bf16 %v291, %v290
      %v318 = vpack.c.bf16 %v293, %v292
      %v319 = vpack.c.bf16 %v295, %v294
      %v320 = vpack.c.bf16 %v297, %v296
      %v321 = vpack.c.bf16 %v299, %v298
      %v322 = vpack.c.bf16 %v301, %v300
      %v323 = vpack.c.bf16 %v303, %v302
      %v324 = vpack.c.bf16 %v305, %v304
      %v325 = vpack.c.bf16 %v307, %v306
      %v326 = vpack.c.bf16 %v309, %v308
      %v327 = vpack.c.bf16 %v311, %v310
      %v328 = vld [vmem:[%s1] sm:$0xf]
      %v329 = vld [vmem:[%s1 + $0x4] sm:$0xf]
      %v330 = vld [vmem:[%s1 + $0x8] sm:$0xf]
      %v331 = vld [vmem:[%s1 + $0xc] sm:$0xf]
      %v332 = vld [vmem:[%s1 + $0x10] sm:$0xf]
      %v333 = vld [vmem:[%s1 + $0x14] sm:$0xf]
      %v334 = vld [vmem:[%s1 + $0x18] sm:$0xf]
      %v335 = vld [vmem:[%s1 + $0x1c] sm:$0xf]
      %v336 = vld [vmem:[%s1 + $0x20] sm:$0xf]
      %v337 = vld [vmem:[%s1 + $0x24] sm:$0xf]
      %v338 = vld [vmem:[%s1 + $0x28] sm:$0xf]
      %v339 = vld [vmem:[%s1 + $0x2c] sm:$0xf]
      %v340 = vld [vmem:[%s1 + $0x30] sm:$0xf]
      %v341 = vld [vmem:[%s1 + $0x34] sm:$0xf]
      %v342 = vld [vmem:[%s1 + $0x38] sm:$0xf]
      %v343 = vld [vmem:[%s1 + $0x3c] sm:$0xf]
      %v360 = vunpack.c.l.b16 %v328
      %v361 = vunpack.c.l.b16 %v329
      %v362 = vunpack.c.l.b16 %v330
      %v363 = vunpack.c.l.b16 %v331
      %v364 = vunpack.c.l.b16 %v332
      %v365 = vunpack.c.l.b16 %v333
      %v366 = vunpack.c.l.b16 %v334
      %v367 = vunpack.c.l.b16 %v335
      %v368 = vunpack.c.l.b16 %v336
      %v369 = vunpack.c.l.b16 %v337
      %v370 = vunpack.c.l.b16 %v338
      %v371 = vunpack.c.l.b16 %v339
      %v372 = vunpack.c.l.b16 %v340
      %v373 = vunpack.c.l.b16 %v341
      %v374 = vunpack.c.l.b16 %v342
      %v375 = vunpack.c.l.b16 %v343
      %v376 = vpack.c.b16 %v361, %v360
      %v377 = vpack.c.b16 %v363, %v362
      %v378 = vpack.c.b16 %v365, %v364
      %v379 = vpack.c.b16 %v367, %v366
      %v380 = vpack.c.b16 %v369, %v368
      %v381 = vpack.c.b16 %v371, %v370
      %v382 = vpack.c.b16 %v373, %v372
      %v383 = vpack.c.b16 %v375, %v374
      %392 = vmatprep.subr.bf16.mxu0 0
      %393 = vmatpush1.bf16.msra.mxu0 %v376
      %394 = vmatprep.subr.bf16.mxu0 0
      %395 = vmatpush1.bf16.msra.mxu0 %v377
      %396 = vmatprep.subr.bf16.mxu0 0
      %397 = vmatpush1.bf16.msra.mxu0 %v378
      %398 = vmatprep.subr.bf16.mxu0 0
      %399 = vmatpush1.bf16.msra.mxu0 %v379
      %400 = vmatprep.subr.bf16.mxu0 0
      %401 = vmatpush1.bf16.msra.mxu0 %v380
      %402 = vmatprep.subr.bf16.mxu0 0
      %403 = vmatpush1.bf16.msra.mxu0 %v381
      %404 = vmatprep.subr.bf16.mxu0 0
      %405 = vmatpush1.bf16.msra.mxu0 %v382
      %406 = vmatprep.subr.bf16.mxu0 0
      %407 = vmatpush1.bf16.msra.mxu0 %v383
      %408 = vmatprep.subr.bf16.mxu0 0
      %409 = vmatpush1.bf16.msra.mxu0 0
      %410 = vmatprep.subr.bf16.mxu0 0
      %411 = vmatpush1.bf16.msra.mxu0 0
      %412 = vmatprep.subr.bf16.mxu0 0
      %413 = vmatpush1.bf16.msra.mxu0 0
      %414 = vmatprep.subr.bf16.mxu0 0
      %415 = vmatpush1.bf16.msra.mxu0 0
      %416 = vmatprep.subr.bf16.mxu0 0
      %417 = vmatpush1.bf16.msra.mxu0 0
      %418 = vmatprep.subr.bf16.mxu0 0
      %419 = vmatpush1.bf16.msra.mxu0 0
      %420 = vmatprep.subr.bf16.mxu0 0
      %421 = vmatpush1.bf16.msra.mxu0 0
      %422 = vmatprep.subr.bf16.mxu0 0
      %423 = vmatpush1.bf16.msra.mxu0 0
      %424 = vmatprep.mubr.bf16.mxu0 0
      %425 = vmatmul.mubr.bf16.gmra.mrb[0].mxu0 %v312
      %v426 = vpop.f32.mrb[0].mxu0
      %v427 = vadd.f32 0.0, %v426
      %v428 = vpop.f32.mrb[0].mxu0
      %v429 = vpop.f32.mrb[0].mxu0
      %v430 = vadd.f32 0.0, %v429
      %v431 = vpop.f32.mrb[0].mxu0
      %432 = vmatprep.mubr.bf16.mxu0 0
      %433 = vmatmul.mubr.bf16.gmra.mrb[0].mxu0 %v313
      %v434 = vpop.f32.mrb[0].mxu0
      %v435 = vadd.f32 0.0, %v434
      %v436 = vpop.f32.mrb[0].mxu0
      %v437 = vpop.f32.mrb[0].mxu0
      %v438 = vadd.f32 0.0, %v437
      %v439 = vpop.f32.mrb[0].mxu0
      %440 = vmatprep.mubr.bf16.mxu0 0
      %441 = vmatmul.mubr.bf16.gmra.mrb[0].mxu0 %v314
      %v442 = vpop.f32.mrb[0].mxu0
      %v443 = vadd.f32 0.0, %v442
      %v444 = vpop.f32.mrb[0].mxu0
      %v445 = vpop.f32.mrb[0].mxu0
      %v446 = vadd.f32 0.0, %v445
      %v447 = vpop.f32.mrb[0].mxu0
      %448 = vmatprep.mubr.bf16.mxu0 0
      %449 = vmatmul.mubr.bf16.gmra.mrb[0].mxu0 %v315
      %v450 = vpop.f32.mrb[0].mxu0
      %v451 = vadd.f32 0.0, %v450
      %v452 = vpop.f32.mrb[0].mxu0
      %v453 = vpop.f32.mrb[0].mxu0
      %v454 = vadd.f32 0.0, %v453
      %v455 = vpop.f32.mrb[0].mxu0
      %456 = vmatprep.mubr.bf16.mxu0 0
      %457 = vmatmul.mubr.bf16.gmra.mrb[0].mxu0 %v316
      %v458 = vpop.f32.mrb[0].mxu0
      %v459 = vadd.f32 0.0, %v458
      %v460 = vpop.f32.mrb[0].mxu0
      %v461 = vpop.f32.mrb[0].mxu0
      %v462 = vadd.f32 0.0, %v461
      %v463 = vpop.f32.mrb[0].mxu0
      %464 = vmatprep.mubr.bf16.mxu0 0
      %465 = vmatmul.mubr.bf16.gmra.mrb[0].mxu0 %v317
      %v466 = vpop.f32.mrb[0].mxu0
      %v467 = vadd.f32 0.0, %v466
      %v468 = vpop.f32.mrb[0].mxu0
      %v469 = vpop.f32.mrb[0].mxu0
      %v470 = vadd.f32 0.0, %v469
      %v471 = vpop.f32.mrb[0].mxu0
      %472 = vmatprep.mubr.bf16.mxu0 0
      %473 = vmatmul.mubr.bf16.gmra.mrb[0].mxu0 %v318
      %v474 = vpop.f32.mrb[0].mxu0
      %v475 = vadd.f32 0.0, %v474
      %v476 = vpop.f32.mrb[0].mxu0
      %v477 = vpop.f32.mrb[0].mxu0
      %v478 = vadd.f32 0.0, %v477
      %v479 = vpop.f32.mrb[0].mxu0
      %480 = vmatprep.mubr.bf16.mxu0 0
      %481 = vmatmul.mubr.bf16.gmra.mrb[0].mxu0 %v319
      %v482 = vpop.f32.mrb[0].mxu0
      %v483 = vadd.f32 0.0, %v482
      %v484 = vpop.f32.mrb[0].mxu0
      %v485 = vpop.f32.mrb[0].mxu0
      %v486 = vadd.f32 0.0, %v485
      %v487 = vpop.f32.mrb[0].mxu0
      %488 = vmatprep.mubr.bf16.mxu0 0
      %489 = vmatmul.mubr.bf16.gmra.mrb[0].mxu0 %v320
      %v490 = vpop.f32.mrb[0].mxu0
      %v491 = vadd.f32 0.0, %v490
      %v492 = vpop.f32.mrb[0].mxu0
      %v493 = vpop.f32.mrb[0].mxu0
      %v494 = vadd.f32 0.0, %v493
      %v495 = vpop.f32.mrb[0].mxu0
      %496 = vmatprep.mubr.bf16.mxu0 0
      %497 = vmatmul.mubr.bf16.gmra.mrb[0].mxu0 %v321
      %v498 = vpop.f32.mrb[0].mxu0
      %v499 = vadd.f32 0.0, %v498
      %v500 = vpop.f32.mrb[0].mxu0
      %v501 = vpop.f32.mrb[0].mxu0
      %v502 = vadd.f32 0.0, %v501
      %v503 = vpop.f32.mrb[0].mxu0
      %504 = vmatprep.mubr.bf16.mxu0 0
      %505 = vmatmul.mubr.bf16.gmra.mrb[0].mxu0 %v322
      %v506 = vpop.f32.mrb[0].mxu0
      %v507 = vadd.f32 0.0, %v506
      %v508 = vpop.f32.mrb[0].mxu0
      %v509 = vpop.f32.mrb[0].mxu0
      %v510 = vadd.f32 0.0, %v509
      %v511 = vpop.f32.mrb[0].mxu0
      %512 = vmatprep.mubr.bf16.mxu0 0
      %513 = vmatmul.mubr.bf16.gmra.mrb[0].mxu0 %v323
      %v514 = vpop.f32.mrb[0].mxu0
      %v515 = vadd.f32 0.0, %v514
      %v516 = vpop.f32.mrb[0].mxu0
      %v517 = vpop.f32.mrb[0].mxu0
      %v518 = vadd.f32 0.0, %v517
      %v519 = vpop.f32.mrb[0].mxu0
      %520 = vmatprep.mubr.bf16.mxu0 0
      %521 = vmatmul.mubr.bf16.gmra.mrb[0].mxu0 %v324
      %v522 = vpop.f32.mrb[0].mxu0
      %v523 = vadd.f32 0.0, %v522
      %v524 = vpop.f32.mrb[0].mxu0
      %v525 = vpop.f32.mrb[0].mxu0
      %v526 = vadd.f32 0.0, %v525
      %v527 = vpop.f32.mrb[0].mxu0
      %528 = vmatprep.mubr.bf16.mxu0 0
      %529 = vmatmul.mubr.bf16.gmra.mrb[0].mxu0 %v325
      %v530 = vpop.f32.mrb[0].mxu0
      %v531 = vadd.f32 0.0, %v530
      %v532 = vpop.f32.mrb[0].mxu0
      %v533 = vpop.f32.mrb[0].mxu0
      %v534 = vadd.f32 0.0, %v533
      %v535 = vpop.f32.mrb[0].mxu0
      %536 = vmatprep.mubr.bf16.mxu0 0
      %537 = vmatmul.mubr.bf16.gmra.mrb[0].mxu0 %v326
      %v538 = vpop.f32.mrb[0].mxu0
      %v539 = vadd.f32 0.0, %v538
      %v540 = vpop.f32.mrb[0].mxu0
      %v541 = vpop.f32.mrb[0].mxu0
      %v542 = vadd.f32 0.0, %v541
      %v543 = vpop.f32.mrb[0].mxu0
      %544 = vmatprep.mubr.bf16.mxu0 0
      %545 = vmatmul.mubr.bf16.gmra.mrb[0].mxu0 %v327
      %v546 = vpop.f32.mrb[0].mxu0
      %v547 = vadd.f32 0.0, %v546
      %v548 = vpop.f32.mrb[0].mxu0
      %v549 = vpop.f32.mrb[0].mxu0
      %v550 = vadd.f32 0.0, %v549
      %v551 = vpop.f32.mrb[0].mxu0
      %552 = vdwg.mxu0
      %v553 = vld [vmem:[%s2] sm:$0x1]
      %v555 = vlaneseq
      %v556 = vshrl.u32 %v555, 7
      %v557 = vsub.s32 0, %v556
      %v558 = vrot.slane %v553, %v557
      %v560 = vmul.f32 %v427, %v558
      %v561 = vmul.f32 %v430, %v558
      %v562 = vmul.f32 %v435, %v558
      %v563 = vmul.f32 %v438, %v558
      %v564 = vmul.f32 %v443, %v558
      %v565 = vmul.f32 %v446, %v558
      %v566 = vmul.f32 %v451, %v558
      %v567 = vmul.f32 %v454, %v558
      %v568 = vmul.f32 %v459, %v558
      %v569 = vmul.f32 %v462, %v558
      %v570 = vmul.f32 %v467, %v558
      %v571 = vmul.f32 %v470, %v558
      %v572 = vmul.f32 %v475, %v558
      %v573 = vmul.f32 %v478, %v558
      %v574 = vmul.f32 %v483, %v558
      %v575 = vmul.f32 %v486, %v558
      %v576 = vmul.f32 %v491, %v558
      %v577 = vmul.f32 %v494, %v558
      %v578 = vmul.f32 %v499, %v558
      %v579 = vmul.f32 %v502, %v558
      %v580 = vmul.f32 %v507, %v558
      %v581 = vmul.f32 %v510, %v558
      %v582 = vmul.f32 %v515, %v558
      %v583 = vmul.f32 %v518, %v558
      %v584 = vmul.f32 %v523, %v558
      %v585 = vmul.f32 %v526, %v558
      %v586 = vmul.f32 %v531, %v558
      %v587 = vmul.f32 %v534, %v558
      %v588 = vmul.f32 %v539, %v558
      %v589 = vmul.f32 %v542, %v558
      %v590 = vmul.f32 %v547, %v558
      %v591 = vmul.f32 %v550, %v558
      %v592 = vld [vmem:[%s3] sm:$0x1]
      %v594 = vlaneseq
      %v595 = vshrl.u32 %v594, 7
      %v596 = vsub.s32 0, %v595
      %v597 = vrot.slane %v592, %v596
      %v599 = vadd.f32 %v560, %v597
      %v600 = vadd.f32 %v561, %v597
      %v601 = vadd.f32 %v562, %v597
      %v602 = vadd.f32 %v563, %v597
      %v603 = vadd.f32 %v564, %v597
      %v604 = vadd.f32 %v565, %v597
      %v605 = vadd.f32 %v566, %v597
      %v606 = vadd.f32 %v567, %v597
      %v607 = vadd.f32 %v568, %v597
      %v608 = vadd.f32 %v569, %v597
      %v609 = vadd.f32 %v570, %v597
      %v610 = vadd.f32 %v571, %v597
      %v611 = vadd.f32 %v572, %v597
      %v612 = vadd.f32 %v573, %v597
      %v613 = vadd.f32 %v574, %v597
      %v614 = vadd.f32 %v575, %v597
      %v615 = vadd.f32 %v576, %v597
      %v616 = vadd.f32 %v577, %v597
      %v617 = vadd.f32 %v578, %v597
      %v618 = vadd.f32 %v579, %v597
      %v619 = vadd.f32 %v580, %v597
      %v620 = vadd.f32 %v581, %v597
      %v621 = vadd.f32 %v582, %v597
      %v622 = vadd.f32 %v583, %v597
      %v623 = vadd.f32 %v584, %v597
      %v624 = vadd.f32 %v585, %v597
      %v625 = vadd.f32 %v586, %v597
      %v626 = vadd.f32 %v587, %v597
      %v627 = vadd.f32 %v588, %v597
      %v628 = vadd.f32 %v589, %v597
      %v629 = vadd.f32 %v590, %v597
      %v630 = vadd.f32 %v591, %v597
      %v631 = vmin.f32 %v599, 20.0
      %v632 = vmin.f32 %v600, 20.0
      %v633 = vmin.f32 %v601, 20.0
      %v634 = vmin.f32 %v602, 20.0
      %v635 = vmin.f32 %v603, 20.0
      %v636 = vmin.f32 %v604, 20.0
      %v637 = vmin.f32 %v605, 20.0
      %v638 = vmin.f32 %v606, 20.0
      %v639 = vmin.f32 %v607, 20.0
      %v640 = vmin.f32 %v608, 20.0
      %v641 = vmin.f32 %v609, 20.0
      %v642 = vmin.f32 %v610, 20.0
      %v643 = vmin.f32 %v611, 20.0
      %v644 = vmin.f32 %v612, 20.0
      %v645 = vmin.f32 %v613, 20.0
      %v646 = vmin.f32 %v614, 20.0
      %v647 = vmin.f32 %v615, 20.0
      %v648 = vmin.f32 %v616, 20.0
      %v649 = vmin.f32 %v617, 20.0
      %v650 = vmin.f32 %v618, 20.0
      %v651 = vmin.f32 %v619, 20.0
      %v652 = vmin.f32 %v620, 20.0
      %v653 = vmin.f32 %v621, 20.0
      %v654 = vmin.f32 %v622, 20.0
      %v655 = vmin.f32 %v623, 20.0
      %v656 = vmin.f32 %v624, 20.0
      %v657 = vmin.f32 %v625, 20.0
      %v658 = vmin.f32 %v626, 20.0
      %v659 = vmin.f32 %v627, 20.0
      %v660 = vmin.f32 %v628, 20.0
      %v661 = vmin.f32 %v629, 20.0
      %v662 = vmin.f32 %v630, 20.0
      %v663 = vmul.f32 %v631, 1.442695
      %v664 = vpow.pop %v663
      %v665 = vmul.f32 %v632, 1.442695
      %v666 = vpow.pop %v665
      %v667 = vmul.f32 %v633, 1.442695
      %v668 = vpow.pop %v667
      %v669 = vmul.f32 %v634, 1.442695
      %v670 = vpow.pop %v669
      %v671 = vmul.f32 %v635, 1.442695
      %v672 = vpow.pop %v671
      %v673 = vmul.f32 %v636, 1.442695
      %v674 = vpow.pop %v673
      %v675 = vmul.f32 %v637, 1.442695
      %v676 = vpow.pop %v675
      %v677 = vmul.f32 %v638, 1.442695
      %v678 = vpow.pop %v677
      %v679 = vmul.f32 %v639, 1.442695
      %v680 = vpow.pop %v679
      %v681 = vmul.f32 %v640, 1.442695
      %v682 = vpow.pop %v681
      %v683 = vmul.f32 %v641, 1.442695
      %v684 = vpow.pop %v683
      %v685 = vmul.f32 %v642, 1.442695
      %v686 = vpow.pop %v685
      %v687 = vmul.f32 %v643, 1.442695
      %v688 = vpow.pop %v687
      %v689 = vmul.f32 %v644, 1.442695
      %v690 = vpow.pop %v689
      %v691 = vmul.f32 %v645, 1.442695
      %v692 = vpow.pop %v691
      %v693 = vmul.f32 %v646, 1.442695
      %v694 = vpow.pop %v693
      %v695 = vmul.f32 %v647, 1.442695
      %v696 = vpow.pop %v695
      %v697 = vmul.f32 %v648, 1.442695
      %v698 = vpow.pop %v697
      %v699 = vmul.f32 %v649, 1.442695
      %v700 = vpow.pop %v699
      %v701 = vmul.f32 %v650, 1.442695
      %v702 = vpow.pop %v701
      %v703 = vmul.f32 %v651, 1.442695
      %v704 = vpow.pop %v703
      %v705 = vmul.f32 %v652, 1.442695
      %v706 = vpow.pop %v705
      %v707 = vmul.f32 %v653, 1.442695
      %v708 = vpow.pop %v707
      %v709 = vmul.f32 %v654, 1.442695
      %v710 = vpow.pop %v709
      %v711 = vmul.f32 %v655, 1.442695
      %v712 = vpow.pop %v711
      %v713 = vmul.f32 %v656, 1.442695
      %v714 = vpow.pop %v713
      %v715 = vmul.f32 %v657, 1.442695
      %v716 = vpow.pop %v715
      %v717 = vmul.f32 %v658, 1.442695
      %v718 = vpow.pop %v717
      %v719 = vmul.f32 %v659, 1.442695
      %v720 = vpow.pop %v719
      %v721 = vmul.f32 %v660, 1.442695
      %v722 = vpow.pop %v721
      %v723 = vmul.f32 %v661, 1.442695
      %v724 = vpow.pop %v723
      %v725 = vmul.f32 %v662, 1.442695
      %v726 = vpow.pop %v725
      %v727 = vadd.f32 %v664, 1.0
      %v728 = vadd.f32 %v666, 1.0
      %v729 = vadd.f32 %v668, 1.0
      %v730 = vadd.f32 %v670, 1.0
      %v731 = vadd.f32 %v672, 1.0
      %v732 = vadd.f32 %v674, 1.0
      %v733 = vadd.f32 %v676, 1.0
      %v734 = vadd.f32 %v678, 1.0
      %v735 = vadd.f32 %v680, 1.0
      %v736 = vadd.f32 %v682, 1.0
      %v737 = vadd.f32 %v684, 1.0
      %v738 = vadd.f32 %v686, 1.0
      %v739 = vadd.f32 %v688, 1.0
      %v740 = vadd.f32 %v690, 1.0
      %v741 = vadd.f32 %v692, 1.0
      %v742 = vadd.f32 %v694, 1.0
      %v743 = vadd.f32 %v696, 1.0
      %v744 = vadd.f32 %v698, 1.0
      %v745 = vadd.f32 %v700, 1.0
      %v746 = vadd.f32 %v702, 1.0
      %v747 = vadd.f32 %v704, 1.0
      %v748 = vadd.f32 %v706, 1.0
      %v749 = vadd.f32 %v708, 1.0
      %v750 = vadd.f32 %v710, 1.0
      %v751 = vadd.f32 %v712, 1.0
      %v752 = vadd.f32 %v714, 1.0
      %v753 = vadd.f32 %v716, 1.0
      %v754 = vadd.f32 %v718, 1.0
      %v755 = vadd.f32 %v720, 1.0
      %v756 = vadd.f32 %v722, 1.0
      %v757 = vadd.f32 %v724, 1.0
      %v758 = vadd.f32 %v726, 1.0
      %v759 = vmul.f32 %v727, %v727
      %v760 = vmul.f32 %v728, %v728
      %v761 = vmul.f32 %v729, %v729
      %v762 = vmul.f32 %v730, %v730
      %v763 = vmul.f32 %v731, %v731
      %v764 = vmul.f32 %v732, %v732
      %v765 = vmul.f32 %v733, %v733
      %v766 = vmul.f32 %v734, %v734
      %v767 = vmul.f32 %v735, %v735
      %v768 = vmul.f32 %v736, %v736
      %v769 = vmul.f32 %v737, %v737
      %v770 = vmul.f32 %v738, %v738
      %v771 = vmul.f32 %v739, %v739
      %v772 = vmul.f32 %v740, %v740
      %v773 = vmul.f32 %v741, %v741
      %v774 = vmul.f32 %v742, %v742
      %v775 = vmul.f32 %v743, %v743
      %v776 = vmul.f32 %v744, %v744
      %v777 = vmul.f32 %v745, %v745
      %v778 = vmul.f32 %v746, %v746
      %v779 = vmul.f32 %v747, %v747
      %v780 = vmul.f32 %v748, %v748
      %v781 = vmul.f32 %v749, %v749
      %v782 = vmul.f32 %v750, %v750
      %v783 = vmul.f32 %v751, %v751
      %v784 = vmul.f32 %v752, %v752
      %v785 = vmul.f32 %v753, %v753
      %v786 = vmul.f32 %v754, %v754
      %v787 = vmul.f32 %v755, %v755
      %v788 = vmul.f32 %v756, %v756
      %v789 = vmul.f32 %v757, %v757
      %v790 = vmul.f32 %v758, %v758
      %v791 = vsub.f32 %v759, 1.0
      %v792 = vsub.f32 %v760, 1.0
      %v793 = vsub.f32 %v761, 1.0
      %v794 = vsub.f32 %v762, 1.0
      %v795 = vsub.f32 %v763, 1.0
      %v796 = vsub.f32 %v764, 1.0
      %v797 = vsub.f32 %v765, 1.0
      %v798 = vsub.f32 %v766, 1.0
      %v799 = vsub.f32 %v767, 1.0
      %v800 = vsub.f32 %v768, 1.0
      %v801 = vsub.f32 %v769, 1.0
      %v802 = vsub.f32 %v770, 1.0
      %v803 = vsub.f32 %v771, 1.0
      %v804 = vsub.f32 %v772, 1.0
      %v805 = vsub.f32 %v773, 1.0
      %v806 = vsub.f32 %v774, 1.0
      %v807 = vsub.f32 %v775, 1.0
      %v808 = vsub.f32 %v776, 1.0
      %v809 = vsub.f32 %v777, 1.0
      %v810 = vsub.f32 %v778, 1.0
      %v811 = vsub.f32 %v779, 1.0
      %v812 = vsub.f32 %v780, 1.0
      %v813 = vsub.f32 %v781, 1.0
      %v814 = vsub.f32 %v782, 1.0
      %v815 = vsub.f32 %v783, 1.0
      %v816 = vsub.f32 %v784, 1.0
      %v817 = vsub.f32 %v785, 1.0
      %v818 = vsub.f32 %v786, 1.0
      %v819 = vsub.f32 %v787, 1.0
      %v820 = vsub.f32 %v788, 1.0
      %v821 = vsub.f32 %v789, 1.0
      %v822 = vsub.f32 %v790, 1.0
      %v823 = vmul.f32 %v599, %v791
      %v824 = vmul.f32 %v600, %v792
      %v825 = vmul.f32 %v601, %v793
      %v826 = vmul.f32 %v602, %v794
      %v827 = vmul.f32 %v603, %v795
      %v828 = vmul.f32 %v604, %v796
      %v829 = vmul.f32 %v605, %v797
      %v830 = vmul.f32 %v606, %v798
      %v831 = vmul.f32 %v607, %v799
      %v832 = vmul.f32 %v608, %v800
      %v833 = vmul.f32 %v609, %v801
      %v834 = vmul.f32 %v610, %v802
      %v835 = vmul.f32 %v611, %v803
      %v836 = vmul.f32 %v612, %v804
      %v837 = vmul.f32 %v613, %v805
      %v838 = vmul.f32 %v614, %v806
      %v839 = vmul.f32 %v615, %v807
      %v840 = vmul.f32 %v616, %v808
      %v841 = vmul.f32 %v617, %v809
      %v842 = vmul.f32 %v618, %v810
      %v843 = vmul.f32 %v619, %v811
      %v844 = vmul.f32 %v620, %v812
      %v845 = vmul.f32 %v621, %v813
      %v846 = vmul.f32 %v622, %v814
      %v847 = vmul.f32 %v623, %v815
      %v848 = vmul.f32 %v624, %v816
      %v849 = vmul.f32 %v625, %v817
      %v850 = vmul.f32 %v626, %v818
      %v851 = vmul.f32 %v627, %v819
      %v852 = vmul.f32 %v628, %v820
      %v853 = vmul.f32 %v629, %v821
      %v854 = vmul.f32 %v630, %v822
      %v855 = vadd.f32 %v759, 1.0
      %v856 = vadd.f32 %v760, 1.0
      %v857 = vadd.f32 %v761, 1.0
      %v858 = vadd.f32 %v762, 1.0
      %v859 = vadd.f32 %v763, 1.0
      %v860 = vadd.f32 %v764, 1.0
      %v861 = vadd.f32 %v765, 1.0
      %v862 = vadd.f32 %v766, 1.0
      %v863 = vadd.f32 %v767, 1.0
      %v864 = vadd.f32 %v768, 1.0
      %v865 = vadd.f32 %v769, 1.0
      %v866 = vadd.f32 %v770, 1.0
      %v867 = vadd.f32 %v771, 1.0
      %v868 = vadd.f32 %v772, 1.0
      %v869 = vadd.f32 %v773, 1.0
      %v870 = vadd.f32 %v774, 1.0
      %v871 = vadd.f32 %v775, 1.0
      %v872 = vadd.f32 %v776, 1.0
      %v873 = vadd.f32 %v777, 1.0
      %v874 = vadd.f32 %v778, 1.0
      %v875 = vadd.f32 %v779, 1.0
      %v876 = vadd.f32 %v780, 1.0
      %v877 = vadd.f32 %v781, 1.0
      %v878 = vadd.f32 %v782, 1.0
      %v879 = vadd.f32 %v783, 1.0
      %v880 = vadd.f32 %v784, 1.0
      %v881 = vadd.f32 %v785, 1.0
      %v882 = vadd.f32 %v786, 1.0
      %v883 = vadd.f32 %v787, 1.0
      %v884 = vadd.f32 %v788, 1.0
      %v885 = vadd.f32 %v789, 1.0
      %v886 = vadd.f32 %v790, 1.0
      %v887 = vrcp.pop %v855
      %v888 = vrcp.pop %v856
      %v889 = vrcp.pop %v857
      %v890 = vrcp.pop %v858
      %v891 = vrcp.pop %v859
      %v892 = vrcp.pop %v860
      %v893 = vrcp.pop %v861
      %v894 = vrcp.pop %v862
      %v895 = vrcp.pop %v863
      %v896 = vrcp.pop %v864
      %v897 = vrcp.pop %v865
      %v898 = vrcp.pop %v866
      %v899 = vrcp.pop %v867
      %v900 = vrcp.pop %v868
      %v901 = vrcp.pop %v869
      %v902 = vrcp.pop %v870
      %v903 = vrcp.pop %v871
      %v904 = vrcp.pop %v872
      %v905 = vrcp.pop %v873
      %v906 = vrcp.pop %v874
      %v907 = vrcp.pop %v875
      %v908 = vrcp.pop %v876
      %v909 = vrcp.pop %v877
      %v910 = vrcp.pop %v878
      %v911 = vrcp.pop %v879
      %v912 = vrcp.pop %v880
      %v913 = vrcp.pop %v881
      %v914 = vrcp.pop %v882
      %v915 = vrcp.pop %v883
      %v916 = vrcp.pop %v884
      %v917 = vrcp.pop %v885
      %v918 = vrcp.pop %v886
      %v919 = vmul.f32 %v823, %v887
      %v920 = vmul.f32 %v824, %v888
      %v921 = vmul.f32 %v825, %v889
      %v922 = vmul.f32 %v826, %v890
      %v923 = vmul.f32 %v827, %v891
      %v924 = vmul.f32 %v828, %v892
      %v925 = vmul.f32 %v829, %v893
      %v926 = vmul.f32 %v830, %v894
      %v927 = vmul.f32 %v831, %v895
      %v928 = vmul.f32 %v832, %v896
      %v929 = vmul.f32 %v833, %v897
      %v930 = vmul.f32 %v834, %v898
      %v931 = vmul.f32 %v835, %v899
      %v932 = vmul.f32 %v836, %v900
      %v933 = vmul.f32 %v837, %v901
      %v934 = vmul.f32 %v838, %v902
      %v935 = vmul.f32 %v839, %v903
      %v936 = vmul.f32 %v840, %v904
      %v937 = vmul.f32 %v841, %v905
      %v938 = vmul.f32 %v842, %v906
      %v939 = vmul.f32 %v843, %v907
      %v940 = vmul.f32 %v844, %v908
      %v941 = vmul.f32 %v845, %v909
      %v942 = vmul.f32 %v846, %v910
      %v943 = vmul.f32 %v847, %v911
      %v944 = vmul.f32 %v848, %v912
      %v945 = vmul.f32 %v849, %v913
      %v946 = vmul.f32 %v850, %v914
      %v947 = vmul.f32 %v851, %v915
      %v948 = vmul.f32 %v852, %v916
      %v949 = vmul.f32 %v853, %v917
      %v950 = vmul.f32 %v854, %v918
      %vm951 = vcmask 1043459
      %vm952 = vsmask.f32 7950
      %vm953 = vmand %vm951, %vm952
      %v954 = vld [vmem:[#allocation2 + $0x4] sm:$0x8]
      %v955 = vsel %vm953, 0, %v954
      %956 = vst [vmem:[#allocation2 + $0x4] sm:$0x8] %v955
      %957 = vst [vmem:[#allocation2 + $0x8] sm:$0xf] 0
      %958 = vst [vmem:[#allocation2 + $0xc] sm:$0xf] 0
      %vm959 = vcmask 1040384
      %vm960 = vsmask.f32 256
      %vm961 = vmand %vm959, %vm960
      %v962 = vld [vmem:[#allocation2 + $0x10] sm:$0x1]
      %v963 = vsel %vm961, 0, %v962
      %964 = vst [vmem:[#allocation2 + $0x10] sm:$0x1] %v963
      %s965 = scalar_lea.vmem [#allocation2], 340
      %v966 = vld [vmem:[%s965 + $0x4] sm:$0x8]
      %v967 = vsel %vm953, 0, %v966
      %968 = vst [vmem:[%s965 + $0x4] sm:$0x8] %v967
      %969 = vst [vmem:[%s965 + $0x8] sm:$0xf] 0
      %970 = vst [vmem:[%s965 + $0xc] sm:$0xf] 0
      %v971 = vld [vmem:[%s965 + $0x10] sm:$0x1]
      %v972 = vsel %vm961, 0, %v971
      %973 = vst [vmem:[%s965 + $0x10] sm:$0x1] %v972
      %s974 = scalar_lea.vmem [#allocation2], 20
      %v975 = vld [vmem:[%s974 + $0x4] sm:$0x8]
      %v976 = vsel %vm953, 0, %v975
      %977 = vst [vmem:[%s974 + $0x4] sm:$0x8] %v976
      %v978 = vld [vmem:[%s974 + $0x18] sm:$0x8]
      %v979 = vsel %vm953, 0, %v978
      %980 = vst [vmem:[%s974 + $0x18] sm:$0x8] %v979
      %v981 = vld [vmem:[%s974 + $0x2c] sm:$0x8]
      %v982 = vsel %vm953, 0, %v981
      %983 = vst [vmem:[%s974 + $0x2c] sm:$0x8] %v982
      %v984 = vld [vmem:[%s974 + $0x40] sm:$0x8]
      %v985 = vsel %vm953, 0, %v984
      %986 = vst [vmem:[%s974 + $0x40] sm:$0x8] %v985
      %v987 = vld [vmem:[%s974 + $0x54] sm:$0x8]
      %v988 = vsel %vm953, 0, %v987
      %989 = vst [vmem:[%s974 + $0x54] sm:$0x8] %v988
      %v990 = vld [vmem:[%s974 + $0x68] sm:$0x8]
      %v991 = vsel %vm953, 0, %v990
      %992 = vst [vmem:[%s974 + $0x68] sm:$0x8] %v991
      %v993 = vld [vmem:[%s974 + $0x7c] sm:$0x8]
      %v994 = vsel %vm953, 0, %v993
      %995 = vst [vmem:[%s974 + $0x7c] sm:$0x8] %v994
      %v996 = vld [vmem:[%s974 + $0x90] sm:$0x8]
      %v997 = vsel %vm953, 0, %v996
      %998 = vst [vmem:[%s974 + $0x90] sm:$0x8] %v997
      %v999 = vld [vmem:[%s974 + $0xa4] sm:$0x8]
      %v1000 = vsel %vm953, 0, %v999
      %1001 = vst [vmem:[%s974 + $0xa4] sm:$0x8] %v1000
      %v1002 = vld [vmem:[%s974 + $0xb8] sm:$0x8]
      %v1003 = vsel %vm953, 0, %v1002
      %1004 = vst [vmem:[%s974 + $0xb8] sm:$0x8] %v1003
      %v1005 = vld [vmem:[%s974 + $0xcc] sm:$0x8]
      %v1006 = vsel %vm953, 0, %v1005
      %1007 = vst [vmem:[%s974 + $0xcc] sm:$0x8] %v1006
      %v1008 = vld [vmem:[%s974 + $0xe0] sm:$0x8]
      %v1009 = vsel %vm953, 0, %v1008
      %1010 = vst [vmem:[%s974 + $0xe0] sm:$0x8] %v1009
      %v1011 = vld [vmem:[%s974 + $0xf4] sm:$0x8]
      %v1012 = vsel %vm953, 0, %v1011
      %1013 = vst [vmem:[%s974 + $0xf4] sm:$0x8] %v1012
      %v1014 = vld [vmem:[%s974 + $0x108] sm:$0x8]
      %v1015 = vsel %vm953, 0, %v1014
      %1016 = vst [vmem:[%s974 + $0x108] sm:$0x8] %v1015
      %v1017 = vld [vmem:[%s974 + $0x11c] sm:$0x8]
      %v1018 = vsel %vm953, 0, %v1017
      %1019 = vst [vmem:[%s974 + $0x11c] sm:$0x8] %v1018
      %v1020 = vld [vmem:[%s974 + $0x130] sm:$0x8]
      %v1021 = vsel %vm953, 0, %v1020
      %1022 = vst [vmem:[%s974 + $0x130] sm:$0x8] %v1021
      %v1023 = vld [vmem:[%s974 + $0x10] sm:$0x1]
      %v1024 = vsel %vm961, 0, %v1023
      %1025 = vst [vmem:[%s974 + $0x10] sm:$0x1] %v1024
      %v1026 = vld [vmem:[%s974 + $0x24] sm:$0x1]
      %v1027 = vsel %vm961, 0, %v1026
      %1028 = vst [vmem:[%s974 + $0x24] sm:$0x1] %v1027
      %v1029 = vld [vmem:[%s974 + $0x38] sm:$0x1]
      %v1030 = vsel %vm961, 0, %v1029
      %1031 = vst [vmem:[%s974 + $0x38] sm:$0x1] %v1030
      %v1032 = vld [vmem:[%s974 + $0x4c] sm:$0x1]
      %v1033 = vsel %vm961, 0, %v1032
      %1034 = vst [vmem:[%s974 + $0x4c] sm:$0x1] %v1033
      %v1035 = vld [vmem:[%s974 + $0x60] sm:$0x1]
      %v1036 = vsel %vm961, 0, %v1035
      %1037 = vst [vmem:[%s974 + $0x60] sm:$0x1] %v1036
      %v1038 = vld [vmem:[%s974 + $0x74] sm:$0x1]
      %v1039 = vsel %vm961, 0, %v1038
      %1040 = vst [vmem:[%s974 + $0x74] sm:$0x1] %v1039
      %v1041 = vld [vmem:[%s974 + $0x88] sm:$0x1]
      %v1042 = vsel %vm961, 0, %v1041
      %1043 = vst [vmem:[%s974 + $0x88] sm:$0x1] %v1042
      %v1044 = vld [vmem:[%s974 + $0x9c] sm:$0x1]
      %v1045 = vsel %vm961, 0, %v1044
      %1046 = vst [vmem:[%s974 + $0x9c] sm:$0x1] %v1045
      %v1047 = vld [vmem:[%s974 + $0xb0] sm:$0x1]
      %v1048 = vsel %vm961, 0, %v1047
      %1049 = vst [vmem:[%s974 + $0xb0] sm:$0x1] %v1048
      %v1050 = vld [vmem:[%s974 + $0xc4] sm:$0x1]
      %v1051 = vsel %vm961, 0, %v1050
      %1052 = vst [vmem:[%s974 + $0xc4] sm:$0x1] %v1051
      %v1053 = vld [vmem:[%s974 + $0xd8] sm:$0x1]
      %v1054 = vsel %vm961, 0, %v1053
      %1055 = vst [vmem:[%s974 + $0xd8] sm:$0x1] %v1054
      %v1056 = vld [vmem:[%s974 + $0xec] sm:$0x1]
      %v1057 = vsel %vm961, 0, %v1056
      %1058 = vst [vmem:[%s974 + $0xec] sm:$0x1] %v1057
      %v1059 = vld [vmem:[%s974 + $0x100] sm:$0x1]
      %v1060 = vsel %vm961, 0, %v1059
      %1061 = vst [vmem:[%s974 + $0x100] sm:$0x1] %v1060
      %v1062 = vld [vmem:[%s974 + $0x114] sm:$0x1]
      %v1063 = vsel %vm961, 0, %v1062
      %1064 = vst [vmem:[%s974 + $0x114] sm:$0x1] %v1063
      %v1065 = vld [vmem:[%s974 + $0x128] sm:$0x1]
      %v1066 = vsel %vm961, 0, %v1065
      %1067 = vst [vmem:[%s974 + $0x128] sm:$0x1] %v1066
      %v1068 = vld [vmem:[%s974 + $0x13c] sm:$0x1]
      %v1069 = vsel %vm961, 0, %v1068
      %1070 = vst [vmem:[%s974 + $0x13c] sm:$0x1] %v1069
      %v1071 = vpack.c.bf16 %v920, %v919
      %v1072 = vpack.c.bf16 %v922, %v921
      %v1073 = vpack.c.bf16 %v924, %v923
      %v1074 = vpack.c.bf16 %v926, %v925
      %v1075 = vpack.c.bf16 %v928, %v927
      %v1076 = vpack.c.bf16 %v930, %v929
      %v1077 = vpack.c.bf16 %v932, %v931
      %v1078 = vpack.c.bf16 %v934, %v933
      %v1079 = vpack.c.bf16 %v936, %v935
      %v1080 = vpack.c.bf16 %v938, %v937
      %v1081 = vpack.c.bf16 %v940, %v939
      %v1082 = vpack.c.bf16 %v942, %v941
      %v1083 = vpack.c.bf16 %v944, %v943
      %v1084 = vpack.c.bf16 %v946, %v945
      %v1085 = vpack.c.bf16 %v948, %v947
      %v1086 = vpack.c.bf16 %v950, %v949
      %v1103 = vunpack.c.l.b16 %v1071
      %v1104 = vunpack.c.h.b16 %v1071
      %v1105 = vunpack.c.l.b16 %v1072
      %v1106 = vunpack.c.h.b16 %v1072
      %v1107 = vunpack.c.l.b16 %v1073
      %v1108 = vunpack.c.h.b16 %v1073
      %v1109 = vunpack.c.l.b16 %v1074
      %v1110 = vunpack.c.h.b16 %v1074
      %v1111 = vunpack.c.l.b16 %v1075
      %v1112 = vunpack.c.h.b16 %v1075
      %v1113 = vunpack.c.l.b16 %v1076
      %v1114 = vunpack.c.h.b16 %v1076
      %v1115 = vunpack.c.l.b16 %v1077
      %v1116 = vunpack.c.h.b16 %v1077
      %v1117 = vunpack.c.l.b16 %v1078
      %v1118 = vunpack.c.h.b16 %v1078
      %v1119 = vunpack.c.l.b16 %v1079
      %v1120 = vunpack.c.h.b16 %v1079
      %v1121 = vunpack.c.l.b16 %v1080
      %v1122 = vunpack.c.h.b16 %v1080
      %v1123 = vunpack.c.l.b16 %v1081
      %v1124 = vunpack.c.h.b16 %v1081
      %v1125 = vunpack.c.l.b16 %v1082
      %v1126 = vunpack.c.h.b16 %v1082
      %v1127 = vunpack.c.l.b16 %v1083
      %v1128 = vunpack.c.h.b16 %v1083
      %v1129 = vunpack.c.l.b16 %v1084
      %v1130 = vunpack.c.h.b16 %v1084
      %v1131 = vunpack.c.l.b16 %v1085
      %v1132 = vunpack.c.h.b16 %v1085
      %v1133 = vunpack.c.l.b16 %v1086
      %v1134 = vunpack.c.h.b16 %v1086
      %v1135 = vpack.c.b16 %v1103, %v1103
      %v1136 = vpack.c.b16 %v1104, %v1104
      %v1137 = vpack.c.b16 %v1105, %v1105
      %v1138 = vpack.c.b16 %v1106, %v1106
      %v1139 = vpack.c.b16 %v1107, %v1107
      %v1140 = vpack.c.b16 %v1108, %v1108
      %v1141 = vpack.c.b16 %v1109, %v1109
      %v1142 = vpack.c.b16 %v1110, %v1110
      %v1143 = vpack.c.b16 %v1111, %v1111
      %v1144 = vpack.c.b16 %v1112, %v1112
      %v1145 = vpack.c.b16 %v1113, %v1113
      %v1146 = vpack.c.b16 %v1114, %v1114
      %v1147 = vpack.c.b16 %v1115, %v1115
      %v1148 = vpack.c.b16 %v1116, %v1116
      %v1149 = vpack.c.b16 %v1117, %v1117
      %v1150 = vpack.c.b16 %v1118, %v1118
      %v1151 = vpack.c.b16 %v1119, %v1119
      %v1152 = vpack.c.b16 %v1120, %v1120
      %v1153 = vpack.c.b16 %v1121, %v1121
      %v1154 = vpack.c.b16 %v1122, %v1122
      %v1155 = vpack.c.b16 %v1123, %v1123
      %v1156 = vpack.c.b16 %v1124, %v1124
      %v1157 = vpack.c.b16 %v1125, %v1125
      %v1158 = vpack.c.b16 %v1126, %v1126
      %v1159 = vpack.c.b16 %v1127, %v1127
      %v1160 = vpack.c.b16 %v1128, %v1128
      %v1161 = vpack.c.b16 %v1129, %v1129
      %v1162 = vpack.c.b16 %v1130, %v1130
      %v1163 = vpack.c.b16 %v1131, %v1131
      %v1164 = vpack.c.b16 %v1132, %v1132
      %v1165 = vpack.c.b16 %v1133, %v1133
      %v1166 = vpack.c.b16 %v1134, %v1134
      %1199 = vst [vmem:[%s974 + $0x8] sm:$0xf] %v1135
      %1200 = vst [vmem:[%s974 + $0xc] sm:$0xf] %v1136
      %1201 = vst [vmem:[%s974 + $0x1c] sm:$0xf] %v1137
      %1202 = vst [vmem:[%s974 + $0x20] sm:$0xf] %v1138
      %1203 = vst [vmem:[%s974 + $0x30] sm:$0xf] %v1139
      %1204 = vst [vmem:[%s974 + $0x34] sm:$0xf] %v1140
      %1205 = vst [vmem:[%s974 + $0x44] sm:$0xf] %v1141
      %1206 = vst [vmem:[%s974 + $0x48] sm:$0xf] %v1142
      %1207 = vst [vmem:[%s974 + $0x58] sm:$0xf] %v1143
      %1208 = vst [vmem:[%s974 + $0x5c] sm:$0xf] %v1144
      %1209 = vst [vmem:[%s974 + $0x6c] sm:$0xf] %v1145
      %1210 = vst [vmem:[%s974 + $0x70] sm:$0xf] %v1146
      %1211 = vst [vmem:[%s974 + $0x80] sm:$0xf] %v1147
      %1212 = vst [vmem:[%s974 + $0x84] sm:$0xf] %v1148
      %1213 = vst [vmem:[%s974 + $0x94] sm:$0xf] %v1149
      %1214 = vst [vmem:[%s974 + $0x98] sm:$0xf] %v1150
      %1215 = vst [vmem:[%s974 + $0xa8] sm:$0xf] %v1151
      %1216 = vst [vmem:[%s974 + $0xac] sm:$0xf] %v1152
      %1217 = vst [vmem:[%s974 + $0xbc] sm:$0xf] %v1153
      %1218 = vst [vmem:[%s974 + $0xc0] sm:$0xf] %v1154
      %1219 = vst [vmem:[%s974 + $0xd0] sm:$0xf] %v1155
      %1220 = vst [vmem:[%s974 + $0xd4] sm:$0xf] %v1156
      %1221 = vst [vmem:[%s974 + $0xe4] sm:$0xf] %v1157
      %1222 = vst [vmem:[%s974 + $0xe8] sm:$0xf] %v1158
      %1223 = vst [vmem:[%s974 + $0xf8] sm:$0xf] %v1159
      %1224 = vst [vmem:[%s974 + $0xfc] sm:$0xf] %v1160
      %1225 = vst [vmem:[%s974 + $0x10c] sm:$0xf] %v1161
      %1226 = vst [vmem:[%s974 + $0x110] sm:$0xf] %v1162
      %1227 = vst [vmem:[%s974 + $0x120] sm:$0xf] %v1163
      %1228 = vst [vmem:[%s974 + $0x124] sm:$0xf] %v1164
      %1229 = vst [vmem:[%s974 + $0x134] sm:$0xf] %v1165
      %1230 = vst [vmem:[%s974 + $0x138] sm:$0xf] %v1166
      %v1231 = vld [vmem:[#allocation2 + $0x4] sm:$0x8]
      %v1232 = vld [vmem:[#allocation2 + $0x8] sm:$0xf]
      %v1233 = vld [vmem:[#allocation2 + $0xc] sm:$0xf]
      %v1234 = vld [vmem:[#allocation2 + $0x18] sm:$0x8]
      %v1235 = vld [vmem:[#allocation2 + $0x1c] sm:$0xf]
      %v1236 = vld [vmem:[#allocation2 + $0x20] sm:$0xf]
      %v1237 = vld [vmem:[#allocation2 + $0x2c] sm:$0x8]
      %v1238 = vld [vmem:[#allocation2 + $0x30] sm:$0xf]
      %v1239 = vld [vmem:[#allocation2 + $0x34] sm:$0xf]
      %v1240 = vld [vmem:[#allocation2 + $0x40] sm:$0x8]
      %v1241 = vld [vmem:[#allocation2 + $0x44] sm:$0xf]
      %v1242 = vld [vmem:[#allocation2 + $0x48] sm:$0xf]
      %v1243 = vld [vmem:[#allocation2 + $0x54] sm:$0x8]
      %v1244 = vld [vmem:[#allocation2 + $0x58] sm:$0xf]
      %v1245 = vld [vmem:[#allocation2 + $0x5c] sm:$0xf]
      %v1246 = vld [vmem:[#allocation2 + $0x68] sm:$0x8]
      %v1247 = vld [vmem:[#allocation2 + $0x6c] sm:$0xf]
      %v1248 = vld [vmem:[#allocation2 + $0x70] sm:$0xf]
      %v1249 = vld [vmem:[#allocation2 + $0x7c] sm:$0x8]
      %v1250 = vld [vmem:[#allocation2 + $0x80] sm:$0xf]
      %v1251 = vld [vmem:[#allocation2 + $0x84] sm:$0xf]
      %v1252 = vld [vmem:[#allocation2 + $0x90] sm:$0x8]
      %v1253 = vld [vmem:[#allocation2 + $0x94] sm:$0xf]
      %v1254 = vld [vmem:[#allocation2 + $0x98] sm:$0xf]
      %v1255 = vld [vmem:[#allocation2 + $0xa4] sm:$0x8]
      %v1256 = vld [vmem:[#allocation2 + $0xa8] sm:$0xf]
      %v1257 = vld [vmem:[#allocation2 + $0xac] sm:$0xf]
      %v1258 = vld [vmem:[#allocation2 + $0xb8] sm:$0x8]
      %v1259 = vld [vmem:[#allocation2 + $0xbc] sm:$0xf]
      %v1260 = vld [vmem:[#allocation2 + $0xc0] sm:$0xf]
      %v1261 = vld [vmem:[#allocation2 + $0xcc] sm:$0x8]
      %v1262 = vld [vmem:[#allocation2 + $0xd0] sm:$0xf]
      %v1263 = vld [vmem:[#allocation2 + $0xd4] sm:$0xf]
      %v1264 = vld [vmem:[#allocation2 + $0xe0] sm:$0x8]
      %v1265 = vld [vmem:[#allocation2 + $0xe4] sm:$0xf]
      %v1266 = vld [vmem:[#allocation2 + $0xe8] sm:$0xf]
      %v1267 = vld [vmem:[#allocation2 + $0xf4] sm:$0x8]
      %v1268 = vld [vmem:[#allocation2 + $0xf8] sm:$0xf]
      %v1269 = vld [vmem:[#allocation2 + $0xfc] sm:$0xf]
      %v1270 = vld [vmem:[#allocation2 + $0x108] sm:$0x8]
      %v1271 = vld [vmem:[#allocation2 + $0x10c] sm:$0xf]
      %v1272 = vld [vmem:[#allocation2 + $0x110] sm:$0xf]
      %v1273 = vld [vmem:[#allocation2 + $0x11c] sm:$0x8]
      %v1274 = vld [vmem:[#allocation2 + $0x120] sm:$0xf]
      %v1275 = vld [vmem:[#allocation2 + $0x124] sm:$0xf]
      %v1276 = vld [vmem:[#allocation2 + $0x130] sm:$0x8]
      %v1277 = vld [vmem:[#allocation2 + $0x134] sm:$0xf]
      %v1278 = vld [vmem:[#allocation2 + $0x138] sm:$0xf]
      %vm1279 = vsmask.f32 4368
      %vm1280 = vmor %vm960, %vm1279
      %v1282 = vshrl.u32 %v1231, 16
      %v1284 = vrot.slane %v1282, 7
      %v1285 = vrot.slane %v1284, 4
      %v1287 = vshrl.u32 %v1232, 16
      %v1289 = vrot.slane %v1287, 7
      %v1290 = vshll.u32 %v1232, 16
      %v1292 = vor.u32 %v1289, %v1290
      %v1293 = vsel %vm1280, %v1285, %v1292
      %v1294 = vrot.slane %v1289, 4
      %v1296 = vshrl.u32 %v1233, 16
      %v1298 = vrot.slane %v1296, 7
      %v1299 = vshll.u32 %v1233, 16
      %v1301 = vor.u32 %v1298, %v1299
      %v1302 = vsel %vm1280, %v1294, %v1301
      %v1304 = vshrl.u32 %v1234, 16
      %v1306 = vrot.slane %v1304, 7
      %v1307 = vrot.slane %v1306, 4
      %v1309 = vshrl.u32 %v1235, 16
      %v1311 = vrot.slane %v1309, 7
      %v1312 = vshll.u32 %v1235, 16
      %v1314 = vor.u32 %v1311, %v1312
      %v1315 = vsel %vm1280, %v1307, %v1314
      %v1316 = vrot.slane %v1311, 4
      %v1318 = vshrl.u32 %v1236, 16
      %v1320 = vrot.slane %v1318, 7
      %v1321 = vshll.u32 %v1236, 16
      %v1323 = vor.u32 %v1320, %v1321
      %v1324 = vsel %vm1280, %v1316, %v1323
      %v1326 = vshrl.u32 %v1237, 16
      %v1328 = vrot.slane %v1326, 7
      %v1329 = vrot.slane %v1328, 4
      %v1331 = vshrl.u32 %v1238, 16
      %v1333 = vrot.slane %v1331, 7
      %v1334 = vshll.u32 %v1238, 16
      %v1336 = vor.u32 %v1333, %v1334
      %v1337 = vsel %vm1280, %v1329, %v1336
      %v1338 = vrot.slane %v1333, 4
      %v1340 = vshrl.u32 %v1239, 16
      %v1342 = vrot.slane %v1340, 7
      %v1343 = vshll.u32 %v1239, 16
      %v1345 = vor.u32 %v1342, %v1343
      %v1346 = vsel %vm1280, %v1338, %v1345
      %v1348 = vshrl.u32 %v1240, 16
      %v1350 = vrot.slane %v1348, 7
      %v1351 = vrot.slane %v1350, 4
      %v1353 = vshrl.u32 %v1241, 16
      %v1355 = vrot.slane %v1353, 7
      %v1356 = vshll.u32 %v1241, 16
      %v1358 = vor.u32 %v1355, %v1356
      %v1359 = vsel %vm1280, %v1351, %v1358
      %v1360 = vrot.slane %v1355, 4
      %v1362 = vshrl.u32 %v1242, 16
      %v1364 = vrot.slane %v1362, 7
      %v1365 = vshll.u32 %v1242, 16
      %v1367 = vor.u32 %v1364, %v1365
      %v1368 = vsel %vm1280, %v1360, %v1367
      %v1370 = vshrl.u32 %v1243, 16
      %v1372 = vrot.slane %v1370, 7
      %v1373 = vrot.slane %v1372, 4
      %v1375 = vshrl.u32 %v1244, 16
      %v1377 = vrot.slane %v1375, 7
      %v1378 = vshll.u32 %v1244, 16
      %v1380 = vor.u32 %v1377, %v1378
      %v1381 = vsel %vm1280, %v1373, %v1380
      %v1382 = vrot.slane %v1377, 4
      %v1384 = vshrl.u32 %v1245, 16
      %v1386 = vrot.slane %v1384, 7
      %v1387 = vshll.u32 %v1245, 16
      %v1389 = vor.u32 %v1386, %v1387
      %v1390 = vsel %vm1280, %v1382, %v1389
      %v1392 = vshrl.u32 %v1246, 16
      %v1394 = vrot.slane %v1392, 7
      %v1395 = vrot.slane %v1394, 4
      %v1397 = vshrl.u32 %v1247, 16
      %v1399 = vrot.slane %v1397, 7
      %v1400 = vshll.u32 %v1247, 16
      %v1402 = vor.u32 %v1399, %v1400
      %v1403 = vsel %vm1280, %v1395, %v1402
      %v1404 = vrot.slane %v1399, 4
      %v1406 = vshrl.u32 %v1248, 16
      %v1408 = vrot.slane %v1406, 7
      %v1409 = vshll.u32 %v1248, 16
      %v1411 = vor.u32 %v1408, %v1409
      %v1412 = vsel %vm1280, %v1404, %v1411
      %v1414 = vshrl.u32 %v1249, 16
      %v1416 = vrot.slane %v1414, 7
      %v1417 = vrot.slane %v1416, 4
      %v1419 = vshrl.u32 %v1250, 16
      %v1421 = vrot.slane %v1419, 7
      %v1422 = vshll.u32 %v1250, 16
      %v1424 = vor.u32 %v1421, %v1422
      %v1425 = vsel %vm1280, %v1417, %v1424
      %v1426 = vrot.slane %v1421, 4
      %v1428 = vshrl.u32 %v1251, 16
      %v1430 = vrot.slane %v1428, 7
      %v1431 = vshll.u32 %v1251, 16
      %v1433 = vor.u32 %v1430, %v1431
      %v1434 = vsel %vm1280, %v1426, %v1433
      %v1436 = vshrl.u32 %v1252, 16
      %v1438 = vrot.slane %v1436, 7
      %v1439 = vrot.slane %v1438, 4
      %v1441 = vshrl.u32 %v1253, 16
      %v1443 = vrot.slane %v1441, 7
      %v1444 = vshll.u32 %v1253, 16
      %v1446 = vor.u32 %v1443, %v1444
      %v1447 = vsel %vm1280, %v1439, %v1446
      %v1448 = vrot.slane %v1443, 4
      %v1450 = vshrl.u32 %v1254, 16
      %v1452 = vrot.slane %v1450, 7
      %v1453 = vshll.u32 %v1254, 16
      %v1455 = vor.u32 %v1452, %v1453
      %v1456 = vsel %vm1280, %v1448, %v1455
      %v1458 = vshrl.u32 %v1255, 16
      %v1460 = vrot.slane %v1458, 7
      %v1461 = vrot.slane %v1460, 4
      %v1463 = vshrl.u32 %v1256, 16
      %v1465 = vrot.slane %v1463, 7
      %v1466 = vshll.u32 %v1256, 16
      %v1468 = vor.u32 %v1465, %v1466
      %v1469 = vsel %vm1280, %v1461, %v1468
      %v1470 = vrot.slane %v1465, 4
      %v1472 = vshrl.u32 %v1257, 16
      %v1474 = vrot.slane %v1472, 7
      %v1475 = vshll.u32 %v1257, 16
      %v1477 = vor.u32 %v1474, %v1475
      %v1478 = vsel %vm1280, %v1470, %v1477
      %v1480 = vshrl.u32 %v1258, 16
      %v1482 = vrot.slane %v1480, 7
      %v1483 = vrot.slane %v1482, 4
      %v1485 = vshrl.u32 %v1259, 16
      %v1487 = vrot.slane %v1485, 7
      %v1488 = vshll.u32 %v1259, 16
      %v1490 = vor.u32 %v1487, %v1488
      %v1491 = vsel %vm1280, %v1483, %v1490
      %v1492 = vrot.slane %v1487, 4
      %v1494 = vshrl.u32 %v1260, 16
      %v1496 = vrot.slane %v1494, 7
      %v1497 = vshll.u32 %v1260, 16
      %v1499 = vor.u32 %v1496, %v1497
      %v1500 = vsel %vm1280, %v1492, %v1499
      %v1502 = vshrl.u32 %v1261, 16
      %v1504 = vrot.slane %v1502, 7
      %v1505 = vrot.slane %v1504, 4
      %v1507 = vshrl.u32 %v1262, 16
      %v1509 = vrot.slane %v1507, 7
      %v1510 = vshll.u32 %v1262, 16
      %v1512 = vor.u32 %v1509, %v1510
      %v1513 = vsel %vm1280, %v1505, %v1512
      %v1514 = vrot.slane %v1509, 4
      %v1516 = vshrl.u32 %v1263, 16
      %v1518 = vrot.slane %v1516, 7
      %v1519 = vshll.u32 %v1263, 16
      %v1521 = vor.u32 %v1518, %v1519
      %v1522 = vsel %vm1280, %v1514, %v1521
      %v1524 = vshrl.u32 %v1264, 16
      %v1526 = vrot.slane %v1524, 7
      %v1527 = vrot.slane %v1526, 4
      %v1529 = vshrl.u32 %v1265, 16
      %v1531 = vrot.slane %v1529, 7
      %v1532 = vshll.u32 %v1265, 16
      %v1534 = vor.u32 %v1531, %v1532
      %v1535 = vsel %vm1280, %v1527, %v1534
      %v1536 = vrot.slane %v1531, 4
      %v1538 = vshrl.u32 %v1266, 16
      %v1540 = vrot.slane %v1538, 7
      %v1541 = vshll.u32 %v1266, 16
      %v1543 = vor.u32 %v1540, %v1541
      %v1544 = vsel %vm1280, %v1536, %v1543
      %v1546 = vshrl.u32 %v1267, 16
      %v1548 = vrot.slane %v1546, 7
      %v1549 = vrot.slane %v1548, 4
      %v1551 = vshrl.u32 %v1268, 16
      %v1553 = vrot.slane %v1551, 7
      %v1554 = vshll.u32 %v1268, 16
      %v1556 = vor.u32 %v1553, %v1554
      %v1557 = vsel %vm1280, %v1549, %v1556
      %v1558 = vrot.slane %v1553, 4
      %v1560 = vshrl.u32 %v1269, 16
      %v1562 = vrot.slane %v1560, 7
      %v1563 = vshll.u32 %v1269, 16
      %v1565 = vor.u32 %v1562, %v1563
      %v1566 = vsel %vm1280, %v1558, %v1565
      %v1568 = vshrl.u32 %v1270, 16
      %v1570 = vrot.slane %v1568, 7
      %v1571 = vrot.slane %v1570, 4
      %v1573 = vshrl.u32 %v1271, 16
      %v1575 = vrot.slane %v1573, 7
      %v1576 = vshll.u32 %v1271, 16
      %v1578 = vor.u32 %v1575, %v1576
      %v1579 = vsel %vm1280, %v1571, %v1578
      %v1580 = vrot.slane %v1575, 4
      %v1582 = vshrl.u32 %v1272, 16
      %v1584 = vrot.slane %v1582, 7
      %v1585 = vshll.u32 %v1272, 16
      %v1587 = vor.u32 %v1584, %v1585
      %v1588 = vsel %vm1280, %v1580, %v1587
      %v1590 = vshrl.u32 %v1273, 16
      %v1592 = vrot.slane %v1590, 7
      %v1593 = vrot.slane %v1592, 4
      %v1595 = vshrl.u32 %v1274, 16
      %v1597 = vrot.slane %v1595, 7
      %v1598 = vshll.u32 %v1274, 16
      %v1600 = vor.u32 %v1597, %v1598
      %v1601 = vsel %vm1280, %v1593, %v1600
      %v1602 = vrot.slane %v1597, 4
      %v1604 = vshrl.u32 %v1275, 16
      %v1606 = vrot.slane %v1604, 7
      %v1607 = vshll.u32 %v1275, 16
      %v1609 = vor.u32 %v1606, %v1607
      %v1610 = vsel %vm1280, %v1602, %v1609
      %v1612 = vshrl.u32 %v1276, 16
      %v1614 = vrot.slane %v1612, 7
      %v1615 = vrot.slane %v1614, 4
      %v1617 = vshrl.u32 %v1277, 16
      %v1619 = vrot.slane %v1617, 7
      %v1620 = vshll.u32 %v1277, 16
      %v1622 = vor.u32 %v1619, %v1620
      %v1623 = vsel %vm1280, %v1615, %v1622
      %v1624 = vrot.slane %v1619, 4
      %v1626 = vshrl.u32 %v1278, 16
      %v1628 = vrot.slane %v1626, 7
      %v1629 = vshll.u32 %v1278, 16
      %v1631 = vor.u32 %v1628, %v1629
      %v1632 = vsel %vm1280, %v1624, %v1631
      %v1633 = vld [vmem:[%s4] sm:$0xf]
      %v1634 = vld [vmem:[%s4 + $0x4] sm:$0xf]
      %v1635 = vld [vmem:[%s4 + $0x8] sm:$0xf]
      %v1636 = vld [vmem:[%s4 + $0xc] sm:$0xf]
      %v1637 = vld [vmem:[%s4 + $0x10] sm:$0xf]
      %v1638 = vld [vmem:[%s4 + $0x14] sm:$0xf]
      %v1639 = vld [vmem:[%s4 + $0x18] sm:$0xf]
      %v1640 = vld [vmem:[%s4 + $0x1c] sm:$0xf]
      %v1641 = vld [vmem:[%s4 + $0x20] sm:$0xf]
      %v1642 = vld [vmem:[%s4 + $0x24] sm:$0xf]
      %v1643 = vld [vmem:[%s4 + $0x28] sm:$0xf]
      %v1644 = vld [vmem:[%s4 + $0x2c] sm:$0xf]
      %v1645 = vld [vmem:[%s4 + $0x30] sm:$0xf]
      %v1646 = vld [vmem:[%s4 + $0x34] sm:$0xf]
      %v1647 = vld [vmem:[%s4 + $0x38] sm:$0xf]
      %v1648 = vld [vmem:[%s4 + $0x3c] sm:$0xf]
      %s1649 = scalar_lea.vmem %s4, 64
      %v1650 = vld [vmem:[%s1649] sm:$0xf]
      %v1651 = vld [vmem:[%s1649 + $0x4] sm:$0xf]
      %v1652 = vld [vmem:[%s1649 + $0x8] sm:$0xf]
      %v1653 = vld [vmem:[%s1649 + $0xc] sm:$0xf]
      %v1654 = vld [vmem:[%s1649 + $0x10] sm:$0xf]
      %v1655 = vld [vmem:[%s1649 + $0x14] sm:$0xf]
      %v1656 = vld [vmem:[%s1649 + $0x18] sm:$0xf]
      %v1657 = vld [vmem:[%s1649 + $0x1c] sm:$0xf]
      %v1658 = vld [vmem:[%s1649 + $0x20] sm:$0xf]
      %v1659 = vld [vmem:[%s1649 + $0x24] sm:$0xf]
      %v1660 = vld [vmem:[%s1649 + $0x28] sm:$0xf]
      %v1661 = vld [vmem:[%s1649 + $0x2c] sm:$0xf]
      %v1662 = vld [vmem:[%s1649 + $0x30] sm:$0xf]
      %v1663 = vld [vmem:[%s1649 + $0x34] sm:$0xf]
      %v1664 = vld [vmem:[%s1649 + $0x38] sm:$0xf]
      %v1665 = vld [vmem:[%s1649 + $0x3c] sm:$0xf]
      %v1698 = vunpack.c.l.b16 %v1232
      %v1699 = vunpack.c.l.b16 %v1233
      %v1700 = vunpack.c.l.b16 %v1235
      %v1701 = vunpack.c.l.b16 %v1236
      %v1702 = vunpack.c.l.b16 %v1238
      %v1703 = vunpack.c.l.b16 %v1239
      %v1704 = vunpack.c.l.b16 %v1241
      %v1705 = vunpack.c.l.b16 %v1242
      %v1706 = vunpack.c.l.b16 %v1244
      %v1707 = vunpack.c.l.b16 %v1245
      %v1708 = vunpack.c.l.b16 %v1247
      %v1709 = vunpack.c.l.b16 %v1248
      %v1710 = vunpack.c.l.b16 %v1250
      %v1711 = vunpack.c.l.b16 %v1251
      %v1712 = vunpack.c.l.b16 %v1253
      %v1713 = vunpack.c.l.b16 %v1254
      %v1714 = vunpack.c.l.b16 %v1256
      %v1715 = vunpack.c.l.b16 %v1257
      %v1716 = vunpack.c.l.b16 %v1259
      %v1717 = vunpack.c.l.b16 %v1260
      %v1718 = vunpack.c.l.b16 %v1262
      %v1719 = vunpack.c.l.b16 %v1263
      %v1720 = vunpack.c.l.b16 %v1265
      %v1721 = vunpack.c.l.b16 %v1266
      %v1722 = vunpack.c.l.b16 %v1268
      %v1723 = vunpack.c.l.b16 %v1269
      %v1724 = vunpack.c.l.b16 %v1271
      %v1725 = vunpack.c.l.b16 %v1272
      %v1726 = vunpack.c.l.b16 %v1274
      %v1727 = vunpack.c.l.b16 %v1275
      %v1728 = vunpack.c.l.b16 %v1277
      %v1729 = vunpack.c.l.b16 %v1278
      %v1730 = vpack.c.b16 %v1699, %v1698
      %v1731 = vpack.c.b16 %v1701, %v1700
      %v1732 = vpack.c.b16 %v1703, %v1702
      %v1733 = vpack.c.b16 %v1705, %v1704
      %v1734 = vpack.c.b16 %v1707, %v1706
      %v1735 = vpack.c.b16 %v1709, %v1708
      %v1736 = vpack.c.b16 %v1711, %v1710
      %v1737 = vpack.c.b16 %v1713, %v1712
      %v1738 = vpack.c.b16 %v1715, %v1714
      %v1739 = vpack.c.b16 %v1717, %v1716
      %v1740 = vpack.c.b16 %v1719, %v1718
      %v1741 = vpack.c.b16 %v1721, %v1720
      %v1742 = vpack.c.b16 %v1723, %v1722
      %v1743 = vpack.c.b16 %v1725, %v1724
      %v1744 = vpack.c.b16 %v1727, %v1726
      %v1745 = vpack.c.b16 %v1729, %v1728
      %v1778 = vunpack.c.l.b16 %v1650
      %v1779 = vunpack.c.l.b16 %v1651
      %v1780 = vunpack.c.l.b16 %v1652
      %v1781 = vunpack.c.l.b16 %v1653
      %v1782 = vunpack.c.l.b16 %v1654
      %v1783 = vunpack.c.l.b16 %v1655
      %v1784 = vunpack.c.l.b16 %v1656
      %v1785 = vunpack.c.l.b16 %v1657
      %v1786 = vunpack.c.l.b16 %v1658
      %v1787 = vunpack.c.l.b16 %v1659
      %v1788 = vunpack.c.l.b16 %v1660
      %v1789 = vunpack.c.l.b16 %v1661
      %v1790 = vunpack.c.l.b16 %v1662
      %v1791 = vunpack.c.l.b16 %v1663
      %v1792 = vunpack.c.l.b16 %v1664
      %v1793 = vunpack.c.l.b16 %v1665
      %v1794 = vpack.c.b16 %v1779, %v1778
      %v1795 = vpack.c.b16 %v1781, %v1780
      %v1796 = vpack.c.b16 %v1783, %v1782
      %v1797 = vpack.c.b16 %v1785, %v1784
      %v1798 = vpack.c.b16 %v1787, %v1786
      %v1799 = vpack.c.b16 %v1789, %v1788
      %v1800 = vpack.c.b16 %v1791, %v1790
      %v1801 = vpack.c.b16 %v1793, %v1792
      %1810 = vmatprep.subr.bf16.mxu0 0
      %1811 = vmatpush1.bf16.msra.mxu0 %v1794
      %1812 = vmatprep.subr.bf16.mxu0 0
      %1813 = vmatpush1.bf16.msra.mxu0 %v1795
      %1814 = vmatprep.subr.bf16.mxu0 0
      %1815 = vmatpush1.bf16.msra.mxu0 %v1796
      %1816 = vmatprep.subr.bf16.mxu0 0
      %1817 = vmatpush1.bf16.msra.mxu0 %v1797
      %1818 = vmatprep.subr.bf16.mxu0 0
      %1819 = vmatpush1.bf16.msra.mxu0 %v1798
      %1820 = vmatprep.subr.bf16.mxu0 0
      %1821 = vmatpush1.bf16.msra.mxu0 %v1799
      %1822 = vmatprep.subr.bf16.mxu0 0
      %1823 = vmatpush1.bf16.msra.mxu0 %v1800
      %1824 = vmatprep.subr.bf16.mxu0 0
      %1825 = vmatpush1.bf16.msra.mxu0 %v1801
      %1826 = vmatprep.subr.bf16.mxu0 0
      %1827 = vmatpush1.bf16.msra.mxu0 0
      %1828 = vmatprep.subr.bf16.mxu0 0
      %1829 = vmatpush1.bf16.msra.mxu0 0
      %1830 = vmatprep.subr.bf16.mxu0 0
      %1831 = vmatpush1.bf16.msra.mxu0 0
      %1832 = vmatprep.subr.bf16.mxu0 0
      %1833 = vmatpush1.bf16.msra.mxu0 0
      %1834 = vmatprep.subr.bf16.mxu0 0
      %1835 = vmatpush1.bf16.msra.mxu0 0
      %1836 = vmatprep.subr.bf16.mxu0 0
      %1837 = vmatpush1.bf16.msra.mxu0 0
      %1838 = vmatprep.subr.bf16.mxu0 0
      %1839 = vmatpush1.bf16.msra.mxu0 0
      %1840 = vmatprep.subr.bf16.mxu0 0
      %1841 = vmatpush1.bf16.msra.mxu0 0
      %1842 = vmatprep.mubr.bf16.mxu0 0
      %1843 = vmatmul.mubr.bf16.gmra.mrb[0].mxu0 %v1730
      %v1844 = vpop.f32.mrb[0].mxu0
      %v1845 = vadd.f32 0.0, %v1844
      %v1846 = vpop.f32.mrb[0].mxu0
      %v1847 = vpop.f32.mrb[0].mxu0
      %v1848 = vadd.f32 0.0, %v1847
      %v1849 = vpop.f32.mrb[0].mxu0
      %1850 = vmatprep.mubr.bf16.mxu0 0
      %1851 = vmatmul.mubr.bf16.gmra.mrb[0].mxu0 %v1731
      %v1852 = vpop.f32.mrb[0].mxu0
      %v1853 = vadd.f32 0.0, %v1852
      %v1854 = vpop.f32.mrb[0].mxu0
      %v1855 = vpop.f32.mrb[0].mxu0
      %v1856 = vadd.f32 0.0, %v1855
      %v1857 = vpop.f32.mrb[0].mxu0
      %1858 = vmatprep.mubr.bf16.mxu0 0
      %1859 = vmatmul.mubr.bf16.gmra.mrb[0].mxu0 %v1732
      %v1860 = vpop.f32.mrb[0].mxu0
      %v1861 = vadd.f32 0.0, %v1860
      %v1862 = vpop.f32.mrb[0].mxu0
      %v1863 = vpop.f32.mrb[0].mxu0
      %v1864 = vadd.f32 0.0, %v1863
      %v1865 = vpop.f32.mrb[0].mxu0
      %1866 = vmatprep.mubr.bf16.mxu0 0
      %1867 = vmatmul.mubr.bf16.gmra.mrb[0].mxu0 %v1733
      %v1868 = vpop.f32.mrb[0].mxu0
      %v1869 = vadd.f32 0.0, %v1868
      %v1870 = vpop.f32.mrb[0].mxu0
      %v1871 = vpop.f32.mrb[0].mxu0
      %v1872 = vadd.f32 0.0, %v1871
      %v1873 = vpop.f32.mrb[0].mxu0
      %1874 = vmatprep.mubr.bf16.mxu0 0
      %1875 = vmatmul.mubr.bf16.gmra.mrb[0].mxu0 %v1734
      %v1876 = vpop.f32.mrb[0].mxu0
      %v1877 = vadd.f32 0.0, %v1876
      %v1878 = vpop.f32.mrb[0].mxu0
      %v1879 = vpop.f32.mrb[0].mxu0
      %v1880 = vadd.f32 0.0, %v1879
      %v1881 = vpop.f32.mrb[0].mxu0
      %1882 = vmatprep.mubr.bf16.mxu0 0
      %1883 = vmatmul.mubr.bf16.gmra.mrb[0].mxu0 %v1735
      %v1884 = vpop.f32.mrb[0].mxu0
      %v1885 = vadd.f32 0.0, %v1884
      %v1886 = vpop.f32.mrb[0].mxu0
      %v1887 = vpop.f32.mrb[0].mxu0
      %v1888 = vadd.f32 0.0, %v1887
      %v1889 = vpop.f32.mrb[0].mxu0
      %1890 = vmatprep.mubr.bf16.mxu0 0
      %1891 = vmatmul.mubr.bf16.gmra.mrb[0].mxu0 %v1736
      %v1892 = vpop.f32.mrb[0].mxu0
      %v1893 = vadd.f32 0.0, %v1892
      %v1894 = vpop.f32.mrb[0].mxu0
      %v1895 = vpop.f32.mrb[0].mxu0
      %v1896 = vadd.f32 0.0, %v1895
      %v1897 = vpop.f32.mrb[0].mxu0
      %1898 = vmatprep.mubr.bf16.mxu0 0
      %1899 = vmatmul.mubr.bf16.gmra.mrb[0].mxu0 %v1737
      %v1900 = vpop.f32.mrb[0].mxu0
      %v1901 = vadd.f32 0.0, %v1900
      %v1902 = vpop.f32.mrb[0].mxu0
      %v1903 = vpop.f32.mrb[0].mxu0
      %v1904 = vadd.f32 0.0, %v1903
      %v1905 = vpop.f32.mrb[0].mxu0
      %1906 = vmatprep.mubr.bf16.mxu0 0
      %1907 = vmatmul.mubr.bf16.gmra.mrb[0].mxu0 %v1738
      %v1908 = vpop.f32.mrb[0].mxu0
      %v1909 = vadd.f32 0.0, %v1908
      %v1910 = vpop.f32.mrb[0].mxu0
      %v1911 = vpop.f32.mrb[0].mxu0
      %v1912 = vadd.f32 0.0, %v1911
      %v1913 = vpop.f32.mrb[0].mxu0
      %1914 = vmatprep.mubr.bf16.mxu0 0
      %1915 = vmatmul.mubr.bf16.gmra.mrb[0].mxu0 %v1739
      %v1916 = vpop.f32.mrb[0].mxu0
      %v1917 = vadd.f32 0.0, %v1916
      %v1918 = vpop.f32.mrb[0].mxu0
      %v1919 = vpop.f32.mrb[0].mxu0
      %v1920 = vadd.f32 0.0, %v1919
      %v1921 = vpop.f32.mrb[0].mxu0
      %1922 = vmatprep.mubr.bf16.mxu0 0
      %1923 = vmatmul.mubr.bf16.gmra.mrb[0].mxu0 %v1740
      %v1924 = vpop.f32.mrb[0].mxu0
      %v1925 = vadd.f32 0.0, %v1924
      %v1926 = vpop.f32.mrb[0].mxu0
      %v1927 = vpop.f32.mrb[0].mxu0
      %v1928 = vadd.f32 0.0, %v1927
      %v1929 = vpop.f32.mrb[0].mxu0
      %1930 = vmatprep.mubr.bf16.mxu0 0
      %1931 = vmatmul.mubr.bf16.gmra.mrb[0].mxu0 %v1741
      %v1932 = vpop.f32.mrb[0].mxu0
      %v1933 = vadd.f32 0.0, %v1932
      %v1934 = vpop.f32.mrb[0].mxu0
      %v1935 = vpop.f32.mrb[0].mxu0
      %v1936 = vadd.f32 0.0, %v1935
      %v1937 = vpop.f32.mrb[0].mxu0
      %1938 = vmatprep.mubr.bf16.mxu0 0
      %1939 = vmatmul.mubr.bf16.gmra.mrb[0].mxu0 %v1742
      %v1940 = vpop.f32.mrb[0].mxu0
      %v1941 = vadd.f32 0.0, %v1940
      %v1942 = vpop.f32.mrb[0].mxu0
      %v1943 = vpop.f32.mrb[0].mxu0
      %v1944 = vadd.f32 0.0, %v1943
      %v1945 = vpop.f32.mrb[0].mxu0
      %1946 = vmatprep.mubr.bf16.mxu0 0
      %1947 = vmatmul.mubr.bf16.gmra.mrb[0].mxu0 %v1743
      %v1948 = vpop.f32.mrb[0].mxu0
      %v1949 = vadd.f32 0.0, %v1948
      %v1950 = vpop.f32.mrb[0].mxu0
      %v1951 = vpop.f32.mrb[0].mxu0
      %v1952 = vadd.f32 0.0, %v1951
      %v1953 = vpop.f32.mrb[0].mxu0
      %1954 = vmatprep.mubr.bf16.mxu0 0
      %1955 = vmatmul.mubr.bf16.gmra.mrb[0].mxu0 %v1744
      %v1956 = vpop.f32.mrb[0].mxu0
      %v1957 = vadd.f32 0.0, %v1956
      %v1958 = vpop.f32.mrb[0].mxu0
      %v1959 = vpop.f32.mrb[0].mxu0
      %v1960 = vadd.f32 0.0, %v1959
      %v1961 = vpop.f32.mrb[0].mxu0
      %1962 = vmatprep.mubr.bf16.mxu0 0
      %1963 = vmatmul.mubr.bf16.gmra.mrb[0].mxu0 %v1745
      %v1964 = vpop.f32.mrb[0].mxu0
      %v1965 = vadd.f32 0.0, %v1964
      %v1966 = vpop.f32.mrb[0].mxu0
      %v1967 = vpop.f32.mrb[0].mxu0
      %v1968 = vadd.f32 0.0, %v1967
      %v1969 = vpop.f32.mrb[0].mxu0
      %1970 = vdwg.mxu0
      %v1971 = vunpack.c.l.b16 %v1293
      %v1972 = vunpack.c.l.b16 %v1302
      %v1973 = vunpack.c.l.b16 %v1315
      %v1974 = vunpack.c.l.b16 %v1324
      %v1975 = vunpack.c.l.b16 %v1337
      %v1976 = vunpack.c.l.b16 %v1346
      %v1977 = vunpack.c.l.b16 %v1359
      %v1978 = vunpack.c.l.b16 %v1368
      %v1979 = vunpack.c.l.b16 %v1381
      %v1980 = vunpack.c.l.b16 %v1390
      %v1981 = vunpack.c.l.b16 %v1403
      %v1982 = vunpack.c.l.b16 %v1412
      %v1983 = vunpack.c.l.b16 %v1425
      %v1984 = vunpack.c.l.b16 %v1434
      %v1985 = vunpack.c.l.b16 %v1447
      %v1986 = vunpack.c.l.b16 %v1456
      %v1987 = vunpack.c.l.b16 %v1469
      %v1988 = vunpack.c.l.b16 %v1478
      %v1989 = vunpack.c.l.b16 %v1491
      %v1990 = vunpack.c.l.b16 %v1500
      %v1991 = vunpack.c.l.b16 %v1513
      %v1992 = vunpack.c.l.b16 %v1522
      %v1993 = vunpack.c.l.b16 %v1535
      %v1994 = vunpack.c.l.b16 %v1544
      %v1995 = vunpack.c.l.b16 %v1557
      %v1996 = vunpack.c.l.b16 %v1566
      %v1997 = vunpack.c.l.b16 %v1579
      %v1998 = vunpack.c.l.b16 %v1588
      %v1999 = vunpack.c.l.b16 %v1601
      %v2000 = vunpack.c.l.b16 %v1610
      %v2001 = vunpack.c.l.b16 %v1623
      %v2002 = vunpack.c.l.b16 %v1632
      %v2003 = vpack.c.b16 %v1972, %v1971
      %v2004 = vpack.c.b16 %v1974, %v1973
      %v2005 = vpack.c.b16 %v1976, %v1975
      %v2006 = vpack.c.b16 %v1978, %v1977
      %v2007 = vpack.c.b16 %v1980, %v1979
      %v2008 = vpack.c.b16 %v1982, %v1981
      %v2009 = vpack.c.b16 %v1984, %v1983
      %v2010 = vpack.c.b16 %v1986, %v1985
      %v2011 = vpack.c.b16 %v1988, %v1987
      %v2012 = vpack.c.b16 %v1990, %v1989
      %v2013 = vpack.c.b16 %v1992, %v1991
      %v2014 = vpack.c.b16 %v1994, %v1993
      %v2015 = vpack.c.b16 %v1996, %v1995
      %v2016 = vpack.c.b16 %v1998, %v1997
      %v2017 = vpack.c.b16 %v2000, %v1999
      %v2018 = vpack.c.b16 %v2002, %v2001
      %v2051 = vunpack.c.l.b16 %v1633
      %v2052 = vunpack.c.l.b16 %v1634
      %v2053 = vunpack.c.l.b16 %v1635
      %v2054 = vunpack.c.l.b16 %v1636
      %v2055 = vunpack.c.l.b16 %v1637
      %v2056 = vunpack.c.l.b16 %v1638
      %v2057 = vunpack.c.l.b16 %v1639
      %v2058 = vunpack.c.l.b16 %v1640
      %v2059 = vunpack.c.l.b16 %v1641
      %v2060 = vunpack.c.l.b16 %v1642
      %v2061 = vunpack.c.l.b16 %v1643
      %v2062 = vunpack.c.l.b16 %v1644
      %v2063 = vunpack.c.l.b16 %v1645
      %v2064 = vunpack.c.l.b16 %v1646
      %v2065 = vunpack.c.l.b16 %v1647
      %v2066 = vunpack.c.l.b16 %v1648
      %v2067 = vpack.c.b16 %v2052, %v2051
      %v2068 = vpack.c.b16 %v2054, %v2053
      %v2069 = vpack.c.b16 %v2056, %v2055
      %v2070 = vpack.c.b16 %v2058, %v2057
      %v2071 = vpack.c.b16 %v2060, %v2059
      %v2072 = vpack.c.b16 %v2062, %v2061
      %v2073 = vpack.c.b16 %v2064, %v2063
      %v2074 = vpack.c.b16 %v2066, %v2065
      %2083 = vmatprep.subr.bf16.mxu0 0
      %2084 = vmatpush1.bf16.msra.mxu0 %v2067
      %2085 = vmatprep.subr.bf16.mxu0 0
      %2086 = vmatpush1.bf16.msra.mxu0 %v2068
      %2087 = vmatprep.subr.bf16.mxu0 0
      %2088 = vmatpush1.bf16.msra.mxu0 %v2069
      %2089 = vmatprep.subr.bf16.mxu0 0
      %2090 = vmatpush1.bf16.msra.mxu0 %v2070
      %2091 = vmatprep.subr.bf16.mxu0 0
      %2092 = vmatpush1.bf16.msra.mxu0 %v2071
      %2093 = vmatprep.subr.bf16.mxu0 0
      %2094 = vmatpush1.bf16.msra.mxu0 %v2072
      %2095 = vmatprep.subr.bf16.mxu0 0
      %2096 = vmatpush1.bf16.msra.mxu0 %v2073
      %2097 = vmatprep.subr.bf16.mxu0 0
      %2098 = vmatpush1.bf16.msra.mxu0 %v2074
      %2099 = vmatprep.subr.bf16.mxu0 0
      %2100 = vmatpush1.bf16.msra.mxu0 0
      %2101 = vmatprep.subr.bf16.mxu0 0
      %2102 = vmatpush1.bf16.msra.mxu0 0
      %2103 = vmatprep.subr.bf16.mxu0 0
      %2104 = vmatpush1.bf16.msra.mxu0 0
      %2105 = vmatprep.subr.bf16.mxu0 0
      %2106 = vmatpush1.bf16.msra.mxu0 0
      %2107 = vmatprep.subr.bf16.mxu0 0
      %2108 = vmatpush1.bf16.msra.mxu0 0
      %2109 = vmatprep.subr.bf16.mxu0 0
      %2110 = vmatpush1.bf16.msra.mxu0 0
      %2111 = vmatprep.subr.bf16.mxu0 0
      %2112 = vmatpush1.bf16.msra.mxu0 0
      %2113 = vmatprep.subr.bf16.mxu0 0
      %2114 = vmatpush1.bf16.msra.mxu0 0
      %2115 = vmatprep.mubr.bf16.mxu0 0
      %2116 = vmatmul.mubr.bf16.gmra.mrb[0].mxu0 %v2003
      %v2117 = vpop.f32.mrb[0].mxu0
      %v2118 = vadd.f32 %v1845, %v2117
      %v2119 = vpop.f32.mrb[0].mxu0
      %v2120 = vpop.f32.mrb[0].mxu0
      %v2121 = vadd.f32 %v1848, %v2120
      %v2122 = vpop.f32.mrb[0].mxu0
      %2123 = vmatprep.mubr.bf16.mxu0 0
      %2124 = vmatmul.mubr.bf16.gmra.mrb[0].mxu0 %v2004
      %v2125 = vpop.f32.mrb[0].mxu0
      %v2126 = vadd.f32 %v1853, %v2125
      %v2127 = vpop.f32.mrb[0].mxu0
      %v2128 = vpop.f32.mrb[0].mxu0
      %v2129 = vadd.f32 %v1856, %v2128
      %v2130 = vpop.f32.mrb[0].mxu0
      %2131 = vmatprep.mubr.bf16.mxu0 0
      %2132 = vmatmul.mubr.bf16.gmra.mrb[0].mxu0 %v2005
      %v2133 = vpop.f32.mrb[0].mxu0
      %v2134 = vadd.f32 %v1861, %v2133
      %v2135 = vpop.f32.mrb[0].mxu0
      %v2136 = vpop.f32.mrb[0].mxu0
      %v2137 = vadd.f32 %v1864, %v2136
      %v2138 = vpop.f32.mrb[0].mxu0
      %2139 = vmatprep.mubr.bf16.mxu0 0
      %2140 = vmatmul.mubr.bf16.gmra.mrb[0].mxu0 %v2006
      %v2141 = vpop.f32.mrb[0].mxu0
      %v2142 = vadd.f32 %v1869, %v2141
      %v2143 = vpop.f32.mrb[0].mxu0
      %v2144 = vpop.f32.mrb[0].mxu0
      %v2145 = vadd.f32 %v1872, %v2144
      %v2146 = vpop.f32.mrb[0].mxu0
      %2147 = vmatprep.mubr.bf16.mxu0 0
      %2148 = vmatmul.mubr.bf16.gmra.mrb[0].mxu0 %v2007
      %v2149 = vpop.f32.mrb[0].mxu0
      %v2150 = vadd.f32 %v1877, %v2149
      %v2151 = vpop.f32.mrb[0].mxu0
      %v2152 = vpop.f32.mrb[0].mxu0
      %v2153 = vadd.f32 %v1880, %v2152
      %v2154 = vpop.f32.mrb[0].mxu0
      %2155 = vmatprep.mubr.bf16.mxu0 0
      %2156 = vmatmul.mubr.bf16.gmra.mrb[0].mxu0 %v2008
      %v2157 = vpop.f32.mrb[0].mxu0
      %v2158 = vadd.f32 %v1885, %v2157
      %v2159 = vpop.f32.mrb[0].mxu0
      %v2160 = vpop.f32.mrb[0].mxu0
      %v2161 = vadd.f32 %v1888, %v2160
      %v2162 = vpop.f32.mrb[0].mxu0
      %2163 = vmatprep.mubr.bf16.mxu0 0
      %2164 = vmatmul.mubr.bf16.gmra.mrb[0].mxu0 %v2009
      %v2165 = vpop.f32.mrb[0].mxu0
      %v2166 = vadd.f32 %v1893, %v2165
      %v2167 = vpop.f32.mrb[0].mxu0
      %v2168 = vpop.f32.mrb[0].mxu0
      %v2169 = vadd.f32 %v1896, %v2168
      %v2170 = vpop.f32.mrb[0].mxu0
      %2171 = vmatprep.mubr.bf16.mxu0 0
      %2172 = vmatmul.mubr.bf16.gmra.mrb[0].mxu0 %v2010
      %v2173 = vpop.f32.mrb[0].mxu0
      %v2174 = vadd.f32 %v1901, %v2173
      %v2175 = vpop.f32.mrb[0].mxu0
      %v2176 = vpop.f32.mrb[0].mxu0
      %v2177 = vadd.f32 %v1904, %v2176
      %v2178 = vpop.f32.mrb[0].mxu0
      %2179 = vmatprep.mubr.bf16.mxu0 0
      %2180 = vmatmul.mubr.bf16.gmra.mrb[0].mxu0 %v2011
      %v2181 = vpop.f32.mrb[0].mxu0
      %v2182 = vadd.f32 %v1909, %v2181
      %v2183 = vpop.f32.mrb[0].mxu0
      %v2184 = vpop.f32.mrb[0].mxu0
      %v2185 = vadd.f32 %v1912, %v2184
      %v2186 = vpop.f32.mrb[0].mxu0
      %2187 = vmatprep.mubr.bf16.mxu0 0
      %2188 = vmatmul.mubr.bf16.gmra.mrb[0].mxu0 %v2012
      %v2189 = vpop.f32.mrb[0].mxu0
      %v2190 = vadd.f32 %v1917, %v2189
      %v2191 = vpop.f32.mrb[0].mxu0
      %v2192 = vpop.f32.mrb[0].mxu0
      %v2193 = vadd.f32 %v1920, %v2192
      %v2194 = vpop.f32.mrb[0].mxu0
      %2195 = vmatprep.mubr.bf16.mxu0 0
      %2196 = vmatmul.mubr.bf16.gmra.mrb[0].mxu0 %v2013
      %v2197 = vpop.f32.mrb[0].mxu0
      %v2198 = vadd.f32 %v1925, %v2197
      %v2199 = vpop.f32.mrb[0].mxu0
      %v2200 = vpop.f32.mrb[0].mxu0
      %v2201 = vadd.f32 %v1928, %v2200
      %v2202 = vpop.f32.mrb[0].mxu0
      %2203 = vmatprep.mubr.bf16.mxu0 0
      %2204 = vmatmul.mubr.bf16.gmra.mrb[0].mxu0 %v2014
      %v2205 = vpop.f32.mrb[0].mxu0
      %v2206 = vadd.f32 %v1933, %v2205
      %v2207 = vpop.f32.mrb[0].mxu0
      %v2208 = vpop.f32.mrb[0].mxu0
      %v2209 = vadd.f32 %v1936, %v2208
      %v2210 = vpop.f32.mrb[0].mxu0
      %2211 = vmatprep.mubr.bf16.mxu0 0
      %2212 = vmatmul.mubr.bf16.gmra.mrb[0].mxu0 %v2015
      %v2213 = vpop.f32.mrb[0].mxu0
      %v2214 = vadd.f32 %v1941, %v2213
      %v2215 = vpop.f32.mrb[0].mxu0
      %v2216 = vpop.f32.mrb[0].mxu0
      %v2217 = vadd.f32 %v1944, %v2216
      %v2218 = vpop.f32.mrb[0].mxu0
      %2219 = vmatprep.mubr.bf16.mxu0 0
      %2220 = vmatmul.mubr.bf16.gmra.mrb[0].mxu0 %v2016
      %v2221 = vpop.f32.mrb[0].mxu0
      %v2222 = vadd.f32 %v1949, %v2221
      %v2223 = vpop.f32.mrb[0].mxu0
      %v2224 = vpop.f32.mrb[0].mxu0
      %v2225 = vadd.f32 %v1952, %v2224
      %v2226 = vpop.f32.mrb[0].mxu0
      %2227 = vmatprep.mubr.bf16.mxu0 0
      %2228 = vmatmul.mubr.bf16.gmra.mrb[0].mxu0 %v2017
      %v2229 = vpop.f32.mrb[0].mxu0
      %v2230 = vadd.f32 %v1957, %v2229
      %v2231 = vpop.f32.mrb[0].mxu0
      %v2232 = vpop.f32.mrb[0].mxu0
      %v2233 = vadd.f32 %v1960, %v2232
      %v2234 = vpop.f32.mrb[0].mxu0
      %2235 = vmatprep.mubr.bf16.mxu0 0
      %2236 = vmatmul.mubr.bf16.gmra.mrb[0].mxu0 %v2018
      %v2237 = vpop.f32.mrb[0].mxu0
      %v2238 = vadd.f32 %v1965, %v2237
      %v2239 = vpop.f32.mrb[0].mxu0
      %v2240 = vpop.f32.mrb[0].mxu0
      %v2241 = vadd.f32 %v1968, %v2240
      %v2242 = vpop.f32.mrb[0].mxu0
      %2243 = vdwg.mxu0
      %v2244 = vld [vmem:[#allocation2 + $0x8] sm:$0xf]
      %v2245 = vld [vmem:[#allocation2 + $0xc] sm:$0xf]
      %v2246 = vld [vmem:[#allocation2 + $0x10] sm:$0x1]
      %v2247 = vld [vmem:[#allocation2 + $0x1c] sm:$0xf]
      %v2248 = vld [vmem:[#allocation2 + $0x20] sm:$0xf]
      %v2249 = vld [vmem:[#allocation2 + $0x24] sm:$0x1]
      %v2250 = vld [vmem:[#allocation2 + $0x30] sm:$0xf]
      %v2251 = vld [vmem:[#allocation2 + $0x34] sm:$0xf]
      %v2252 = vld [vmem:[#allocation2 + $0x38] sm:$0x1]
      %v2253 = vld [vmem:[#allocation2 + $0x44] sm:$0xf]
      %v2254 = vld [vmem:[#allocation2 + $0x48] sm:$0xf]
      %v2255 = vld [vmem:[#allocation2 + $0x4c] sm:$0x1]
      %v2256 = vld [vmem:[#allocation2 + $0x58] sm:$0xf]
      %v2257 = vld [vmem:[#allocation2 + $0x5c] sm:$0xf]
      %v2258 = vld [vmem:[#allocation2 + $0x60] sm:$0x1]
      %v2259 = vld [vmem:[#allocation2 + $0x6c] sm:$0xf]
      %v2260 = vld [vmem:[#allocation2 + $0x70] sm:$0xf]
      %v2261 = vld [vmem:[#allocation2 + $0x74] sm:$0x1]
      %v2262 = vld [vmem:[#allocation2 + $0x80] sm:$0xf]
      %v2263 = vld [vmem:[#allocation2 + $0x84] sm:$0xf]
      %v2264 = vld [vmem:[#allocation2 + $0x88] sm:$0x1]
      %v2265 = vld [vmem:[#allocation2 + $0x94] sm:$0xf]
      %v2266 = vld [vmem:[#allocation2 + $0x98] sm:$0xf]
      %v2267 = vld [vmem:[#allocation2 + $0x9c] sm:$0x1]
      %v2268 = vld [vmem:[#allocation2 + $0xa8] sm:$0xf]
      %v2269 = vld [vmem:[#allocation2 + $0xac] sm:$0xf]
      %v2270 = vld [vmem:[#allocation2 + $0xb0] sm:$0x1]
      %v2271 = vld [vmem:[#allocation2 + $0xbc] sm:$0xf]
      %v2272 = vld [vmem:[#allocation2 + $0xc0] sm:$0xf]
      %v2273 = vld [vmem:[#allocation2 + $0xc4] sm:$0x1]
      %v2274 = vld [vmem:[#allocation2 + $0xd0] sm:$0xf]
      %v2275 = vld [vmem:[#allocation2 + $0xd4] sm:$0xf]
      %v2276 = vld [vmem:[#allocation2 + $0xd8] sm:$0x1]
      %v2277 = vld [vmem:[#allocation2 + $0xe4] sm:$0xf]
      %v2278 = vld [vmem:[#allocation2 + $0xe8] sm:$0xf]
      %v2279 = vld [vmem:[#allocation2 + $0xec] sm:$0x1]
      %v2280 = vld [vmem:[#allocation2 + $0xf8] sm:$0xf]
      %v2281 = vld [vmem:[#allocation2 + $0xfc] sm:$0xf]
      %v2282 = vld [vmem:[#allocation2 + $0x100] sm:$0x1]
      %v2283 = vld [vmem:[#allocation2 + $0x10c] sm:$0xf]
      %v2284 = vld [vmem:[#allocation2 + $0x110] sm:$0xf]
      %v2285 = vld [vmem:[#allocation2 + $0x114] sm:$0x1]
      %v2286 = vld [vmem:[#allocation2 + $0x120] sm:$0xf]
      %v2287 = vld [vmem:[#allocation2 + $0x124] sm:$0xf]
      %v2288 = vld [vmem:[#allocation2 + $0x128] sm:$0x1]
      %v2289 = vld [vmem:[#allocation2 + $0x134] sm:$0xf]
      %v2290 = vld [vmem:[#allocation2 + $0x138] sm:$0xf]
      %v2291 = vld [vmem:[#allocation2 + $0x13c] sm:$0x1]
      %vm2292 = vsmask.f32 3328
      %vm2293 = vsmask.f32 7440
      %vm2294 = vmor %vm2292, %vm2293
      %v2296 = vshrl.u32 %v2244, 16
      %v2298 = vrot.slane %v2296, 4
      %v2299 = vshll.u32 %v2244, 16
      %v2301 = vrot.slane %v2299, 5
      %v2302 = vor.u32 %v2298, %v2301
      %v2303 = vrot.slane %v2302, 4
      %v2305 = vshll.u32 %v2245, 16
      %v2307 = vrot.slane %v2305, 5
      %v2308 = vsel %vm2294, %v2303, %v2307
      %v2309 = vshrl.u32 %v2245, 16
      %v2311 = vrot.slane %v2309, 4
      %v2312 = vor.u32 %v2311, %v2307
      %v2313 = vrot.slane %v2312, 4
      %v2315 = vshll.u32 %v2246, 16
      %v2317 = vrot.slane %v2315, 5
      %v2318 = vsel %vm2294, %v2313, %v2317
      %v2320 = vshrl.u32 %v2247, 16
      %v2322 = vrot.slane %v2320, 4
      %v2323 = vshll.u32 %v2247, 16
      %v2325 = vrot.slane %v2323, 5
      %v2326 = vor.u32 %v2322, %v2325
      %v2327 = vrot.slane %v2326, 4
      %v2329 = vshll.u32 %v2248, 16
      %v2331 = vrot.slane %v2329, 5
      %v2332 = vsel %vm2294, %v2327, %v2331
      %v2333 = vshrl.u32 %v2248, 16
      %v2335 = vrot.slane %v2333, 4
      %v2336 = vor.u32 %v2335, %v2331
      %v2337 = vrot.slane %v2336, 4
      %v2339 = vshll.u32 %v2249, 16
      %v2341 = vrot.slane %v2339, 5
      %v2342 = vsel %vm2294, %v2337, %v2341
      %v2344 = vshrl.u32 %v2250, 16
      %v2346 = vrot.slane %v2344, 4
      %v2347 = vshll.u32 %v2250, 16
      %v2349 = vrot.slane %v2347, 5
      %v2350 = vor.u32 %v2346, %v2349
      %v2351 = vrot.slane %v2350, 4
      %v2353 = vshll.u32 %v2251, 16
      %v2355 = vrot.slane %v2353, 5
      %v2356 = vsel %vm2294, %v2351, %v2355
      %v2357 = vshrl.u32 %v2251, 16
      %v2359 = vrot.slane %v2357, 4
      %v2360 = vor.u32 %v2359, %v2355
      %v2361 = vrot.slane %v2360, 4
      %v2363 = vshll.u32 %v2252, 16
      %v2365 = vrot.slane %v2363, 5
      %v2366 = vsel %vm2294, %v2361, %v2365
      %v2368 = vshrl.u32 %v2253, 16
      %v2370 = vrot.slane %v2368, 4
      %v2371 = vshll.u32 %v2253, 16
      %v2373 = vrot.slane %v2371, 5
      %v2374 = vor.u32 %v2370, %v2373
      %v2375 = vrot.slane %v2374, 4
      %v2377 = vshll.u32 %v2254, 16
      %v2379 = vrot.slane %v2377, 5
      %v2380 = vsel %vm2294, %v2375, %v2379
      %v2381 = vshrl.u32 %v2254, 16
      %v2383 = vrot.slane %v2381, 4
      %v2384 = vor.u32 %v2383, %v2379
      %v2385 = vrot.slane %v2384, 4
      %v2387 = vshll.u32 %v2255, 16
      %v2389 = vrot.slane %v2387, 5
      %v2390 = vsel %vm2294, %v2385, %v2389
      %v2392 = vshrl.u32 %v2256, 16
      %v2394 = vrot.slane %v2392, 4
      %v2395 = vshll.u32 %v2256, 16
      %v2397 = vrot.slane %v2395, 5
      %v2398 = vor.u32 %v2394, %v2397
      %v2399 = vrot.slane %v2398, 4
      %v2401 = vshll.u32 %v2257, 16
      %v2403 = vrot.slane %v2401, 5
      %v2404 = vsel %vm2294, %v2399, %v2403
      %v2405 = vshrl.u32 %v2257, 16
      %v2407 = vrot.slane %v2405, 4
      %v2408 = vor.u32 %v2407, %v2403
      %v2409 = vrot.slane %v2408, 4
      %v2411 = vshll.u32 %v2258, 16
      %v2413 = vrot.slane %v2411, 5
      %v2414 = vsel %vm2294, %v2409, %v2413
      %v2416 = vshrl.u32 %v2259, 16
      %v2418 = vrot.slane %v2416, 4
      %v2419 = vshll.u32 %v2259, 16
      %v2421 = vrot.slane %v2419, 5
      %v2422 = vor.u32 %v2418, %v2421
      %v2423 = vrot.slane %v2422, 4
      %v2425 = vshll.u32 %v2260, 16
      %v2427 = vrot.slane %v2425, 5
      %v2428 = vsel %vm2294, %v2423, %v2427
      %v2429 = vshrl.u32 %v2260, 16
      %v2431 = vrot.slane %v2429, 4
      %v2432 = vor.u32 %v2431, %v2427
      %v2433 = vrot.slane %v2432, 4
      %v2435 = vshll.u32 %v2261, 16
      %v2437 = vrot.slane %v2435, 5
      %v2438 = vsel %vm2294, %v2433, %v2437
      %v2440 = vshrl.u32 %v2262, 16
      %v2442 = vrot.slane %v2440, 4
      %v2443 = vshll.u32 %v2262, 16
      %v2445 = vrot.slane %v2443, 5
      %v2446 = vor.u32 %v2442, %v2445
      %v2447 = vrot.slane %v2446, 4
      %v2449 = vshll.u32 %v2263, 16
      %v2451 = vrot.slane %v2449, 5
      %v2452 = vsel %vm2294, %v2447, %v2451
      %v2453 = vshrl.u32 %v2263, 16
      %v2455 = vrot.slane %v2453, 4
      %v2456 = vor.u32 %v2455, %v2451
      %v2457 = vrot.slane %v2456, 4
      %v2459 = vshll.u32 %v2264, 16
      %v2461 = vrot.slane %v2459, 5
      %v2462 = vsel %vm2294, %v2457, %v2461
      %v2464 = vshrl.u32 %v2265, 16
      %v2466 = vrot.slane %v2464, 4
      %v2467 = vshll.u32 %v2265, 16
      %v2469 = vrot.slane %v2467, 5
      %v2470 = vor.u32 %v2466, %v2469
      %v2471 = vrot.slane %v2470, 4
      %v2473 = vshll.u32 %v2266, 16
      %v2475 = vrot.slane %v2473, 5
      %v2476 = vsel %vm2294, %v2471, %v2475
      %v2477 = vshrl.u32 %v2266, 16
      %v2479 = vrot.slane %v2477, 4
      %v2480 = vor.u32 %v2479, %v2475
      %v2481 = vrot.slane %v2480, 4
      %v2483 = vshll.u32 %v2267, 16
      %v2485 = vrot.slane %v2483, 5
      %v2486 = vsel %vm2294, %v2481, %v2485
      %v2488 = vshrl.u32 %v2268, 16
      %v2490 = vrot.slane %v2488, 4
      %v2491 = vshll.u32 %v2268, 16
      %v2493 = vrot.slane %v2491, 5
      %v2494 = vor.u32 %v2490, %v2493
      %v2495 = vrot.slane %v2494, 4
      %v2497 = vshll.u32 %v2269, 16
      %v2499 = vrot.slane %v2497, 5
      %v2500 = vsel %vm2294, %v2495, %v2499
      %v2501 = vshrl.u32 %v2269, 16
      %v2503 = vrot.slane %v2501, 4
      %v2504 = vor.u32 %v2503, %v2499
      %v2505 = vrot.slane %v2504, 4
      %v2507 = vshll.u32 %v2270, 16
      %v2509 = vrot.slane %v2507, 5
      %v2510 = vsel %vm2294, %v2505, %v2509
      %v2512 = vshrl.u32 %v2271, 16
      %v2514 = vrot.slane %v2512, 4
      %v2515 = vshll.u32 %v2271, 16
      %v2517 = vrot.slane %v2515, 5
      %v2518 = vor.u32 %v2514, %v2517
      %v2519 = vrot.slane %v2518, 4
      %v2521 = vshll.u32 %v2272, 16
      %v2523 = vrot.slane %v2521, 5
      %v2524 = vsel %vm2294, %v2519, %v2523
      %v2525 = vshrl.u32 %v2272, 16
      %v2527 = vrot.slane %v2525, 4
      %v2528 = vor.u32 %v2527, %v2523
      %v2529 = vrot.slane %v2528, 4
      %v2531 = vshll.u32 %v2273, 16
      %v2533 = vrot.slane %v2531, 5
      %v2534 = vsel %vm2294, %v2529, %v2533
      %v2536 = vshrl.u32 %v2274, 16
      %v2538 = vrot.slane %v2536, 4
      %v2539 = vshll.u32 %v2274, 16
      %v2541 = vrot.slane %v2539, 5
      %v2542 = vor.u32 %v2538, %v2541
      %v2543 = vrot.slane %v2542, 4
      %v2545 = vshll.u32 %v2275, 16
      %v2547 = vrot.slane %v2545, 5
      %v2548 = vsel %vm2294, %v2543, %v2547
      %v2549 = vshrl.u32 %v2275, 16
      %v2551 = vrot.slane %v2549, 4
      %v2552 = vor.u32 %v2551, %v2547
      %v2553 = vrot.slane %v2552, 4
      %v2555 = vshll.u32 %v2276, 16
      %v2557 = vrot.slane %v2555, 5
      %v2558 = vsel %vm2294, %v2553, %v2557
      %v2560 = vshrl.u32 %v2277, 16
      %v2562 = vrot.slane %v2560, 4
      %v2563 = vshll.u32 %v2277, 16
      %v2565 = vrot.slane %v2563, 5
      %v2566 = vor.u32 %v2562, %v2565
      %v2567 = vrot.slane %v2566, 4
      %v2569 = vshll.u32 %v2278, 16
      %v2571 = vrot.slane %v2569, 5
      %v2572 = vsel %vm2294, %v2567, %v2571
      %v2573 = vshrl.u32 %v2278, 16
      %v2575 = vrot.slane %v2573, 4
      %v2576 = vor.u32 %v2575, %v2571
      %v2577 = vrot.slane %v2576, 4
      %v2579 = vshll.u32 %v2279, 16
      %v2581 = vrot.slane %v2579, 5
      %v2582 = vsel %vm2294, %v2577, %v2581
      %v2584 = vshrl.u32 %v2280, 16
      %v2586 = vrot.slane %v2584, 4
      %v2587 = vshll.u32 %v2280, 16
      %v2589 = vrot.slane %v2587, 5
      %v2590 = vor.u32 %v2586, %v2589
      %v2591 = vrot.slane %v2590, 4
      %v2593 = vshll.u32 %v2281, 16
      %v2595 = vrot.slane %v2593, 5
      %v2596 = vsel %vm2294, %v2591, %v2595
      %v2597 = vshrl.u32 %v2281, 16
      %v2599 = vrot.slane %v2597, 4
      %v2600 = vor.u32 %v2599, %v2595
      %v2601 = vrot.slane %v2600, 4
      %v2603 = vshll.u32 %v2282, 16
      %v2605 = vrot.slane %v2603, 5
      %v2606 = vsel %vm2294, %v2601, %v2605
      %v2608 = vshrl.u32 %v2283, 16
      %v2610 = vrot.slane %v2608, 4
      %v2611 = vshll.u32 %v2283, 16
      %v2613 = vrot.slane %v2611, 5
      %v2614 = vor.u32 %v2610, %v2613
      %v2615 = vrot.slane %v2614, 4
      %v2617 = vshll.u32 %v2284, 16
      %v2619 = vrot.slane %v2617, 5
      %v2620 = vsel %vm2294, %v2615, %v2619
      %v2621 = vshrl.u32 %v2284, 16
      %v2623 = vrot.slane %v2621, 4
      %v2624 = vor.u32 %v2623, %v2619
      %v2625 = vrot.slane %v2624, 4
      %v2627 = vshll.u32 %v2285, 16
      %v2629 = vrot.slane %v2627, 5
      %v2630 = vsel %vm2294, %v2625, %v2629
      %v2632 = vshrl.u32 %v2286, 16
      %v2634 = vrot.slane %v2632, 4
      %v2635 = vshll.u32 %v2286, 16
      %v2637 = vrot.slane %v2635, 5
      %v2638 = vor.u32 %v2634, %v2637
      %v2639 = vrot.slane %v2638, 4
      %v2641 = vshll.u32 %v2287, 16
      %v2643 = vrot.slane %v2641, 5
      %v2644 = vsel %vm2294, %v2639, %v2643
      %v2645 = vshrl.u32 %v2287, 16
      %v2647 = vrot.slane %v2645, 4
      %v2648 = vor.u32 %v2647, %v2643
      %v2649 = vrot.slane %v2648, 4
      %v2651 = vshll.u32 %v2288, 16
      %v2653 = vrot.slane %v2651, 5
      %v2654 = vsel %vm2294, %v2649, %v2653
      %v2656 = vshrl.u32 %v2289, 16
      %v2658 = vrot.slane %v2656, 4
      %v2659 = vshll.u32 %v2289, 16
      %v2661 = vrot.slane %v2659, 5
      %v2662 = vor.u32 %v2658, %v2661
      %v2663 = vrot.slane %v2662, 4
      %v2665 = vshll.u32 %v2290, 16
      %v2667 = vrot.slane %v2665, 5
      %v2668 = vsel %vm2294, %v2663, %v2667
      %v2669 = vshrl.u32 %v2290, 16
      %v2671 = vrot.slane %v2669, 4
      %v2672 = vor.u32 %v2671, %v2667
      %v2673 = vrot.slane %v2672, 4
      %v2675 = vshll.u32 %v2291, 16
      %v2677 = vrot.slane %v2675, 5
      %v2678 = vsel %vm2294, %v2673, %v2677
      %s2679 = scalar_lea.vmem %s4, 128
      %v2680 = vld [vmem:[%s2679] sm:$0xf]
      %v2681 = vld [vmem:[%s2679 + $0x4] sm:$0xf]
      %v2682 = vld [vmem:[%s2679 + $0x8] sm:$0xf]
      %v2683 = vld [vmem:[%s2679 + $0xc] sm:$0xf]
      %v2684 = vld [vmem:[%s2679 + $0x10] sm:$0xf]
      %v2685 = vld [vmem:[%s2679 + $0x14] sm:$0xf]
      %v2686 = vld [vmem:[%s2679 + $0x18] sm:$0xf]
      %v2687 = vld [vmem:[%s2679 + $0x1c] sm:$0xf]
      %v2688 = vld [vmem:[%s2679 + $0x20] sm:$0xf]
      %v2689 = vld [vmem:[%s2679 + $0x24] sm:$0xf]
      %v2690 = vld [vmem:[%s2679 + $0x28] sm:$0xf]
      %v2691 = vld [vmem:[%s2679 + $0x2c] sm:$0xf]
      %v2692 = vld [vmem:[%s2679 + $0x30] sm:$0xf]
      %v2693 = vld [vmem:[%s2679 + $0x34] sm:$0xf]
      %v2694 = vld [vmem:[%s2679 + $0x38] sm:$0xf]
      %v2695 = vld [vmem:[%s2679 + $0x3c] sm:$0xf]
      %v2696 = vunpack.c.l.b16 %v2308
      %v2697 = vunpack.c.l.b16 %v2318
      %v2698 = vunpack.c.l.b16 %v2332
      %v2699 = vunpack.c.l.b16 %v2342
      %v2700 = vunpack.c.l.b16 %v2356
      %v2701 = vunpack.c.l.b16 %v2366
      %v2702 = vunpack.c.l.b16 %v2380
      %v2703 = vunpack.c.l.b16 %v2390
      %v2704 = vunpack.c.l.b16 %v2404
      %v2705 = vunpack.c.l.b16 %v2414
      %v2706 = vunpack.c.l.b16 %v2428
      %v2707 = vunpack.c.l.b16 %v2438
      %v2708 = vunpack.c.l.b16 %v2452
      %v2709 = vunpack.c.l.b16 %v2462
      %v2710 = vunpack.c.l.b16 %v2476
      %v2711 = vunpack.c.l.b16 %v2486
      %v2712 = vunpack.c.l.b16 %v2500
      %v2713 = vunpack.c.l.b16 %v2510
      %v2714 = vunpack.c.l.b16 %v2524
      %v2715 = vunpack.c.l.b16 %v2534
      %v2716 = vunpack.c.l.b16 %v2548
      %v2717 = vunpack.c.l.b16 %v2558
      %v2718 = vunpack.c.l.b16 %v2572
      %v2719 = vunpack.c.l.b16 %v2582
      %v2720 = vunpack.c.l.b16 %v2596
      %v2721 = vunpack.c.l.b16 %v2606
      %v2722 = vunpack.c.l.b16 %v2620
      %v2723 = vunpack.c.l.b16 %v2630
      %v2724 = vunpack.c.l.b16 %v2644
      %v2725 = vunpack.c.l.b16 %v2654
      %v2726 = vunpack.c.l.b16 %v2668
      %v2727 = vunpack.c.l.b16 %v2678
      %v2728 = vpack.c.b16 %v2697, %v2696
      %v2729 = vpack.c.b16 %v2699, %v2698
      %v2730 = vpack.c.b16 %v2701, %v2700
      %v2731 = vpack.c.b16 %v2703, %v2702
      %v2732 = vpack.c.b16 %v2705, %v2704
      %v2733 = vpack.c.b16 %v2707, %v2706
      %v2734 = vpack.c.b16 %v2709, %v2708
      %v2735 = vpack.c.b16 %v2711, %v2710
      %v2736 = vpack.c.b16 %v2713, %v2712
      %v2737 = vpack.c.b16 %v2715, %v2714
      %v2738 = vpack.c.b16 %v2717, %v2716
      %v2739 = vpack.c.b16 %v2719, %v2718
      %v2740 = vpack.c.b16 %v2721, %v2720
      %v2741 = vpack.c.b16 %v2723, %v2722
      %v2742 = vpack.c.b16 %v2725, %v2724
      %v2743 = vpack.c.b16 %v2727, %v2726
      %v2776 = vunpack.c.l.b16 %v2680
      %v2777 = vunpack.c.l.b16 %v2681
      %v2778 = vunpack.c.l.b16 %v2682
      %v2779 = vunpack.c.l.b16 %v2683
      %v2780 = vunpack.c.l.b16 %v2684
      %v2781 = vunpack.c.l.b16 %v2685
      %v2782 = vunpack.c.l.b16 %v2686
      %v2783 = vunpack.c.l.b16 %v2687
      %v2784 = vunpack.c.l.b16 %v2688
      %v2785 = vunpack.c.l.b16 %v2689
      %v2786 = vunpack.c.l.b16 %v2690
      %v2787 = vunpack.c.l.b16 %v2691
      %v2788 = vunpack.c.l.b16 %v2692
      %v2789 = vunpack.c.l.b16 %v2693
      %v2790 = vunpack.c.l.b16 %v2694
      %v2791 = vunpack.c.l.b16 %v2695
      %v2792 = vpack.c.b16 %v2777, %v2776
      %v2793 = vpack.c.b16 %v2779, %v2778
      %v2794 = vpack.c.b16 %v2781, %v2780
      %v2795 = vpack.c.b16 %v2783, %v2782
      %v2796 = vpack.c.b16 %v2785, %v2784
      %v2797 = vpack.c.b16 %v2787, %v2786
      %v2798 = vpack.c.b16 %v2789, %v2788
      %v2799 = vpack.c.b16 %v2791, %v2790
      %2808 = vmatprep.subr.bf16.mxu0 0
      %2809 = vmatpush1.bf16.msra.mxu0 %v2792
      %2810 = vmatprep.subr.bf16.mxu0 0
      %2811 = vmatpush1.bf16.msra.mxu0 %v2793
      %2812 = vmatprep.subr.bf16.mxu0 0
      %2813 = vmatpush1.bf16.msra.mxu0 %v2794
      %2814 = vmatprep.subr.bf16.mxu0 0
      %2815 = vmatpush1.bf16.msra.mxu0 %v2795
      %2816 = vmatprep.subr.bf16.mxu0 0
      %2817 = vmatpush1.bf16.msra.mxu0 %v2796
      %2818 = vmatprep.subr.bf16.mxu0 0
      %2819 = vmatpush1.bf16.msra.mxu0 %v2797
      %2820 = vmatprep.subr.bf16.mxu0 0
      %2821 = vmatpush1.bf16.msra.mxu0 %v2798
      %2822 = vmatprep.subr.bf16.mxu0 0
      %2823 = vmatpush1.bf16.msra.mxu0 %v2799
      %2824 = vmatprep.subr.bf16.mxu0 0
      %2825 = vmatpush1.bf16.msra.mxu0 0
      %2826 = vmatprep.subr.bf16.mxu0 0
      %2827 = vmatpush1.bf16.msra.mxu0 0
      %2828 = vmatprep.subr.bf16.mxu0 0
      %2829 = vmatpush1.bf16.msra.mxu0 0
      %2830 = vmatprep.subr.bf16.mxu0 0
      %2831 = vmatpush1.bf16.msra.mxu0 0
      %2832 = vmatprep.subr.bf16.mxu0 0
      %2833 = vmatpush1.bf16.msra.mxu0 0
      %2834 = vmatprep.subr.bf16.mxu0 0
      %2835 = vmatpush1.bf16.msra.mxu0 0
      %2836 = vmatprep.subr.bf16.mxu0 0
      %2837 = vmatpush1.bf16.msra.mxu0 0
      %2838 = vmatprep.subr.bf16.mxu0 0
      %2839 = vmatpush1.bf16.msra.mxu0 0
      %2840 = vmatprep.mubr.bf16.mxu0 0
      %2841 = vmatmul.mubr.bf16.gmra.mrb[0].mxu0 %v2728
      %v2842 = vpop.f32.mrb[0].mxu0
      %v2843 = vadd.f32 0.0, %v2842
      %v2844 = vpop.f32.mrb[0].mxu0
      %v2845 = vpop.f32.mrb[0].mxu0
      %v2846 = vadd.f32 0.0, %v2845
      %v2847 = vpop.f32.mrb[0].mxu0
      %2848 = vmatprep.mubr.bf16.mxu0 0
      %2849 = vmatmul.mubr.bf16.gmra.mrb[0].mxu0 %v2729
      %v2850 = vpop.f32.mrb[0].mxu0
      %v2851 = vadd.f32 0.0, %v2850
      %v2852 = vpop.f32.mrb[0].mxu0
      %v2853 = vpop.f32.mrb[0].mxu0
      %v2854 = vadd.f32 0.0, %v2853
      %v2855 = vpop.f32.mrb[0].mxu0
      %2856 = vmatprep.mubr.bf16.mxu0 0
      %2857 = vmatmul.mubr.bf16.gmra.mrb[0].mxu0 %v2730
      %v2858 = vpop.f32.mrb[0].mxu0
      %v2859 = vadd.f32 0.0, %v2858
      %v2860 = vpop.f32.mrb[0].mxu0
      %v2861 = vpop.f32.mrb[0].mxu0
      %v2862 = vadd.f32 0.0, %v2861
      %v2863 = vpop.f32.mrb[0].mxu0
      %2864 = vmatprep.mubr.bf16.mxu0 0
      %2865 = vmatmul.mubr.bf16.gmra.mrb[0].mxu0 %v2731
      %v2866 = vpop.f32.mrb[0].mxu0
      %v2867 = vadd.f32 0.0, %v2866
      %v2868 = vpop.f32.mrb[0].mxu0
      %v2869 = vpop.f32.mrb[0].mxu0
      %v2870 = vadd.f32 0.0, %v2869
      %v2871 = vpop.f32.mrb[0].mxu0
      %2872 = vmatprep.mubr.bf16.mxu0 0
      %2873 = vmatmul.mubr.bf16.gmra.mrb[0].mxu0 %v2732
      %v2874 = vpop.f32.mrb[0].mxu0
      %v2875 = vadd.f32 0.0, %v2874
      %v2876 = vpop.f32.mrb[0].mxu0
      %v2877 = vpop.f32.mrb[0].mxu0
      %v2878 = vadd.f32 0.0, %v2877
      %v2879 = vpop.f32.mrb[0].mxu0
      %2880 = vmatprep.mubr.bf16.mxu0 0
      %2881 = vmatmul.mubr.bf16.gmra.mrb[0].mxu0 %v2733
      %v2882 = vpop.f32.mrb[0].mxu0
      %v2883 = vadd.f32 0.0, %v2882
      %v2884 = vpop.f32.mrb[0].mxu0
      %v2885 = vpop.f32.mrb[0].mxu0
      %v2886 = vadd.f32 0.0, %v2885
      %v2887 = vpop.f32.mrb[0].mxu0
      %2888 = vmatprep.mubr.bf16.mxu0 0
      %2889 = vmatmul.mubr.bf16.gmra.mrb[0].mxu0 %v2734
      %v2890 = vpop.f32.mrb[0].mxu0
      %v2891 = vadd.f32 0.0, %v2890
      %v2892 = vpop.f32.mrb[0].mxu0
      %v2893 = vpop.f32.mrb[0].mxu0
      %v2894 = vadd.f32 0.0, %v2893
      %v2895 = vpop.f32.mrb[0].mxu0
      %2896 = vmatprep.mubr.bf16.mxu0 0
      %2897 = vmatmul.mubr.bf16.gmra.mrb[0].mxu0 %v2735
      %v2898 = vpop.f32.mrb[0].mxu0
      %v2899 = vadd.f32 0.0, %v2898
      %v2900 = vpop.f32.mrb[0].mxu0
      %v2901 = vpop.f32.mrb[0].mxu0
      %v2902 = vadd.f32 0.0, %v2901
      %v2903 = vpop.f32.mrb[0].mxu0
      %2904 = vmatprep.mubr.bf16.mxu0 0
      %2905 = vmatmul.mubr.bf16.gmra.mrb[0].mxu0 %v2736
      %v2906 = vpop.f32.mrb[0].mxu0
      %v2907 = vadd.f32 0.0, %v2906
      %v2908 = vpop.f32.mrb[0].mxu0
      %v2909 = vpop.f32.mrb[0].mxu0
      %v2910 = vadd.f32 0.0, %v2909
      %v2911 = vpop.f32.mrb[0].mxu0
      %2912 = vmatprep.mubr.bf16.mxu0 0
      %2913 = vmatmul.mubr.bf16.gmra.mrb[0].mxu0 %v2737
      %v2914 = vpop.f32.mrb[0].mxu0
      %v2915 = vadd.f32 0.0, %v2914
      %v2916 = vpop.f32.mrb[0].mxu0
      %v2917 = vpop.f32.mrb[0].mxu0
      %v2918 = vadd.f32 0.0, %v2917
      %v2919 = vpop.f32.mrb[0].mxu0
      %2920 = vmatprep.mubr.bf16.mxu0 0
      %2921 = vmatmul.mubr.bf16.gmra.mrb[0].mxu0 %v2738
      %v2922 = vpop.f32.mrb[0].mxu0
      %v2923 = vadd.f32 0.0, %v2922
      %v2924 = vpop.f32.mrb[0].mxu0
      %v2925 = vpop.f32.mrb[0].mxu0
      %v2926 = vadd.f32 0.0, %v2925
      %v2927 = vpop.f32.mrb[0].mxu0
      %2928 = vmatprep.mubr.bf16.mxu0 0
      %2929 = vmatmul.mubr.bf16.gmra.mrb[0].mxu0 %v2739
      %v2930 = vpop.f32.mrb[0].mxu0
      %v2931 = vadd.f32 0.0, %v2930
      %v2932 = vpop.f32.mrb[0].mxu0
      %v2933 = vpop.f32.mrb[0].mxu0
      %v2934 = vadd.f32 0.0, %v2933
      %v2935 = vpop.f32.mrb[0].mxu0
      %2936 = vmatprep.mubr.bf16.mxu0 0
      %2937 = vmatmul.mubr.bf16.gmra.mrb[0].mxu0 %v2740
      %v2938 = vpop.f32.mrb[0].mxu0
      %v2939 = vadd.f32 0.0, %v2938
      %v2940 = vpop.f32.mrb[0].mxu0
      %v2941 = vpop.f32.mrb[0].mxu0
      %v2942 = vadd.f32 0.0, %v2941
      %v2943 = vpop.f32.mrb[0].mxu0
      %2944 = vmatprep.mubr.bf16.mxu0 0
      %2945 = vmatmul.mubr.bf16.gmra.mrb[0].mxu0 %v2741
      %v2946 = vpop.f32.mrb[0].mxu0
      %v2947 = vadd.f32 0.0, %v2946
      %v2948 = vpop.f32.mrb[0].mxu0
      %v2949 = vpop.f32.mrb[0].mxu0
      %v2950 = vadd.f32 0.0, %v2949
      %v2951 = vpop.f32.mrb[0].mxu0
      %2952 = vmatprep.mubr.bf16.mxu0 0
      %2953 = vmatmul.mubr.bf16.gmra.mrb[0].mxu0 %v2742
      %v2954 = vpop.f32.mrb[0].mxu0
      %v2955 = vadd.f32 0.0, %v2954
      %v2956 = vpop.f32.mrb[0].mxu0
      %v2957 = vpop.f32.mrb[0].mxu0
      %v2958 = vadd.f32 0.0, %v2957
      %v2959 = vpop.f32.mrb[0].mxu0
      %2960 = vmatprep.mubr.bf16.mxu0 0
      %2961 = vmatmul.mubr.bf16.gmra.mrb[0].mxu0 %v2743
      %v2962 = vpop.f32.mrb[0].mxu0
      %v2963 = vadd.f32 0.0, %v2962
      %v2964 = vpop.f32.mrb[0].mxu0
      %v2965 = vpop.f32.mrb[0].mxu0
      %v2966 = vadd.f32 0.0, %v2965
      %v2967 = vpop.f32.mrb[0].mxu0
      %2968 = vdwg.mxu0
      %v2969 = vadd.f32 %v2118, %v2843
      %v2970 = vadd.f32 %v2121, %v2846
      %v2971 = vadd.f32 %v2126, %v2851
      %v2972 = vadd.f32 %v2129, %v2854
      %v2973 = vadd.f32 %v2134, %v2859
      %v2974 = vadd.f32 %v2137, %v2862
      %v2975 = vadd.f32 %v2142, %v2867
      %v2976 = vadd.f32 %v2145, %v2870
      %v2977 = vadd.f32 %v2150, %v2875
      %v2978 = vadd.f32 %v2153, %v2878
      %v2979 = vadd.f32 %v2158, %v2883
      %v2980 = vadd.f32 %v2161, %v2886
      %v2981 = vadd.f32 %v2166, %v2891
      %v2982 = vadd.f32 %v2169, %v2894
      %v2983 = vadd.f32 %v2174, %v2899
      %v2984 = vadd.f32 %v2177, %v2902
      %v2985 = vadd.f32 %v2182, %v2907
      %v2986 = vadd.f32 %v2185, %v2910
      %v2987 = vadd.f32 %v2190, %v2915
      %v2988 = vadd.f32 %v2193, %v2918
      %v2989 = vadd.f32 %v2198, %v2923
      %v2990 = vadd.f32 %v2201, %v2926
      %v2991 = vadd.f32 %v2206, %v2931
      %v2992 = vadd.f32 %v2209, %v2934
      %v2993 = vadd.f32 %v2214, %v2939
      %v2994 = vadd.f32 %v2217, %v2942
      %v2995 = vadd.f32 %v2222, %v2947
      %v2996 = vadd.f32 %v2225, %v2950
      %v2997 = vadd.f32 %v2230, %v2955
      %v2998 = vadd.f32 %v2233, %v2958
      %v2999 = vadd.f32 %v2238, %v2963
      %v3000 = vadd.f32 %v2241, %v2966
      %v3001 = vld [vmem:[%s974 + $0x4] sm:$0x8]
      %v3002 = vld [vmem:[%s974 + $0x8] sm:$0xf]
      %v3003 = vld [vmem:[%s974 + $0xc] sm:$0xf]
      %v3004 = vld [vmem:[%s974 + $0x18] sm:$0x8]
      %v3005 = vld [vmem:[%s974 + $0x1c] sm:$0xf]
      %v3006 = vld [vmem:[%s974 + $0x20] sm:$0xf]
      %v3007 = vld [vmem:[%s974 + $0x2c] sm:$0x8]
      %v3008 = vld [vmem:[%s974 + $0x30] sm:$0xf]
      %v3009 = vld [vmem:[%s974 + $0x34] sm:$0xf]
      %v3010 = vld [vmem:[%s974 + $0x40] sm:$0x8]
      %v3011 = vld [vmem:[%s974 + $0x44] sm:$0xf]
      %v3012 = vld [vmem:[%s974 + $0x48] sm:$0xf]
      %v3013 = vld [vmem:[%s974 + $0x54] sm:$0x8]
      %v3014 = vld [vmem:[%s974 + $0x58] sm:$0xf]
      %v3015 = vld [vmem:[%s974 + $0x5c] sm:$0xf]
      %v3016 = vld [vmem:[%s974 + $0x68] sm:$0x8]
      %v3017 = vld [vmem:[%s974 + $0x6c] sm:$0xf]
      %v3018 = vld [vmem:[%s974 + $0x70] sm:$0xf]
      %v3019 = vld [vmem:[%s974 + $0x7c] sm:$0x8]
      %v3020 = vld [vmem:[%s974 + $0x80] sm:$0xf]
      %v3021 = vld [vmem:[%s974 + $0x84] sm:$0xf]
      %v3022 = vld [vmem:[%s974 + $0x90] sm:$0x8]
      %v3023 = vld [vmem:[%s974 + $0x94] sm:$0xf]
      %v3024 = vld [vmem:[%s974 + $0x98] sm:$0xf]
      %v3025 = vld [vmem:[%s974 + $0xa4] sm:$0x8]
      %v3026 = vld [vmem:[%s974 + $0xa8] sm:$0xf]
      %v3027 = vld [vmem:[%s974 + $0xac] sm:$0xf]
      %v3028 = vld [vmem:[%s974 + $0xb8] sm:$0x8]
      %v3029 = vld [vmem:[%s974 + $0xbc] sm:$0xf]
      %v3030 = vld [vmem:[%s974 + $0xc0] sm:$0xf]
      %v3031 = vld [vmem:[%s974 + $0xcc] sm:$0x8]
      %v3032 = vld [vmem:[%s974 + $0xd0] sm:$0xf]
      %v3033 = vld [vmem:[%s974 + $0xd4] sm:$0xf]
      %v3034 = vld [vmem:[%s974 + $0xe0] sm:$0x8]
      %v3035 = vld [vmem:[%s974 + $0xe4] sm:$0xf]
      %v3036 = vld [vmem:[%s974 + $0xe8] sm:$0xf]
      %v3037 = vld [vmem:[%s974 + $0xf4] sm:$0x8]
      %v3038 = vld [vmem:[%s974 + $0xf8] sm:$0xf]
      %v3039 = vld [vmem:[%s974 + $0xfc] sm:$0xf]
      %v3040 = vld [vmem:[%s974 + $0x108] sm:$0x8]
      %v3041 = vld [vmem:[%s974 + $0x10c] sm:$0xf]
      %v3042 = vld [vmem:[%s974 + $0x110] sm:$0xf]
      %v3043 = vld [vmem:[%s974 + $0x11c] sm:$0x8]
      %v3044 = vld [vmem:[%s974 + $0x120] sm:$0xf]
      %v3045 = vld [vmem:[%s974 + $0x124] sm:$0xf]
      %v3046 = vld [vmem:[%s974 + $0x130] sm:$0x8]
      %v3047 = vld [vmem:[%s974 + $0x134] sm:$0xf]
      %v3048 = vld [vmem:[%s974 + $0x138] sm:$0xf]
      %v3050 = vshrl.u32 %v3001, 16
      %v3052 = vrot.slane %v3050, 7
      %v3053 = vrot.slane %v3052, 4
      %v3055 = vshrl.u32 %v3002, 16
      %v3057 = vrot.slane %v3055, 7
      %v3058 = vshll.u32 %v3002, 16
      %v3060 = vor.u32 %v3057, %v3058
      %v3061 = vsel %vm1280, %v3053, %v3060
      %v3062 = vrot.slane %v3057, 4
      %v3064 = vshrl.u32 %v3003, 16
      %v3066 = vrot.slane %v3064, 7
      %v3067 = vshll.u32 %v3003, 16
      %v3069 = vor.u32 %v3066, %v3067
      %v3070 = vsel %vm1280, %v3062, %v3069
      %v3072 = vshrl.u32 %v3004, 16
      %v3074 = vrot.slane %v3072, 7
      %v3075 = vrot.slane %v3074, 4
      %v3077 = vshrl.u32 %v3005, 16
      %v3079 = vrot.slane %v3077, 7
      %v3080 = vshll.u32 %v3005, 16
      %v3082 = vor.u32 %v3079, %v3080
      %v3083 = vsel %vm1280, %v3075, %v3082
      %v3084 = vrot.slane %v3079, 4
      %v3086 = vshrl.u32 %v3006, 16
      %v3088 = vrot.slane %v3086, 7
      %v3089 = vshll.u32 %v3006, 16
      %v3091 = vor.u32 %v3088, %v3089
      %v3092 = vsel %vm1280, %v3084, %v3091
      %v3094 = vshrl.u32 %v3007, 16
      %v3096 = vrot.slane %v3094, 7
      %v3097 = vrot.slane %v3096, 4
      %v3099 = vshrl.u32 %v3008, 16
      %v3101 = vrot.slane %v3099, 7
      %v3102 = vshll.u32 %v3008, 16
      %v3104 = vor.u32 %v3101, %v3102
      %v3105 = vsel %vm1280, %v3097, %v3104
      %v3106 = vrot.slane %v3101, 4
      %v3108 = vshrl.u32 %v3009, 16
      %v3110 = vrot.slane %v3108, 7
      %v3111 = vshll.u32 %v3009, 16
      %v3113 = vor.u32 %v3110, %v3111
      %v3114 = vsel %vm1280, %v3106, %v3113
      %v3116 = vshrl.u32 %v3010, 16
      %v3118 = vrot.slane %v3116, 7
      %v3119 = vrot.slane %v3118, 4
      %v3121 = vshrl.u32 %v3011, 16
      %v3123 = vrot.slane %v3121, 7
      %v3124 = vshll.u32 %v3011, 16
      %v3126 = vor.u32 %v3123, %v3124
      %v3127 = vsel %vm1280, %v3119, %v3126
      %v3128 = vrot.slane %v3123, 4
      %v3130 = vshrl.u32 %v3012, 16
      %v3132 = vrot.slane %v3130, 7
      %v3133 = vshll.u32 %v3012, 16
      %v3135 = vor.u32 %v3132, %v3133
      %v3136 = vsel %vm1280, %v3128, %v3135
      %v3138 = vshrl.u32 %v3013, 16
      %v3140 = vrot.slane %v3138, 7
      %v3141 = vrot.slane %v3140, 4
      %v3143 = vshrl.u32 %v3014, 16
      %v3145 = vrot.slane %v3143, 7
      %v3146 = vshll.u32 %v3014, 16
      %v3148 = vor.u32 %v3145, %v3146
      %v3149 = vsel %vm1280, %v3141, %v3148
      %v3150 = vrot.slane %v3145, 4
      %v3152 = vshrl.u32 %v3015, 16
      %v3154 = vrot.slane %v3152, 7
      %v3155 = vshll.u32 %v3015, 16
      %v3157 = vor.u32 %v3154, %v3155
      %v3158 = vsel %vm1280, %v3150, %v3157
      %v3160 = vshrl.u32 %v3016, 16
      %v3162 = vrot.slane %v3160, 7
      %v3163 = vrot.slane %v3162, 4
      %v3165 = vshrl.u32 %v3017, 16
      %v3167 = vrot.slane %v3165, 7
      %v3168 = vshll.u32 %v3017, 16
      %v3170 = vor.u32 %v3167, %v3168
      %v3171 = vsel %vm1280, %v3163, %v3170
      %v3172 = vrot.slane %v3167, 4
      %v3174 = vshrl.u32 %v3018, 16
      %v3176 = vrot.slane %v3174, 7
      %v3177 = vshll.u32 %v3018, 16
      %v3179 = vor.u32 %v3176, %v3177
      %v3180 = vsel %vm1280, %v3172, %v3179
      %v3182 = vshrl.u32 %v3019, 16
      %v3184 = vrot.slane %v3182, 7
      %v3185 = vrot.slane %v3184, 4
      %v3187 = vshrl.u32 %v3020, 16
      %v3189 = vrot.slane %v3187, 7
      %v3190 = vshll.u32 %v3020, 16
      %v3192 = vor.u32 %v3189, %v3190
      %v3193 = vsel %vm1280, %v3185, %v3192
      %v3194 = vrot.slane %v3189, 4
      %v3196 = vshrl.u32 %v3021, 16
      %v3198 = vrot.slane %v3196, 7
      %v3199 = vshll.u32 %v3021, 16
      %v3201 = vor.u32 %v3198, %v3199
      %v3202 = vsel %vm1280, %v3194, %v3201
      %v3204 = vshrl.u32 %v3022, 16
      %v3206 = vrot.slane %v3204, 7
      %v3207 = vrot.slane %v3206, 4
      %v3209 = vshrl.u32 %v3023, 16
      %v3211 = vrot.slane %v3209, 7
      %v3212 = vshll.u32 %v3023, 16
      %v3214 = vor.u32 %v3211, %v3212
      %v3215 = vsel %vm1280, %v3207, %v3214
      %v3216 = vrot.slane %v3211, 4
      %v3218 = vshrl.u32 %v3024, 16
      %v3220 = vrot.slane %v3218, 7
      %v3221 = vshll.u32 %v3024, 16
      %v3223 = vor.u32 %v3220, %v3221
      %v3224 = vsel %vm1280, %v3216, %v3223
      %v3226 = vshrl.u32 %v3025, 16
      %v3228 = vrot.slane %v3226, 7
      %v3229 = vrot.slane %v3228, 4
      %v3231 = vshrl.u32 %v3026, 16
      %v3233 = vrot.slane %v3231, 7
      %v3234 = vshll.u32 %v3026, 16
      %v3236 = vor.u32 %v3233, %v3234
      %v3237 = vsel %vm1280, %v3229, %v3236
      %v3238 = vrot.slane %v3233, 4
      %v3240 = vshrl.u32 %v3027, 16
      %v3242 = vrot.slane %v3240, 7
      %v3243 = vshll.u32 %v3027, 16
      %v3245 = vor.u32 %v3242, %v3243
      %v3246 = vsel %vm1280, %v3238, %v3245
      %v3248 = vshrl.u32 %v3028, 16
      %v3250 = vrot.slane %v3248, 7
      %v3251 = vrot.slane %v3250, 4
      %v3253 = vshrl.u32 %v3029, 16
      %v3255 = vrot.slane %v3253, 7
      %v3256 = vshll.u32 %v3029, 16
      %v3258 = vor.u32 %v3255, %v3256
      %v3259 = vsel %vm1280, %v3251, %v3258
      %v3260 = vrot.slane %v3255, 4
      %v3262 = vshrl.u32 %v3030, 16
      %v3264 = vrot.slane %v3262, 7
      %v3265 = vshll.u32 %v3030, 16
      %v3267 = vor.u32 %v3264, %v3265
      %v3268 = vsel %vm1280, %v3260, %v3267
      %v3270 = vshrl.u32 %v3031, 16
      %v3272 = vrot.slane %v3270, 7
      %v3273 = vrot.slane %v3272, 4
      %v3275 = vshrl.u32 %v3032, 16
      %v3277 = vrot.slane %v3275, 7
      %v3278 = vshll.u32 %v3032, 16
      %v3280 = vor.u32 %v3277, %v3278
      %v3281 = vsel %vm1280, %v3273, %v3280
      %v3282 = vrot.slane %v3277, 4
      %v3284 = vshrl.u32 %v3033, 16
      %v3286 = vrot.slane %v3284, 7
      %v3287 = vshll.u32 %v3033, 16
      %v3289 = vor.u32 %v3286, %v3287
      %v3290 = vsel %vm1280, %v3282, %v3289
      %v3292 = vshrl.u32 %v3034, 16
      %v3294 = vrot.slane %v3292, 7
      %v3295 = vrot.slane %v3294, 4
      %v3297 = vshrl.u32 %v3035, 16
      %v3299 = vrot.slane %v3297, 7
      %v3300 = vshll.u32 %v3035, 16
      %v3302 = vor.u32 %v3299, %v3300
      %v3303 = vsel %vm1280, %v3295, %v3302
      %v3304 = vrot.slane %v3299, 4
      %v3306 = vshrl.u32 %v3036, 16
      %v3308 = vrot.slane %v3306, 7
      %v3309 = vshll.u32 %v3036, 16
      %v3311 = vor.u32 %v3308, %v3309
      %v3312 = vsel %vm1280, %v3304, %v3311
      %v3314 = vshrl.u32 %v3037, 16
      %v3316 = vrot.slane %v3314, 7
      %v3317 = vrot.slane %v3316, 4
      %v3319 = vshrl.u32 %v3038, 16
      %v3321 = vrot.slane %v3319, 7
      %v3322 = vshll.u32 %v3038, 16
      %v3324 = vor.u32 %v3321, %v3322
      %v3325 = vsel %vm1280, %v3317, %v3324
      %v3326 = vrot.slane %v3321, 4
      %v3328 = vshrl.u32 %v3039, 16
      %v3330 = vrot.slane %v3328, 7
      %v3331 = vshll.u32 %v3039, 16
      %v3333 = vor.u32 %v3330, %v3331
      %v3334 = vsel %vm1280, %v3326, %v3333
      %v3336 = vshrl.u32 %v3040, 16
      %v3338 = vrot.slane %v3336, 7
      %v3339 = vrot.slane %v3338, 4
      %v3341 = vshrl.u32 %v3041, 16
      %v3343 = vrot.slane %v3341, 7
      %v3344 = vshll.u32 %v3041, 16
      %v3346 = vor.u32 %v3343, %v3344
      %v3347 = vsel %vm1280, %v3339, %v3346
      %v3348 = vrot.slane %v3343, 4
      %v3350 = vshrl.u32 %v3042, 16
      %v3352 = vrot.slane %v3350, 7
      %v3353 = vshll.u32 %v3042, 16
      %v3355 = vor.u32 %v3352, %v3353
      %v3356 = vsel %vm1280, %v3348, %v3355
      %v3358 = vshrl.u32 %v3043, 16
      %v3360 = vrot.slane %v3358, 7
      %v3361 = vrot.slane %v3360, 4
      %v3363 = vshrl.u32 %v3044, 16
      %v3365 = vrot.slane %v3363, 7
      %v3366 = vshll.u32 %v3044, 16
      %v3368 = vor.u32 %v3365, %v3366
      %v3369 = vsel %vm1280, %v3361, %v3368
      %v3370 = vrot.slane %v3365, 4
      %v3372 = vshrl.u32 %v3045, 16
      %v3374 = vrot.slane %v3372, 7
      %v3375 = vshll.u32 %v3045, 16
      %v3377 = vor.u32 %v3374, %v3375
      %v3378 = vsel %vm1280, %v3370, %v3377
      %v3380 = vshrl.u32 %v3046, 16
      %v3382 = vrot.slane %v3380, 7
      %v3383 = vrot.slane %v3382, 4
      %v3385 = vshrl.u32 %v3047, 16
      %v3387 = vrot.slane %v3385, 7
      %v3388 = vshll.u32 %v3047, 16
      %v3390 = vor.u32 %v3387, %v3388
      %v3391 = vsel %vm1280, %v3383, %v3390
      %v3392 = vrot.slane %v3387, 4
      %v3394 = vshrl.u32 %v3048, 16
      %v3396 = vrot.slane %v3394, 7
      %v3397 = vshll.u32 %v3048, 16
      %v3399 = vor.u32 %v3396, %v3397
      %v3400 = vsel %vm1280, %v3392, %v3399
      %s3401 = scalar_lea.vmem %s4, 192
      %v3402 = vld [vmem:[%s3401] sm:$0xf]
      %v3403 = vld [vmem:[%s3401 + $0x4] sm:$0xf]
      %v3404 = vld [vmem:[%s3401 + $0x8] sm:$0xf]
      %v3405 = vld [vmem:[%s3401 + $0xc] sm:$0xf]
      %v3406 = vld [vmem:[%s3401 + $0x10] sm:$0xf]
      %v3407 = vld [vmem:[%s3401 + $0x14] sm:$0xf]
      %v3408 = vld [vmem:[%s3401 + $0x18] sm:$0xf]
      %v3409 = vld [vmem:[%s3401 + $0x1c] sm:$0xf]
      %v3410 = vld [vmem:[%s3401 + $0x20] sm:$0xf]
      %v3411 = vld [vmem:[%s3401 + $0x24] sm:$0xf]
      %v3412 = vld [vmem:[%s3401 + $0x28] sm:$0xf]
      %v3413 = vld [vmem:[%s3401 + $0x2c] sm:$0xf]
      %v3414 = vld [vmem:[%s3401 + $0x30] sm:$0xf]
      %v3415 = vld [vmem:[%s3401 + $0x34] sm:$0xf]
      %v3416 = vld [vmem:[%s3401 + $0x38] sm:$0xf]
      %v3417 = vld [vmem:[%s3401 + $0x3c] sm:$0xf]
      %v3418 = vunpack.c.l.b16 %v3061
      %v3419 = vunpack.c.l.b16 %v3070
      %v3420 = vunpack.c.l.b16 %v3083
      %v3421 = vunpack.c.l.b16 %v3092
      %v3422 = vunpack.c.l.b16 %v3105
      %v3423 = vunpack.c.l.b16 %v3114
      %v3424 = vunpack.c.l.b16 %v3127
      %v3425 = vunpack.c.l.b16 %v3136
      %v3426 = vunpack.c.l.b16 %v3149
      %v3427 = vunpack.c.l.b16 %v3158
      %v3428 = vunpack.c.l.b16 %v3171
      %v3429 = vunpack.c.l.b16 %v3180
      %v3430 = vunpack.c.l.b16 %v3193
      %v3431 = vunpack.c.l.b16 %v3202
      %v3432 = vunpack.c.l.b16 %v3215
      %v3433 = vunpack.c.l.b16 %v3224
      %v3434 = vunpack.c.l.b16 %v3237
      %v3435 = vunpack.c.l.b16 %v3246
      %v3436 = vunpack.c.l.b16 %v3259
      %v3437 = vunpack.c.l.b16 %v3268
      %v3438 = vunpack.c.l.b16 %v3281
      %v3439 = vunpack.c.l.b16 %v3290
      %v3440 = vunpack.c.l.b16 %v3303
      %v3441 = vunpack.c.l.b16 %v3312
      %v3442 = vunpack.c.l.b16 %v3325
      %v3443 = vunpack.c.l.b16 %v3334
      %v3444 = vunpack.c.l.b16 %v3347
      %v3445 = vunpack.c.l.b16 %v3356
      %v3446 = vunpack.c.l.b16 %v3369
      %v3447 = vunpack.c.l.b16 %v3378
      %v3448 = vunpack.c.l.b16 %v3391
      %v3449 = vunpack.c.l.b16 %v3400
      %v3450 = vpack.c.b16 %v3419, %v3418
      %v3451 = vpack.c.b16 %v3421, %v3420
      %v3452 = vpack.c.b16 %v3423, %v3422
      %v3453 = vpack.c.b16 %v3425, %v3424
      %v3454 = vpack.c.b16 %v3427, %v3426
      %v3455 = vpack.c.b16 %v3429, %v3428
      %v3456 = vpack.c.b16 %v3431, %v3430
      %v3457 = vpack.c.b16 %v3433, %v3432
      %v3458 = vpack.c.b16 %v3435, %v3434
      %v3459 = vpack.c.b16 %v3437, %v3436
      %v3460 = vpack.c.b16 %v3439, %v3438
      %v3461 = vpack.c.b16 %v3441, %v3440
      %v3462 = vpack.c.b16 %v3443, %v3442
      %v3463 = vpack.c.b16 %v3445, %v3444
      %v3464 = vpack.c.b16 %v3447, %v3446
      %v3465 = vpack.c.b16 %v3449, %v3448
      %v3498 = vunpack.c.l.b16 %v3402
      %v3499 = vunpack.c.l.b16 %v3403
      %v3500 = vunpack.c.l.b16 %v3404
      %v3501 = vunpack.c.l.b16 %v3405
      %v3502 = vunpack.c.l.b16 %v3406
      %v3503 = vunpack.c.l.b16 %v3407
      %v3504 = vunpack.c.l.b16 %v3408
      %v3505 = vunpack.c.l.b16 %v3409
      %v3506 = vunpack.c.l.b16 %v3410
      %v3507 = vunpack.c.l.b16 %v3411
      %v3508 = vunpack.c.l.b16 %v3412
      %v3509 = vunpack.c.l.b16 %v3413
      %v3510 = vunpack.c.l.b16 %v3414
      %v3511 = vunpack.c.l.b16 %v3415
      %v3512 = vunpack.c.l.b16 %v3416
      %v3513 = vunpack.c.l.b16 %v3417
      %v3514 = vpack.c.b16 %v3499, %v3498
      %v3515 = vpack.c.b16 %v3501, %v3500
      %v3516 = vpack.c.b16 %v3503, %v3502
      %v3517 = vpack.c.b16 %v3505, %v3504
      %v3518 = vpack.c.b16 %v3507, %v3506
      %v3519 = vpack.c.b16 %v3509, %v3508
      %v3520 = vpack.c.b16 %v3511, %v3510
      %v3521 = vpack.c.b16 %v3513, %v3512
      %3530 = vmatprep.subr.bf16.mxu0 0
      %3531 = vmatpush1.bf16.msra.mxu0 %v3514
      %3532 = vmatprep.subr.bf16.mxu0 0
      %3533 = vmatpush1.bf16.msra.mxu0 %v3515
      %3534 = vmatprep.subr.bf16.mxu0 0
      %3535 = vmatpush1.bf16.msra.mxu0 %v3516
      %3536 = vmatprep.subr.bf16.mxu0 0
      %3537 = vmatpush1.bf16.msra.mxu0 %v3517
      %3538 = vmatprep.subr.bf16.mxu0 0
      %3539 = vmatpush1.bf16.msra.mxu0 %v3518
      %3540 = vmatprep.subr.bf16.mxu0 0
      %3541 = vmatpush1.bf16.msra.mxu0 %v3519
      %3542 = vmatprep.subr.bf16.mxu0 0
      %3543 = vmatpush1.bf16.msra.mxu0 %v3520
      %3544 = vmatprep.subr.bf16.mxu0 0
      %3545 = vmatpush1.bf16.msra.mxu0 %v3521
      %3546 = vmatprep.subr.bf16.mxu0 0
      %3547 = vmatpush1.bf16.msra.mxu0 0
      %3548 = vmatprep.subr.bf16.mxu0 0
      %3549 = vmatpush1.bf16.msra.mxu0 0
      %3550 = vmatprep.subr.bf16.mxu0 0
      %3551 = vmatpush1.bf16.msra.mxu0 0
      %3552 = vmatprep.subr.bf16.mxu0 0
      %3553 = vmatpush1.bf16.msra.mxu0 0
      %3554 = vmatprep.subr.bf16.mxu0 0
      %3555 = vmatpush1.bf16.msra.mxu0 0
      %3556 = vmatprep.subr.bf16.mxu0 0
      %3557 = vmatpush1.bf16.msra.mxu0 0
      %3558 = vmatprep.subr.bf16.mxu0 0
      %3559 = vmatpush1.bf16.msra.mxu0 0
      %3560 = vmatprep.subr.bf16.mxu0 0
      %3561 = vmatpush1.bf16.msra.mxu0 0
      %3562 = vmatprep.mubr.bf16.mxu0 0
      %3563 = vmatmul.mubr.bf16.gmra.mrb[0].mxu0 %v3450
      %v3564 = vpop.f32.mrb[0].mxu0
      %v3565 = vadd.f32 0.0, %v3564
      %v3566 = vpop.f32.mrb[0].mxu0
      %v3567 = vpop.f32.mrb[0].mxu0
      %v3568 = vadd.f32 0.0, %v3567
      %v3569 = vpop.f32.mrb[0].mxu0
      %3570 = vmatprep.mubr.bf16.mxu0 0
      %3571 = vmatmul.mubr.bf16.gmra.mrb[0].mxu0 %v3451
      %v3572 = vpop.f32.mrb[0].mxu0
      %v3573 = vadd.f32 0.0, %v3572
      %v3574 = vpop.f32.mrb[0].mxu0
      %v3575 = vpop.f32.mrb[0].mxu0
      %v3576 = vadd.f32 0.0, %v3575
      %v3577 = vpop.f32.mrb[0].mxu0
      %3578 = vmatprep.mubr.bf16.mxu0 0
      %3579 = vmatmul.mubr.bf16.gmra.mrb[0].mxu0 %v3452
      %v3580 = vpop.f32.mrb[0].mxu0
      %v3581 = vadd.f32 0.0, %v3580
      %v3582 = vpop.f32.mrb[0].mxu0
      %v3583 = vpop.f32.mrb[0].mxu0
      %v3584 = vadd.f32 0.0, %v3583
      %v3585 = vpop.f32.mrb[0].mxu0
      %3586 = vmatprep.mubr.bf16.mxu0 0
      %3587 = vmatmul.mubr.bf16.gmra.mrb[0].mxu0 %v3453
      %v3588 = vpop.f32.mrb[0].mxu0
      %v3589 = vadd.f32 0.0, %v3588
      %v3590 = vpop.f32.mrb[0].mxu0
      %v3591 = vpop.f32.mrb[0].mxu0
      %v3592 = vadd.f32 0.0, %v3591
      %v3593 = vpop.f32.mrb[0].mxu0
      %3594 = vmatprep.mubr.bf16.mxu0 0
      %3595 = vmatmul.mubr.bf16.gmra.mrb[0].mxu0 %v3454
      %v3596 = vpop.f32.mrb[0].mxu0
      %v3597 = vadd.f32 0.0, %v3596
      %v3598 = vpop.f32.mrb[0].mxu0
      %v3599 = vpop.f32.mrb[0].mxu0
      %v3600 = vadd.f32 0.0, %v3599
      %v3601 = vpop.f32.mrb[0].mxu0
      %3602 = vmatprep.mubr.bf16.mxu0 0
      %3603 = vmatmul.mubr.bf16.gmra.mrb[0].mxu0 %v3455
      %v3604 = vpop.f32.mrb[0].mxu0
      %v3605 = vadd.f32 0.0, %v3604
      %v3606 = vpop.f32.mrb[0].mxu0
      %v3607 = vpop.f32.mrb[0].mxu0
      %v3608 = vadd.f32 0.0, %v3607
      %v3609 = vpop.f32.mrb[0].mxu0
      %3610 = vmatprep.mubr.bf16.mxu0 0
      %3611 = vmatmul.mubr.bf16.gmra.mrb[0].mxu0 %v3456
      %v3612 = vpop.f32.mrb[0].mxu0
      %v3613 = vadd.f32 0.0, %v3612
      %v3614 = vpop.f32.mrb[0].mxu0
      %v3615 = vpop.f32.mrb[0].mxu0
      %v3616 = vadd.f32 0.0, %v3615
      %v3617 = vpop.f32.mrb[0].mxu0
      %3618 = vmatprep.mubr.bf16.mxu0 0
      %3619 = vmatmul.mubr.bf16.gmra.mrb[0].mxu0 %v3457
      %v3620 = vpop.f32.mrb[0].mxu0
      %v3621 = vadd.f32 0.0, %v3620
      %v3622 = vpop.f32.mrb[0].mxu0
      %v3623 = vpop.f32.mrb[0].mxu0
      %v3624 = vadd.f32 0.0, %v3623
      %v3625 = vpop.f32.mrb[0].mxu0
      %3626 = vmatprep.mubr.bf16.mxu0 0
      %3627 = vmatmul.mubr.bf16.gmra.mrb[0].mxu0 %v3458
      %v3628 = vpop.f32.mrb[0].mxu0
      %v3629 = vadd.f32 0.0, %v3628
      %v3630 = vpop.f32.mrb[0].mxu0
      %v3631 = vpop.f32.mrb[0].mxu0
      %v3632 = vadd.f32 0.0, %v3631
      %v3633 = vpop.f32.mrb[0].mxu0
      %3634 = vmatprep.mubr.bf16.mxu0 0
      %3635 = vmatmul.mubr.bf16.gmra.mrb[0].mxu0 %v3459
      %v3636 = vpop.f32.mrb[0].mxu0
      %v3637 = vadd.f32 0.0, %v3636
      %v3638 = vpop.f32.mrb[0].mxu0
      %v3639 = vpop.f32.mrb[0].mxu0
      %v3640 = vadd.f32 0.0, %v3639
      %v3641 = vpop.f32.mrb[0].mxu0
      %3642 = vmatprep.mubr.bf16.mxu0 0
      %3643 = vmatmul.mubr.bf16.gmra.mrb[0].mxu0 %v3460
      %v3644 = vpop.f32.mrb[0].mxu0
      %v3645 = vadd.f32 0.0, %v3644
      %v3646 = vpop.f32.mrb[0].mxu0
      %v3647 = vpop.f32.mrb[0].mxu0
      %v3648 = vadd.f32 0.0, %v3647
      %v3649 = vpop.f32.mrb[0].mxu0
      %3650 = vmatprep.mubr.bf16.mxu0 0
      %3651 = vmatmul.mubr.bf16.gmra.mrb[0].mxu0 %v3461
      %v3652 = vpop.f32.mrb[0].mxu0
      %v3653 = vadd.f32 0.0, %v3652
      %v3654 = vpop.f32.mrb[0].mxu0
      %v3655 = vpop.f32.mrb[0].mxu0
      %v3656 = vadd.f32 0.0, %v3655
      %v3657 = vpop.f32.mrb[0].mxu0
      %3658 = vmatprep.mubr.bf16.mxu0 0
      %3659 = vmatmul.mubr.bf16.gmra.mrb[0].mxu0 %v3462
      %v3660 = vpop.f32.mrb[0].mxu0
      %v3661 = vadd.f32 0.0, %v3660
      %v3662 = vpop.f32.mrb[0].mxu0
      %v3663 = vpop.f32.mrb[0].mxu0
      %v3664 = vadd.f32 0.0, %v3663
      %v3665 = vpop.f32.mrb[0].mxu0
      %3666 = vmatprep.mubr.bf16.mxu0 0
      %3667 = vmatmul.mubr.bf16.gmra.mrb[0].mxu0 %v3463
      %v3668 = vpop.f32.mrb[0].mxu0
      %v3669 = vadd.f32 0.0, %v3668
      %v3670 = vpop.f32.mrb[0].mxu0
      %v3671 = vpop.f32.mrb[0].mxu0
      %v3672 = vadd.f32 0.0, %v3671
      %v3673 = vpop.f32.mrb[0].mxu0
      %3674 = vmatprep.mubr.bf16.mxu0 0
      %3675 = vmatmul.mubr.bf16.gmra.mrb[0].mxu0 %v3464
      %v3676 = vpop.f32.mrb[0].mxu0
      %v3677 = vadd.f32 0.0, %v3676
      %v3678 = vpop.f32.mrb[0].mxu0
      %v3679 = vpop.f32.mrb[0].mxu0
      %v3680 = vadd.f32 0.0, %v3679
      %v3681 = vpop.f32.mrb[0].mxu0
      %3682 = vmatprep.mubr.bf16.mxu0 0
      %3683 = vmatmul.mubr.bf16.gmra.mrb[0].mxu0 %v3465
      %v3684 = vpop.f32.mrb[0].mxu0
      %v3685 = vadd.f32 0.0, %v3684
      %v3686 = vpop.f32.mrb[0].mxu0
      %v3687 = vpop.f32.mrb[0].mxu0
      %v3688 = vadd.f32 0.0, %v3687
      %v3689 = vpop.f32.mrb[0].mxu0
      %3690 = vdwg.mxu0
      %v3691 = vadd.f32 %v2969, %v3565
      %v3692 = vadd.f32 %v2970, %v3568
      %v3693 = vadd.f32 %v2971, %v3573
      %v3694 = vadd.f32 %v2972, %v3576
      %v3695 = vadd.f32 %v2973, %v3581
      %v3696 = vadd.f32 %v2974, %v3584
      %v3697 = vadd.f32 %v2975, %v3589
      %v3698 = vadd.f32 %v2976, %v3592
      %v3699 = vadd.f32 %v2977, %v3597
      %v3700 = vadd.f32 %v2978, %v3600
      %v3701 = vadd.f32 %v2979, %v3605
      %v3702 = vadd.f32 %v2980, %v3608
      %v3703 = vadd.f32 %v2981, %v3613
      %v3704 = vadd.f32 %v2982, %v3616
      %v3705 = vadd.f32 %v2983, %v3621
      %v3706 = vadd.f32 %v2984, %v3624
      %v3707 = vadd.f32 %v2985, %v3629
      %v3708 = vadd.f32 %v2986, %v3632
      %v3709 = vadd.f32 %v2987, %v3637
      %v3710 = vadd.f32 %v2988, %v3640
      %v3711 = vadd.f32 %v2989, %v3645
      %v3712 = vadd.f32 %v2990, %v3648
      %v3713 = vadd.f32 %v2991, %v3653
      %v3714 = vadd.f32 %v2992, %v3656
      %v3715 = vadd.f32 %v2993, %v3661
      %v3716 = vadd.f32 %v2994, %v3664
      %v3717 = vadd.f32 %v2995, %v3669
      %v3718 = vadd.f32 %v2996, %v3672
      %v3719 = vadd.f32 %v2997, %v3677
      %v3720 = vadd.f32 %v2998, %v3680
      %v3721 = vadd.f32 %v2999, %v3685
      %v3722 = vadd.f32 %v3000, %v3688
      %s3723 = scalar_lea.vmem %s4, 256
      %v3724 = vld [vmem:[%s3723] sm:$0xf]
      %v3725 = vld [vmem:[%s3723 + $0x4] sm:$0xf]
      %v3726 = vld [vmem:[%s3723 + $0x8] sm:$0xf]
      %v3727 = vld [vmem:[%s3723 + $0xc] sm:$0xf]
      %v3728 = vld [vmem:[%s3723 + $0x10] sm:$0xf]
      %v3729 = vld [vmem:[%s3723 + $0x14] sm:$0xf]
      %v3730 = vld [vmem:[%s3723 + $0x18] sm:$0xf]
      %v3731 = vld [vmem:[%s3723 + $0x1c] sm:$0xf]
      %v3732 = vld [vmem:[%s3723 + $0x20] sm:$0xf]
      %v3733 = vld [vmem:[%s3723 + $0x24] sm:$0xf]
      %v3734 = vld [vmem:[%s3723 + $0x28] sm:$0xf]
      %v3735 = vld [vmem:[%s3723 + $0x2c] sm:$0xf]
      %v3736 = vld [vmem:[%s3723 + $0x30] sm:$0xf]
      %v3737 = vld [vmem:[%s3723 + $0x34] sm:$0xf]
      %v3738 = vld [vmem:[%s3723 + $0x38] sm:$0xf]
      %v3739 = vld [vmem:[%s3723 + $0x3c] sm:$0xf]
      %v3772 = vunpack.c.l.b16 %v3002
      %v3773 = vunpack.c.l.b16 %v3003
      %v3774 = vunpack.c.l.b16 %v3005
      %v3775 = vunpack.c.l.b16 %v3006
      %v3776 = vunpack.c.l.b16 %v3008
      %v3777 = vunpack.c.l.b16 %v3009
      %v3778 = vunpack.c.l.b16 %v3011
      %v3779 = vunpack.c.l.b16 %v3012
      %v3780 = vunpack.c.l.b16 %v3014
      %v3781 = vunpack.c.l.b16 %v3015
      %v3782 = vunpack.c.l.b16 %v3017
      %v3783 = vunpack.c.l.b16 %v3018
      %v3784 = vunpack.c.l.b16 %v3020
      %v3785 = vunpack.c.l.b16 %v3021
      %v3786 = vunpack.c.l.b16 %v3023
      %v3787 = vunpack.c.l.b16 %v3024
      %v3788 = vunpack.c.l.b16 %v3026
      %v3789 = vunpack.c.l.b16 %v3027
      %v3790 = vunpack.c.l.b16 %v3029
      %v3791 = vunpack.c.l.b16 %v3030
      %v3792 = vunpack.c.l.b16 %v3032
      %v3793 = vunpack.c.l.b16 %v3033
      %v3794 = vunpack.c.l.b16 %v3035
      %v3795 = vunpack.c.l.b16 %v3036
      %v3796 = vunpack.c.l.b16 %v3038
      %v3797 = vunpack.c.l.b16 %v3039
      %v3798 = vunpack.c.l.b16 %v3041
      %v3799 = vunpack.c.l.b16 %v3042
      %v3800 = vunpack.c.l.b16 %v3044
      %v3801 = vunpack.c.l.b16 %v3045
      %v3802 = vunpack.c.l.b16 %v3047
      %v3803 = vunpack.c.l.b16 %v3048
      %v3804 = vpack.c.b16 %v3773, %v3772
      %v3805 = vpack.c.b16 %v3775, %v3774
      %v3806 = vpack.c.b16 %v3777, %v3776
      %v3807 = vpack.c.b16 %v3779, %v3778
      %v3808 = vpack.c.b16 %v3781, %v3780
      %v3809 = vpack.c.b16 %v3783, %v3782
      %v3810 = vpack.c.b16 %v3785, %v3784
      %v3811 = vpack.c.b16 %v3787, %v3786
      %v3812 = vpack.c.b16 %v3789, %v3788
      %v3813 = vpack.c.b16 %v3791, %v3790
      %v3814 = vpack.c.b16 %v3793, %v3792
      %v3815 = vpack.c.b16 %v3795, %v3794
      %v3816 = vpack.c.b16 %v3797, %v3796
      %v3817 = vpack.c.b16 %v3799, %v3798
      %v3818 = vpack.c.b16 %v3801, %v3800
      %v3819 = vpack.c.b16 %v3803, %v3802
      %v3852 = vunpack.c.l.b16 %v3724
      %v3853 = vunpack.c.l.b16 %v3725
      %v3854 = vunpack.c.l.b16 %v3726
      %v3855 = vunpack.c.l.b16 %v3727
      %v3856 = vunpack.c.l.b16 %v3728
      %v3857 = vunpack.c.l.b16 %v3729
      %v3858 = vunpack.c.l.b16 %v3730
      %v3859 = vunpack.c.l.b16 %v3731
      %v3860 = vunpack.c.l.b16 %v3732
      %v3861 = vunpack.c.l.b16 %v3733
      %v3862 = vunpack.c.l.b16 %v3734
      %v3863 = vunpack.c.l.b16 %v3735
      %v3864 = vunpack.c.l.b16 %v3736
      %v3865 = vunpack.c.l.b16 %v3737
      %v3866 = vunpack.c.l.b16 %v3738
      %v3867 = vunpack.c.l.b16 %v3739
      %v3868 = vpack.c.b16 %v3853, %v3852
      %v3869 = vpack.c.b16 %v3855, %v3854
      %v3870 = vpack.c.b16 %v3857, %v3856
      %v3871 = vpack.c.b16 %v3859, %v3858
      %v3872 = vpack.c.b16 %v3861, %v3860
      %v3873 = vpack.c.b16 %v3863, %v3862
      %v3874 = vpack.c.b16 %v3865, %v3864
      %v3875 = vpack.c.b16 %v3867, %v3866
      %3884 = vmatprep.subr.bf16.mxu0 0
      %3885 = vmatpush1.bf16.msra.mxu0 %v3868
      %3886 = vmatprep.subr.bf16.mxu0 0
      %3887 = vmatpush1.bf16.msra.mxu0 %v3869
      %3888 = vmatprep.subr.bf16.mxu0 0
      %3889 = vmatpush1.bf16.msra.mxu0 %v3870
      %3890 = vmatprep.subr.bf16.mxu0 0
      %3891 = vmatpush1.bf16.msra.mxu0 %v3871
      %3892 = vmatprep.subr.bf16.mxu0 0
      %3893 = vmatpush1.bf16.msra.mxu0 %v3872
      %3894 = vmatprep.subr.bf16.mxu0 0
      %3895 = vmatpush1.bf16.msra.mxu0 %v3873
      %3896 = vmatprep.subr.bf16.mxu0 0
      %3897 = vmatpush1.bf16.msra.mxu0 %v3874
      %3898 = vmatprep.subr.bf16.mxu0 0
      %3899 = vmatpush1.bf16.msra.mxu0 %v3875
      %3900 = vmatprep.subr.bf16.mxu0 0
      %3901 = vmatpush1.bf16.msra.mxu0 0
      %3902 = vmatprep.subr.bf16.mxu0 0
      %3903 = vmatpush1.bf16.msra.mxu0 0
      %3904 = vmatprep.subr.bf16.mxu0 0
      %3905 = vmatpush1.bf16.msra.mxu0 0
      %3906 = vmatprep.subr.bf16.mxu0 0
      %3907 = vmatpush1.bf16.msra.mxu0 0
      %3908 = vmatprep.subr.bf16.mxu0 0
      %3909 = vmatpush1.bf16.msra.mxu0 0
      %3910 = vmatprep.subr.bf16.mxu0 0
      %3911 = vmatpush1.bf16.msra.mxu0 0
      %3912 = vmatprep.subr.bf16.mxu0 0
      %3913 = vmatpush1.bf16.msra.mxu0 0
      %3914 = vmatprep.subr.bf16.mxu0 0
      %3915 = vmatpush1.bf16.msra.mxu0 0
      %3916 = vmatprep.mubr.bf16.mxu0 0
      %3917 = vmatmul.mubr.bf16.gmra.mrb[0].mxu0 %v3804
      %v3918 = vpop.f32.mrb[0].mxu0
      %v3919 = vadd.f32 0.0, %v3918
      %v3920 = vpop.f32.mrb[0].mxu0
      %v3921 = vpop.f32.mrb[0].mxu0
      %v3922 = vadd.f32 0.0, %v3921
      %v3923 = vpop.f32.mrb[0].mxu0
      %3924 = vmatprep.mubr.bf16.mxu0 0
      %3925 = vmatmul.mubr.bf16.gmra.mrb[0].mxu0 %v3805
      %v3926 = vpop.f32.mrb[0].mxu0
      %v3927 = vadd.f32 0.0, %v3926
      %v3928 = vpop.f32.mrb[0].mxu0
      %v3929 = vpop.f32.mrb[0].mxu0
      %v3930 = vadd.f32 0.0, %v3929
      %v3931 = vpop.f32.mrb[0].mxu0
      %3932 = vmatprep.mubr.bf16.mxu0 0
      %3933 = vmatmul.mubr.bf16.gmra.mrb[0].mxu0 %v3806
      %v3934 = vpop.f32.mrb[0].mxu0
      %v3935 = vadd.f32 0.0, %v3934
      %v3936 = vpop.f32.mrb[0].mxu0
      %v3937 = vpop.f32.mrb[0].mxu0
      %v3938 = vadd.f32 0.0, %v3937
      %v3939 = vpop.f32.mrb[0].mxu0
      %3940 = vmatprep.mubr.bf16.mxu0 0
      %3941 = vmatmul.mubr.bf16.gmra.mrb[0].mxu0 %v3807
      %v3942 = vpop.f32.mrb[0].mxu0
      %v3943 = vadd.f32 0.0, %v3942
      %v3944 = vpop.f32.mrb[0].mxu0
      %v3945 = vpop.f32.mrb[0].mxu0
      %v3946 = vadd.f32 0.0, %v3945
      %v3947 = vpop.f32.mrb[0].mxu0
      %3948 = vmatprep.mubr.bf16.mxu0 0
      %3949 = vmatmul.mubr.bf16.gmra.mrb[0].mxu0 %v3808
      %v3950 = vpop.f32.mrb[0].mxu0
      %v3951 = vadd.f32 0.0, %v3950
      %v3952 = vpop.f32.mrb[0].mxu0
      %v3953 = vpop.f32.mrb[0].mxu0
      %v3954 = vadd.f32 0.0, %v3953
      %v3955 = vpop.f32.mrb[0].mxu0
      %3956 = vmatprep.mubr.bf16.mxu0 0
      %3957 = vmatmul.mubr.bf16.gmra.mrb[0].mxu0 %v3809
      %v3958 = vpop.f32.mrb[0].mxu0
      %v3959 = vadd.f32 0.0, %v3958
      %v3960 = vpop.f32.mrb[0].mxu0
      %v3961 = vpop.f32.mrb[0].mxu0
      %v3962 = vadd.f32 0.0, %v3961
      %v3963 = vpop.f32.mrb[0].mxu0
      %3964 = vmatprep.mubr.bf16.mxu0 0
      %3965 = vmatmul.mubr.bf16.gmra.mrb[0].mxu0 %v3810
      %v3966 = vpop.f32.mrb[0].mxu0
      %v3967 = vadd.f32 0.0, %v3966
      %v3968 = vpop.f32.mrb[0].mxu0
      %v3969 = vpop.f32.mrb[0].mxu0
      %v3970 = vadd.f32 0.0, %v3969
      %v3971 = vpop.f32.mrb[0].mxu0
      %3972 = vmatprep.mubr.bf16.mxu0 0
      %3973 = vmatmul.mubr.bf16.gmra.mrb[0].mxu0 %v3811
      %v3974 = vpop.f32.mrb[0].mxu0
      %v3975 = vadd.f32 0.0, %v3974
      %v3976 = vpop.f32.mrb[0].mxu0
      %v3977 = vpop.f32.mrb[0].mxu0
      %v3978 = vadd.f32 0.0, %v3977
      %v3979 = vpop.f32.mrb[0].mxu0
      %3980 = vmatprep.mubr.bf16.mxu0 0
      %3981 = vmatmul.mubr.bf16.gmra.mrb[0].mxu0 %v3812
      %v3982 = vpop.f32.mrb[0].mxu0
      %v3983 = vadd.f32 0.0, %v3982
      %v3984 = vpop.f32.mrb[0].mxu0
      %v3985 = vpop.f32.mrb[0].mxu0
      %v3986 = vadd.f32 0.0, %v3985
      %v3987 = vpop.f32.mrb[0].mxu0
      %3988 = vmatprep.mubr.bf16.mxu0 0
      %3989 = vmatmul.mubr.bf16.gmra.mrb[0].mxu0 %v3813
      %v3990 = vpop.f32.mrb[0].mxu0
      %v3991 = vadd.f32 0.0, %v3990
      %v3992 = vpop.f32.mrb[0].mxu0
      %v3993 = vpop.f32.mrb[0].mxu0
      %v3994 = vadd.f32 0.0, %v3993
      %v3995 = vpop.f32.mrb[0].mxu0
      %3996 = vmatprep.mubr.bf16.mxu0 0
      %3997 = vmatmul.mubr.bf16.gmra.mrb[0].mxu0 %v3814
      %v3998 = vpop.f32.mrb[0].mxu0
      %v3999 = vadd.f32 0.0, %v3998
      %v4000 = vpop.f32.mrb[0].mxu0
      %v4001 = vpop.f32.mrb[0].mxu0
      %v4002 = vadd.f32 0.0, %v4001
      %v4003 = vpop.f32.mrb[0].mxu0
      %4004 = vmatprep.mubr.bf16.mxu0 0
      %4005 = vmatmul.mubr.bf16.gmra.mrb[0].mxu0 %v3815
      %v4006 = vpop.f32.mrb[0].mxu0
      %v4007 = vadd.f32 0.0, %v4006
      %v4008 = vpop.f32.mrb[0].mxu0
      %v4009 = vpop.f32.mrb[0].mxu0
      %v4010 = vadd.f32 0.0, %v4009
      %v4011 = vpop.f32.mrb[0].mxu0
      %4012 = vmatprep.mubr.bf16.mxu0 0
      %4013 = vmatmul.mubr.bf16.gmra.mrb[0].mxu0 %v3816
      %v4014 = vpop.f32.mrb[0].mxu0
      %v4015 = vadd.f32 0.0, %v4014
      %v4016 = vpop.f32.mrb[0].mxu0
      %v4017 = vpop.f32.mrb[0].mxu0
      %v4018 = vadd.f32 0.0, %v4017
      %v4019 = vpop.f32.mrb[0].mxu0
      %4020 = vmatprep.mubr.bf16.mxu0 0
      %4021 = vmatmul.mubr.bf16.gmra.mrb[0].mxu0 %v3817
      %v4022 = vpop.f32.mrb[0].mxu0
      %v4023 = vadd.f32 0.0, %v4022
      %v4024 = vpop.f32.mrb[0].mxu0
      %v4025 = vpop.f32.mrb[0].mxu0
      %v4026 = vadd.f32 0.0, %v4025
      %v4027 = vpop.f32.mrb[0].mxu0
      %4028 = vmatprep.mubr.bf16.mxu0 0
      %4029 = vmatmul.mubr.bf16.gmra.mrb[0].mxu0 %v3818
      %v4030 = vpop.f32.mrb[0].mxu0
      %v4031 = vadd.f32 0.0, %v4030
      %v4032 = vpop.f32.mrb[0].mxu0
      %v4033 = vpop.f32.mrb[0].mxu0
      %v4034 = vadd.f32 0.0, %v4033
      %v4035 = vpop.f32.mrb[0].mxu0
      %4036 = vmatprep.mubr.bf16.mxu0 0
      %4037 = vmatmul.mubr.bf16.gmra.mrb[0].mxu0 %v3819
      %v4038 = vpop.f32.mrb[0].mxu0
      %v4039 = vadd.f32 0.0, %v4038
      %v4040 = vpop.f32.mrb[0].mxu0
      %v4041 = vpop.f32.mrb[0].mxu0
      %v4042 = vadd.f32 0.0, %v4041
      %v4043 = vpop.f32.mrb[0].mxu0
      %4044 = vdwg.mxu0
      %v4045 = vadd.f32 %v3691, %v3919
      %v4046 = vadd.f32 %v3692, %v3922
      %v4047 = vadd.f32 %v3693, %v3927
      %v4048 = vadd.f32 %v3694, %v3930
      %v4049 = vadd.f32 %v3695, %v3935
      %v4050 = vadd.f32 %v3696, %v3938
      %v4051 = vadd.f32 %v3697, %v3943
      %v4052 = vadd.f32 %v3698, %v3946
      %v4053 = vadd.f32 %v3699, %v3951
      %v4054 = vadd.f32 %v3700, %v3954
      %v4055 = vadd.f32 %v3701, %v3959
      %v4056 = vadd.f32 %v3702, %v3962
      %v4057 = vadd.f32 %v3703, %v3967
      %v4058 = vadd.f32 %v3704, %v3970
      %v4059 = vadd.f32 %v3705, %v3975
      %v4060 = vadd.f32 %v3706, %v3978
      %v4061 = vadd.f32 %v3707, %v3983
      %v4062 = vadd.f32 %v3708, %v3986
      %v4063 = vadd.f32 %v3709, %v3991
      %v4064 = vadd.f32 %v3710, %v3994
      %v4065 = vadd.f32 %v3711, %v3999
      %v4066 = vadd.f32 %v3712, %v4002
      %v4067 = vadd.f32 %v3713, %v4007
      %v4068 = vadd.f32 %v3714, %v4010
      %v4069 = vadd.f32 %v3715, %v4015
      %v4070 = vadd.f32 %v3716, %v4018
      %v4071 = vadd.f32 %v3717, %v4023
      %v4072 = vadd.f32 %v3718, %v4026
      %v4073 = vadd.f32 %v3719, %v4031
      %v4074 = vadd.f32 %v3720, %v4034
      %v4075 = vadd.f32 %v3721, %v4039
      %v4076 = vadd.f32 %v3722, %v4042
      %v4077 = vld [vmem:[%s974 + $0x8] sm:$0xf]
      %v4078 = vld [vmem:[%s974 + $0xc] sm:$0xf]
      %v4079 = vld [vmem:[%s974 + $0x10] sm:$0x1]
      %v4080 = vld [vmem:[%s974 + $0x1c] sm:$0xf]
      %v4081 = vld [vmem:[%s974 + $0x20] sm:$0xf]
      %v4082 = vld [vmem:[%s974 + $0x24] sm:$0x1]
      %v4083 = vld [vmem:[%s974 + $0x30] sm:$0xf]
      %v4084 = vld [vmem:[%s974 + $0x34] sm:$0xf]
      %v4085 = vld [vmem:[%s974 + $0x38] sm:$0x1]
      %v4086 = vld [vmem:[%s974 + $0x44] sm:$0xf]
      %v4087 = vld [vmem:[%s974 + $0x48] sm:$0xf]
      %v4088 = vld [vmem:[%s974 + $0x4c] sm:$0x1]
      %v4089 = vld [vmem:[%s974 + $0x58] sm:$0xf]
      %v4090 = vld [vmem:[%s974 + $0x5c] sm:$0xf]
      %v4091 = vld [vmem:[%s974 + $0x60] sm:$0x1]
      %v4092 = vld [vmem:[%s974 + $0x6c] sm:$0xf]
      %v4093 = vld [vmem:[%s974 + $0x70] sm:$0xf]
      %v4094 = vld [vmem:[%s974 + $0x74] sm:$0x1]
      %v4095 = vld [vmem:[%s974 + $0x80] sm:$0xf]
      %v4096 = vld [vmem:[%s974 + $0x84] sm:$0xf]
      %v4097 = vld [vmem:[%s974 + $0x88] sm:$0x1]
      %v4098 = vld [vmem:[%s974 + $0x94] sm:$0xf]
      %v4099 = vld [vmem:[%s974 + $0x98] sm:$0xf]
      %v4100 = vld [vmem:[%s974 + $0x9c] sm:$0x1]
      %v4101 = vld [vmem:[%s974 + $0xa8] sm:$0xf]
      %v4102 = vld [vmem:[%s974 + $0xac] sm:$0xf]
      %v4103 = vld [vmem:[%s974 + $0xb0] sm:$0x1]
      %v4104 = vld [vmem:[%s974 + $0xbc] sm:$0xf]
      %v4105 = vld [vmem:[%s974 + $0xc0] sm:$0xf]
      %v4106 = vld [vmem:[%s974 + $0xc4] sm:$0x1]
      %v4107 = vld [vmem:[%s974 + $0xd0] sm:$0xf]
      %v4108 = vld [vmem:[%s974 + $0xd4] sm:$0xf]
      %v4109 = vld [vmem:[%s974 + $0xd8] sm:$0x1]
      %v4110 = vld [vmem:[%s974 + $0xe4] sm:$0xf]
      %v4111 = vld [vmem:[%s974 + $0xe8] sm:$0xf]
      %v4112 = vld [vmem:[%s974 + $0xec] sm:$0x1]
      %v4113 = vld [vmem:[%s974 + $0xf8] sm:$0xf]
      %v4114 = vld [vmem:[%s974 + $0xfc] sm:$0xf]
      %v4115 = vld [vmem:[%s974 + $0x100] sm:$0x1]
      %v4116 = vld [vmem:[%s974 + $0x10c] sm:$0xf]
      %v4117 = vld [vmem:[%s974 + $0x110] sm:$0xf]
      %v4118 = vld [vmem:[%s974 + $0x114] sm:$0x1]
      %v4119 = vld [vmem:[%s974 + $0x120] sm:$0xf]
      %v4120 = vld [vmem:[%s974 + $0x124] sm:$0xf]
      %v4121 = vld [vmem:[%s974 + $0x128] sm:$0x1]
      %v4122 = vld [vmem:[%s974 + $0x134] sm:$0xf]
      %v4123 = vld [vmem:[%s974 + $0x138] sm:$0xf]
      %v4124 = vld [vmem:[%s974 + $0x13c] sm:$0x1]
      %v4126 = vshrl.u32 %v4077, 16
      %v4128 = vrot.slane %v4126, 4
      %v4129 = vshll.u32 %v4077, 16
      %v4131 = vrot.slane %v4129, 5
      %v4132 = vor.u32 %v4128, %v4131
      %v4133 = vrot.slane %v4132, 4
      %v4135 = vshll.u32 %v4078, 16
      %v4137 = vrot.slane %v4135, 5
      %v4138 = vsel %vm2294, %v4133, %v4137
      %v4139 = vshrl.u32 %v4078, 16
      %v4141 = vrot.slane %v4139, 4
      %v4142 = vor.u32 %v4141, %v4137
      %v4143 = vrot.slane %v4142, 4
      %v4145 = vshll.u32 %v4079, 16
      %v4147 = vrot.slane %v4145, 5
      %v4148 = vsel %vm2294, %v4143, %v4147
      %v4150 = vshrl.u32 %v4080, 16
      %v4152 = vrot.slane %v4150, 4
      %v4153 = vshll.u32 %v4080, 16
      %v4155 = vrot.slane %v4153, 5
      %v4156 = vor.u32 %v4152, %v4155
      %v4157 = vrot.slane %v4156, 4
      %v4159 = vshll.u32 %v4081, 16
      %v4161 = vrot.slane %v4159, 5
      %v4162 = vsel %vm2294, %v4157, %v4161
      %v4163 = vshrl.u32 %v4081, 16
      %v4165 = vrot.slane %v4163, 4
      %v4166 = vor.u32 %v4165, %v4161
      %v4167 = vrot.slane %v4166, 4
      %v4169 = vshll.u32 %v4082, 16
      %v4171 = vrot.slane %v4169, 5
      %v4172 = vsel %vm2294, %v4167, %v4171
      %v4174 = vshrl.u32 %v4083, 16
      %v4176 = vrot.slane %v4174, 4
      %v4177 = vshll.u32 %v4083, 16
      %v4179 = vrot.slane %v4177, 5
      %v4180 = vor.u32 %v4176, %v4179
      %v4181 = vrot.slane %v4180, 4
      %v4183 = vshll.u32 %v4084, 16
      %v4185 = vrot.slane %v4183, 5
      %v4186 = vsel %vm2294, %v4181, %v4185
      %v4187 = vshrl.u32 %v4084, 16
      %v4189 = vrot.slane %v4187, 4
      %v4190 = vor.u32 %v4189, %v4185
      %v4191 = vrot.slane %v4190, 4
      %v4193 = vshll.u32 %v4085, 16
      %v4195 = vrot.slane %v4193, 5
      %v4196 = vsel %vm2294, %v4191, %v4195
      %v4198 = vshrl.u32 %v4086, 16
      %v4200 = vrot.slane %v4198, 4
      %v4201 = vshll.u32 %v4086, 16
      %v4203 = vrot.slane %v4201, 5
      %v4204 = vor.u32 %v4200, %v4203
      %v4205 = vrot.slane %v4204, 4
      %v4207 = vshll.u32 %v4087, 16
      %v4209 = vrot.slane %v4207, 5
      %v4210 = vsel %vm2294, %v4205, %v4209
      %v4211 = vshrl.u32 %v4087, 16
      %v4213 = vrot.slane %v4211, 4
      %v4214 = vor.u32 %v4213, %v4209
      %v4215 = vrot.slane %v4214, 4
      %v4217 = vshll.u32 %v4088, 16
      %v4219 = vrot.slane %v4217, 5
      %v4220 = vsel %vm2294, %v4215, %v4219
      %v4222 = vshrl.u32 %v4089, 16
      %v4224 = vrot.slane %v4222, 4
      %v4225 = vshll.u32 %v4089, 16
      %v4227 = vrot.slane %v4225, 5
      %v4228 = vor.u32 %v4224, %v4227
      %v4229 = vrot.slane %v4228, 4
      %v4231 = vshll.u32 %v4090, 16
      %v4233 = vrot.slane %v4231, 5
      %v4234 = vsel %vm2294, %v4229, %v4233
      %v4235 = vshrl.u32 %v4090, 16
      %v4237 = vrot.slane %v4235, 4
      %v4238 = vor.u32 %v4237, %v4233
      %v4239 = vrot.slane %v4238, 4
      %v4241 = vshll.u32 %v4091, 16
      %v4243 = vrot.slane %v4241, 5
      %v4244 = vsel %vm2294, %v4239, %v4243
      %v4246 = vshrl.u32 %v4092, 16
      %v4248 = vrot.slane %v4246, 4
      %v4249 = vshll.u32 %v4092, 16
      %v4251 = vrot.slane %v4249, 5
      %v4252 = vor.u32 %v4248, %v4251
      %v4253 = vrot.slane %v4252, 4
      %v4255 = vshll.u32 %v4093, 16
      %v4257 = vrot.slane %v4255, 5
      %v4258 = vsel %vm2294, %v4253, %v4257
      %v4259 = vshrl.u32 %v4093, 16
      %v4261 = vrot.slane %v4259, 4
      %v4262 = vor.u32 %v4261, %v4257
      %v4263 = vrot.slane %v4262, 4
      %v4265 = vshll.u32 %v4094, 16
      %v4267 = vrot.slane %v4265, 5
      %v4268 = vsel %vm2294, %v4263, %v4267
      %v4270 = vshrl.u32 %v4095, 16
      %v4272 = vrot.slane %v4270, 4
      %v4273 = vshll.u32 %v4095, 16
      %v4275 = vrot.slane %v4273, 5
      %v4276 = vor.u32 %v4272, %v4275
      %v4277 = vrot.slane %v4276, 4
      %v4279 = vshll.u32 %v4096, 16
      %v4281 = vrot.slane %v4279, 5
      %v4282 = vsel %vm2294, %v4277, %v4281
      %v4283 = vshrl.u32 %v4096, 16
      %v4285 = vrot.slane %v4283, 4
      %v4286 = vor.u32 %v4285, %v4281
      %v4287 = vrot.slane %v4286, 4
      %v4289 = vshll.u32 %v4097, 16
      %v4291 = vrot.slane %v4289, 5
      %v4292 = vsel %vm2294, %v4287, %v4291
      %v4294 = vshrl.u32 %v4098, 16
      %v4296 = vrot.slane %v4294, 4
      %v4297 = vshll.u32 %v4098, 16
      %v4299 = vrot.slane %v4297, 5
      %v4300 = vor.u32 %v4296, %v4299
      %v4301 = vrot.slane %v4300, 4
      %v4303 = vshll.u32 %v4099, 16
      %v4305 = vrot.slane %v4303, 5
      %v4306 = vsel %vm2294, %v4301, %v4305
      %v4307 = vshrl.u32 %v4099, 16
      %v4309 = vrot.slane %v4307, 4
      %v4310 = vor.u32 %v4309, %v4305
      %v4311 = vrot.slane %v4310, 4
      %v4313 = vshll.u32 %v4100, 16
      %v4315 = vrot.slane %v4313, 5
      %v4316 = vsel %vm2294, %v4311, %v4315
      %v4318 = vshrl.u32 %v4101, 16
      %v4320 = vrot.slane %v4318, 4
      %v4321 = vshll.u32 %v4101, 16
      %v4323 = vrot.slane %v4321, 5
      %v4324 = vor.u32 %v4320, %v4323
      %v4325 = vrot.slane %v4324, 4
      %v4327 = vshll.u32 %v4102, 16
      %v4329 = vrot.slane %v4327, 5
      %v4330 = vsel %vm2294, %v4325, %v4329
      %v4331 = vshrl.u32 %v4102, 16
      %v4333 = vrot.slane %v4331, 4
      %v4334 = vor.u32 %v4333, %v4329
      %v4335 = vrot.slane %v4334, 4
      %v4337 = vshll.u32 %v4103, 16
      %v4339 = vrot.slane %v4337, 5
      %v4340 = vsel %vm2294, %v4335, %v4339
      %v4342 = vshrl.u32 %v4104, 16
      %v4344 = vrot.slane %v4342, 4
      %v4345 = vshll.u32 %v4104, 16
      %v4347 = vrot.slane %v4345, 5
      %v4348 = vor.u32 %v4344, %v4347
      %v4349 = vrot.slane %v4348, 4
      %v4351 = vshll.u32 %v4105, 16
      %v4353 = vrot.slane %v4351, 5
      %v4354 = vsel %vm2294, %v4349, %v4353
      %v4355 = vshrl.u32 %v4105, 16
      %v4357 = vrot.slane %v4355, 4
      %v4358 = vor.u32 %v4357, %v4353
      %v4359 = vrot.slane %v4358, 4
      %v4361 = vshll.u32 %v4106, 16
      %v4363 = vrot.slane %v4361, 5
      %v4364 = vsel %vm2294, %v4359, %v4363
      %v4366 = vshrl.u32 %v4107, 16
      %v4368 = vrot.slane %v4366, 4
      %v4369 = vshll.u32 %v4107, 16
      %v4371 = vrot.slane %v4369, 5
      %v4372 = vor.u32 %v4368, %v4371
      %v4373 = vrot.slane %v4372, 4
      %v4375 = vshll.u32 %v4108, 16
      %v4377 = vrot.slane %v4375, 5
      %v4378 = vsel %vm2294, %v4373, %v4377
      %v4379 = vshrl.u32 %v4108, 16
      %v4381 = vrot.slane %v4379, 4
      %v4382 = vor.u32 %v4381, %v4377
      %v4383 = vrot.slane %v4382, 4
      %v4385 = vshll.u32 %v4109, 16
      %v4387 = vrot.slane %v4385, 5
      %v4388 = vsel %vm2294, %v4383, %v4387
      %v4390 = vshrl.u32 %v4110, 16
      %v4392 = vrot.slane %v4390, 4
      %v4393 = vshll.u32 %v4110, 16
      %v4395 = vrot.slane %v4393, 5
      %v4396 = vor.u32 %v4392, %v4395
      %v4397 = vrot.slane %v4396, 4
      %v4399 = vshll.u32 %v4111, 16
      %v4401 = vrot.slane %v4399, 5
      %v4402 = vsel %vm2294, %v4397, %v4401
      %v4403 = vshrl.u32 %v4111, 16
      %v4405 = vrot.slane %v4403, 4
      %v4406 = vor.u32 %v4405, %v4401
      %v4407 = vrot.slane %v4406, 4
      %v4409 = vshll.u32 %v4112, 16
      %v4411 = vrot.slane %v4409, 5
      %v4412 = vsel %vm2294, %v4407, %v4411
      %v4414 = vshrl.u32 %v4113, 16
      %v4416 = vrot.slane %v4414, 4
      %v4417 = vshll.u32 %v4113, 16
      %v4419 = vrot.slane %v4417, 5
      %v4420 = vor.u32 %v4416, %v4419
      %v4421 = vrot.slane %v4420, 4
      %v4423 = vshll.u32 %v4114, 16
      %v4425 = vrot.slane %v4423, 5
      %v4426 = vsel %vm2294, %v4421, %v4425
      %v4427 = vshrl.u32 %v4114, 16
      %v4429 = vrot.slane %v4427, 4
      %v4430 = vor.u32 %v4429, %v4425
      %v4431 = vrot.slane %v4430, 4
      %v4433 = vshll.u32 %v4115, 16
      %v4435 = vrot.slane %v4433, 5
      %v4436 = vsel %vm2294, %v4431, %v4435
      %v4438 = vshrl.u32 %v4116, 16
      %v4440 = vrot.slane %v4438, 4
      %v4441 = vshll.u32 %v4116, 16
      %v4443 = vrot.slane %v4441, 5
      %v4444 = vor.u32 %v4440, %v4443
      %v4445 = vrot.slane %v4444, 4
      %v4447 = vshll.u32 %v4117, 16
      %v4449 = vrot.slane %v4447, 5
      %v4450 = vsel %vm2294, %v4445, %v4449
      %v4451 = vshrl.u32 %v4117, 16
      %v4453 = vrot.slane %v4451, 4
      %v4454 = vor.u32 %v4453, %v4449
      %v4455 = vrot.slane %v4454, 4
      %v4457 = vshll.u32 %v4118, 16
      %v4459 = vrot.slane %v4457, 5
      %v4460 = vsel %vm2294, %v4455, %v4459
      %v4462 = vshrl.u32 %v4119, 16
      %v4464 = vrot.slane %v4462, 4
      %v4465 = vshll.u32 %v4119, 16
      %v4467 = vrot.slane %v4465, 5
      %v4468 = vor.u32 %v4464, %v4467
      %v4469 = vrot.slane %v4468, 4
      %v4471 = vshll.u32 %v4120, 16
      %v4473 = vrot.slane %v4471, 5
      %v4474 = vsel %vm2294, %v4469, %v4473
      %v4475 = vshrl.u32 %v4120, 16
      %v4477 = vrot.slane %v4475, 4
      %v4478 = vor.u32 %v4477, %v4473
      %v4479 = vrot.slane %v4478, 4
      %v4481 = vshll.u32 %v4121, 16
      %v4483 = vrot.slane %v4481, 5
      %v4484 = vsel %vm2294, %v4479, %v4483
      %v4486 = vshrl.u32 %v4122, 16
      %v4488 = vrot.slane %v4486, 4
      %v4489 = vshll.u32 %v4122, 16
      %v4491 = vrot.slane %v4489, 5
      %v4492 = vor.u32 %v4488, %v4491
      %v4493 = vrot.slane %v4492, 4
      %v4495 = vshll.u32 %v4123, 16
      %v4497 = vrot.slane %v4495, 5
      %v4498 = vsel %vm2294, %v4493, %v4497
      %v4499 = vshrl.u32 %v4123, 16
      %v4501 = vrot.slane %v4499, 4
      %v4502 = vor.u32 %v4501, %v4497
      %v4503 = vrot.slane %v4502, 4
      %v4505 = vshll.u32 %v4124, 16
      %v4507 = vrot.slane %v4505, 5
      %v4508 = vsel %vm2294, %v4503, %v4507
      %s4509 = scalar_lea.vmem %s4, 320
      %v4510 = vld [vmem:[%s4509] sm:$0xf]
      %v4511 = vld [vmem:[%s4509 + $0x4] sm:$0xf]
      %v4512 = vld [vmem:[%s4509 + $0x8] sm:$0xf]
      %v4513 = vld [vmem:[%s4509 + $0xc] sm:$0xf]
      %v4514 = vld [vmem:[%s4509 + $0x10] sm:$0xf]
      %v4515 = vld [vmem:[%s4509 + $0x14] sm:$0xf]
      %v4516 = vld [vmem:[%s4509 + $0x18] sm:$0xf]
      %v4517 = vld [vmem:[%s4509 + $0x1c] sm:$0xf]
      %v4518 = vld [vmem:[%s4509 + $0x20] sm:$0xf]
      %v4519 = vld [vmem:[%s4509 + $0x24] sm:$0xf]
      %v4520 = vld [vmem:[%s4509 + $0x28] sm:$0xf]
      %v4521 = vld [vmem:[%s4509 + $0x2c] sm:$0xf]
      %v4522 = vld [vmem:[%s4509 + $0x30] sm:$0xf]
      %v4523 = vld [vmem:[%s4509 + $0x34] sm:$0xf]
      %v4524 = vld [vmem:[%s4509 + $0x38] sm:$0xf]
      %v4525 = vld [vmem:[%s4509 + $0x3c] sm:$0xf]
      %v4526 = vunpack.c.l.b16 %v4138
      %v4527 = vunpack.c.l.b16 %v4148
      %v4528 = vunpack.c.l.b16 %v4162
      %v4529 = vunpack.c.l.b16 %v4172
      %v4530 = vunpack.c.l.b16 %v4186
      %v4531 = vunpack.c.l.b16 %v4196
      %v4532 = vunpack.c.l.b16 %v4210
      %v4533 = vunpack.c.l.b16 %v4220
      %v4534 = vunpack.c.l.b16 %v4234
      %v4535 = vunpack.c.l.b16 %v4244
      %v4536 = vunpack.c.l.b16 %v4258
      %v4537 = vunpack.c.l.b16 %v4268
      %v4538 = vunpack.c.l.b16 %v4282
      %v4539 = vunpack.c.l.b16 %v4292
      %v4540 = vunpack.c.l.b16 %v4306
      %v4541 = vunpack.c.l.b16 %v4316
      %v4542 = vunpack.c.l.b16 %v4330
      %v4543 = vunpack.c.l.b16 %v4340
      %v4544 = vunpack.c.l.b16 %v4354
      %v4545 = vunpack.c.l.b16 %v4364
      %v4546 = vunpack.c.l.b16 %v4378
      %v4547 = vunpack.c.l.b16 %v4388
      %v4548 = vunpack.c.l.b16 %v4402
      %v4549 = vunpack.c.l.b16 %v4412
      %v4550 = vunpack.c.l.b16 %v4426
      %v4551 = vunpack.c.l.b16 %v4436
      %v4552 = vunpack.c.l.b16 %v4450
      %v4553 = vunpack.c.l.b16 %v4460
      %v4554 = vunpack.c.l.b16 %v4474
      %v4555 = vunpack.c.l.b16 %v4484
      %v4556 = vunpack.c.l.b16 %v4498
      %v4557 = vunpack.c.l.b16 %v4508
      %v4558 = vpack.c.b16 %v4527, %v4526
      %v4559 = vpack.c.b16 %v4529, %v4528
      %v4560 = vpack.c.b16 %v4531, %v4530
      %v4561 = vpack.c.b16 %v4533, %v4532
      %v4562 = vpack.c.b16 %v4535, %v4534
      %v4563 = vpack.c.b16 %v4537, %v4536
      %v4564 = vpack.c.b16 %v4539, %v4538
      %v4565 = vpack.c.b16 %v4541, %v4540
      %v4566 = vpack.c.b16 %v4543, %v4542
      %v4567 = vpack.c.b16 %v4545, %v4544
      %v4568 = vpack.c.b16 %v4547, %v4546
      %v4569 = vpack.c.b16 %v4549, %v4548
      %v4570 = vpack.c.b16 %v4551, %v4550
      %v4571 = vpack.c.b16 %v4553, %v4552
      %v4572 = vpack.c.b16 %v4555, %v4554
      %v4573 = vpack.c.b16 %v4557, %v4556
      %v4606 = vunpack.c.l.b16 %v4510
      %v4607 = vunpack.c.l.b16 %v4511
      %v4608 = vunpack.c.l.b16 %v4512
      %v4609 = vunpack.c.l.b16 %v4513
      %v4610 = vunpack.c.l.b16 %v4514
      %v4611 = vunpack.c.l.b16 %v4515
      %v4612 = vunpack.c.l.b16 %v4516
      %v4613 = vunpack.c.l.b16 %v4517
      %v4614 = vunpack.c.l.b16 %v4518
      %v4615 = vunpack.c.l.b16 %v4519
      %v4616 = vunpack.c.l.b16 %v4520
      %v4617 = vunpack.c.l.b16 %v4521
      %v4618 = vunpack.c.l.b16 %v4522
      %v4619 = vunpack.c.l.b16 %v4523
      %v4620 = vunpack.c.l.b16 %v4524
      %v4621 = vunpack.c.l.b16 %v4525
      %v4622 = vpack.c.b16 %v4607, %v4606
      %v4623 = vpack.c.b16 %v4609, %v4608
      %v4624 = vpack.c.b16 %v4611, %v4610
      %v4625 = vpack.c.b16 %v4613, %v4612
      %v4626 = vpack.c.b16 %v4615, %v4614
      %v4627 = vpack.c.b16 %v4617, %v4616
      %v4628 = vpack.c.b16 %v4619, %v4618
      %v4629 = vpack.c.b16 %v4621, %v4620
      %4638 = vmatprep.subr.bf16.mxu0 0
      %4639 = vmatpush1.bf16.msra.mxu0 %v4622
      %4640 = vmatprep.subr.bf16.mxu0 0
      %4641 = vmatpush1.bf16.msra.mxu0 %v4623
      %4642 = vmatprep.subr.bf16.mxu0 0
      %4643 = vmatpush1.bf16.msra.mxu0 %v4624
      %4644 = vmatprep.subr.bf16.mxu0 0
      %4645 = vmatpush1.bf16.msra.mxu0 %v4625
      %4646 = vmatprep.subr.bf16.mxu0 0
      %4647 = vmatpush1.bf16.msra.mxu0 %v4626
      %4648 = vmatprep.subr.bf16.mxu0 0
      %4649 = vmatpush1.bf16.msra.mxu0 %v4627
      %4650 = vmatprep.subr.bf16.mxu0 0
      %4651 = vmatpush1.bf16.msra.mxu0 %v4628
      %4652 = vmatprep.subr.bf16.mxu0 0
      %4653 = vmatpush1.bf16.msra.mxu0 %v4629
      %4654 = vmatprep.subr.bf16.mxu0 0
      %4655 = vmatpush1.bf16.msra.mxu0 0
      %4656 = vmatprep.subr.bf16.mxu0 0
      %4657 = vmatpush1.bf16.msra.mxu0 0
      %4658 = vmatprep.subr.bf16.mxu0 0
      %4659 = vmatpush1.bf16.msra.mxu0 0
      %4660 = vmatprep.subr.bf16.mxu0 0
      %4661 = vmatpush1.bf16.msra.mxu0 0
      %4662 = vmatprep.subr.bf16.mxu0 0
      %4663 = vmatpush1.bf16.msra.mxu0 0
      %4664 = vmatprep.subr.bf16.mxu0 0
      %4665 = vmatpush1.bf16.msra.mxu0 0
      %4666 = vmatprep.subr.bf16.mxu0 0
      %4667 = vmatpush1.bf16.msra.mxu0 0
      %4668 = vmatprep.subr.bf16.mxu0 0
      %4669 = vmatpush1.bf16.msra.mxu0 0
      %4670 = vmatprep.mubr.bf16.mxu0 0
      %4671 = vmatmul.mubr.bf16.gmra.mrb[0].mxu0 %v4558
      %v4672 = vpop.f32.mrb[0].mxu0
      %v4673 = vadd.f32 0.0, %v4672
      %v4674 = vpop.f32.mrb[0].mxu0
      %v4675 = vpop.f32.mrb[0].mxu0
      %v4676 = vadd.f32 0.0, %v4675
      %v4677 = vpop.f32.mrb[0].mxu0
      %4678 = vmatprep.mubr.bf16.mxu0 0
      %4679 = vmatmul.mubr.bf16.gmra.mrb[0].mxu0 %v4559
      %v4680 = vpop.f32.mrb[0].mxu0
      %v4681 = vadd.f32 0.0, %v4680
      %v4682 = vpop.f32.mrb[0].mxu0
      %v4683 = vpop.f32.mrb[0].mxu0
      %v4684 = vadd.f32 0.0, %v4683
      %v4685 = vpop.f32.mrb[0].mxu0
      %4686 = vmatprep.mubr.bf16.mxu0 0
      %4687 = vmatmul.mubr.bf16.gmra.mrb[0].mxu0 %v4560
      %v4688 = vpop.f32.mrb[0].mxu0
      %v4689 = vadd.f32 0.0, %v4688
      %v4690 = vpop.f32.mrb[0].mxu0
      %v4691 = vpop.f32.mrb[0].mxu0
      %v4692 = vadd.f32 0.0, %v4691
      %v4693 = vpop.f32.mrb[0].mxu0
      %4694 = vmatprep.mubr.bf16.mxu0 0
      %4695 = vmatmul.mubr.bf16.gmra.mrb[0].mxu0 %v4561
      %v4696 = vpop.f32.mrb[0].mxu0
      %v4697 = vadd.f32 0.0, %v4696
      %v4698 = vpop.f32.mrb[0].mxu0
      %v4699 = vpop.f32.mrb[0].mxu0
      %v4700 = vadd.f32 0.0, %v4699
      %v4701 = vpop.f32.mrb[0].mxu0
      %4702 = vmatprep.mubr.bf16.mxu0 0
      %4703 = vmatmul.mubr.bf16.gmra.mrb[0].mxu0 %v4562
      %v4704 = vpop.f32.mrb[0].mxu0
      %v4705 = vadd.f32 0.0, %v4704
      %v4706 = vpop.f32.mrb[0].mxu0
      %v4707 = vpop.f32.mrb[0].mxu0
      %v4708 = vadd.f32 0.0, %v4707
      %v4709 = vpop.f32.mrb[0].mxu0
      %4710 = vmatprep.mubr.bf16.mxu0 0
      %4711 = vmatmul.mubr.bf16.gmra.mrb[0].mxu0 %v4563
      %v4712 = vpop.f32.mrb[0].mxu0
      %v4713 = vadd.f32 0.0, %v4712
      %v4714 = vpop.f32.mrb[0].mxu0
      %v4715 = vpop.f32.mrb[0].mxu0
      %v4716 = vadd.f32 0.0, %v4715
      %v4717 = vpop.f32.mrb[0].mxu0
      %4718 = vmatprep.mubr.bf16.mxu0 0
      %4719 = vmatmul.mubr.bf16.gmra.mrb[0].mxu0 %v4564
      %v4720 = vpop.f32.mrb[0].mxu0
      %v4721 = vadd.f32 0.0, %v4720
      %v4722 = vpop.f32.mrb[0].mxu0
      %v4723 = vpop.f32.mrb[0].mxu0
      %v4724 = vadd.f32 0.0, %v4723
      %v4725 = vpop.f32.mrb[0].mxu0
      %4726 = vmatprep.mubr.bf16.mxu0 0
      %4727 = vmatmul.mubr.bf16.gmra.mrb[0].mxu0 %v4565
      %v4728 = vpop.f32.mrb[0].mxu0
      %v4729 = vadd.f32 0.0, %v4728
      %v4730 = vpop.f32.mrb[0].mxu0
      %v4731 = vpop.f32.mrb[0].mxu0
      %v4732 = vadd.f32 0.0, %v4731
      %v4733 = vpop.f32.mrb[0].mxu0
      %4734 = vmatprep.mubr.bf16.mxu0 0
      %4735 = vmatmul.mubr.bf16.gmra.mrb[0].mxu0 %v4566
      %v4736 = vpop.f32.mrb[0].mxu0
      %v4737 = vadd.f32 0.0, %v4736
      %v4738 = vpop.f32.mrb[0].mxu0
      %v4739 = vpop.f32.mrb[0].mxu0
      %v4740 = vadd.f32 0.0, %v4739
      %v4741 = vpop.f32.mrb[0].mxu0
      %4742 = vmatprep.mubr.bf16.mxu0 0
      %4743 = vmatmul.mubr.bf16.gmra.mrb[0].mxu0 %v4567
      %v4744 = vpop.f32.mrb[0].mxu0
      %v4745 = vadd.f32 0.0, %v4744
      %v4746 = vpop.f32.mrb[0].mxu0
      %v4747 = vpop.f32.mrb[0].mxu0
      %v4748 = vadd.f32 0.0, %v4747
      %v4749 = vpop.f32.mrb[0].mxu0
      %4750 = vmatprep.mubr.bf16.mxu0 0
      %4751 = vmatmul.mubr.bf16.gmra.mrb[0].mxu0 %v4568
      %v4752 = vpop.f32.mrb[0].mxu0
      %v4753 = vadd.f32 0.0, %v4752
      %v4754 = vpop.f32.mrb[0].mxu0
      %v4755 = vpop.f32.mrb[0].mxu0
      %v4756 = vadd.f32 0.0, %v4755
      %v4757 = vpop.f32.mrb[0].mxu0
      %4758 = vmatprep.mubr.bf16.mxu0 0
      %4759 = vmatmul.mubr.bf16.gmra.mrb[0].mxu0 %v4569
      %v4760 = vpop.f32.mrb[0].mxu0
      %v4761 = vadd.f32 0.0, %v4760
      %v4762 = vpop.f32.mrb[0].mxu0
      %v4763 = vpop.f32.mrb[0].mxu0
      %v4764 = vadd.f32 0.0, %v4763
      %v4765 = vpop.f32.mrb[0].mxu0
      %4766 = vmatprep.mubr.bf16.mxu0 0
      %4767 = vmatmul.mubr.bf16.gmra.mrb[0].mxu0 %v4570
      %v4768 = vpop.f32.mrb[0].mxu0
      %v4769 = vadd.f32 0.0, %v4768
      %v4770 = vpop.f32.mrb[0].mxu0
      %v4771 = vpop.f32.mrb[0].mxu0
      %v4772 = vadd.f32 0.0, %v4771
      %v4773 = vpop.f32.mrb[0].mxu0
      %4774 = vmatprep.mubr.bf16.mxu0 0
      %4775 = vmatmul.mubr.bf16.gmra.mrb[0].mxu0 %v4571
      %v4776 = vpop.f32.mrb[0].mxu0
      %v4777 = vadd.f32 0.0, %v4776
      %v4778 = vpop.f32.mrb[0].mxu0
      %v4779 = vpop.f32.mrb[0].mxu0
      %v4780 = vadd.f32 0.0, %v4779
      %v4781 = vpop.f32.mrb[0].mxu0
      %4782 = vmatprep.mubr.bf16.mxu0 0
      %4783 = vmatmul.mubr.bf16.gmra.mrb[0].mxu0 %v4572
      %v4784 = vpop.f32.mrb[0].mxu0
      %v4785 = vadd.f32 0.0, %v4784
      %v4786 = vpop.f32.mrb[0].mxu0
      %v4787 = vpop.f32.mrb[0].mxu0
      %v4788 = vadd.f32 0.0, %v4787
      %v4789 = vpop.f32.mrb[0].mxu0
      %4790 = vmatprep.mubr.bf16.mxu0 0
      %4791 = vmatmul.mubr.bf16.gmra.mrb[0].mxu0 %v4573
      %v4792 = vpop.f32.mrb[0].mxu0
      %v4793 = vadd.f32 0.0, %v4792
      %v4794 = vpop.f32.mrb[0].mxu0
      %v4795 = vpop.f32.mrb[0].mxu0
      %v4796 = vadd.f32 0.0, %v4795
      %v4797 = vpop.f32.mrb[0].mxu0
      %4798 = vdwg.mxu0
      %v4799 = vadd.f32 %v4045, %v4673
      %v4800 = vadd.f32 %v4046, %v4676
      %v4801 = vadd.f32 %v4047, %v4681
      %v4802 = vadd.f32 %v4048, %v4684
      %v4803 = vadd.f32 %v4049, %v4689
      %v4804 = vadd.f32 %v4050, %v4692
      %v4805 = vadd.f32 %v4051, %v4697
      %v4806 = vadd.f32 %v4052, %v4700
      %v4807 = vadd.f32 %v4053, %v4705
      %v4808 = vadd.f32 %v4054, %v4708
      %v4809 = vadd.f32 %v4055, %v4713
      %v4810 = vadd.f32 %v4056, %v4716
      %v4811 = vadd.f32 %v4057, %v4721
      %v4812 = vadd.f32 %v4058, %v4724
      %v4813 = vadd.f32 %v4059, %v4729
      %v4814 = vadd.f32 %v4060, %v4732
      %v4815 = vadd.f32 %v4061, %v4737
      %v4816 = vadd.f32 %v4062, %v4740
      %v4817 = vadd.f32 %v4063, %v4745
      %v4818 = vadd.f32 %v4064, %v4748
      %v4819 = vadd.f32 %v4065, %v4753
      %v4820 = vadd.f32 %v4066, %v4756
      %v4821 = vadd.f32 %v4067, %v4761
      %v4822 = vadd.f32 %v4068, %v4764
      %v4823 = vadd.f32 %v4069, %v4769
      %v4824 = vadd.f32 %v4070, %v4772
      %v4825 = vadd.f32 %v4071, %v4777
      %v4826 = vadd.f32 %v4072, %v4780
      %v4827 = vadd.f32 %v4073, %v4785
      %v4828 = vadd.f32 %v4074, %v4788
      %v4829 = vadd.f32 %v4075, %v4793
      %v4830 = vadd.f32 %v4076, %v4796
      %s4831 = scalar_lea.vmem [#allocation2], 40
      %v4832 = vld [vmem:[%s4831 + $0x4] sm:$0x8]
      %v4833 = vld [vmem:[%s4831 + $0x8] sm:$0xf]
      %v4834 = vld [vmem:[%s4831 + $0xc] sm:$0xf]
      %v4835 = vld [vmem:[%s4831 + $0x18] sm:$0x8]
      %v4836 = vld [vmem:[%s4831 + $0x1c] sm:$0xf]
      %v4837 = vld [vmem:[%s4831 + $0x20] sm:$0xf]
      %v4838 = vld [vmem:[%s4831 + $0x2c] sm:$0x8]
      %v4839 = vld [vmem:[%s4831 + $0x30] sm:$0xf]
      %v4840 = vld [vmem:[%s4831 + $0x34] sm:$0xf]
      %v4841 = vld [vmem:[%s4831 + $0x40] sm:$0x8]
      %v4842 = vld [vmem:[%s4831 + $0x44] sm:$0xf]
      %v4843 = vld [vmem:[%s4831 + $0x48] sm:$0xf]
      %v4844 = vld [vmem:[%s4831 + $0x54] sm:$0x8]
      %v4845 = vld [vmem:[%s4831 + $0x58] sm:$0xf]
      %v4846 = vld [vmem:[%s4831 + $0x5c] sm:$0xf]
      %v4847 = vld [vmem:[%s4831 + $0x68] sm:$0x8]
      %v4848 = vld [vmem:[%s4831 + $0x6c] sm:$0xf]
      %v4849 = vld [vmem:[%s4831 + $0x70] sm:$0xf]
      %v4850 = vld [vmem:[%s4831 + $0x7c] sm:$0x8]
      %v4851 = vld [vmem:[%s4831 + $0x80] sm:$0xf]
      %v4852 = vld [vmem:[%s4831 + $0x84] sm:$0xf]
      %v4853 = vld [vmem:[%s4831 + $0x90] sm:$0x8]
      %v4854 = vld [vmem:[%s4831 + $0x94] sm:$0xf]
      %v4855 = vld [vmem:[%s4831 + $0x98] sm:$0xf]
      %v4856 = vld [vmem:[%s4831 + $0xa4] sm:$0x8]
      %v4857 = vld [vmem:[%s4831 + $0xa8] sm:$0xf]
      %v4858 = vld [vmem:[%s4831 + $0xac] sm:$0xf]
      %v4859 = vld [vmem:[%s4831 + $0xb8] sm:$0x8]
      %v4860 = vld [vmem:[%s4831 + $0xbc] sm:$0xf]
      %v4861 = vld [vmem:[%s4831 + $0xc0] sm:$0xf]
      %v4862 = vld [vmem:[%s4831 + $0xcc] sm:$0x8]
      %v4863 = vld [vmem:[%s4831 + $0xd0] sm:$0xf]
      %v4864 = vld [vmem:[%s4831 + $0xd4] sm:$0xf]
      %v4865 = vld [vmem:[%s4831 + $0xe0] sm:$0x8]
      %v4866 = vld [vmem:[%s4831 + $0xe4] sm:$0xf]
      %v4867 = vld [vmem:[%s4831 + $0xe8] sm:$0xf]
      %v4868 = vld [vmem:[%s4831 + $0xf4] sm:$0x8]
      %v4869 = vld [vmem:[%s4831 + $0xf8] sm:$0xf]
      %v4870 = vld [vmem:[%s4831 + $0xfc] sm:$0xf]
      %v4871 = vld [vmem:[%s4831 + $0x108] sm:$0x8]
      %v4872 = vld [vmem:[%s4831 + $0x10c] sm:$0xf]
      %v4873 = vld [vmem:[%s4831 + $0x110] sm:$0xf]
      %v4874 = vld [vmem:[%s4831 + $0x11c] sm:$0x8]
      %v4875 = vld [vmem:[%s4831 + $0x120] sm:$0xf]
      %v4876 = vld [vmem:[%s4831 + $0x124] sm:$0xf]
      %v4877 = vld [vmem:[%s4831 + $0x130] sm:$0x8]
      %v4878 = vld [vmem:[%s4831 + $0x134] sm:$0xf]
      %v4879 = vld [vmem:[%s4831 + $0x138] sm:$0xf]
      %v4881 = vshrl.u32 %v4832, 16
      %v4883 = vrot.slane %v4881, 7
      %v4884 = vrot.slane %v4883, 4
      %v4886 = vshrl.u32 %v4833, 16
      %v4888 = vrot.slane %v4886, 7
      %v4889 = vshll.u32 %v4833, 16
      %v4891 = vor.u32 %v4888, %v4889
      %v4892 = vsel %vm1280, %v4884, %v4891
      %v4893 = vrot.slane %v4888, 4
      %v4895 = vshrl.u32 %v4834, 16
      %v4897 = vrot.slane %v4895, 7
      %v4898 = vshll.u32 %v4834, 16
      %v4900 = vor.u32 %v4897, %v4898
      %v4901 = vsel %vm1280, %v4893, %v4900
      %v4903 = vshrl.u32 %v4835, 16
      %v4905 = vrot.slane %v4903, 7
      %v4906 = vrot.slane %v4905, 4
      %v4908 = vshrl.u32 %v4836, 16
      %v4910 = vrot.slane %v4908, 7
      %v4911 = vshll.u32 %v4836, 16
      %v4913 = vor.u32 %v4910, %v4911
      %v4914 = vsel %vm1280, %v4906, %v4913
      %v4915 = vrot.slane %v4910, 4
      %v4917 = vshrl.u32 %v4837, 16
      %v4919 = vrot.slane %v4917, 7
      %v4920 = vshll.u32 %v4837, 16
      %v4922 = vor.u32 %v4919, %v4920
      %v4923 = vsel %vm1280, %v4915, %v4922
      %v4925 = vshrl.u32 %v4838, 16
      %v4927 = vrot.slane %v4925, 7
      %v4928 = vrot.slane %v4927, 4
      %v4930 = vshrl.u32 %v4839, 16
      %v4932 = vrot.slane %v4930, 7
      %v4933 = vshll.u32 %v4839, 16
      %v4935 = vor.u32 %v4932, %v4933
      %v4936 = vsel %vm1280, %v4928, %v4935
      %v4937 = vrot.slane %v4932, 4
      %v4939 = vshrl.u32 %v4840, 16
      %v4941 = vrot.slane %v4939, 7
      %v4942 = vshll.u32 %v4840, 16
      %v4944 = vor.u32 %v4941, %v4942
      %v4945 = vsel %vm1280, %v4937, %v4944
      %v4947 = vshrl.u32 %v4841, 16
      %v4949 = vrot.slane %v4947, 7
      %v4950 = vrot.slane %v4949, 4
      %v4952 = vshrl.u32 %v4842, 16
      %v4954 = vrot.slane %v4952, 7
      %v4955 = vshll.u32 %v4842, 16
      %v4957 = vor.u32 %v4954, %v4955
      %v4958 = vsel %vm1280, %v4950, %v4957
      %v4959 = vrot.slane %v4954, 4
      %v4961 = vshrl.u32 %v4843, 16
      %v4963 = vrot.slane %v4961, 7
      %v4964 = vshll.u32 %v4843, 16
      %v4966 = vor.u32 %v4963, %v4964
      %v4967 = vsel %vm1280, %v4959, %v4966
      %v4969 = vshrl.u32 %v4844, 16
      %v4971 = vrot.slane %v4969, 7
      %v4972 = vrot.slane %v4971, 4
      %v4974 = vshrl.u32 %v4845, 16
      %v4976 = vrot.slane %v4974, 7
      %v4977 = vshll.u32 %v4845, 16
      %v4979 = vor.u32 %v4976, %v4977
      %v4980 = vsel %vm1280, %v4972, %v4979
      %v4981 = vrot.slane %v4976, 4
      %v4983 = vshrl.u32 %v4846, 16
      %v4985 = vrot.slane %v4983, 7
      %v4986 = vshll.u32 %v4846, 16
      %v4988 = vor.u32 %v4985, %v4986
      %v4989 = vsel %vm1280, %v4981, %v4988
      %v4991 = vshrl.u32 %v4847, 16
      %v4993 = vrot.slane %v4991, 7
      %v4994 = vrot.slane %v4993, 4
      %v4996 = vshrl.u32 %v4848, 16
      %v4998 = vrot.slane %v4996, 7
      %v4999 = vshll.u32 %v4848, 16
      %v5001 = vor.u32 %v4998, %v4999
      %v5002 = vsel %vm1280, %v4994, %v5001
      %v5003 = vrot.slane %v4998, 4
      %v5005 = vshrl.u32 %v4849, 16
      %v5007 = vrot.slane %v5005, 7
      %v5008 = vshll.u32 %v4849, 16
      %v5010 = vor.u32 %v5007, %v5008
      %v5011 = vsel %vm1280, %v5003, %v5010
      %v5013 = vshrl.u32 %v4850, 16
      %v5015 = vrot.slane %v5013, 7
      %v5016 = vrot.slane %v5015, 4
      %v5018 = vshrl.u32 %v4851, 16
      %v5020 = vrot.slane %v5018, 7
      %v5021 = vshll.u32 %v4851, 16
      %v5023 = vor.u32 %v5020, %v5021
      %v5024 = vsel %vm1280, %v5016, %v5023
      %v5025 = vrot.slane %v5020, 4
      %v5027 = vshrl.u32 %v4852, 16
      %v5029 = vrot.slane %v5027, 7
      %v5030 = vshll.u32 %v4852, 16
      %v5032 = vor.u32 %v5029, %v5030
      %v5033 = vsel %vm1280, %v5025, %v5032
      %v5035 = vshrl.u32 %v4853, 16
      %v5037 = vrot.slane %v5035, 7
      %v5038 = vrot.slane %v5037, 4
      %v5040 = vshrl.u32 %v4854, 16
      %v5042 = vrot.slane %v5040, 7
      %v5043 = vshll.u32 %v4854, 16
      %v5045 = vor.u32 %v5042, %v5043
      %v5046 = vsel %vm1280, %v5038, %v5045
      %v5047 = vrot.slane %v5042, 4
      %v5049 = vshrl.u32 %v4855, 16
      %v5051 = vrot.slane %v5049, 7
      %v5052 = vshll.u32 %v4855, 16
      %v5054 = vor.u32 %v5051, %v5052
      %v5055 = vsel %vm1280, %v5047, %v5054
      %v5057 = vshrl.u32 %v4856, 16
      %v5059 = vrot.slane %v5057, 7
      %v5060 = vrot.slane %v5059, 4
      %v5062 = vshrl.u32 %v4857, 16
      %v5064 = vrot.slane %v5062, 7
      %v5065 = vshll.u32 %v4857, 16
      %v5067 = vor.u32 %v5064, %v5065
      %v5068 = vsel %vm1280, %v5060, %v5067
      %v5069 = vrot.slane %v5064, 4
      %v5071 = vshrl.u32 %v4858, 16
      %v5073 = vrot.slane %v5071, 7
      %v5074 = vshll.u32 %v4858, 16
      %v5076 = vor.u32 %v5073, %v5074
      %v5077 = vsel %vm1280, %v5069, %v5076
      %v5079 = vshrl.u32 %v4859, 16
      %v5081 = vrot.slane %v5079, 7
      %v5082 = vrot.slane %v5081, 4
      %v5084 = vshrl.u32 %v4860, 16
      %v5086 = vrot.slane %v5084, 7
      %v5087 = vshll.u32 %v4860, 16
      %v5089 = vor.u32 %v5086, %v5087
      %v5090 = vsel %vm1280, %v5082, %v5089
      %v5091 = vrot.slane %v5086, 4
      %v5093 = vshrl.u32 %v4861, 16
      %v5095 = vrot.slane %v5093, 7
      %v5096 = vshll.u32 %v4861, 16
      %v5098 = vor.u32 %v5095, %v5096
      %v5099 = vsel %vm1280, %v5091, %v5098
      %v5101 = vshrl.u32 %v4862, 16
      %v5103 = vrot.slane %v5101, 7
      %v5104 = vrot.slane %v5103, 4
      %v5106 = vshrl.u32 %v4863, 16
      %v5108 = vrot.slane %v5106, 7
      %v5109 = vshll.u32 %v4863, 16
      %v5111 = vor.u32 %v5108, %v5109
      %v5112 = vsel %vm1280, %v5104, %v5111
      %v5113 = vrot.slane %v5108, 4
      %v5115 = vshrl.u32 %v4864, 16
      %v5117 = vrot.slane %v5115, 7
      %v5118 = vshll.u32 %v4864, 16
      %v5120 = vor.u32 %v5117, %v5118
      %v5121 = vsel %vm1280, %v5113, %v5120
      %v5123 = vshrl.u32 %v4865, 16
      %v5125 = vrot.slane %v5123, 7
      %v5126 = vrot.slane %v5125, 4
      %v5128 = vshrl.u32 %v4866, 16
      %v5130 = vrot.slane %v5128, 7
      %v5131 = vshll.u32 %v4866, 16
      %v5133 = vor.u32 %v5130, %v5131
      %v5134 = vsel %vm1280, %v5126, %v5133
      %v5135 = vrot.slane %v5130, 4
      %v5137 = vshrl.u32 %v4867, 16
      %v5139 = vrot.slane %v5137, 7
      %v5140 = vshll.u32 %v4867, 16
      %v5142 = vor.u32 %v5139, %v5140
      %v5143 = vsel %vm1280, %v5135, %v5142
      %v5145 = vshrl.u32 %v4868, 16
      %v5147 = vrot.slane %v5145, 7
      %v5148 = vrot.slane %v5147, 4
      %v5150 = vshrl.u32 %v4869, 16
      %v5152 = vrot.slane %v5150, 7
      %v5153 = vshll.u32 %v4869, 16
      %v5155 = vor.u32 %v5152, %v5153
      %v5156 = vsel %vm1280, %v5148, %v5155
      %v5157 = vrot.slane %v5152, 4
      %v5159 = vshrl.u32 %v4870, 16
      %v5161 = vrot.slane %v5159, 7
      %v5162 = vshll.u32 %v4870, 16
      %v5164 = vor.u32 %v5161, %v5162
      %v5165 = vsel %vm1280, %v5157, %v5164
      %v5167 = vshrl.u32 %v4871, 16
      %v5169 = vrot.slane %v5167, 7
      %v5170 = vrot.slane %v5169, 4
      %v5172 = vshrl.u32 %v4872, 16
      %v5174 = vrot.slane %v5172, 7
      %v5175 = vshll.u32 %v4872, 16
      %v5177 = vor.u32 %v5174, %v5175
      %v5178 = vsel %vm1280, %v5170, %v5177
      %v5179 = vrot.slane %v5174, 4
      %v5181 = vshrl.u32 %v4873, 16
      %v5183 = vrot.slane %v5181, 7
      %v5184 = vshll.u32 %v4873, 16
      %v5186 = vor.u32 %v5183, %v5184
      %v5187 = vsel %vm1280, %v5179, %v5186
      %v5189 = vshrl.u32 %v4874, 16
      %v5191 = vrot.slane %v5189, 7
      %v5192 = vrot.slane %v5191, 4
      %v5194 = vshrl.u32 %v4875, 16
      %v5196 = vrot.slane %v5194, 7
      %v5197 = vshll.u32 %v4875, 16
      %v5199 = vor.u32 %v5196, %v5197
      %v5200 = vsel %vm1280, %v5192, %v5199
      %v5201 = vrot.slane %v5196, 4
      %v5203 = vshrl.u32 %v4876, 16
      %v5205 = vrot.slane %v5203, 7
      %v5206 = vshll.u32 %v4876, 16
      %v5208 = vor.u32 %v5205, %v5206
      %v5209 = vsel %vm1280, %v5201, %v5208
      %v5211 = vshrl.u32 %v4877, 16
      %v5213 = vrot.slane %v5211, 7
      %v5214 = vrot.slane %v5213, 4
      %v5216 = vshrl.u32 %v4878, 16
      %v5218 = vrot.slane %v5216, 7
      %v5219 = vshll.u32 %v4878, 16
      %v5221 = vor.u32 %v5218, %v5219
      %v5222 = vsel %vm1280, %v5214, %v5221
      %v5223 = vrot.slane %v5218, 4
      %v5225 = vshrl.u32 %v4879, 16
      %v5227 = vrot.slane %v5225, 7
      %v5228 = vshll.u32 %v4879, 16
      %v5230 = vor.u32 %v5227, %v5228
      %v5231 = vsel %vm1280, %v5223, %v5230
      %s5232 = scalar_lea.vmem %s4, 384
      %v5233 = vld [vmem:[%s5232] sm:$0xf]
      %v5234 = vld [vmem:[%s5232 + $0x4] sm:$0xf]
      %v5235 = vld [vmem:[%s5232 + $0x8] sm:$0xf]
      %v5236 = vld [vmem:[%s5232 + $0xc] sm:$0xf]
      %v5237 = vld [vmem:[%s5232 + $0x10] sm:$0xf]
      %v5238 = vld [vmem:[%s5232 + $0x14] sm:$0xf]
      %v5239 = vld [vmem:[%s5232 + $0x18] sm:$0xf]
      %v5240 = vld [vmem:[%s5232 + $0x1c] sm:$0xf]
      %v5241 = vld [vmem:[%s5232 + $0x20] sm:$0xf]
      %v5242 = vld [vmem:[%s5232 + $0x24] sm:$0xf]
      %v5243 = vld [vmem:[%s5232 + $0x28] sm:$0xf]
      %v5244 = vld [vmem:[%s5232 + $0x2c] sm:$0xf]
      %v5245 = vld [vmem:[%s5232 + $0x30] sm:$0xf]
      %v5246 = vld [vmem:[%s5232 + $0x34] sm:$0xf]
      %v5247 = vld [vmem:[%s5232 + $0x38] sm:$0xf]
      %v5248 = vld [vmem:[%s5232 + $0x3c] sm:$0xf]
      %v5249 = vunpack.c.l.b16 %v4892
      %v5250 = vunpack.c.l.b16 %v4901
      %v5251 = vunpack.c.l.b16 %v4914
      %v5252 = vunpack.c.l.b16 %v4923
      %v5253 = vunpack.c.l.b16 %v4936
      %v5254 = vunpack.c.l.b16 %v4945
      %v5255 = vunpack.c.l.b16 %v4958
      %v5256 = vunpack.c.l.b16 %v4967
      %v5257 = vunpack.c.l.b16 %v4980
      %v5258 = vunpack.c.l.b16 %v4989
      %v5259 = vunpack.c.l.b16 %v5002
      %v5260 = vunpack.c.l.b16 %v5011
      %v5261 = vunpack.c.l.b16 %v5024
      %v5262 = vunpack.c.l.b16 %v5033
      %v5263 = vunpack.c.l.b16 %v5046
      %v5264 = vunpack.c.l.b16 %v5055
      %v5265 = vunpack.c.l.b16 %v5068
      %v5266 = vunpack.c.l.b16 %v5077
      %v5267 = vunpack.c.l.b16 %v5090
      %v5268 = vunpack.c.l.b16 %v5099
      %v5269 = vunpack.c.l.b16 %v5112
      %v5270 = vunpack.c.l.b16 %v5121
      %v5271 = vunpack.c.l.b16 %v5134
      %v5272 = vunpack.c.l.b16 %v5143
      %v5273 = vunpack.c.l.b16 %v5156
      %v5274 = vunpack.c.l.b16 %v5165
      %v5275 = vunpack.c.l.b16 %v5178
      %v5276 = vunpack.c.l.b16 %v5187
      %v5277 = vunpack.c.l.b16 %v5200
      %v5278 = vunpack.c.l.b16 %v5209
      %v5279 = vunpack.c.l.b16 %v5222
      %v5280 = vunpack.c.l.b16 %v5231
      %v5281 = vpack.c.b16 %v5250, %v5249
      %v5282 = vpack.c.b16 %v5252, %v5251
      %v5283 = vpack.c.b16 %v5254, %v5253
      %v5284 = vpack.c.b16 %v5256, %v5255
      %v5285 = vpack.c.b16 %v5258, %v5257
      %v5286 = vpack.c.b16 %v5260, %v5259
      %v5287 = vpack.c.b16 %v5262, %v5261
      %v5288 = vpack.c.b16 %v5264, %v5263
      %v5289 = vpack.c.b16 %v5266, %v5265
      %v5290 = vpack.c.b16 %v5268, %v5267
      %v5291 = vpack.c.b16 %v5270, %v5269
      %v5292 = vpack.c.b16 %v5272, %v5271
      %v5293 = vpack.c.b16 %v5274, %v5273
      %v5294 = vpack.c.b16 %v5276, %v5275
      %v5295 = vpack.c.b16 %v5278, %v5277
      %v5296 = vpack.c.b16 %v5280, %v5279
      %v5329 = vunpack.c.l.b16 %v5233
      %v5330 = vunpack.c.l.b16 %v5234
      %v5331 = vunpack.c.l.b16 %v5235
      %v5332 = vunpack.c.l.b16 %v5236
      %v5333 = vunpack.c.l.b16 %v5237
      %v5334 = vunpack.c.l.b16 %v5238
      %v5335 = vunpack.c.l.b16 %v5239
      %v5336 = vunpack.c.l.b16 %v5240
      %v5337 = vunpack.c.l.b16 %v5241
      %v5338 = vunpack.c.l.b16 %v5242
      %v5339 = vunpack.c.l.b16 %v5243
      %v5340 = vunpack.c.l.b16 %v5244
      %v5341 = vunpack.c.l.b16 %v5245
      %v5342 = vunpack.c.l.b16 %v5246
      %v5343 = vunpack.c.l.b16 %v5247
      %v5344 = vunpack.c.l.b16 %v5248
      %v5345 = vpack.c.b16 %v5330, %v5329
      %v5346 = vpack.c.b16 %v5332, %v5331
      %v5347 = vpack.c.b16 %v5334, %v5333
      %v5348 = vpack.c.b16 %v5336, %v5335
      %v5349 = vpack.c.b16 %v5338, %v5337
      %v5350 = vpack.c.b16 %v5340, %v5339
      %v5351 = vpack.c.b16 %v5342, %v5341
      %v5352 = vpack.c.b16 %v5344, %v5343
      %5361 = vmatprep.subr.bf16.mxu0 0
      %5362 = vmatpush1.bf16.msra.mxu0 %v5345
      %5363 = vmatprep.subr.bf16.mxu0 0
      %5364 = vmatpush1.bf16.msra.mxu0 %v5346
      %5365 = vmatprep.subr.bf16.mxu0 0
      %5366 = vmatpush1.bf16.msra.mxu0 %v5347
      %5367 = vmatprep.subr.bf16.mxu0 0
      %5368 = vmatpush1.bf16.msra.mxu0 %v5348
      %5369 = vmatprep.subr.bf16.mxu0 0
      %5370 = vmatpush1.bf16.msra.mxu0 %v5349
      %5371 = vmatprep.subr.bf16.mxu0 0
      %5372 = vmatpush1.bf16.msra.mxu0 %v5350
      %5373 = vmatprep.subr.bf16.mxu0 0
      %5374 = vmatpush1.bf16.msra.mxu0 %v5351
      %5375 = vmatprep.subr.bf16.mxu0 0
      %5376 = vmatpush1.bf16.msra.mxu0 %v5352
      %5377 = vmatprep.subr.bf16.mxu0 0
      %5378 = vmatpush1.bf16.msra.mxu0 0
      %5379 = vmatprep.subr.bf16.mxu0 0
      %5380 = vmatpush1.bf16.msra.mxu0 0
      %5381 = vmatprep.subr.bf16.mxu0 0
      %5382 = vmatpush1.bf16.msra.mxu0 0
      %5383 = vmatprep.subr.bf16.mxu0 0
      %5384 = vmatpush1.bf16.msra.mxu0 0
      %5385 = vmatprep.subr.bf16.mxu0 0
      %5386 = vmatpush1.bf16.msra.mxu0 0
      %5387 = vmatprep.subr.bf16.mxu0 0
      %5388 = vmatpush1.bf16.msra.mxu0 0
      %5389 = vmatprep.subr.bf16.mxu0 0
      %5390 = vmatpush1.bf16.msra.mxu0 0
      %5391 = vmatprep.subr.bf16.mxu0 0
      %5392 = vmatpush1.bf16.msra.mxu0 0
      %5393 = vmatprep.mubr.bf16.mxu0 0
      %5394 = vmatmul.mubr.bf16.gmra.mrb[0].mxu0 %v5281
      %v5395 = vpop.f32.mrb[0].mxu0
      %v5396 = vadd.f32 0.0, %v5395
      %v5397 = vpop.f32.mrb[0].mxu0
      %v5398 = vpop.f32.mrb[0].mxu0
      %v5399 = vadd.f32 0.0, %v5398
      %v5400 = vpop.f32.mrb[0].mxu0
      %5401 = vmatprep.mubr.bf16.mxu0 0
      %5402 = vmatmul.mubr.bf16.gmra.mrb[0].mxu0 %v5282
      %v5403 = vpop.f32.mrb[0].mxu0
      %v5404 = vadd.f32 0.0, %v5403
      %v5405 = vpop.f32.mrb[0].mxu0
      %v5406 = vpop.f32.mrb[0].mxu0
      %v5407 = vadd.f32 0.0, %v5406
      %v5408 = vpop.f32.mrb[0].mxu0
      %5409 = vmatprep.mubr.bf16.mxu0 0
      %5410 = vmatmul.mubr.bf16.gmra.mrb[0].mxu0 %v5283
      %v5411 = vpop.f32.mrb[0].mxu0
      %v5412 = vadd.f32 0.0, %v5411
      %v5413 = vpop.f32.mrb[0].mxu0
      %v5414 = vpop.f32.mrb[0].mxu0
      %v5415 = vadd.f32 0.0, %v5414
      %v5416 = vpop.f32.mrb[0].mxu0
      %5417 = vmatprep.mubr.bf16.mxu0 0
      %5418 = vmatmul.mubr.bf16.gmra.mrb[0].mxu0 %v5284
      %v5419 = vpop.f32.mrb[0].mxu0
      %v5420 = vadd.f32 0.0, %v5419
      %v5421 = vpop.f32.mrb[0].mxu0
      %v5422 = vpop.f32.mrb[0].mxu0
      %v5423 = vadd.f32 0.0, %v5422
      %v5424 = vpop.f32.mrb[0].mxu0
      %5425 = vmatprep.mubr.bf16.mxu0 0
      %5426 = vmatmul.mubr.bf16.gmra.mrb[0].mxu0 %v5285
      %v5427 = vpop.f32.mrb[0].mxu0
      %v5428 = vadd.f32 0.0, %v5427
      %v5429 = vpop.f32.mrb[0].mxu0
      %v5430 = vpop.f32.mrb[0].mxu0
      %v5431 = vadd.f32 0.0, %v5430
      %v5432 = vpop.f32.mrb[0].mxu0
      %5433 = vmatprep.mubr.bf16.mxu0 0
      %5434 = vmatmul.mubr.bf16.gmra.mrb[0].mxu0 %v5286
      %v5435 = vpop.f32.mrb[0].mxu0
      %v5436 = vadd.f32 0.0, %v5435
      %v5437 = vpop.f32.mrb[0].mxu0
      %v5438 = vpop.f32.mrb[0].mxu0
      %v5439 = vadd.f32 0.0, %v5438
      %v5440 = vpop.f32.mrb[0].mxu0
      %5441 = vmatprep.mubr.bf16.mxu0 0
      %5442 = vmatmul.mubr.bf16.gmra.mrb[0].mxu0 %v5287
      %v5443 = vpop.f32.mrb[0].mxu0
      %v5444 = vadd.f32 0.0, %v5443
      %v5445 = vpop.f32.mrb[0].mxu0
      %v5446 = vpop.f32.mrb[0].mxu0
      %v5447 = vadd.f32 0.0, %v5446
      %v5448 = vpop.f32.mrb[0].mxu0
      %5449 = vmatprep.mubr.bf16.mxu0 0
      %5450 = vmatmul.mubr.bf16.gmra.mrb[0].mxu0 %v5288
      %v5451 = vpop.f32.mrb[0].mxu0
      %v5452 = vadd.f32 0.0, %v5451
      %v5453 = vpop.f32.mrb[0].mxu0
      %v5454 = vpop.f32.mrb[0].mxu0
      %v5455 = vadd.f32 0.0, %v5454
      %v5456 = vpop.f32.mrb[0].mxu0
      %5457 = vmatprep.mubr.bf16.mxu0 0
      %5458 = vmatmul.mubr.bf16.gmra.mrb[0].mxu0 %v5289
      %v5459 = vpop.f32.mrb[0].mxu0
      %v5460 = vadd.f32 0.0, %v5459
      %v5461 = vpop.f32.mrb[0].mxu0
      %v5462 = vpop.f32.mrb[0].mxu0
      %v5463 = vadd.f32 0.0, %v5462
      %v5464 = vpop.f32.mrb[0].mxu0
      %5465 = vmatprep.mubr.bf16.mxu0 0
      %5466 = vmatmul.mubr.bf16.gmra.mrb[0].mxu0 %v5290
      %v5467 = vpop.f32.mrb[0].mxu0
      %v5468 = vadd.f32 0.0, %v5467
      %v5469 = vpop.f32.mrb[0].mxu0
      %v5470 = vpop.f32.mrb[0].mxu0
      %v5471 = vadd.f32 0.0, %v5470
      %v5472 = vpop.f32.mrb[0].mxu0
      %5473 = vmatprep.mubr.bf16.mxu0 0
      %5474 = vmatmul.mubr.bf16.gmra.mrb[0].mxu0 %v5291
      %v5475 = vpop.f32.mrb[0].mxu0
      %v5476 = vadd.f32 0.0, %v5475
      %v5477 = vpop.f32.mrb[0].mxu0
      %v5478 = vpop.f32.mrb[0].mxu0
      %v5479 = vadd.f32 0.0, %v5478
      %v5480 = vpop.f32.mrb[0].mxu0
      %5481 = vmatprep.mubr.bf16.mxu0 0
      %5482 = vmatmul.mubr.bf16.gmra.mrb[0].mxu0 %v5292
      %v5483 = vpop.f32.mrb[0].mxu0
      %v5484 = vadd.f32 0.0, %v5483
      %v5485 = vpop.f32.mrb[0].mxu0
      %v5486 = vpop.f32.mrb[0].mxu0
      %v5487 = vadd.f32 0.0, %v5486
      %v5488 = vpop.f32.mrb[0].mxu0
      %5489 = vmatprep.mubr.bf16.mxu0 0
      %5490 = vmatmul.mubr.bf16.gmra.mrb[0].mxu0 %v5293
      %v5491 = vpop.f32.mrb[0].mxu0
      %v5492 = vadd.f32 0.0, %v5491
      %v5493 = vpop.f32.mrb[0].mxu0
      %v5494 = vpop.f32.mrb[0].mxu0
      %v5495 = vadd.f32 0.0, %v5494
      %v5496 = vpop.f32.mrb[0].mxu0
      %5497 = vmatprep.mubr.bf16.mxu0 0
      %5498 = vmatmul.mubr.bf16.gmra.mrb[0].mxu0 %v5294
      %v5499 = vpop.f32.mrb[0].mxu0
      %v5500 = vadd.f32 0.0, %v5499
      %v5501 = vpop.f32.mrb[0].mxu0
      %v5502 = vpop.f32.mrb[0].mxu0
      %v5503 = vadd.f32 0.0, %v5502
      %v5504 = vpop.f32.mrb[0].mxu0
      %5505 = vmatprep.mubr.bf16.mxu0 0
      %5506 = vmatmul.mubr.bf16.gmra.mrb[0].mxu0 %v5295
      %v5507 = vpop.f32.mrb[0].mxu0
      %v5508 = vadd.f32 0.0, %v5507
      %v5509 = vpop.f32.mrb[0].mxu0
      %v5510 = vpop.f32.mrb[0].mxu0
      %v5511 = vadd.f32 0.0, %v5510
      %v5512 = vpop.f32.mrb[0].mxu0
      %5513 = vmatprep.mubr.bf16.mxu0 0
      %5514 = vmatmul.mubr.bf16.gmra.mrb[0].mxu0 %v5296
      %v5515 = vpop.f32.mrb[0].mxu0
      %v5516 = vadd.f32 0.0, %v5515
      %v5517 = vpop.f32.mrb[0].mxu0
      %v5518 = vpop.f32.mrb[0].mxu0
      %v5519 = vadd.f32 0.0, %v5518
      %v5520 = vpop.f32.mrb[0].mxu0
      %5521 = vdwg.mxu0
      %v5522 = vadd.f32 %v4799, %v5396
      %v5523 = vadd.f32 %v4800, %v5399
      %v5524 = vadd.f32 %v4801, %v5404
      %v5525 = vadd.f32 %v4802, %v5407
      %v5526 = vadd.f32 %v4803, %v5412
      %v5527 = vadd.f32 %v4804, %v5415
      %v5528 = vadd.f32 %v4805, %v5420
      %v5529 = vadd.f32 %v4806, %v5423
      %v5530 = vadd.f32 %v4807, %v5428
      %v5531 = vadd.f32 %v4808, %v5431
      %v5532 = vadd.f32 %v4809, %v5436
      %v5533 = vadd.f32 %v4810, %v5439
      %v5534 = vadd.f32 %v4811, %v5444
      %v5535 = vadd.f32 %v4812, %v5447
      %v5536 = vadd.f32 %v4813, %v5452
      %v5537 = vadd.f32 %v4814, %v5455
      %v5538 = vadd.f32 %v4815, %v5460
      %v5539 = vadd.f32 %v4816, %v5463
      %v5540 = vadd.f32 %v4817, %v5468
      %v5541 = vadd.f32 %v4818, %v5471
      %v5542 = vadd.f32 %v4819, %v5476
      %v5543 = vadd.f32 %v4820, %v5479
      %v5544 = vadd.f32 %v4821, %v5484
      %v5545 = vadd.f32 %v4822, %v5487
      %v5546 = vadd.f32 %v4823, %v5492
      %v5547 = vadd.f32 %v4824, %v5495
      %v5548 = vadd.f32 %v4825, %v5500
      %v5549 = vadd.f32 %v4826, %v5503
      %v5550 = vadd.f32 %v4827, %v5508
      %v5551 = vadd.f32 %v4828, %v5511
      %v5552 = vadd.f32 %v4829, %v5516
      %v5553 = vadd.f32 %v4830, %v5519
      %s5554 = scalar_lea.vmem %s4, 448
      %v5555 = vld [vmem:[%s5554] sm:$0xf]
      %v5556 = vld [vmem:[%s5554 + $0x4] sm:$0xf]
      %v5557 = vld [vmem:[%s5554 + $0x8] sm:$0xf]
      %v5558 = vld [vmem:[%s5554 + $0xc] sm:$0xf]
      %v5559 = vld [vmem:[%s5554 + $0x10] sm:$0xf]
      %v5560 = vld [vmem:[%s5554 + $0x14] sm:$0xf]
      %v5561 = vld [vmem:[%s5554 + $0x18] sm:$0xf]
      %v5562 = vld [vmem:[%s5554 + $0x1c] sm:$0xf]
      %v5563 = vld [vmem:[%s5554 + $0x20] sm:$0xf]
      %v5564 = vld [vmem:[%s5554 + $0x24] sm:$0xf]
      %v5565 = vld [vmem:[%s5554 + $0x28] sm:$0xf]
      %v5566 = vld [vmem:[%s5554 + $0x2c] sm:$0xf]
      %v5567 = vld [vmem:[%s5554 + $0x30] sm:$0xf]
      %v5568 = vld [vmem:[%s5554 + $0x34] sm:$0xf]
      %v5569 = vld [vmem:[%s5554 + $0x38] sm:$0xf]
      %v5570 = vld [vmem:[%s5554 + $0x3c] sm:$0xf]
      %v5603 = vunpack.c.l.b16 %v4833
      %v5604 = vunpack.c.l.b16 %v4834
      %v5605 = vunpack.c.l.b16 %v4836
      %v5606 = vunpack.c.l.b16 %v4837
      %v5607 = vunpack.c.l.b16 %v4839
      %v5608 = vunpack.c.l.b16 %v4840
      %v5609 = vunpack.c.l.b16 %v4842
      %v5610 = vunpack.c.l.b16 %v4843
      %v5611 = vunpack.c.l.b16 %v4845
      %v5612 = vunpack.c.l.b16 %v4846
      %v5613 = vunpack.c.l.b16 %v4848
      %v5614 = vunpack.c.l.b16 %v4849
      %v5615 = vunpack.c.l.b16 %v4851
      %v5616 = vunpack.c.l.b16 %v4852
      %v5617 = vunpack.c.l.b16 %v4854
      %v5618 = vunpack.c.l.b16 %v4855
      %v5619 = vunpack.c.l.b16 %v4857
      %v5620 = vunpack.c.l.b16 %v4858
      %v5621 = vunpack.c.l.b16 %v4860
      %v5622 = vunpack.c.l.b16 %v4861
      %v5623 = vunpack.c.l.b16 %v4863
      %v5624 = vunpack.c.l.b16 %v4864
      %v5625 = vunpack.c.l.b16 %v4866
      %v5626 = vunpack.c.l.b16 %v4867
      %v5627 = vunpack.c.l.b16 %v4869
      %v5628 = vunpack.c.l.b16 %v4870
      %v5629 = vunpack.c.l.b16 %v4872
      %v5630 = vunpack.c.l.b16 %v4873
      %v5631 = vunpack.c.l.b16 %v4875
      %v5632 = vunpack.c.l.b16 %v4876
      %v5633 = vunpack.c.l.b16 %v4878
      %v5634 = vunpack.c.l.b16 %v4879
      %v5635 = vpack.c.b16 %v5604, %v5603
      %v5636 = vpack.c.b16 %v5606, %v5605
      %v5637 = vpack.c.b16 %v5608, %v5607
      %v5638 = vpack.c.b16 %v5610, %v5609
      %v5639 = vpack.c.b16 %v5612, %v5611
      %v5640 = vpack.c.b16 %v5614, %v5613
      %v5641 = vpack.c.b16 %v5616, %v5615
      %v5642 = vpack.c.b16 %v5618, %v5617
      %v5643 = vpack.c.b16 %v5620, %v5619
      %v5644 = vpack.c.b16 %v5622, %v5621
      %v5645 = vpack.c.b16 %v5624, %v5623
      %v5646 = vpack.c.b16 %v5626, %v5625
      %v5647 = vpack.c.b16 %v5628, %v5627
      %v5648 = vpack.c.b16 %v5630, %v5629
      %v5649 = vpack.c.b16 %v5632, %v5631
      %v5650 = vpack.c.b16 %v5634, %v5633
      %v5683 = vunpack.c.l.b16 %v5555
      %v5684 = vunpack.c.l.b16 %v5556
      %v5685 = vunpack.c.l.b16 %v5557
      %v5686 = vunpack.c.l.b16 %v5558
      %v5687 = vunpack.c.l.b16 %v5559
      %v5688 = vunpack.c.l.b16 %v5560
      %v5689 = vunpack.c.l.b16 %v5561
      %v5690 = vunpack.c.l.b16 %v5562
      %v5691 = vunpack.c.l.b16 %v5563
      %v5692 = vunpack.c.l.b16 %v5564
      %v5693 = vunpack.c.l.b16 %v5565
      %v5694 = vunpack.c.l.b16 %v5566
      %v5695 = vunpack.c.l.b16 %v5567
      %v5696 = vunpack.c.l.b16 %v5568
      %v5697 = vunpack.c.l.b16 %v5569
      %v5698 = vunpack.c.l.b16 %v5570
      %v5699 = vpack.c.b16 %v5684, %v5683
      %v5700 = vpack.c.b16 %v5686, %v5685
      %v5701 = vpack.c.b16 %v5688, %v5687
      %v5702 = vpack.c.b16 %v5690, %v5689
      %v5703 = vpack.c.b16 %v5692, %v5691
      %v5704 = vpack.c.b16 %v5694, %v5693
      %v5705 = vpack.c.b16 %v5696, %v5695
      %v5706 = vpack.c.b16 %v5698, %v5697
      %5715 = vmatprep.subr.bf16.mxu0 0
      %5716 = vmatpush1.bf16.msra.mxu0 %v5699
      %5717 = vmatprep.subr.bf16.mxu0 0
      %5718 = vmatpush1.bf16.msra.mxu0 %v5700
      %5719 = vmatprep.subr.bf16.mxu0 0
      %5720 = vmatpush1.bf16.msra.mxu0 %v5701
      %5721 = vmatprep.subr.bf16.mxu0 0
      %5722 = vmatpush1.bf16.msra.mxu0 %v5702
      %5723 = vmatprep.subr.bf16.mxu0 0
      %5724 = vmatpush1.bf16.msra.mxu0 %v5703
      %5725 = vmatprep.subr.bf16.mxu0 0
      %5726 = vmatpush1.bf16.msra.mxu0 %v5704
      %5727 = vmatprep.subr.bf16.mxu0 0
      %5728 = vmatpush1.bf16.msra.mxu0 %v5705
      %5729 = vmatprep.subr.bf16.mxu0 0
      %5730 = vmatpush1.bf16.msra.mxu0 %v5706
      %5731 = vmatprep.subr.bf16.mxu0 0
      %5732 = vmatpush1.bf16.msra.mxu0 0
      %5733 = vmatprep.subr.bf16.mxu0 0
      %5734 = vmatpush1.bf16.msra.mxu0 0
      %5735 = vmatprep.subr.bf16.mxu0 0
      %5736 = vmatpush1.bf16.msra.mxu0 0
      %5737 = vmatprep.subr.bf16.mxu0 0
      %5738 = vmatpush1.bf16.msra.mxu0 0
      %5739 = vmatprep.subr.bf16.mxu0 0
      %5740 = vmatpush1.bf16.msra.mxu0 0
      %5741 = vmatprep.subr.bf16.mxu0 0
      %5742 = vmatpush1.bf16.msra.mxu0 0
      %5743 = vmatprep.subr.bf16.mxu0 0
      %5744 = vmatpush1.bf16.msra.mxu0 0
      %5745 = vmatprep.subr.bf16.mxu0 0
      %5746 = vmatpush1.bf16.msra.mxu0 0
      %5747 = vmatprep.mubr.bf16.mxu0 0
      %5748 = vmatmul.mubr.bf16.gmra.mrb[0].mxu0 %v5635
      %v5749 = vpop.f32.mrb[0].mxu0
      %v5750 = vadd.f32 0.0, %v5749
      %v5751 = vpop.f32.mrb[0].mxu0
      %v5752 = vpop.f32.mrb[0].mxu0
      %v5753 = vadd.f32 0.0, %v5752
      %v5754 = vpop.f32.mrb[0].mxu0
      %5755 = vmatprep.mubr.bf16.mxu0 0
      %5756 = vmatmul.mubr.bf16.gmra.mrb[0].mxu0 %v5636
      %v5757 = vpop.f32.mrb[0].mxu0
      %v5758 = vadd.f32 0.0, %v5757
      %v5759 = vpop.f32.mrb[0].mxu0
      %v5760 = vpop.f32.mrb[0].mxu0
      %v5761 = vadd.f32 0.0, %v5760
      %v5762 = vpop.f32.mrb[0].mxu0
      %5763 = vmatprep.mubr.bf16.mxu0 0
      %5764 = vmatmul.mubr.bf16.gmra.mrb[0].mxu0 %v5637
      %v5765 = vpop.f32.mrb[0].mxu0
      %v5766 = vadd.f32 0.0, %v5765
      %v5767 = vpop.f32.mrb[0].mxu0
      %v5768 = vpop.f32.mrb[0].mxu0
      %v5769 = vadd.f32 0.0, %v5768
      %v5770 = vpop.f32.mrb[0].mxu0
      %5771 = vmatprep.mubr.bf16.mxu0 0
      %5772 = vmatmul.mubr.bf16.gmra.mrb[0].mxu0 %v5638
      %v5773 = vpop.f32.mrb[0].mxu0
      %v5774 = vadd.f32 0.0, %v5773
      %v5775 = vpop.f32.mrb[0].mxu0
      %v5776 = vpop.f32.mrb[0].mxu0
      %v5777 = vadd.f32 0.0, %v5776
      %v5778 = vpop.f32.mrb[0].mxu0
      %5779 = vmatprep.mubr.bf16.mxu0 0
      %5780 = vmatmul.mubr.bf16.gmra.mrb[0].mxu0 %v5639
      %v5781 = vpop.f32.mrb[0].mxu0
      %v5782 = vadd.f32 0.0, %v5781
      %v5783 = vpop.f32.mrb[0].mxu0
      %v5784 = vpop.f32.mrb[0].mxu0
      %v5785 = vadd.f32 0.0, %v5784
      %v5786 = vpop.f32.mrb[0].mxu0
      %5787 = vmatprep.mubr.bf16.mxu0 0
      %5788 = vmatmul.mubr.bf16.gmra.mrb[0].mxu0 %v5640
      %v5789 = vpop.f32.mrb[0].mxu0
      %v5790 = vadd.f32 0.0, %v5789
      %v5791 = vpop.f32.mrb[0].mxu0
      %v5792 = vpop.f32.mrb[0].mxu0
      %v5793 = vadd.f32 0.0, %v5792
      %v5794 = vpop.f32.mrb[0].mxu0
      %5795 = vmatprep.mubr.bf16.mxu0 0
      %5796 = vmatmul.mubr.bf16.gmra.mrb[0].mxu0 %v5641
      %v5797 = vpop.f32.mrb[0].mxu0
      %v5798 = vadd.f32 0.0, %v5797
      %v5799 = vpop.f32.mrb[0].mxu0
      %v5800 = vpop.f32.mrb[0].mxu0
      %v5801 = vadd.f32 0.0, %v5800
      %v5802 = vpop.f32.mrb[0].mxu0
      %5803 = vmatprep.mubr.bf16.mxu0 0
      %5804 = vmatmul.mubr.bf16.gmra.mrb[0].mxu0 %v5642
      %v5805 = vpop.f32.mrb[0].mxu0
      %v5806 = vadd.f32 0.0, %v5805
      %v5807 = vpop.f32.mrb[0].mxu0
      %v5808 = vpop.f32.mrb[0].mxu0
      %v5809 = vadd.f32 0.0, %v5808
      %v5810 = vpop.f32.mrb[0].mxu0
      %5811 = vmatprep.mubr.bf16.mxu0 0
      %5812 = vmatmul.mubr.bf16.gmra.mrb[0].mxu0 %v5643
      %v5813 = vpop.f32.mrb[0].mxu0
      %v5814 = vadd.f32 0.0, %v5813
      %v5815 = vpop.f32.mrb[0].mxu0
      %v5816 = vpop.f32.mrb[0].mxu0
      %v5817 = vadd.f32 0.0, %v5816
      %v5818 = vpop.f32.mrb[0].mxu0
      %5819 = vmatprep.mubr.bf16.mxu0 0
      %5820 = vmatmul.mubr.bf16.gmra.mrb[0].mxu0 %v5644
      %v5821 = vpop.f32.mrb[0].mxu0
      %v5822 = vadd.f32 0.0, %v5821
      %v5823 = vpop.f32.mrb[0].mxu0
      %v5824 = vpop.f32.mrb[0].mxu0
      %v5825 = vadd.f32 0.0, %v5824
      %v5826 = vpop.f32.mrb[0].mxu0
      %5827 = vmatprep.mubr.bf16.mxu0 0
      %5828 = vmatmul.mubr.bf16.gmra.mrb[0].mxu0 %v5645
      %v5829 = vpop.f32.mrb[0].mxu0
      %v5830 = vadd.f32 0.0, %v5829
      %v5831 = vpop.f32.mrb[0].mxu0
      %v5832 = vpop.f32.mrb[0].mxu0
      %v5833 = vadd.f32 0.0, %v5832
      %v5834 = vpop.f32.mrb[0].mxu0
      %5835 = vmatprep.mubr.bf16.mxu0 0
      %5836 = vmatmul.mubr.bf16.gmra.mrb[0].mxu0 %v5646
      %v5837 = vpop.f32.mrb[0].mxu0
      %v5838 = vadd.f32 0.0, %v5837
      %v5839 = vpop.f32.mrb[0].mxu0
      %v5840 = vpop.f32.mrb[0].mxu0
      %v5841 = vadd.f32 0.0, %v5840
      %v5842 = vpop.f32.mrb[0].mxu0
      %5843 = vmatprep.mubr.bf16.mxu0 0
      %5844 = vmatmul.mubr.bf16.gmra.mrb[0].mxu0 %v5647
      %v5845 = vpop.f32.mrb[0].mxu0
      %v5846 = vadd.f32 0.0, %v5845
      %v5847 = vpop.f32.mrb[0].mxu0
      %v5848 = vpop.f32.mrb[0].mxu0
      %v5849 = vadd.f32 0.0, %v5848
      %v5850 = vpop.f32.mrb[0].mxu0
      %5851 = vmatprep.mubr.bf16.mxu0 0
      %5852 = vmatmul.mubr.bf16.gmra.mrb[0].mxu0 %v5648
      %v5853 = vpop.f32.mrb[0].mxu0
      %v5854 = vadd.f32 0.0, %v5853
      %v5855 = vpop.f32.mrb[0].mxu0
      %v5856 = vpop.f32.mrb[0].mxu0
      %v5857 = vadd.f32 0.0, %v5856
      %v5858 = vpop.f32.mrb[0].mxu0
      %5859 = vmatprep.mubr.bf16.mxu0 0
      %5860 = vmatmul.mubr.bf16.gmra.mrb[0].mxu0 %v5649
      %v5861 = vpop.f32.mrb[0].mxu0
      %v5862 = vadd.f32 0.0, %v5861
      %v5863 = vpop.f32.mrb[0].mxu0
      %v5864 = vpop.f32.mrb[0].mxu0
      %v5865 = vadd.f32 0.0, %v5864
      %v5866 = vpop.f32.mrb[0].mxu0
      %5867 = vmatprep.mubr.bf16.mxu0 0
      %5868 = vmatmul.mubr.bf16.gmra.mrb[0].mxu0 %v5650
      %v5869 = vpop.f32.mrb[0].mxu0
      %v5870 = vadd.f32 0.0, %v5869
      %v5871 = vpop.f32.mrb[0].mxu0
      %v5872 = vpop.f32.mrb[0].mxu0
      %v5873 = vadd.f32 0.0, %v5872
      %v5874 = vpop.f32.mrb[0].mxu0
      %5875 = vdwg.mxu0
      %v5876 = vadd.f32 %v5522, %v5750
      %v5877 = vadd.f32 %v5523, %v5753
      %v5878 = vadd.f32 %v5524, %v5758
      %v5879 = vadd.f32 %v5525, %v5761
      %v5880 = vadd.f32 %v5526, %v5766
      %v5881 = vadd.f32 %v5527, %v5769
      %v5882 = vadd.f32 %v5528, %v5774
      %v5883 = vadd.f32 %v5529, %v5777
      %v5884 = vadd.f32 %v5530, %v5782
      %v5885 = vadd.f32 %v5531, %v5785
      %v5886 = vadd.f32 %v5532, %v5790
      %v5887 = vadd.f32 %v5533, %v5793
      %v5888 = vadd.f32 %v5534, %v5798
      %v5889 = vadd.f32 %v5535, %v5801
      %v5890 = vadd.f32 %v5536, %v5806
      %v5891 = vadd.f32 %v5537, %v5809
      %v5892 = vadd.f32 %v5538, %v5814
      %v5893 = vadd.f32 %v5539, %v5817
      %v5894 = vadd.f32 %v5540, %v5822
      %v5895 = vadd.f32 %v5541, %v5825
      %v5896 = vadd.f32 %v5542, %v5830
      %v5897 = vadd.f32 %v5543, %v5833
      %v5898 = vadd.f32 %v5544, %v5838
      %v5899 = vadd.f32 %v5545, %v5841
      %v5900 = vadd.f32 %v5546, %v5846
      %v5901 = vadd.f32 %v5547, %v5849
      %v5902 = vadd.f32 %v5548, %v5854
      %v5903 = vadd.f32 %v5549, %v5857
      %v5904 = vadd.f32 %v5550, %v5862
      %v5905 = vadd.f32 %v5551, %v5865
      %v5906 = vadd.f32 %v5552, %v5870
      %v5907 = vadd.f32 %v5553, %v5873
      %v5908 = vld [vmem:[%s4831 + $0x8] sm:$0xf]
      %v5909 = vld [vmem:[%s4831 + $0xc] sm:$0xf]
      %v5910 = vld [vmem:[%s4831 + $0x10] sm:$0x1]
      %v5911 = vld [vmem:[%s4831 + $0x1c] sm:$0xf]
      %v5912 = vld [vmem:[%s4831 + $0x20] sm:$0xf]
      %v5913 = vld [vmem:[%s4831 + $0x24] sm:$0x1]
      %v5914 = vld [vmem:[%s4831 + $0x30] sm:$0xf]
      %v5915 = vld [vmem:[%s4831 + $0x34] sm:$0xf]
      %v5916 = vld [vmem:[%s4831 + $0x38] sm:$0x1]
      %v5917 = vld [vmem:[%s4831 + $0x44] sm:$0xf]
      %v5918 = vld [vmem:[%s4831 + $0x48] sm:$0xf]
      %v5919 = vld [vmem:[%s4831 + $0x4c] sm:$0x1]
      %v5920 = vld [vmem:[%s4831 + $0x58] sm:$0xf]
      %v5921 = vld [vmem:[%s4831 + $0x5c] sm:$0xf]
      %v5922 = vld [vmem:[%s4831 + $0x60] sm:$0x1]
      %v5923 = vld [vmem:[%s4831 + $0x6c] sm:$0xf]
      %v5924 = vld [vmem:[%s4831 + $0x70] sm:$0xf]
      %v5925 = vld [vmem:[%s4831 + $0x74] sm:$0x1]
      %v5926 = vld [vmem:[%s4831 + $0x80] sm:$0xf]
      %v5927 = vld [vmem:[%s4831 + $0x84] sm:$0xf]
      %v5928 = vld [vmem:[%s4831 + $0x88] sm:$0x1]
      %v5929 = vld [vmem:[%s4831 + $0x94] sm:$0xf]
      %v5930 = vld [vmem:[%s4831 + $0x98] sm:$0xf]
      %v5931 = vld [vmem:[%s4831 + $0x9c] sm:$0x1]
      %v5932 = vld [vmem:[%s4831 + $0xa8] sm:$0xf]
      %v5933 = vld [vmem:[%s4831 + $0xac] sm:$0xf]
      %v5934 = vld [vmem:[%s4831 + $0xb0] sm:$0x1]
      %v5935 = vld [vmem:[%s4831 + $0xbc] sm:$0xf]
      %v5936 = vld [vmem:[%s4831 + $0xc0] sm:$0xf]
      %v5937 = vld [vmem:[%s4831 + $0xc4] sm:$0x1]
      %v5938 = vld [vmem:[%s4831 + $0xd0] sm:$0xf]
      %v5939 = vld [vmem:[%s4831 + $0xd4] sm:$0xf]
      %v5940 = vld [vmem:[%s4831 + $0xd8] sm:$0x1]
      %v5941 = vld [vmem:[%s4831 + $0xe4] sm:$0xf]
      %v5942 = vld [vmem:[%s4831 + $0xe8] sm:$0xf]
      %v5943 = vld [vmem:[%s4831 + $0xec] sm:$0x1]
      %v5944 = vld [vmem:[%s4831 + $0xf8] sm:$0xf]
      %v5945 = vld [vmem:[%s4831 + $0xfc] sm:$0xf]
      %v5946 = vld [vmem:[%s4831 + $0x100] sm:$0x1]
      %v5947 = vld [vmem:[%s4831 + $0x10c] sm:$0xf]
      %v5948 = vld [vmem:[%s4831 + $0x110] sm:$0xf]
      %v5949 = vld [vmem:[%s4831 + $0x114] sm:$0x1]
      %v5950 = vld [vmem:[%s4831 + $0x120] sm:$0xf]
      %v5951 = vld [vmem:[%s4831 + $0x124] sm:$0xf]
      %v5952 = vld [vmem:[%s4831 + $0x128] sm:$0x1]
      %v5953 = vld [vmem:[%s4831 + $0x134] sm:$0xf]
      %v5954 = vld [vmem:[%s4831 + $0x138] sm:$0xf]
      %v5955 = vld [vmem:[%s4831 + $0x13c] sm:$0x1]
      %v5957 = vshrl.u32 %v5908, 16
      %v5959 = vrot.slane %v5957, 4
      %v5960 = vshll.u32 %v5908, 16
      %v5962 = vrot.slane %v5960, 5
      %v5963 = vor.u32 %v5959, %v5962
      %v5964 = vrot.slane %v5963, 4
      %v5966 = vshll.u32 %v5909, 16
      %v5968 = vrot.slane %v5966, 5
      %v5969 = vsel %vm2294, %v5964, %v5968
      %v5970 = vshrl.u32 %v5909, 16
      %v5972 = vrot.slane %v5970, 4
      %v5973 = vor.u32 %v5972, %v5968
      %v5974 = vrot.slane %v5973, 4
      %v5976 = vshll.u32 %v5910, 16
      %v5978 = vrot.slane %v5976, 5
      %v5979 = vsel %vm2294, %v5974, %v5978
      %v5981 = vshrl.u32 %v5911, 16
      %v5983 = vrot.slane %v5981, 4
      %v5984 = vshll.u32 %v5911, 16
      %v5986 = vrot.slane %v5984, 5
      %v5987 = vor.u32 %v5983, %v5986
      %v5988 = vrot.slane %v5987, 4
      %v5990 = vshll.u32 %v5912, 16
      %v5992 = vrot.slane %v5990, 5
      %v5993 = vsel %vm2294, %v5988, %v5992
      %v5994 = vshrl.u32 %v5912, 16
      %v5996 = vrot.slane %v5994, 4
      %v5997 = vor.u32 %v5996, %v5992
      %v5998 = vrot.slane %v5997, 4
      %v6000 = vshll.u32 %v5913, 16
      %v6002 = vrot.slane %v6000, 5
      %v6003 = vsel %vm2294, %v5998, %v6002
      %v6005 = vshrl.u32 %v5914, 16
      %v6007 = vrot.slane %v6005, 4
      %v6008 = vshll.u32 %v5914, 16
      %v6010 = vrot.slane %v6008, 5
      %v6011 = vor.u32 %v6007, %v6010
      %v6012 = vrot.slane %v6011, 4
      %v6014 = vshll.u32 %v5915, 16
      %v6016 = vrot.slane %v6014, 5
      %v6017 = vsel %vm2294, %v6012, %v6016
      %v6018 = vshrl.u32 %v5915, 16
      %v6020 = vrot.slane %v6018, 4
      %v6021 = vor.u32 %v6020, %v6016
      %v6022 = vrot.slane %v6021, 4
      %v6024 = vshll.u32 %v5916, 16
      %v6026 = vrot.slane %v6024, 5
      %v6027 = vsel %vm2294, %v6022, %v6026
      %v6029 = vshrl.u32 %v5917, 16
      %v6031 = vrot.slane %v6029, 4
      %v6032 = vshll.u32 %v5917, 16
      %v6034 = vrot.slane %v6032, 5
      %v6035 = vor.u32 %v6031, %v6034
      %v6036 = vrot.slane %v6035, 4
      %v6038 = vshll.u32 %v5918, 16
      %v6040 = vrot.slane %v6038, 5
      %v6041 = vsel %vm2294, %v6036, %v6040
      %v6042 = vshrl.u32 %v5918, 16
      %v6044 = vrot.slane %v6042, 4
      %v6045 = vor.u32 %v6044, %v6040
      %v6046 = vrot.slane %v6045, 4
      %v6048 = vshll.u32 %v5919, 16
      %v6050 = vrot.slane %v6048, 5
      %v6051 = vsel %vm2294, %v6046, %v6050
      %v6053 = vshrl.u32 %v5920, 16
      %v6055 = vrot.slane %v6053, 4
      %v6056 = vshll.u32 %v5920, 16
      %v6058 = vrot.slane %v6056, 5
      %v6059 = vor.u32 %v6055, %v6058
      %v6060 = vrot.slane %v6059, 4
      %v6062 = vshll.u32 %v5921, 16
      %v6064 = vrot.slane %v6062, 5
      %v6065 = vsel %vm2294, %v6060, %v6064
      %v6066 = vshrl.u32 %v5921, 16
      %v6068 = vrot.slane %v6066, 4
      %v6069 = vor.u32 %v6068, %v6064
      %v6070 = vrot.slane %v6069, 4
      %v6072 = vshll.u32 %v5922, 16
      %v6074 = vrot.slane %v6072, 5
      %v6075 = vsel %vm2294, %v6070, %v6074
      %v6077 = vshrl.u32 %v5923, 16
      %v6079 = vrot.slane %v6077, 4
      %v6080 = vshll.u32 %v5923, 16
      %v6082 = vrot.slane %v6080, 5
      %v6083 = vor.u32 %v6079, %v6082
      %v6084 = vrot.slane %v6083, 4
      %v6086 = vshll.u32 %v5924, 16
      %v6088 = vrot.slane %v6086, 5
      %v6089 = vsel %vm2294, %v6084, %v6088
      %v6090 = vshrl.u32 %v5924, 16
      %v6092 = vrot.slane %v6090, 4
      %v6093 = vor.u32 %v6092, %v6088
      %v6094 = vrot.slane %v6093, 4
      %v6096 = vshll.u32 %v5925, 16
      %v6098 = vrot.slane %v6096, 5
      %v6099 = vsel %vm2294, %v6094, %v6098
      %v6101 = vshrl.u32 %v5926, 16
      %v6103 = vrot.slane %v6101, 4
      %v6104 = vshll.u32 %v5926, 16
      %v6106 = vrot.slane %v6104, 5
      %v6107 = vor.u32 %v6103, %v6106
      %v6108 = vrot.slane %v6107, 4
      %v6110 = vshll.u32 %v5927, 16
      %v6112 = vrot.slane %v6110, 5
      %v6113 = vsel %vm2294, %v6108, %v6112
      %v6114 = vshrl.u32 %v5927, 16
      %v6116 = vrot.slane %v6114, 4
      %v6117 = vor.u32 %v6116, %v6112
      %v6118 = vrot.slane %v6117, 4
      %v6120 = vshll.u32 %v5928, 16
      %v6122 = vrot.slane %v6120, 5
      %v6123 = vsel %vm2294, %v6118, %v6122
      %v6125 = vshrl.u32 %v5929, 16
      %v6127 = vrot.slane %v6125, 4
      %v6128 = vshll.u32 %v5929, 16
      %v6130 = vrot.slane %v6128, 5
      %v6131 = vor.u32 %v6127, %v6130
      %v6132 = vrot.slane %v6131, 4
      %v6134 = vshll.u32 %v5930, 16
      %v6136 = vrot.slane %v6134, 5
      %v6137 = vsel %vm2294, %v6132, %v6136
      %v6138 = vshrl.u32 %v5930, 16
      %v6140 = vrot.slane %v6138, 4
      %v6141 = vor.u32 %v6140, %v6136
      %v6142 = vrot.slane %v6141, 4
      %v6144 = vshll.u32 %v5931, 16
      %v6146 = vrot.slane %v6144, 5
      %v6147 = vsel %vm2294, %v6142, %v6146
      %v6149 = vshrl.u32 %v5932, 16
      %v6151 = vrot.slane %v6149, 4
      %v6152 = vshll.u32 %v5932, 16
      %v6154 = vrot.slane %v6152, 5
      %v6155 = vor.u32 %v6151, %v6154
      %v6156 = vrot.slane %v6155, 4
      %v6158 = vshll.u32 %v5933, 16
      %v6160 = vrot.slane %v6158, 5
      %v6161 = vsel %vm2294, %v6156, %v6160
      %v6162 = vshrl.u32 %v5933, 16
      %v6164 = vrot.slane %v6162, 4
      %v6165 = vor.u32 %v6164, %v6160
      %v6166 = vrot.slane %v6165, 4
      %v6168 = vshll.u32 %v5934, 16
      %v6170 = vrot.slane %v6168, 5
      %v6171 = vsel %vm2294, %v6166, %v6170
      %v6173 = vshrl.u32 %v5935, 16
      %v6175 = vrot.slane %v6173, 4
      %v6176 = vshll.u32 %v5935, 16
      %v6178 = vrot.slane %v6176, 5
      %v6179 = vor.u32 %v6175, %v6178
      %v6180 = vrot.slane %v6179, 4
      %v6182 = vshll.u32 %v5936, 16
      %v6184 = vrot.slane %v6182, 5
      %v6185 = vsel %vm2294, %v6180, %v6184
      %v6186 = vshrl.u32 %v5936, 16
      %v6188 = vrot.slane %v6186, 4
      %v6189 = vor.u32 %v6188, %v6184
      %v6190 = vrot.slane %v6189, 4
      %v6192 = vshll.u32 %v5937, 16
      %v6194 = vrot.slane %v6192, 5
      %v6195 = vsel %vm2294, %v6190, %v6194
      %v6197 = vshrl.u32 %v5938, 16
      %v6199 = vrot.slane %v6197, 4
      %v6200 = vshll.u32 %v5938, 16
      %v6202 = vrot.slane %v6200, 5
      %v6203 = vor.u32 %v6199, %v6202
      %v6204 = vrot.slane %v6203, 4
      %v6206 = vshll.u32 %v5939, 16
      %v6208 = vrot.slane %v6206, 5
      %v6209 = vsel %vm2294, %v6204, %v6208
      %v6210 = vshrl.u32 %v5939, 16
      %v6212 = vrot.slane %v6210, 4
      %v6213 = vor.u32 %v6212, %v6208
      %v6214 = vrot.slane %v6213, 4
      %v6216 = vshll.u32 %v5940, 16
      %v6218 = vrot.slane %v6216, 5
      %v6219 = vsel %vm2294, %v6214, %v6218
      %v6221 = vshrl.u32 %v5941, 16
      %v6223 = vrot.slane %v6221, 4
      %v6224 = vshll.u32 %v5941, 16
      %v6226 = vrot.slane %v6224, 5
      %v6227 = vor.u32 %v6223, %v6226
      %v6228 = vrot.slane %v6227, 4
      %v6230 = vshll.u32 %v5942, 16
      %v6232 = vrot.slane %v6230, 5
      %v6233 = vsel %vm2294, %v6228, %v6232
      %v6234 = vshrl.u32 %v5942, 16
      %v6236 = vrot.slane %v6234, 4
      %v6237 = vor.u32 %v6236, %v6232
      %v6238 = vrot.slane %v6237, 4
      %v6240 = vshll.u32 %v5943, 16
      %v6242 = vrot.slane %v6240, 5
      %v6243 = vsel %vm2294, %v6238, %v6242
      %v6245 = vshrl.u32 %v5944, 16
      %v6247 = vrot.slane %v6245, 4
      %v6248 = vshll.u32 %v5944, 16
      %v6250 = vrot.slane %v6248, 5
      %v6251 = vor.u32 %v6247, %v6250
      %v6252 = vrot.slane %v6251, 4
      %v6254 = vshll.u32 %v5945, 16
      %v6256 = vrot.slane %v6254, 5
      %v6257 = vsel %vm2294, %v6252, %v6256
      %v6258 = vshrl.u32 %v5945, 16
      %v6260 = vrot.slane %v6258, 4
      %v6261 = vor.u32 %v6260, %v6256
      %v6262 = vrot.slane %v6261, 4
      %v6264 = vshll.u32 %v5946, 16
      %v6266 = vrot.slane %v6264, 5
      %v6267 = vsel %vm2294, %v6262, %v6266
      %v6269 = vshrl.u32 %v5947, 16
      %v6271 = vrot.slane %v6269, 4
      %v6272 = vshll.u32 %v5947, 16
      %v6274 = vrot.slane %v6272, 5
      %v6275 = vor.u32 %v6271, %v6274
      %v6276 = vrot.slane %v6275, 4
      %v6278 = vshll.u32 %v5948, 16
      %v6280 = vrot.slane %v6278, 5
      %v6281 = vsel %vm2294, %v6276, %v6280
      %v6282 = vshrl.u32 %v5948, 16
      %v6284 = vrot.slane %v6282, 4
      %v6285 = vor.u32 %v6284, %v6280
      %v6286 = vrot.slane %v6285, 4
      %v6288 = vshll.u32 %v5949, 16
      %v6290 = vrot.slane %v6288, 5
      %v6291 = vsel %vm2294, %v6286, %v6290
      %v6293 = vshrl.u32 %v5950, 16
      %v6295 = vrot.slane %v6293, 4
      %v6296 = vshll.u32 %v5950, 16
      %v6298 = vrot.slane %v6296, 5
      %v6299 = vor.u32 %v6295, %v6298
      %v6300 = vrot.slane %v6299, 4
      %v6302 = vshll.u32 %v5951, 16
      %v6304 = vrot.slane %v6302, 5
      %v6305 = vsel %vm2294, %v6300, %v6304
      %v6306 = vshrl.u32 %v5951, 16
      %v6308 = vrot.slane %v6306, 4
      %v6309 = vor.u32 %v6308, %v6304
      %v6310 = vrot.slane %v6309, 4
      %v6312 = vshll.u32 %v5952, 16
      %v6314 = vrot.slane %v6312, 5
      %v6315 = vsel %vm2294, %v6310, %v6314
      %v6317 = vshrl.u32 %v5953, 16
      %v6319 = vrot.slane %v6317, 4
      %v6320 = vshll.u32 %v5953, 16
      %v6322 = vrot.slane %v6320, 5
      %v6323 = vor.u32 %v6319, %v6322
      %v6324 = vrot.slane %v6323, 4
      %v6326 = vshll.u32 %v5954, 16
      %v6328 = vrot.slane %v6326, 5
      %v6329 = vsel %vm2294, %v6324, %v6328
      %v6330 = vshrl.u32 %v5954, 16
      %v6332 = vrot.slane %v6330, 4
      %v6333 = vor.u32 %v6332, %v6328
      %v6334 = vrot.slane %v6333, 4
      %v6336 = vshll.u32 %v5955, 16
      %v6338 = vrot.slane %v6336, 5
      %v6339 = vsel %vm2294, %v6334, %v6338
      %s6340 = scalar_lea.vmem %s4, 512
      %v6341 = vld [vmem:[%s6340] sm:$0xf]
      %v6342 = vld [vmem:[%s6340 + $0x4] sm:$0xf]
      %v6343 = vld [vmem:[%s6340 + $0x8] sm:$0xf]
      %v6344 = vld [vmem:[%s6340 + $0xc] sm:$0xf]
      %v6345 = vld [vmem:[%s6340 + $0x10] sm:$0xf]
      %v6346 = vld [vmem:[%s6340 + $0x14] sm:$0xf]
      %v6347 = vld [vmem:[%s6340 + $0x18] sm:$0xf]
      %v6348 = vld [vmem:[%s6340 + $0x1c] sm:$0xf]
      %v6349 = vld [vmem:[%s6340 + $0x20] sm:$0xf]
      %v6350 = vld [vmem:[%s6340 + $0x24] sm:$0xf]
      %v6351 = vld [vmem:[%s6340 + $0x28] sm:$0xf]
      %v6352 = vld [vmem:[%s6340 + $0x2c] sm:$0xf]
      %v6353 = vld [vmem:[%s6340 + $0x30] sm:$0xf]
      %v6354 = vld [vmem:[%s6340 + $0x34] sm:$0xf]
      %v6355 = vld [vmem:[%s6340 + $0x38] sm:$0xf]
      %v6356 = vld [vmem:[%s6340 + $0x3c] sm:$0xf]
      %v6357 = vunpack.c.l.b16 %v5969
      %v6358 = vunpack.c.l.b16 %v5979
      %v6359 = vunpack.c.l.b16 %v5993
      %v6360 = vunpack.c.l.b16 %v6003
      %v6361 = vunpack.c.l.b16 %v6017
      %v6362 = vunpack.c.l.b16 %v6027
      %v6363 = vunpack.c.l.b16 %v6041
      %v6364 = vunpack.c.l.b16 %v6051
      %v6365 = vunpack.c.l.b16 %v6065
      %v6366 = vunpack.c.l.b16 %v6075
      %v6367 = vunpack.c.l.b16 %v6089
      %v6368 = vunpack.c.l.b16 %v6099
      %v6369 = vunpack.c.l.b16 %v6113
      %v6370 = vunpack.c.l.b16 %v6123
      %v6371 = vunpack.c.l.b16 %v6137
      %v6372 = vunpack.c.l.b16 %v6147
      %v6373 = vunpack.c.l.b16 %v6161
      %v6374 = vunpack.c.l.b16 %v6171
      %v6375 = vunpack.c.l.b16 %v6185
      %v6376 = vunpack.c.l.b16 %v6195
      %v6377 = vunpack.c.l.b16 %v6209
      %v6378 = vunpack.c.l.b16 %v6219
      %v6379 = vunpack.c.l.b16 %v6233
      %v6380 = vunpack.c.l.b16 %v6243
      %v6381 = vunpack.c.l.b16 %v6257
      %v6382 = vunpack.c.l.b16 %v6267
      %v6383 = vunpack.c.l.b16 %v6281
      %v6384 = vunpack.c.l.b16 %v6291
      %v6385 = vunpack.c.l.b16 %v6305
      %v6386 = vunpack.c.l.b16 %v6315
      %v6387 = vunpack.c.l.b16 %v6329
      %v6388 = vunpack.c.l.b16 %v6339
      %v6389 = vpack.c.b16 %v6358, %v6357
      %v6390 = vpack.c.b16 %v6360, %v6359
      %v6391 = vpack.c.b16 %v6362, %v6361
      %v6392 = vpack.c.b16 %v6364, %v6363
      %v6393 = vpack.c.b16 %v6366, %v6365
      %v6394 = vpack.c.b16 %v6368, %v6367
      %v6395 = vpack.c.b16 %v6370, %v6369
      %v6396 = vpack.c.b16 %v6372, %v6371
      %v6397 = vpack.c.b16 %v6374, %v6373
      %v6398 = vpack.c.b16 %v6376, %v6375
      %v6399 = vpack.c.b16 %v6378, %v6377
      %v6400 = vpack.c.b16 %v6380, %v6379
      %v6401 = vpack.c.b16 %v6382, %v6381
      %v6402 = vpack.c.b16 %v6384, %v6383
      %v6403 = vpack.c.b16 %v6386, %v6385
      %v6404 = vpack.c.b16 %v6388, %v6387
      %v6437 = vunpack.c.l.b16 %v6341
      %v6438 = vunpack.c.l.b16 %v6342
      %v6439 = vunpack.c.l.b16 %v6343
      %v6440 = vunpack.c.l.b16 %v6344
      %v6441 = vunpack.c.l.b16 %v6345
      %v6442 = vunpack.c.l.b16 %v6346
      %v6443 = vunpack.c.l.b16 %v6347
      %v6444 = vunpack.c.l.b16 %v6348
      %v6445 = vunpack.c.l.b16 %v6349
      %v6446 = vunpack.c.l.b16 %v6350
      %v6447 = vunpack.c.l.b16 %v6351
      %v6448 = vunpack.c.l.b16 %v6352
      %v6449 = vunpack.c.l.b16 %v6353
      %v6450 = vunpack.c.l.b16 %v6354
      %v6451 = vunpack.c.l.b16 %v6355
      %v6452 = vunpack.c.l.b16 %v6356
      %v6453 = vpack.c.b16 %v6438, %v6437
      %v6454 = vpack.c.b16 %v6440, %v6439
      %v6455 = vpack.c.b16 %v6442, %v6441
      %v6456 = vpack.c.b16 %v6444, %v6443
      %v6457 = vpack.c.b16 %v6446, %v6445
      %v6458 = vpack.c.b16 %v6448, %v6447
      %v6459 = vpack.c.b16 %v6450, %v6449
      %v6460 = vpack.c.b16 %v6452, %v6451
      %6469 = vmatprep.subr.bf16.mxu0 0
      %6470 = vmatpush1.bf16.msra.mxu0 %v6453
      %6471 = vmatprep.subr.bf16.mxu0 0
      %6472 = vmatpush1.bf16.msra.mxu0 %v6454
      %6473 = vmatprep.subr.bf16.mxu0 0
      %6474 = vmatpush1.bf16.msra.mxu0 %v6455
      %6475 = vmatprep.subr.bf16.mxu0 0
      %6476 = vmatpush1.bf16.msra.mxu0 %v6456
      %6477 = vmatprep.subr.bf16.mxu0 0
      %6478 = vmatpush1.bf16.msra.mxu0 %v6457
      %6479 = vmatprep.subr.bf16.mxu0 0
      %6480 = vmatpush1.bf16.msra.mxu0 %v6458
      %6481 = vmatprep.subr.bf16.mxu0 0
      %6482 = vmatpush1.bf16.msra.mxu0 %v6459
      %6483 = vmatprep.subr.bf16.mxu0 0
      %6484 = vmatpush1.bf16.msra.mxu0 %v6460
      %6485 = vmatprep.subr.bf16.mxu0 0
      %6486 = vmatpush1.bf16.msra.mxu0 0
      %6487 = vmatprep.subr.bf16.mxu0 0
      %6488 = vmatpush1.bf16.msra.mxu0 0
      %6489 = vmatprep.subr.bf16.mxu0 0
      %6490 = vmatpush1.bf16.msra.mxu0 0
      %6491 = vmatprep.subr.bf16.mxu0 0
      %6492 = vmatpush1.bf16.msra.mxu0 0
      %6493 = vmatprep.subr.bf16.mxu0 0
      %6494 = vmatpush1.bf16.msra.mxu0 0
      %6495 = vmatprep.subr.bf16.mxu0 0
      %6496 = vmatpush1.bf16.msra.mxu0 0
      %6497 = vmatprep.subr.bf16.mxu0 0
      %6498 = vmatpush1.bf16.msra.mxu0 0
      %6499 = vmatprep.subr.bf16.mxu0 0
      %6500 = vmatpush1.bf16.msra.mxu0 0
      %6501 = vmatprep.mubr.bf16.mxu0 0
      %6502 = vmatmul.mubr.bf16.gmra.mrb[0].mxu0 %v6389
      %v6503 = vpop.f32.mrb[0].mxu0
      %v6504 = vadd.f32 0.0, %v6503
      %v6505 = vpop.f32.mrb[0].mxu0
      %v6506 = vpop.f32.mrb[0].mxu0
      %v6507 = vadd.f32 0.0, %v6506
      %v6508 = vpop.f32.mrb[0].mxu0
      %6509 = vmatprep.mubr.bf16.mxu0 0
      %6510 = vmatmul.mubr.bf16.gmra.mrb[0].mxu0 %v6390
      %v6511 = vpop.f32.mrb[0].mxu0
      %v6512 = vadd.f32 0.0, %v6511
      %v6513 = vpop.f32.mrb[0].mxu0
      %v6514 = vpop.f32.mrb[0].mxu0
      %v6515 = vadd.f32 0.0, %v6514
      %v6516 = vpop.f32.mrb[0].mxu0
      %6517 = vmatprep.mubr.bf16.mxu0 0
      %6518 = vmatmul.mubr.bf16.gmra.mrb[0].mxu0 %v6391
      %v6519 = vpop.f32.mrb[0].mxu0
      %v6520 = vadd.f32 0.0, %v6519
      %v6521 = vpop.f32.mrb[0].mxu0
      %v6522 = vpop.f32.mrb[0].mxu0
      %v6523 = vadd.f32 0.0, %v6522
      %v6524 = vpop.f32.mrb[0].mxu0
      %6525 = vmatprep.mubr.bf16.mxu0 0
      %6526 = vmatmul.mubr.bf16.gmra.mrb[0].mxu0 %v6392
      %v6527 = vpop.f32.mrb[0].mxu0
      %v6528 = vadd.f32 0.0, %v6527
      %v6529 = vpop.f32.mrb[0].mxu0
      %v6530 = vpop.f32.mrb[0].mxu0
      %v6531 = vadd.f32 0.0, %v6530
      %v6532 = vpop.f32.mrb[0].mxu0
      %6533 = vmatprep.mubr.bf16.mxu0 0
      %6534 = vmatmul.mubr.bf16.gmra.mrb[0].mxu0 %v6393
      %v6535 = vpop.f32.mrb[0].mxu0
      %v6536 = vadd.f32 0.0, %v6535
      %v6537 = vpop.f32.mrb[0].mxu0
      %v6538 = vpop.f32.mrb[0].mxu0
      %v6539 = vadd.f32 0.0, %v6538
      %v6540 = vpop.f32.mrb[0].mxu0
      %6541 = vmatprep.mubr.bf16.mxu0 0
      %6542 = vmatmul.mubr.bf16.gmra.mrb[0].mxu0 %v6394
      %v6543 = vpop.f32.mrb[0].mxu0
      %v6544 = vadd.f32 0.0, %v6543
      %v6545 = vpop.f32.mrb[0].mxu0
      %v6546 = vpop.f32.mrb[0].mxu0
      %v6547 = vadd.f32 0.0, %v6546
      %v6548 = vpop.f32.mrb[0].mxu0
      %6549 = vmatprep.mubr.bf16.mxu0 0
      %6550 = vmatmul.mubr.bf16.gmra.mrb[0].mxu0 %v6395
      %v6551 = vpop.f32.mrb[0].mxu0
      %v6552 = vadd.f32 0.0, %v6551
      %v6553 = vpop.f32.mrb[0].mxu0
      %v6554 = vpop.f32.mrb[0].mxu0
      %v6555 = vadd.f32 0.0, %v6554
      %v6556 = vpop.f32.mrb[0].mxu0
      %6557 = vmatprep.mubr.bf16.mxu0 0
      %6558 = vmatmul.mubr.bf16.gmra.mrb[0].mxu0 %v6396
      %v6559 = vpop.f32.mrb[0].mxu0
      %v6560 = vadd.f32 0.0, %v6559
      %v6561 = vpop.f32.mrb[0].mxu0
      %v6562 = vpop.f32.mrb[0].mxu0
      %v6563 = vadd.f32 0.0, %v6562
      %v6564 = vpop.f32.mrb[0].mxu0
      %6565 = vmatprep.mubr.bf16.mxu0 0
      %6566 = vmatmul.mubr.bf16.gmra.mrb[0].mxu0 %v6397
      %v6567 = vpop.f32.mrb[0].mxu0
      %v6568 = vadd.f32 0.0, %v6567
      %v6569 = vpop.f32.mrb[0].mxu0
      %v6570 = vpop.f32.mrb[0].mxu0
      %v6571 = vadd.f32 0.0, %v6570
      %v6572 = vpop.f32.mrb[0].mxu0
      %6573 = vmatprep.mubr.bf16.mxu0 0
      %6574 = vmatmul.mubr.bf16.gmra.mrb[0].mxu0 %v6398
      %v6575 = vpop.f32.mrb[0].mxu0
      %v6576 = vadd.f32 0.0, %v6575
      %v6577 = vpop.f32.mrb[0].mxu0
      %v6578 = vpop.f32.mrb[0].mxu0
      %v6579 = vadd.f32 0.0, %v6578
      %v6580 = vpop.f32.mrb[0].mxu0
      %6581 = vmatprep.mubr.bf16.mxu0 0
      %6582 = vmatmul.mubr.bf16.gmra.mrb[0].mxu0 %v6399
      %v6583 = vpop.f32.mrb[0].mxu0
      %v6584 = vadd.f32 0.0, %v6583
      %v6585 = vpop.f32.mrb[0].mxu0
      %v6586 = vpop.f32.mrb[0].mxu0
      %v6587 = vadd.f32 0.0, %v6586
      %v6588 = vpop.f32.mrb[0].mxu0
      %6589 = vmatprep.mubr.bf16.mxu0 0
      %6590 = vmatmul.mubr.bf16.gmra.mrb[0].mxu0 %v6400
      %v6591 = vpop.f32.mrb[0].mxu0
      %v6592 = vadd.f32 0.0, %v6591
      %v6593 = vpop.f32.mrb[0].mxu0
      %v6594 = vpop.f32.mrb[0].mxu0
      %v6595 = vadd.f32 0.0, %v6594
      %v6596 = vpop.f32.mrb[0].mxu0
      %6597 = vmatprep.mubr.bf16.mxu0 0
      %6598 = vmatmul.mubr.bf16.gmra.mrb[0].mxu0 %v6401
      %v6599 = vpop.f32.mrb[0].mxu0
      %v6600 = vadd.f32 0.0, %v6599
      %v6601 = vpop.f32.mrb[0].mxu0
      %v6602 = vpop.f32.mrb[0].mxu0
      %v6603 = vadd.f32 0.0, %v6602
      %v6604 = vpop.f32.mrb[0].mxu0
      %6605 = vmatprep.mubr.bf16.mxu0 0
      %6606 = vmatmul.mubr.bf16.gmra.mrb[0].mxu0 %v6402
      %v6607 = vpop.f32.mrb[0].mxu0
      %v6608 = vadd.f32 0.0, %v6607
      %v6609 = vpop.f32.mrb[0].mxu0
      %v6610 = vpop.f32.mrb[0].mxu0
      %v6611 = vadd.f32 0.0, %v6610
      %v6612 = vpop.f32.mrb[0].mxu0
      %6613 = vmatprep.mubr.bf16.mxu0 0
      %6614 = vmatmul.mubr.bf16.gmra.mrb[0].mxu0 %v6403
      %v6615 = vpop.f32.mrb[0].mxu0
      %v6616 = vadd.f32 0.0, %v6615
      %v6617 = vpop.f32.mrb[0].mxu0
      %v6618 = vpop.f32.mrb[0].mxu0
      %v6619 = vadd.f32 0.0, %v6618
      %v6620 = vpop.f32.mrb[0].mxu0
      %6621 = vmatprep.mubr.bf16.mxu0 0
      %6622 = vmatmul.mubr.bf16.gmra.mrb[0].mxu0 %v6404
      %v6623 = vpop.f32.mrb[0].mxu0
      %v6624 = vadd.f32 0.0, %v6623
      %v6625 = vpop.f32.mrb[0].mxu0
      %v6626 = vpop.f32.mrb[0].mxu0
      %v6627 = vadd.f32 0.0, %v6626
      %v6628 = vpop.f32.mrb[0].mxu0
      %6629 = vdwg.mxu0
      %v6630 = vadd.f32 %v5876, %v6504
      %v6631 = vadd.f32 %v5877, %v6507
      %v6632 = vadd.f32 %v5878, %v6512
      %v6633 = vadd.f32 %v5879, %v6515
      %v6634 = vadd.f32 %v5880, %v6520
      %v6635 = vadd.f32 %v5881, %v6523
      %v6636 = vadd.f32 %v5882, %v6528
      %v6637 = vadd.f32 %v5883, %v6531
      %v6638 = vadd.f32 %v5884, %v6536
      %v6639 = vadd.f32 %v5885, %v6539
      %v6640 = vadd.f32 %v5886, %v6544
      %v6641 = vadd.f32 %v5887, %v6547
      %v6642 = vadd.f32 %v5888, %v6552
      %v6643 = vadd.f32 %v5889, %v6555
      %v6644 = vadd.f32 %v5890, %v6560
      %v6645 = vadd.f32 %v5891, %v6563
      %v6646 = vadd.f32 %v5892, %v6568
      %v6647 = vadd.f32 %v5893, %v6571
      %v6648 = vadd.f32 %v5894, %v6576
      %v6649 = vadd.f32 %v5895, %v6579
      %v6650 = vadd.f32 %v5896, %v6584
      %v6651 = vadd.f32 %v5897, %v6587
      %v6652 = vadd.f32 %v5898, %v6592
      %v6653 = vadd.f32 %v5899, %v6595
      %v6654 = vadd.f32 %v5900, %v6600
      %v6655 = vadd.f32 %v5901, %v6603
      %v6656 = vadd.f32 %v5902, %v6608
      %v6657 = vadd.f32 %v5903, %v6611
      %v6658 = vadd.f32 %v5904, %v6616
      %v6659 = vadd.f32 %v5905, %v6619
      %v6660 = vadd.f32 %v5906, %v6624
      %v6661 = vadd.f32 %v5907, %v6627
      %v6662 = vld [vmem:[%s5] sm:$0x1]
      %v6664 = vlaneseq
      %v6665 = vshrl.u32 %v6664, 7
      %v6666 = vsub.s32 0, %v6665
      %v6667 = vrot.slane %v6662, %v6666
      %v6669 = vmul.f32 %v6630, %v6667
      %v6670 = vmul.f32 %v6631, %v6667
      %v6671 = vmul.f32 %v6632, %v6667
      %v6672 = vmul.f32 %v6633, %v6667
      %v6673 = vmul.f32 %v6634, %v6667
      %v6674 = vmul.f32 %v6635, %v6667
      %v6675 = vmul.f32 %v6636, %v6667
      %v6676 = vmul.f32 %v6637, %v6667
      %v6677 = vmul.f32 %v6638, %v6667
      %v6678 = vmul.f32 %v6639, %v6667
      %v6679 = vmul.f32 %v6640, %v6667
      %v6680 = vmul.f32 %v6641, %v6667
      %v6681 = vmul.f32 %v6642, %v6667
      %v6682 = vmul.f32 %v6643, %v6667
      %v6683 = vmul.f32 %v6644, %v6667
      %v6684 = vmul.f32 %v6645, %v6667
      %v6685 = vmul.f32 %v6646, %v6667
      %v6686 = vmul.f32 %v6647, %v6667
      %v6687 = vmul.f32 %v6648, %v6667
      %v6688 = vmul.f32 %v6649, %v6667
      %v6689 = vmul.f32 %v6650, %v6667
      %v6690 = vmul.f32 %v6651, %v6667
      %v6691 = vmul.f32 %v6652, %v6667
      %v6692 = vmul.f32 %v6653, %v6667
      %v6693 = vmul.f32 %v6654, %v6667
      %v6694 = vmul.f32 %v6655, %v6667
      %v6695 = vmul.f32 %v6656, %v6667
      %v6696 = vmul.f32 %v6657, %v6667
      %v6697 = vmul.f32 %v6658, %v6667
      %v6698 = vmul.f32 %v6659, %v6667
      %v6699 = vmul.f32 %v6660, %v6667
      %v6700 = vmul.f32 %v6661, %v6667
      %v6701 = vld [vmem:[%s6] sm:$0x1]
      %v6703 = vlaneseq
      %v6704 = vshrl.u32 %v6703, 7
      %v6705 = vsub.s32 0, %v6704
      %v6706 = vrot.slane %v6701, %v6705
      %v6708 = vadd.f32 %v6669, %v6706
      %v6709 = vadd.f32 %v6670, %v6706
      %v6710 = vadd.f32 %v6671, %v6706
      %v6711 = vadd.f32 %v6672, %v6706
      %v6712 = vadd.f32 %v6673, %v6706
      %v6713 = vadd.f32 %v6674, %v6706
      %v6714 = vadd.f32 %v6675, %v6706
      %v6715 = vadd.f32 %v6676, %v6706
      %v6716 = vadd.f32 %v6677, %v6706
      %v6717 = vadd.f32 %v6678, %v6706
      %v6718 = vadd.f32 %v6679, %v6706
      %v6719 = vadd.f32 %v6680, %v6706
      %v6720 = vadd.f32 %v6681, %v6706
      %v6721 = vadd.f32 %v6682, %v6706
      %v6722 = vadd.f32 %v6683, %v6706
      %v6723 = vadd.f32 %v6684, %v6706
      %v6724 = vadd.f32 %v6685, %v6706
      %v6725 = vadd.f32 %v6686, %v6706
      %v6726 = vadd.f32 %v6687, %v6706
      %v6727 = vadd.f32 %v6688, %v6706
      %v6728 = vadd.f32 %v6689, %v6706
      %v6729 = vadd.f32 %v6690, %v6706
      %v6730 = vadd.f32 %v6691, %v6706
      %v6731 = vadd.f32 %v6692, %v6706
      %v6732 = vadd.f32 %v6693, %v6706
      %v6733 = vadd.f32 %v6694, %v6706
      %v6734 = vadd.f32 %v6695, %v6706
      %v6735 = vadd.f32 %v6696, %v6706
      %v6736 = vadd.f32 %v6697, %v6706
      %v6737 = vadd.f32 %v6698, %v6706
      %v6738 = vadd.f32 %v6699, %v6706
      %v6739 = vadd.f32 %v6700, %v6706
      %v6740 = vmin.f32 %v6708, 20.0
      %v6741 = vmin.f32 %v6709, 20.0
      %v6742 = vmin.f32 %v6710, 20.0
      %v6743 = vmin.f32 %v6711, 20.0
      %v6744 = vmin.f32 %v6712, 20.0
      %v6745 = vmin.f32 %v6713, 20.0
      %v6746 = vmin.f32 %v6714, 20.0
      %v6747 = vmin.f32 %v6715, 20.0
      %v6748 = vmin.f32 %v6716, 20.0
      %v6749 = vmin.f32 %v6717, 20.0
      %v6750 = vmin.f32 %v6718, 20.0
      %v6751 = vmin.f32 %v6719, 20.0
      %v6752 = vmin.f32 %v6720, 20.0
      %v6753 = vmin.f32 %v6721, 20.0
      %v6754 = vmin.f32 %v6722, 20.0
      %v6755 = vmin.f32 %v6723, 20.0
      %v6756 = vmin.f32 %v6724, 20.0
      %v6757 = vmin.f32 %v6725, 20.0
      %v6758 = vmin.f32 %v6726, 20.0
      %v6759 = vmin.f32 %v6727, 20.0
      %v6760 = vmin.f32 %v6728, 20.0
      %v6761 = vmin.f32 %v6729, 20.0
      %v6762 = vmin.f32 %v6730, 20.0
      %v6763 = vmin.f32 %v6731, 20.0
      %v6764 = vmin.f32 %v6732, 20.0
      %v6765 = vmin.f32 %v6733, 20.0
      %v6766 = vmin.f32 %v6734, 20.0
      %v6767 = vmin.f32 %v6735, 20.0
      %v6768 = vmin.f32 %v6736, 20.0
      %v6769 = vmin.f32 %v6737, 20.0
      %v6770 = vmin.f32 %v6738, 20.0
      %v6771 = vmin.f32 %v6739, 20.0
      %v6772 = vmul.f32 %v6740, 1.442695
      %v6773 = vpow.pop %v6772
      %v6774 = vmul.f32 %v6741, 1.442695
      %v6775 = vpow.pop %v6774
      %v6776 = vmul.f32 %v6742, 1.442695
      %v6777 = vpow.pop %v6776
      %v6778 = vmul.f32 %v6743, 1.442695
      %v6779 = vpow.pop %v6778
      %v6780 = vmul.f32 %v6744, 1.442695
      %v6781 = vpow.pop %v6780
      %v6782 = vmul.f32 %v6745, 1.442695
      %v6783 = vpow.pop %v6782
      %v6784 = vmul.f32 %v6746, 1.442695
      %v6785 = vpow.pop %v6784
      %v6786 = vmul.f32 %v6747, 1.442695
      %v6787 = vpow.pop %v6786
      %v6788 = vmul.f32 %v6748, 1.442695
      %v6789 = vpow.pop %v6788
      %v6790 = vmul.f32 %v6749, 1.442695
      %v6791 = vpow.pop %v6790
      %v6792 = vmul.f32 %v6750, 1.442695
      %v6793 = vpow.pop %v6792
      %v6794 = vmul.f32 %v6751, 1.442695
      %v6795 = vpow.pop %v6794
      %v6796 = vmul.f32 %v6752, 1.442695
      %v6797 = vpow.pop %v6796
      %v6798 = vmul.f32 %v6753, 1.442695
      %v6799 = vpow.pop %v6798
      %v6800 = vmul.f32 %v6754, 1.442695
      %v6801 = vpow.pop %v6800
      %v6802 = vmul.f32 %v6755, 1.442695
      %v6803 = vpow.pop %v6802
      %v6804 = vmul.f32 %v6756, 1.442695
      %v6805 = vpow.pop %v6804
      %v6806 = vmul.f32 %v6757, 1.442695
      %v6807 = vpow.pop %v6806
      %v6808 = vmul.f32 %v6758, 1.442695
      %v6809 = vpow.pop %v6808
      %v6810 = vmul.f32 %v6759, 1.442695
      %v6811 = vpow.pop %v6810
      %v6812 = vmul.f32 %v6760, 1.442695
      %v6813 = vpow.pop %v6812
      %v6814 = vmul.f32 %v6761, 1.442695
      %v6815 = vpow.pop %v6814
      %v6816 = vmul.f32 %v6762, 1.442695
      %v6817 = vpow.pop %v6816
      %v6818 = vmul.f32 %v6763, 1.442695
      %v6819 = vpow.pop %v6818
      %v6820 = vmul.f32 %v6764, 1.442695
      %v6821 = vpow.pop %v6820
      %v6822 = vmul.f32 %v6765, 1.442695
      %v6823 = vpow.pop %v6822
      %v6824 = vmul.f32 %v6766, 1.442695
      %v6825 = vpow.pop %v6824
      %v6826 = vmul.f32 %v6767, 1.442695
      %v6827 = vpow.pop %v6826
      %v6828 = vmul.f32 %v6768, 1.442695
      %v6829 = vpow.pop %v6828
      %v6830 = vmul.f32 %v6769, 1.442695
      %v6831 = vpow.pop %v6830
      %v6832 = vmul.f32 %v6770, 1.442695
      %v6833 = vpow.pop %v6832
      %v6834 = vmul.f32 %v6771, 1.442695
      %v6835 = vpow.pop %v6834
      %v6836 = vadd.f32 %v6773, 1.0
      %v6837 = vadd.f32 %v6775, 1.0
      %v6838 = vadd.f32 %v6777, 1.0
      %v6839 = vadd.f32 %v6779, 1.0
      %v6840 = vadd.f32 %v6781, 1.0
      %v6841 = vadd.f32 %v6783, 1.0
      %v6842 = vadd.f32 %v6785, 1.0
      %v6843 = vadd.f32 %v6787, 1.0
      %v6844 = vadd.f32 %v6789, 1.0
      %v6845 = vadd.f32 %v6791, 1.0
      %v6846 = vadd.f32 %v6793, 1.0
      %v6847 = vadd.f32 %v6795, 1.0
      %v6848 = vadd.f32 %v6797, 1.0
      %v6849 = vadd.f32 %v6799, 1.0
      %v6850 = vadd.f32 %v6801, 1.0
      %v6851 = vadd.f32 %v6803, 1.0
      %v6852 = vadd.f32 %v6805, 1.0
      %v6853 = vadd.f32 %v6807, 1.0
      %v6854 = vadd.f32 %v6809, 1.0
      %v6855 = vadd.f32 %v6811, 1.0
      %v6856 = vadd.f32 %v6813, 1.0
      %v6857 = vadd.f32 %v6815, 1.0
      %v6858 = vadd.f32 %v6817, 1.0
      %v6859 = vadd.f32 %v6819, 1.0
      %v6860 = vadd.f32 %v6821, 1.0
      %v6861 = vadd.f32 %v6823, 1.0
      %v6862 = vadd.f32 %v6825, 1.0
      %v6863 = vadd.f32 %v6827, 1.0
      %v6864 = vadd.f32 %v6829, 1.0
      %v6865 = vadd.f32 %v6831, 1.0
      %v6866 = vadd.f32 %v6833, 1.0
      %v6867 = vadd.f32 %v6835, 1.0
      %v6868 = vmul.f32 %v6836, %v6836
      %v6869 = vmul.f32 %v6837, %v6837
      %v6870 = vmul.f32 %v6838, %v6838
      %v6871 = vmul.f32 %v6839, %v6839
      %v6872 = vmul.f32 %v6840, %v6840
      %v6873 = vmul.f32 %v6841, %v6841
      %v6874 = vmul.f32 %v6842, %v6842
      %v6875 = vmul.f32 %v6843, %v6843
      %v6876 = vmul.f32 %v6844, %v6844
      %v6877 = vmul.f32 %v6845, %v6845
      %v6878 = vmul.f32 %v6846, %v6846
      %v6879 = vmul.f32 %v6847, %v6847
      %v6880 = vmul.f32 %v6848, %v6848
      %v6881 = vmul.f32 %v6849, %v6849
      %v6882 = vmul.f32 %v6850, %v6850
      %v6883 = vmul.f32 %v6851, %v6851
      %v6884 = vmul.f32 %v6852, %v6852
      %v6885 = vmul.f32 %v6853, %v6853
      %v6886 = vmul.f32 %v6854, %v6854
      %v6887 = vmul.f32 %v6855, %v6855
      %v6888 = vmul.f32 %v6856, %v6856
      %v6889 = vmul.f32 %v6857, %v6857
      %v6890 = vmul.f32 %v6858, %v6858
      %v6891 = vmul.f32 %v6859, %v6859
      %v6892 = vmul.f32 %v6860, %v6860
      %v6893 = vmul.f32 %v6861, %v6861
      %v6894 = vmul.f32 %v6862, %v6862
      %v6895 = vmul.f32 %v6863, %v6863
      %v6896 = vmul.f32 %v6864, %v6864
      %v6897 = vmul.f32 %v6865, %v6865
      %v6898 = vmul.f32 %v6866, %v6866
      %v6899 = vmul.f32 %v6867, %v6867
      %v6900 = vsub.f32 %v6868, 1.0
      %v6901 = vsub.f32 %v6869, 1.0
      %v6902 = vsub.f32 %v6870, 1.0
      %v6903 = vsub.f32 %v6871, 1.0
      %v6904 = vsub.f32 %v6872, 1.0
      %v6905 = vsub.f32 %v6873, 1.0
      %v6906 = vsub.f32 %v6874, 1.0
      %v6907 = vsub.f32 %v6875, 1.0
      %v6908 = vsub.f32 %v6876, 1.0
      %v6909 = vsub.f32 %v6877, 1.0
      %v6910 = vsub.f32 %v6878, 1.0
      %v6911 = vsub.f32 %v6879, 1.0
      %v6912 = vsub.f32 %v6880, 1.0
      %v6913 = vsub.f32 %v6881, 1.0
      %v6914 = vsub.f32 %v6882, 1.0
      %v6915 = vsub.f32 %v6883, 1.0
      %v6916 = vsub.f32 %v6884, 1.0
      %v6917 = vsub.f32 %v6885, 1.0
      %v6918 = vsub.f32 %v6886, 1.0
      %v6919 = vsub.f32 %v6887, 1.0
      %v6920 = vsub.f32 %v6888, 1.0
      %v6921 = vsub.f32 %v6889, 1.0
      %v6922 = vsub.f32 %v6890, 1.0
      %v6923 = vsub.f32 %v6891, 1.0
      %v6924 = vsub.f32 %v6892, 1.0
      %v6925 = vsub.f32 %v6893, 1.0
      %v6926 = vsub.f32 %v6894, 1.0
      %v6927 = vsub.f32 %v6895, 1.0
      %v6928 = vsub.f32 %v6896, 1.0
      %v6929 = vsub.f32 %v6897, 1.0
      %v6930 = vsub.f32 %v6898, 1.0
      %v6931 = vsub.f32 %v6899, 1.0
      %v6932 = vmul.f32 %v6708, %v6900
      %v6933 = vmul.f32 %v6709, %v6901
      %v6934 = vmul.f32 %v6710, %v6902
      %v6935 = vmul.f32 %v6711, %v6903
      %v6936 = vmul.f32 %v6712, %v6904
      %v6937 = vmul.f32 %v6713, %v6905
      %v6938 = vmul.f32 %v6714, %v6906
      %v6939 = vmul.f32 %v6715, %v6907
      %v6940 = vmul.f32 %v6716, %v6908
      %v6941 = vmul.f32 %v6717, %v6909
      %v6942 = vmul.f32 %v6718, %v6910
      %v6943 = vmul.f32 %v6719, %v6911
      %v6944 = vmul.f32 %v6720, %v6912
      %v6945 = vmul.f32 %v6721, %v6913
      %v6946 = vmul.f32 %v6722, %v6914
      %v6947 = vmul.f32 %v6723, %v6915
      %v6948 = vmul.f32 %v6724, %v6916
      %v6949 = vmul.f32 %v6725, %v6917
      %v6950 = vmul.f32 %v6726, %v6918
      %v6951 = vmul.f32 %v6727, %v6919
      %v6952 = vmul.f32 %v6728, %v6920
      %v6953 = vmul.f32 %v6729, %v6921
      %v6954 = vmul.f32 %v6730, %v6922
      %v6955 = vmul.f32 %v6731, %v6923
      %v6956 = vmul.f32 %v6732, %v6924
      %v6957 = vmul.f32 %v6733, %v6925
      %v6958 = vmul.f32 %v6734, %v6926
      %v6959 = vmul.f32 %v6735, %v6927
      %v6960 = vmul.f32 %v6736, %v6928
      %v6961 = vmul.f32 %v6737, %v6929
      %v6962 = vmul.f32 %v6738, %v6930
      %v6963 = vmul.f32 %v6739, %v6931
      %v6964 = vadd.f32 %v6868, 1.0
      %v6965 = vadd.f32 %v6869, 1.0
      %v6966 = vadd.f32 %v6870, 1.0
      %v6967 = vadd.f32 %v6871, 1.0
      %v6968 = vadd.f32 %v6872, 1.0
      %v6969 = vadd.f32 %v6873, 1.0
      %v6970 = vadd.f32 %v6874, 1.0
      %v6971 = vadd.f32 %v6875, 1.0
      %v6972 = vadd.f32 %v6876, 1.0
      %v6973 = vadd.f32 %v6877, 1.0
      %v6974 = vadd.f32 %v6878, 1.0
      %v6975 = vadd.f32 %v6879, 1.0
      %v6976 = vadd.f32 %v6880, 1.0
      %v6977 = vadd.f32 %v6881, 1.0
      %v6978 = vadd.f32 %v6882, 1.0
      %v6979 = vadd.f32 %v6883, 1.0
      %v6980 = vadd.f32 %v6884, 1.0
      %v6981 = vadd.f32 %v6885, 1.0
      %v6982 = vadd.f32 %v6886, 1.0
      %v6983 = vadd.f32 %v6887, 1.0
      %v6984 = vadd.f32 %v6888, 1.0
      %v6985 = vadd.f32 %v6889, 1.0
      %v6986 = vadd.f32 %v6890, 1.0
      %v6987 = vadd.f32 %v6891, 1.0
      %v6988 = vadd.f32 %v6892, 1.0
      %v6989 = vadd.f32 %v6893, 1.0
      %v6990 = vadd.f32 %v6894, 1.0
      %v6991 = vadd.f32 %v6895, 1.0
      %v6992 = vadd.f32 %v6896, 1.0
      %v6993 = vadd.f32 %v6897, 1.0
      %v6994 = vadd.f32 %v6898, 1.0
      %v6995 = vadd.f32 %v6899, 1.0
      %v6996 = vrcp.pop %v6964
      %v6997 = vrcp.pop %v6965
      %v6998 = vrcp.pop %v6966
      %v6999 = vrcp.pop %v6967
      %v7000 = vrcp.pop %v6968
      %v7001 = vrcp.pop %v6969
      %v7002 = vrcp.pop %v6970
      %v7003 = vrcp.pop %v6971
      %v7004 = vrcp.pop %v6972
      %v7005 = vrcp.pop %v6973
      %v7006 = vrcp.pop %v6974
      %v7007 = vrcp.pop %v6975
      %v7008 = vrcp.pop %v6976
      %v7009 = vrcp.pop %v6977
      %v7010 = vrcp.pop %v6978
      %v7011 = vrcp.pop %v6979
      %v7012 = vrcp.pop %v6980
      %v7013 = vrcp.pop %v6981
      %v7014 = vrcp.pop %v6982
      %v7015 = vrcp.pop %v6983
      %v7016 = vrcp.pop %v6984
      %v7017 = vrcp.pop %v6985
      %v7018 = vrcp.pop %v6986
      %v7019 = vrcp.pop %v6987
      %v7020 = vrcp.pop %v6988
      %v7021 = vrcp.pop %v6989
      %v7022 = vrcp.pop %v6990
      %v7023 = vrcp.pop %v6991
      %v7024 = vrcp.pop %v6992
      %v7025 = vrcp.pop %v6993
      %v7026 = vrcp.pop %v6994
      %v7027 = vrcp.pop %v6995
      %v7028 = vmul.f32 %v6932, %v6996
      %v7029 = vmul.f32 %v6933, %v6997
      %v7030 = vmul.f32 %v6934, %v6998
      %v7031 = vmul.f32 %v6935, %v6999
      %v7032 = vmul.f32 %v6936, %v7000
      %v7033 = vmul.f32 %v6937, %v7001
      %v7034 = vmul.f32 %v6938, %v7002
      %v7035 = vmul.f32 %v6939, %v7003
      %v7036 = vmul.f32 %v6940, %v7004
      %v7037 = vmul.f32 %v6941, %v7005
      %v7038 = vmul.f32 %v6942, %v7006
      %v7039 = vmul.f32 %v6943, %v7007
      %v7040 = vmul.f32 %v6944, %v7008
      %v7041 = vmul.f32 %v6945, %v7009
      %v7042 = vmul.f32 %v6946, %v7010
      %v7043 = vmul.f32 %v6947, %v7011
      %v7044 = vmul.f32 %v6948, %v7012
      %v7045 = vmul.f32 %v6949, %v7013
      %v7046 = vmul.f32 %v6950, %v7014
      %v7047 = vmul.f32 %v6951, %v7015
      %v7048 = vmul.f32 %v6952, %v7016
      %v7049 = vmul.f32 %v6953, %v7017
      %v7050 = vmul.f32 %v6954, %v7018
      %v7051 = vmul.f32 %v6955, %v7019
      %v7052 = vmul.f32 %v6956, %v7020
      %v7053 = vmul.f32 %v6957, %v7021
      %v7054 = vmul.f32 %v6958, %v7022
      %v7055 = vmul.f32 %v6959, %v7023
      %v7056 = vmul.f32 %v6960, %v7024
      %v7057 = vmul.f32 %v6961, %v7025
      %v7058 = vmul.f32 %v6962, %v7026
      %v7059 = vmul.f32 %v6963, %v7027
      %v7060 = vadd.f32 %v7028, %v280
      %v7061 = vadd.f32 %v7029, %v281
      %v7062 = vadd.f32 %v7030, %v282
      %v7063 = vadd.f32 %v7031, %v283
      %v7064 = vadd.f32 %v7032, %v284
      %v7065 = vadd.f32 %v7033, %v285
      %v7066 = vadd.f32 %v7034, %v286
      %v7067 = vadd.f32 %v7035, %v287
      %v7068 = vadd.f32 %v7036, %v288
      %v7069 = vadd.f32 %v7037, %v289
      %v7070 = vadd.f32 %v7038, %v290
      %v7071 = vadd.f32 %v7039, %v291
      %v7072 = vadd.f32 %v7040, %v292
      %v7073 = vadd.f32 %v7041, %v293
      %v7074 = vadd.f32 %v7042, %v294
      %v7075 = vadd.f32 %v7043, %v295
      %v7076 = vadd.f32 %v7044, %v296
      %v7077 = vadd.f32 %v7045, %v297
      %v7078 = vadd.f32 %v7046, %v298
      %v7079 = vadd.f32 %v7047, %v299
      %v7080 = vadd.f32 %v7048, %v300
      %v7081 = vadd.f32 %v7049, %v301
      %v7082 = vadd.f32 %v7050, %v302
      %v7083 = vadd.f32 %v7051, %v303
      %v7084 = vadd.f32 %v7052, %v304
      %v7085 = vadd.f32 %v7053, %v305
      %v7086 = vadd.f32 %v7054, %v306
      %v7087 = vadd.f32 %v7055, %v307
      %v7088 = vadd.f32 %v7056, %v308
      %v7089 = vadd.f32 %v7057, %v309
      %v7090 = vadd.f32 %v7058, %v310
      %v7091 = vadd.f32 %v7059, %v311
      %7092 = vst [vmem:[%s278] sm:$0xff] %v7060
      %7093 = vst [vmem:[%s278 + $0x8] sm:$0xff] %v7061
      %7094 = vst [vmem:[%s278 + $0x10] sm:$0xff] %v7062
      %7095 = vst [vmem:[%s278 + $0x18] sm:$0xff] %v7063
      %7096 = vst [vmem:[%s278 + $0x20] sm:$0xff] %v7064
      %7097 = vst [vmem:[%s278 + $0x28] sm:$0xff] %v7065
      %7098 = vst [vmem:[%s278 + $0x30] sm:$0xff] %v7066
      %7099 = vst [vmem:[%s278 + $0x38] sm:$0xff] %v7067
      %7100 = vst [vmem:[%s278 + $0x40] sm:$0xff] %v7068
      %7101 = vst [vmem:[%s278 + $0x48] sm:$0xff] %v7069
      %7102 = vst [vmem:[%s278 + $0x50] sm:$0xff] %v7070
      %7103 = vst [vmem:[%s278 + $0x58] sm:$0xff] %v7071
      %7104 = vst [vmem:[%s278 + $0x60] sm:$0xff] %v7072
      %7105 = vst [vmem:[%s278 + $0x68] sm:$0xff] %v7073
      %7106 = vst [vmem:[%s278 + $0x70] sm:$0xff] %v7074
      %7107 = vst [vmem:[%s278 + $0x78] sm:$0xff] %v7075
      %7108 = vst [vmem:[%s278 + $0x80] sm:$0xff] %v7076
      %7109 = vst [vmem:[%s278 + $0x88] sm:$0xff] %v7077
      %7110 = vst [vmem:[%s278 + $0x90] sm:$0xff] %v7078
      %7111 = vst [vmem:[%s278 + $0x98] sm:$0xff] %v7079
      %7112 = vst [vmem:[%s278 + $0xa0] sm:$0xff] %v7080
      %7113 = vst [vmem:[%s278 + $0xa8] sm:$0xff] %v7081
      %7114 = vst [vmem:[%s278 + $0xb0] sm:$0xff] %v7082
      %7115 = vst [vmem:[%s278 + $0xb8] sm:$0xff] %v7083
      %7116 = vst [vmem:[%s278 + $0xc0] sm:$0xff] %v7084
      %7117 = vst [vmem:[%s278 + $0xc8] sm:$0xff] %v7085
      %7118 = vst [vmem:[%s278 + $0xd0] sm:$0xff] %v7086
      %7119 = vst [vmem:[%s278 + $0xd8] sm:$0xff] %v7087
      %7120 = vst [vmem:[%s278 + $0xe0] sm:$0xff] %v7088
      %7121 = vst [vmem:[%s278 + $0xe8] sm:$0xff] %v7089
      %7122 = vst [vmem:[%s278 + $0xf0] sm:$0xff] %v7090
      %7123 = vst [vmem:[%s278 + $0xf8] sm:$0xff] %v7091
      %p7124 = scmp.lt.s32.totalorder %s18, 1
      %s7125 = scalar_select %p7124, %s18, 1
      %s7126 = smul.addr %s7125, 32
      %s7127 = smul.addr %s7126, 8
      %s7128 = scalar_lea.vmem %s7, %s7127
      // Predicated region
      $region49: #{cspblock1_pallas.4} parent=47 // pred_check
        %p7129 = pneg %p188
      $region50: #{cspblock1_pallas.4} parent=47 // pred_check_branch
        %7131 = sbr.rel (%p7129) target = $region52
      $region51: #{cspblock1_pallas.4} parent=47 // pred_region
        _
      $region52: #{cspblock1_pallas.4} parent=47 // pred_fallthru
        _
    $region48: #{cspblock1_pallas.4} parent=5 // pred_fallthru
      _
    %p7132 = scmp.le.s32.totalorder 2, %s13
    // Predicated region
    $region53: #{cspblock1_pallas.4} parent=5 // pred_check
      %p7133 = pneg %p7132
    $region54: #{cspblock1_pallas.4} parent=5 // pred_check_branch
      %7135 = sbr.rel (%p7133) target = $region56
    $region55: #{cspblock1_pallas.4} parent=5 // pred_region
      %s7136 = ssub.s32 %s13, 2
      // Predicated region
      $region57: #{cspblock1_pallas.4} parent=55 // pred_check
        %p7137 = pneg %p194
      $region58: #{cspblock1_pallas.4} parent=55 // pred_check_branch
        %7139 = sbr.rel (%p7137) target = $region60
      $region59: #{cspblock1_pallas.4} parent=55 // pred_region
        %p7140 = scmp.lt.s32.totalorder %s19, 1
        %s7141 = scalar_select %p7140, %s19, 1
        %s7142 = smul.addr %s7141, 32
        %s7143 = smul.addr %s7142, 8
        %s7144 = scalar_lea.vmem %s7, %s7143
      $region60: #{cspblock1_pallas.4} parent=55 // pred_fallthru
        _
    $region56: #{cspblock1_pallas.4} parent=5 // pred_fallthru
      _
  $region6: #{cspblock1_pallas.4} parent=0 // loop_footer
    %s17 = sadd.s32 1, %s13
  $region7: #{cspblock1_pallas.4} parent=0 // loop_footer_branch
    %12 = sbr.rel target = $region3
  $region8: #{cspblock1_pallas.4} parent=0 // loop_exit
    _

</llo_original>
